<compile_context>
chip_gen: v5e
topology: v5e:2x2
jax: 0.10.0
libtpu: 0.0.40
codegen_flags: <defaults>
</compile_context>

<pallas_src>
import numpy as np
import jax
import jax.numpy as jnp
from jax.experimental import pallas as pl
from jax.experimental.pallas import tpu as pltpu


def _round_up(n, m):
    return ((n + m - 1) // m) * m


# ----------------------------------------------------------------------------
# Pallas kernel: DDNN forward for one (TB, Np, Np) block of padded fields.
# ----------------------------------------------------------------------------
def ddnn_kernel(x_ref, cphi_ref, sphi_ref,
                mr_ref, mi_ref, mtr_ref, mti_ref,
                or_ref, oi_ref):
    f32 = jnp.float32
    bf16 = jnp.bfloat16
    tb, npad, _ = x_ref.shape

    # Incoherent_Int2Complex (amp = sqrt(I), imag = 0) + PhaseMask (field = amp*e^{i*phi}).
    # cphi/sphi are bf16 constants; the multiply promotes to f32 (v5e has no bf16 VALU),
    # then a single bf16 cast feeds the MXU.
    amp = jnp.sqrt(x_ref[...])                              # f32 (TB, Np, Np)
    fr = (amp * cphi_ref[...]).astype(bf16)
    fi = (amp * sphi_ref[...]).astype(bf16)

    mr, mi = mr_ref[...], mi_ref[...]                       # M      (bf16, Np x Np)
    mtr, mti = mtr_ref[...], mti_ref[...]                   # M^T    (bf16, Np x Np)

    # ---- Right multiply: T = F @ M^T, batched by stacking planes along sublanes. ----
    fr2 = fr.reshape(tb * npad, npad)
    fi2 = fi.reshape(tb * npad, npad)
    tr = (jnp.dot(fr2, mtr, preferred_element_type=f32)
          - jnp.dot(fi2, mti, preferred_element_type=f32))
    ti = (jnp.dot(fr2, mti, preferred_element_type=f32)
          + jnp.dot(fi2, mtr, preferred_element_type=f32))
    tr = tr.astype(bf16)                                    # (TB*Np, Np)
    ti = ti.astype(bf16)

    # ---- Left multiply per plane: out_b = M @ T_b (static unroll, TB is small). ----
    for b in range(tb):
        rows = slice(b * npad, (b + 1) * npad)
        trb = tr[rows, :]
        tib = ti[rows, :]
        # Lane-dense (multiple-of-128) unmasked stores thanks to the padded Np.
        or_ref[b] = (jnp.dot(mr, trb, preferred_element_type=f32)
                     - jnp.dot(mi, tib, preferred_element_type=f32))
        oi_ref[b] = (jnp.dot(mr, tib, preferred_element_type=f32)
                     + jnp.dot(mi, trb, preferred_element_type=f32))


# ----------------------------------------------------------------------------
# Parameter / constant setup (numpy float64 + a little JAX glue).
# ----------------------------------------------------------------------------
def make_shifted_dft_matrices(n):
    """A = fftshift.DFT.ifftshift, B = ifftshift.IDFT.fftshift (1-D, as matrices)."""
    eye = np.eye(n)
    a = np.fft.fftshift(np.fft.fft(np.fft.ifftshift(eye, axes=0), axis=0), axes=0)
    b = np.fft.ifftshift(np.fft.ifft(np.fft.fftshift(eye, axes=0), axis=0), axes=0)
    assert np.allclose(a, a.T) and np.allclose(b, b.T)  # even-N symmetry used below
    return a, b


def make_transfer_function(n, pixel_size, focal_length, wave_lambda):
    """Full 2-D Fresnel transfer function (used only by the numpy reference)."""
    k = 2.0 * np.pi / wave_lambda
    df1 = 1.0 / (n * pixel_size)
    f = (np.arange(n) - n // 2) * df1
    fx, fy = np.meshgrid(f, f)
    q2 = np.exp(-1j * (np.pi ** 2) * 2.0 * focal_length / k * (fx ** 2 + fy ** 2))
    return q2, df1


def build_ddnn_params(whole_dim, phase_dim, pixel_size, focal_length, wave_lambda, key):
    n = whole_dim
    n_pad = _round_up(n, 128)          # 250 -> 256 : MXU / (8,128) lane alignment
    pad = n_pad - n

    a, b = make_shifted_dft_matrices(n)

    # 1-D Fresnel factor: Q2[i, j] = q1d[i] * q1d[j]  (rank-1 / separable).
    k_wave = 2.0 * np.pi / wave_lambda
    df1 = 1.0 / (n * pixel_size)
    f = (np.arange(n) - n // 2) * df1
    q1d = np.exp(-1j * (np.pi ** 2) * 2.0 * focal_length / k_wave * (f ** 2))

    # ft2 / ift2 scale factors; their product is exactly 1.0 here, but fold generically.
    scale = (pixel_size ** 2) * ((n * df1) ** 2)

    # Collapsed propagation matrix: out = M F M^T with M = B diag(q) A (complex128).
    m0 = (b * q1d[None, :]) @ a
    mt = m0.T                          # = A diag(q) B  (A, B symmetric for even n)
    m = m0 * scale                     # fold the scalar into the left factor only

    def pad2(z):
        return np.pad(z, ((0, pad), (0, pad)))
    # Padded rows/cols of M / M^T are zero, so zero-padding cos/sin of phi (instead of
    # cos(0)=1) and zero-padding the input are harmless: the top-left NxN of M F M^T
    # equals the unpadded result.
    m, mt = pad2(m), pad2(mt)

    # PhaseMask parameters: phase = sigmoid(w_p) * 2*pi, zero-padded phase_dim -> n.
    w_p = jax.random.normal(key, (phase_dim, phase_dim), dtype=jnp.float32)
    phase = jax.nn.sigmoid(w_p) * (2.0 * np.pi)
    p0 = (n - phase_dim) // 2
    phi_n = jnp.pad(phase, ((p0, n - phase_dim - p0), (p0, n - phase_dim - p0)))

    # cos/sin hoisted out of the kernel (phi constant across the batch); bf16 storage
    # since they only feed bf16 MXU operands.
    bf16 = jnp.bfloat16
    cphi = jnp.pad(jnp.cos(phi_n), ((0, pad), (0, pad))).astype(bf16)
    sphi = jnp.pad(jnp.sin(phi_n), ((0, pad), (0, pad))).astype(bf16)

    return dict(
        n=n, n_pad=n_pad,
        cphi=cphi, sphi=sphi,
        mr=jnp.asarray(m.real, bf16), mi=jnp.asarray(m.imag, bf16),
        mtr=jnp.asarray(mt.real, bf16), mti=jnp.asarray(mt.imag, bf16),
        phi=phi_n,                     # unpadded (n, n) phase, for the reference
    )


# ----------------------------------------------------------------------------
# Wrapper around pallas_call.
# ----------------------------------------------------------------------------
def ddnn_forward(x, params, tb=2):
    n, n_pad = params["n"], params["n_pad"]
    bsz, c, _, _ = x.shape
    pad = n_pad - n

    # Pad batch up to a multiple of the per-step block TB (cropped after the call).
    b_pad = _round_up(bsz, tb)
    x_pad = jnp.pad(x, ((0, b_pad - bsz), (0, 0), (0, pad), (0, pad)))

    img_spec = pl.BlockSpec((tb, None, n_pad, n_pad), lambda bb, cc: (bb, cc, 0, 0))
    mat_spec = pl.BlockSpec((n_pad, n_pad), lambda bb, cc: (0, 0))

    out_r, out_i = pl.pallas_call(
        ddnn_kernel,
        out_shape=(jax.ShapeDtypeStruct((b_pad, c, n_pad, n_pad), jnp.float32),
                   jax.ShapeDtypeStruct((b_pad, c, n_pad, n_pad), jnp.float32)),
        grid_spec=pltpu.PrefetchScalarGridSpec(
            num_scalar_prefetch=0,
            grid=(b_pad // tb, c),
            in_specs=[img_spec] + [mat_spec] * 6,
            out_specs=[img_spec, img_spec],
        ),
        compiler_params=pltpu.CompilerParams(
            dimension_semantics=("parallel", "parallel")),
    )(
        x_pad,
        params["cphi"], params["sphi"],
        params["mr"], params["mi"], params["mtr"], params["mti"],
    )
    return jax.lax.complex(out_r[:bsz, :, :n, :n], out_i[:bsz, :, :n, :n])


# ----------------------------------------------------------------------------
# Host (numpy, float64) reference for a correctness sanity check.
# ----------------------------------------------------------------------------
def ddnn_reference_np(x, phi, pixel_size, focal_length, wave_lambda):
    x = np.asarray(x, np.float64)
    phi = np.asarray(phi, np.float64)
    n = x.shape[-1]
    q2, df1 = make_transfer_function(n, pixel_size, focal_length, wave_lambda)
    field = np.sqrt(x) * np.exp(1j * phi)
    g = np.fft.fftshift(np.fft.fft2(np.fft.ifftshift(field, axes=(-2, -1))),
                        axes=(-2, -1)) * (pixel_size ** 2)
    h = q2 * g
    out = np.fft.ifftshift(np.fft.ifft2(np.fft.fftshift(h, axes=(-2, -1))),
                           axes=(-2, -1)) * ((n * df1) ** 2)
    return out


if __name__ == "__main__":
    # Shapes follow the original script (x = torch.ones(1, 1, 250, 250)); 250 is padded
    # to 256 inside the wrapper.  batch=4 with TB=2 gives a (2, 1) grid: blocked batch
    # for grid-overhead amortization AND >= 2 parallel steps for v7x's two TensorCores.
    batch = 4
    channels = 1
    whole_dim = 250
    phase_dim = 100
    pixel_size = 8e-6        # 8 um pixels
    focal_length = 0.1       # 10 cm
    wave_lambda = 532e-9     # green laser

    key = jax.random.PRNGKey(0)
    k_x, k_p = jax.random.split(key)

    x = jax.random.uniform(k_x, (batch, channels, whole_dim, whole_dim),
                           dtype=jnp.float32, minval=0.0, maxval=1.0)

    params = build_ddnn_params(whole_dim, phase_dim, pixel_size,
                               focal_length, wave_lambda, k_p)

    out = jax.block_until_ready(ddnn_forward(x, params, tb=2))

    ref = ddnn_reference_np(x, params["phi"], pixel_size, focal_length, wave_lambda)

    err = np.abs(np.asarray(out) - ref)
    scale = float(np.max(np.abs(ref)))
    max_err = float(np.max(err))
    rms_err = float(np.sqrt(np.mean(err ** 2)))
    # Tolerances: bf16-operand DFT-as-matmul carries ~1% relative rounding at N=256;
    # structural bugs (wrong shift / transpose / separability fold) show as O(1)
    # relative error, so these bounds still catch real mistakes.
    if not (max_err <= 7e-2 * max(scale, 1.0) and rms_err <= 2e-2 * max(scale, 1.0)):
        raise AssertionError(
            f"Pallas DDNN mismatch: max_err={max_err}, rms_err={rms_err}, scale={scale}")

    print("KERNEL_OK")
</pallas_src>

<mosaic_0001>
module attributes {stable_mosaic.version = 11 : i64} {
  func.func @ddnn_kernel(%arg0: i32, %arg1: i32, %arg2: memref<2x1x256x256xf32, #tpu.memory_space<vmem>>, %arg3: memref<256x256xbf16, #tpu.memory_space<vmem>>, %arg4: memref<256x256xbf16, #tpu.memory_space<vmem>>, %arg5: memref<256x256xbf16, #tpu.memory_space<vmem>>, %arg6: memref<256x256xbf16, #tpu.memory_space<vmem>>, %arg7: memref<256x256xbf16, #tpu.memory_space<vmem>>, %arg8: memref<256x256xbf16, #tpu.memory_space<vmem>>, %arg9: memref<2x1x256x256xf32, #tpu.memory_space<vmem>>, %arg10: memref<2x1x256x256xf32, #tpu.memory_space<vmem>>) attributes {dimension_semantics = [#tpu.dimension_semantics<parallel>, #tpu.dimension_semantics<parallel>], iteration_bounds = array<i64: 2, 1>, scalar_prefetch = 0 : i64, scratch_operands = 0 : i64, tpu.core_type = #tpu.core_type<tc>, window_params = [{transform_indices = @transform_0, window_bounds = array<i64: 2, 1, 256, 256>}, {pipeline_mode = #tpu.pipeline_mode<synchronous>, transform_indices = @transform_1, window_bounds = array<i64: 256, 256>}, {pipeline_mode = #tpu.pipeline_mode<synchronous>, transform_indices = @transform_2, window_bounds = array<i64: 256, 256>}, {pipeline_mode = #tpu.pipeline_mode<synchronous>, transform_indices = @transform_3, window_bounds = array<i64: 256, 256>}, {pipeline_mode = #tpu.pipeline_mode<synchronous>, transform_indices = @transform_4, window_bounds = array<i64: 256, 256>}, {pipeline_mode = #tpu.pipeline_mode<synchronous>, transform_indices = @transform_5, window_bounds = array<i64: 256, 256>}, {pipeline_mode = #tpu.pipeline_mode<synchronous>, transform_indices = @transform_6, window_bounds = array<i64: 256, 256>}, {transform_indices = @transform_7, window_bounds = array<i64: 2, 1, 256, 256>}, {transform_indices = @transform_8, window_bounds = array<i64: 2, 1, 256, 256>}]} {
    %c0 = arith.constant 0 : index
    %c0_0 = arith.constant 0 : index
    %c0_1 = arith.constant 0 : index
    %c0_2 = arith.constant 0 : index
    %0 = vector.load %arg2[%c0, %c0_0, %c0_1, %c0_2] : memref<2x1x256x256xf32, #tpu.memory_space<vmem>>, vector<2x1x256x256xf32>
    %1 = vector.shape_cast %0 : vector<2x1x256x256xf32> to vector<2x256x256xf32>
    %2 = math.sqrt %1 : vector<2x256x256xf32>
    %c0_3 = arith.constant 0 : index
    %c0_4 = arith.constant 0 : index
    %3 = vector.load %arg3[%c0_3, %c0_4] : memref<256x256xbf16, #tpu.memory_space<vmem>>, vector<256x256xbf16>
    %4 = arith.extf %3 : vector<256x256xbf16> to vector<256x256xf32>
    %5 = vector.shape_cast %4 : vector<256x256xf32> to vector<1x256x256xf32>
    %6 = vector.broadcast %5 : vector<1x256x256xf32> to vector<2x256x256xf32>
    %7 = arith.mulf %2, %6 : vector<2x256x256xf32>
    %8 = arith.truncf %7 : vector<2x256x256xf32> to vector<2x256x256xbf16>
    %c0_5 = arith.constant 0 : index
    %c0_6 = arith.constant 0 : index
    %9 = vector.load %arg4[%c0_5, %c0_6] : memref<256x256xbf16, #tpu.memory_space<vmem>>, vector<256x256xbf16>
    %10 = arith.extf %9 : vector<256x256xbf16> to vector<256x256xf32>
    %11 = vector.shape_cast %10 : vector<256x256xf32> to vector<1x256x256xf32>
    %12 = vector.broadcast %11 : vector<1x256x256xf32> to vector<2x256x256xf32>
    %13 = arith.mulf %2, %12 : vector<2x256x256xf32>
    %14 = arith.truncf %13 : vector<2x256x256xf32> to vector<2x256x256xbf16>
    %c0_7 = arith.constant 0 : index
    %c0_8 = arith.constant 0 : index
    %15 = vector.load %arg5[%c0_7, %c0_8] : memref<256x256xbf16, #tpu.memory_space<vmem>>, vector<256x256xbf16>
    %c0_9 = arith.constant 0 : index
    %c0_10 = arith.constant 0 : index
    %16 = vector.load %arg6[%c0_9, %c0_10] : memref<256x256xbf16, #tpu.memory_space<vmem>>, vector<256x256xbf16>
    %c0_11 = arith.constant 0 : index
    %c0_12 = arith.constant 0 : index
    %17 = vector.load %arg7[%c0_11, %c0_12] : memref<256x256xbf16, #tpu.memory_space<vmem>>, vector<256x256xbf16>
    %c0_13 = arith.constant 0 : index
    %c0_14 = arith.constant 0 : index
    %18 = vector.load %arg8[%c0_13, %c0_14] : memref<256x256xbf16, #tpu.memory_space<vmem>>, vector<256x256xbf16>
    %19 = vector.shape_cast %8 : vector<2x256x256xbf16> to vector<512x256xbf16>
    %20 = vector.shape_cast %14 : vector<2x256x256xbf16> to vector<512x256xbf16>
    %cst = arith.constant dense<0.000000e+00> : vector<512x256xf32>
    %21 = tpu.matmul %19, %17, %cst {dimension_numbers = #tpu.dot_dimension_numbers<[1], [0], [0], [1], [0, 0, 1, 1], [], []>} : vector<512x256xbf16>, vector<256x256xbf16>, vector<512x256xf32> -> vector<512x256xf32>
    %cst_15 = arith.constant dense<0.000000e+00> : vector<512x256xf32>
    %22 = tpu.matmul %20, %18, %cst_15 {dimension_numbers = #tpu.dot_dimension_numbers<[1], [0], [0], [1], [0, 0, 1, 1], [], []>} : vector<512x256xbf16>, vector<256x256xbf16>, vector<512x256xf32> -> vector<512x256xf32>
    %23 = arith.subf %21, %22 : vector<512x256xf32>
    %cst_16 = arith.constant dense<0.000000e+00> : vector<512x256xf32>
    %24 = tpu.matmul %19, %18, %cst_16 {dimension_numbers = #tpu.dot_dimension_numbers<[1], [0], [0], [1], [0, 0, 1, 1], [], []>} : vector<512x256xbf16>, vector<256x256xbf16>, vector<512x256xf32> -> vector<512x256xf32>
    %cst_17 = arith.constant dense<0.000000e+00> : vector<512x256xf32>
    %25 = tpu.matmul %20, %17, %cst_17 {dimension_numbers = #tpu.dot_dimension_numbers<[1], [0], [0], [1], [0, 0, 1, 1], [], []>} : vector<512x256xbf16>, vector<256x256xbf16>, vector<512x256xf32> -> vector<512x256xf32>
    %26 = arith.addf %24, %25 : vector<512x256xf32>
    %27 = arith.truncf %23 : vector<512x256xf32> to vector<512x256xbf16>
    %28 = arith.truncf %26 : vector<512x256xf32> to vector<512x256xbf16>
    %29 = vector.extract_strided_slice %27 {offsets = [0, 0], sizes = [256, 256], strides = [1, 1]} : vector<512x256xbf16> to vector<256x256xbf16>
    %30 = vector.extract_strided_slice %28 {offsets = [0, 0], sizes = [256, 256], strides = [1, 1]} : vector<512x256xbf16> to vector<256x256xbf16>
    %cst_18 = arith.constant dense<0.000000e+00> : vector<256x256xf32>
    %31 = tpu.matmul %15, %29, %cst_18 {dimension_numbers = #tpu.dot_dimension_numbers<[1], [0], [0], [1], [0, 0, 1, 1], [], []>} : vector<256x256xbf16>, vector<256x256xbf16>, vector<256x256xf32> -> vector<256x256xf32>
    %cst_19 = arith.constant dense<0.000000e+00> : vector<256x256xf32>
    %32 = tpu.matmul %16, %30, %cst_19 {dimension_numbers = #tpu.dot_dimension_numbers<[1], [0], [0], [1], [0, 0, 1, 1], [], []>} : vector<256x256xbf16>, vector<256x256xbf16>, vector<256x256xf32> -> vector<256x256xf32>
    %33 = arith.subf %31, %32 : vector<256x256xf32>
    %c0_20 = arith.constant 0 : index
    %c0_21 = arith.constant 0 : index
    %c0_22 = arith.constant 0 : index
    %c0_23 = arith.constant 0 : index
    %34 = vector.load %arg9[%c0_20, %c0_21, %c0_22, %c0_23] : memref<2x1x256x256xf32, #tpu.memory_space<vmem>>, vector<1x1x256x256xf32>
    %35 = vector.shape_cast %34 : vector<1x1x256x256xf32> to vector<256x256xf32>
    %36 = vector.shape_cast %33 : vector<256x256xf32> to vector<1x1x256x256xf32>
    tpu.vector_store %arg9[%c0_20, %c0_21, %c0_22, %c0_23], %36 {strides = array<i32>} : memref<2x1x256x256xf32, #tpu.memory_space<vmem>>, vector<1x1x256x256xf32>,
    %cst_24 = arith.constant dense<0.000000e+00> : vector<256x256xf32>
    %37 = tpu.matmul %15, %30, %cst_24 {dimension_numbers = #tpu.dot_dimension_numbers<[1], [0], [0], [1], [0, 0, 1, 1], [], []>} : vector<256x256xbf16>, vector<256x256xbf16>, vector<256x256xf32> -> vector<256x256xf32>
    %cst_25 = arith.constant dense<0.000000e+00> : vector<256x256xf32>
    %38 = tpu.matmul %16, %29, %cst_25 {dimension_numbers = #tpu.dot_dimension_numbers<[1], [0], [0], [1], [0, 0, 1, 1], [], []>} : vector<256x256xbf16>, vector<256x256xbf16>, vector<256x256xf32> -> vector<256x256xf32>
    %39 = arith.addf %37, %38 : vector<256x256xf32>
    %c0_26 = arith.constant 0 : index
    %c0_27 = arith.constant 0 : index
    %c0_28 = arith.constant 0 : index
    %c0_29 = arith.constant 0 : index
    %40 = vector.load %arg10[%c0_26, %c0_27, %c0_28, %c0_29] : memref<2x1x256x256xf32, #tpu.memory_space<vmem>>, vector<1x1x256x256xf32>
    %41 = vector.shape_cast %40 : vector<1x1x256x256xf32> to vector<256x256xf32>
    %42 = vector.shape_cast %39 : vector<256x256xf32> to vector<1x1x256x256xf32>
    tpu.vector_store %arg10[%c0_26, %c0_27, %c0_28, %c0_29], %42 {strides = array<i32>} : memref<2x1x256x256xf32, #tpu.memory_space<vmem>>, vector<1x1x256x256xf32>,
    %43 = vector.extract_strided_slice %27 {offsets = [256, 0], sizes = [256, 256], strides = [1, 1]} : vector<512x256xbf16> to vector<256x256xbf16>
    %44 = vector.extract_strided_slice %28 {offsets = [256, 0], sizes = [256, 256], strides = [1, 1]} : vector<512x256xbf16> to vector<256x256xbf16>
    %cst_30 = arith.constant dense<0.000000e+00> : vector<256x256xf32>
    %45 = tpu.matmul %15, %43, %cst_30 {dimension_numbers = #tpu.dot_dimension_numbers<[1], [0], [0], [1], [0, 0, 1, 1], [], []>} : vector<256x256xbf16>, vector<256x256xbf16>, vector<256x256xf32> -> vector<256x256xf32>
    %cst_31 = arith.constant dense<0.000000e+00> : vector<256x256xf32>
    %46 = tpu.matmul %16, %44, %cst_31 {dimension_numbers = #tpu.dot_dimension_numbers<[1], [0], [0], [1], [0, 0, 1, 1], [], []>} : vector<256x256xbf16>, vector<256x256xbf16>, vector<256x256xf32> -> vector<256x256xf32>
    %47 = arith.subf %45, %46 : vector<256x256xf32>
    %c1 = arith.constant 1 : index
    %c0_32 = arith.constant 0 : index
    %c0_33 = arith.constant 0 : index
    %c0_34 = arith.constant 0 : index
    %48 = vector.load %arg9[%c1, %c0_32, %c0_33, %c0_34] : memref<2x1x256x256xf32, #tpu.memory_space<vmem>>, vector<1x1x256x256xf32>
    %49 = vector.shape_cast %48 : vector<1x1x256x256xf32> to vector<256x256xf32>
    %50 = vector.shape_cast %47 : vector<256x256xf32> to vector<1x1x256x256xf32>
    tpu.vector_store %arg9[%c1, %c0_32, %c0_33, %c0_34], %50 {strides = array<i32>} : memref<2x1x256x256xf32, #tpu.memory_space<vmem>>, vector<1x1x256x256xf32>,
    %cst_35 = arith.constant dense<0.000000e+00> : vector<256x256xf32>
    %51 = tpu.matmul %15, %44, %cst_35 {dimension_numbers = #tpu.dot_dimension_numbers<[1], [0], [0], [1], [0, 0, 1, 1], [], []>} : vector<256x256xbf16>, vector<256x256xbf16>, vector<256x256xf32> -> vector<256x256xf32>
    %cst_36 = arith.constant dense<0.000000e+00> : vector<256x256xf32>
    %52 = tpu.matmul %16, %43, %cst_36 {dimension_numbers = #tpu.dot_dimension_numbers<[1], [0], [0], [1], [0, 0, 1, 1], [], []>} : vector<256x256xbf16>, vector<256x256xbf16>, vector<256x256xf32> -> vector<256x256xf32>
    %53 = arith.addf %51, %52 : vector<256x256xf32>
    %c1_37 = arith.constant 1 : index
    %c0_38 = arith.constant 0 : index
    %c0_39 = arith.constant 0 : index
    %c0_40 = arith.constant 0 : index
    %54 = vector.load %arg10[%c1_37, %c0_38, %c0_39, %c0_40] : memref<2x1x256x256xf32, #tpu.memory_space<vmem>>, vector<1x1x256x256xf32>
    %55 = vector.shape_cast %54 : vector<1x1x256x256xf32> to vector<256x256xf32>
    %56 = vector.shape_cast %53 : vector<256x256xf32> to vector<1x1x256x256xf32>
    tpu.vector_store %arg10[%c1_37, %c0_38, %c0_39, %c0_40], %56 {strides = array<i32>} : memref<2x1x256x256xf32, #tpu.memory_space<vmem>>, vector<1x1x256x256xf32>,
    return
  }
  func.func @transform_0(%arg0: i32, %arg1: i32) -> (i32, i32, i32, i32) {
    %c0_i32 = arith.constant 0 : i32
    %c0_i32_0 = arith.constant 0 : i32
    %c0_i32_1 = arith.constant 0 : i32
    return %arg0, %arg1, %c0_i32, %c0_i32_0 : i32, i32, i32, i32
  }
  func.func @transform_1(%arg0: i32, %arg1: i32) -> (i32, i32) {
    %c0_i32 = arith.constant 0 : i32
    %c0_i32_0 = arith.constant 0 : i32
    %c0_i32_1 = arith.constant 0 : i32
    return %c0_i32, %c0_i32_0 : i32, i32
  }
  func.func @transform_2(%arg0: i32, %arg1: i32) -> (i32, i32) {
    %c0_i32 = arith.constant 0 : i32
    %c0_i32_0 = arith.constant 0 : i32
    %c0_i32_1 = arith.constant 0 : i32
    return %c0_i32, %c0_i32_0 : i32, i32
  }
  func.func @transform_3(%arg0: i32, %arg1: i32) -> (i32, i32) {
    %c0_i32 = arith.constant 0 : i32
    %c0_i32_0 = arith.constant 0 : i32
    %c0_i32_1 = arith.constant 0 : i32
    return %c0_i32, %c0_i32_0 : i32, i32
  }
  func.func @transform_4(%arg0: i32, %arg1: i32) -> (i32, i32) {
    %c0_i32 = arith.constant 0 : i32
    %c0_i32_0 = arith.constant 0 : i32
    %c0_i32_1 = arith.constant 0 : i32
    return %c0_i32, %c0_i32_0 : i32, i32
  }
  func.func @transform_5(%arg0: i32, %arg1: i32) -> (i32, i32) {
    %c0_i32 = arith.constant 0 : i32
    %c0_i32_0 = arith.constant 0 : i32
    %c0_i32_1 = arith.constant 0 : i32
    return %c0_i32, %c0_i32_0 : i32, i32
  }
  func.func @transform_6(%arg0: i32, %arg1: i32) -> (i32, i32) {
    %c0_i32 = arith.constant 0 : i32
    %c0_i32_0 = arith.constant 0 : i32
    %c0_i32_1 = arith.constant 0 : i32
    return %c0_i32, %c0_i32_0 : i32, i32
  }
  func.func @transform_7(%arg0: i32, %arg1: i32) -> (i32, i32, i32, i32) {
    %c0_i32 = arith.constant 0 : i32
    %c0_i32_0 = arith.constant 0 : i32
    %c0_i32_1 = arith.constant 0 : i32
    return %arg0, %arg1, %c0_i32, %c0_i32_0 : i32, i32, i32, i32
  }
  func.func @transform_8(%arg0: i32, %arg1: i32) -> (i32, i32, i32, i32) {
    %c0_i32 = arith.constant 0 : i32
    %c0_i32_0 = arith.constant 0 : i32
    %c0_i32_1 = arith.constant 0 : i32
    return %arg0, %arg1, %c0_i32, %c0_i32_0 : i32, i32, i32, i32
  }
}

</mosaic_0001>

<llo_original>
// kernel: tpu_custom_call.1
$region0: #{tpu_custom_call.1}
  #allocation0 [shape = 'u32[]', space=smem, size = 0x4, offset = 0x4, fixed_abs, tag = 'smem constant byte address 0x4 - core index']
  #allocation1 [shape = 'u32[72,128]{1,0:T(1,128)}', space=vmem, size = 0x9000, scoped, tag = 'internal scratch']
  %s0 = inlined_call_operand.hbm [shape: f32[4,1,256,256], index: 0, kind: input, shape index: {}]
  %s1 = inlined_call_operand.hbm [shape: bf16[256,256], index: 1, kind: input, shape index: {}]
  %s2 = inlined_call_operand.hbm [shape: bf16[256,256], index: 2, kind: input, shape index: {}]
  %s3 = inlined_call_operand.hbm [shape: bf16[256,256], index: 3, kind: input, shape index: {}]
  %s4 = inlined_call_operand.hbm [shape: bf16[256,256], index: 4, kind: input, shape index: {}]
  %s5 = inlined_call_operand.hbm [shape: bf16[256,256], index: 5, kind: input, shape index: {}]
  %s6 = inlined_call_operand.hbm [shape: bf16[256,256], index: 6, kind: input, shape index: {}]
  %s7 = inlined_call_operand.hbm [shape: f32[4,1,256,256], index: 7, kind: output, shape index: {0}]
  %s8 = inlined_call_operand.hbm [shape: f32[4,1,256,256], index: 8, kind: output, shape index: {1}]
  %9 = xla_tuple %s7, %s8
  %s10 = sld [smem:[#allocation0]]
  $region97: #{tpu_custom_call.1} parent=0
    _
  %s12 = ssub.s32 1, %s10
  %s13 = scalar_select 0, %s12, %s10
  $region1: #{tpu_custom_call.1} parent=0
    #allocation2 [shape = 'u8[1048576]{0}', space=vmem, size = 0x100000, scoped, tag = 'input window, operand 0']
    #allocation3 [shape = 's32[2]{0}', space=sflag, size = 0x8, scoped, tag = 'scoped memory for tpu_custom_call.1']
    #allocation4 [shape = 's32[2]{0}', space=sflag, size = 0x8, scoped, tag = 'scoped memory for tpu_custom_call.1']
    #allocation5 [shape = 'u8[131072]{0}', space=vmem, size = 0x20000, scoped, tag = 'input window, operand 1, single buffered']
    #allocation6 [shape = 's32[1]{0}', space=sflag, size = 0x4, scoped, tag = 'scoped memory for tpu_custom_call.1']
    #allocation7 [shape = 'u8[131072]{0}', space=vmem, size = 0x20000, scoped, tag = 'input window, operand 2, single buffered']
    #allocation8 [shape = 'u8[131072]{0}', space=vmem, size = 0x20000, scoped, tag = 'input window, operand 3, single buffered']
    #allocation9 [shape = 's32[1]{0}', space=sflag, size = 0x4, scoped, tag = 'scoped memory for tpu_custom_call.1']
    #allocation10 [shape = 'u8[131072]{0}', space=vmem, size = 0x20000, scoped, tag = 'input window, operand 4, single buffered']
    #allocation11 [shape = 'u8[131072]{0}', space=vmem, size = 0x20000, scoped, tag = 'input window, operand 5, single buffered']
    #allocation12 [shape = 's32[1]{0}', space=sflag, size = 0x4, scoped, tag = 'scoped memory for tpu_custom_call.1']
    #allocation13 [shape = 'u8[131072]{0}', space=vmem, size = 0x20000, scoped, tag = 'input window, operand 6, single buffered']
    #allocation14 [shape = 'u8[1048576]{0}', space=vmem, size = 0x100000, scoped, tag = 'output window, operand 0']
    #allocation15 [shape = 'u8[1048576]{0}', space=vmem, size = 0x100000, scoped, tag = 'output window, operand 1']
    #allocation16 [shape = 's32[2]{0}', space=sflag, size = 0x8, scoped, tag = 'scoped memory for tpu_custom_call.1']
    %14 = vsyncpa [#allocation3], 0
    %s15 = scalar_lea.sflag [#allocation3], 1
    %16 = vsyncpa %s15, 0
    %17 = vsyncpa [#allocation6], 0
    %18 = vsyncpa [#allocation9], 0
    %19 = vsyncpa [#allocation12], 0
    %20 = vsyncpa [#allocation4], 0
    %s21 = scalar_lea.sflag [#allocation4], 1
    %22 = vsyncpa %s21, 0
    %23 = vsyncpa [#allocation16], 0
    %s24 = scalar_lea.sflag [#allocation16], 1
    %25 = vsyncpa %s24, 0
    loop: start=0, step=1, limit=4
    $region2: #{tpu_custom_call.1} parent=1 // loop_pre_header
      _
    $region3: #{tpu_custom_call.1} parent=1 // loop_header
      %s27 = sphi 0, %s31
      %p28 = scmp.ge.s32.totalorder %s27, 4
      %s34 = sphi 0, %s46
      %s35 = sphi 0, %s42
      %s36 = sphi 0, %s34
      %s37 = sphi 0, %s35
      %s38 = sphi 0, %s36
      %s39 = sphi 0, %s37
      %s51 = sphi 0, %s53
      %s54 = sphi 0, %s51
      %s55 = sphi 0, %s54
      %s71 = sphi 0, %s55
      %s75 = sphi 0, %s75
      %s77 = sphi 0, %s75
      %s78 = sphi 0, %s77
      %s92 = sphi 0, %s78
      %s96 = sphi 0, %s96
      %s98 = sphi 0, %s96
      %s99 = sphi 0, %s98
      %s113 = sphi 0, %s99
      %s117 = sphi 0, %s117
      %s119 = sphi 0, %s117
      %s120 = sphi 0, %s119
      %s134 = sphi 0, %s120
      %s138 = sphi 0, %s138
      %s140 = sphi 0, %s138
      %s141 = sphi 0, %s140
      %s155 = sphi 0, %s141
      %s159 = sphi 0, %s159
      %s161 = sphi 0, %s159
      %s162 = sphi 0, %s161
      %s176 = sphi 0, %s162
      %s180 = sphi 0, %s180
      %s182 = sphi 0, %s180
      %s183 = sphi 0, %s182
      %s197 = sphi 0, %s183
      %s205 = sphi 0, %s207
      %s208 = sphi 0, %s205
      %s209 = sphi 0, %s208
      %s225 = sphi 0, %s209
      %s233 = sphi 0, %s235
      %s236 = sphi 0, %s233
      %s237 = sphi 0, %s236
      %s253 = sphi 0, %s237
    $region4: #{tpu_custom_call.1} parent=1 // loop_header_branch
      %30 = sbr.rel (%p28) target = $region8
    $region5: #{tpu_custom_call.1} parent=1 // loop_body
      %s32 = ssub.s32 %s27, 1
      %s33 = ssub.s32 %s27, 2
      %s40 = sadd.s32 1, %s35
      %p41 = scmp.ge.s32.totalorder %s40, 1
      %s42 = scalar_select %p41, 0, %s40
      %s43 = sadd.s32 1, %s34
      %s44 = scalar_select %p41, %s43, %s34
      %p45 = scmp.ge.s32.totalorder %s44, 2
      %s46 = scalar_select %p45, 0, %s44
      %s47 = ssub.s32 %s34, %s46
      %s48 = ssub.s32 %s35, %s42
      %s49 = sor.u32 %s47, %s48
      %p50 = scmp.eq.s32.totalorder %s49, 0
      %s52 = sadd.s32 %s51, 1
      %s53 = scalar_select %p50, %s51, %s52
      %p56 = pneg %p50
      %p57 = scmp.eq.s32.totalorder %s27, 1
      %p58 = por %p56, %p57
      %p59 = scmp.ne.s32.totalorder %s51, %s54
      %p60 = scmp.eq.s32.totalorder %s27, 0
      %p61 = por %p59, %p60
      %p62 = scmp.ne.s32.totalorder %s51, %s54
      %p63 = scmp.eq.s32.totalorder %s32, 1
      %p64 = por %p62, %p63
      %p65 = scmp.ne.s32.totalorder %s54, %s55
      %p66 = scmp.eq.s32.totalorder %s32, 0
      %p67 = por %p65, %p66
      %p68 = scmp.ne.s32.totalorder %s54, %s55
      %p69 = scmp.eq.s32.totalorder %s33, 1
      %p70 = por %p68, %p69
      %p72 = scmp.ne.s32.totalorder %s55, %s71
      %p73 = scmp.eq.s32.totalorder %s33, 0
      %p74 = por %p72, %p73
      %s76 = sadd.s32 %s75, 1
      %p79 = scmp.eq.s32.totalorder %s27, 1
      %p80 = scmp.ne.s32.totalorder %s75, %s77
      %p81 = scmp.eq.s32.totalorder %s27, 0
      %p82 = por %p80, %p81
      %p83 = scmp.ne.s32.totalorder %s75, %s77
      %p84 = scmp.eq.s32.totalorder %s32, 1
      %p85 = por %p83, %p84
      %p86 = scmp.ne.s32.totalorder %s77, %s78
      %p87 = scmp.eq.s32.totalorder %s32, 0
      %p88 = por %p86, %p87
      %p89 = scmp.ne.s32.totalorder %s77, %s78
      %p90 = scmp.eq.s32.totalorder %s33, 1
      %p91 = por %p89, %p90
      %p93 = scmp.ne.s32.totalorder %s78, %s92
      %p94 = scmp.eq.s32.totalorder %s33, 0
      %p95 = por %p93, %p94
      %s97 = sadd.s32 %s96, 1
      %p100 = scmp.eq.s32.totalorder %s27, 1
      %p101 = scmp.ne.s32.totalorder %s96, %s98
      %p102 = scmp.eq.s32.totalorder %s27, 0
      %p103 = por %p101, %p102
      %p104 = scmp.ne.s32.totalorder %s96, %s98
      %p105 = scmp.eq.s32.totalorder %s32, 1
      %p106 = por %p104, %p105
      %p107 = scmp.ne.s32.totalorder %s98, %s99
      %p108 = scmp.eq.s32.totalorder %s32, 0
      %p109 = por %p107, %p108
      %p110 = scmp.ne.s32.totalorder %s98, %s99
      %p111 = scmp.eq.s32.totalorder %s33, 1
      %p112 = por %p110, %p111
      %p114 = scmp.ne.s32.totalorder %s99, %s113
      %p115 = scmp.eq.s32.totalorder %s33, 0
      %p116 = por %p114, %p115
      %s118 = sadd.s32 %s117, 1
      %p121 = scmp.eq.s32.totalorder %s27, 1
      %p122 = scmp.ne.s32.totalorder %s117, %s119
      %p123 = scmp.eq.s32.totalorder %s27, 0
      %p124 = por %p122, %p123
      %p125 = scmp.ne.s32.totalorder %s117, %s119
      %p126 = scmp.eq.s32.totalorder %s32, 1
      %p127 = por %p125, %p126
      %p128 = scmp.ne.s32.totalorder %s119, %s120
      %p129 = scmp.eq.s32.totalorder %s32, 0
      %p130 = por %p128, %p129
      %p131 = scmp.ne.s32.totalorder %s119, %s120
      %p132 = scmp.eq.s32.totalorder %s33, 1
      %p133 = por %p131, %p132
      %p135 = scmp.ne.s32.totalorder %s120, %s134
      %p136 = scmp.eq.s32.totalorder %s33, 0
      %p137 = por %p135, %p136
      %s139 = sadd.s32 %s138, 1
      %p142 = scmp.eq.s32.totalorder %s27, 1
      %p143 = scmp.ne.s32.totalorder %s138, %s140
      %p144 = scmp.eq.s32.totalorder %s27, 0
      %p145 = por %p143, %p144
      %p146 = scmp.ne.s32.totalorder %s138, %s140
      %p147 = scmp.eq.s32.totalorder %s32, 1
      %p148 = por %p146, %p147
      %p149 = scmp.ne.s32.totalorder %s140, %s141
      %p150 = scmp.eq.s32.totalorder %s32, 0
      %p151 = por %p149, %p150
      %p152 = scmp.ne.s32.totalorder %s140, %s141
      %p153 = scmp.eq.s32.totalorder %s33, 1
      %p154 = por %p152, %p153
      %p156 = scmp.ne.s32.totalorder %s141, %s155
      %p157 = scmp.eq.s32.totalorder %s33, 0
      %p158 = por %p156, %p157
      %s160 = sadd.s32 %s159, 1
      %p163 = scmp.eq.s32.totalorder %s27, 1
      %p164 = scmp.ne.s32.totalorder %s159, %s161
      %p165 = scmp.eq.s32.totalorder %s27, 0
      %p166 = por %p164, %p165
      %p167 = scmp.ne.s32.totalorder %s159, %s161
      %p168 = scmp.eq.s32.totalorder %s32, 1
      %p169 = por %p167, %p168
      %p170 = scmp.ne.s32.totalorder %s161, %s162
      %p171 = scmp.eq.s32.totalorder %s32, 0
      %p172 = por %p170, %p171
      %p173 = scmp.ne.s32.totalorder %s161, %s162
      %p174 = scmp.eq.s32.totalorder %s33, 1
      %p175 = por %p173, %p174
      %p177 = scmp.ne.s32.totalorder %s162, %s176
      %p178 = scmp.eq.s32.totalorder %s33, 0
      %p179 = por %p177, %p178
      %s181 = sadd.s32 %s180, 1
      %p184 = scmp.eq.s32.totalorder %s27, 1
      %p185 = scmp.ne.s32.totalorder %s180, %s182
      %p186 = scmp.eq.s32.totalorder %s27, 0
      %p187 = por %p185, %p186
      %p188 = scmp.ne.s32.totalorder %s180, %s182
      %p189 = scmp.eq.s32.totalorder %s32, 1
      %p190 = por %p188, %p189
      %p191 = scmp.ne.s32.totalorder %s182, %s183
      %p192 = scmp.eq.s32.totalorder %s32, 0
      %p193 = por %p191, %p192
      %p194 = scmp.ne.s32.totalorder %s182, %s183
      %p195 = scmp.eq.s32.totalorder %s33, 1
      %p196 = por %p194, %p195
      %p198 = scmp.ne.s32.totalorder %s183, %s197
      %p199 = scmp.eq.s32.totalorder %s33, 0
      %p200 = por %p198, %p199
      %s201 = ssub.s32 %s34, %s46
      %s202 = ssub.s32 %s35, %s42
      %s203 = sor.u32 %s201, %s202
      %p204 = scmp.eq.s32.totalorder %s203, 0
      %s206 = sadd.s32 %s205, 1
      %s207 = scalar_select %p204, %s205, %s206
      %p210 = pneg %p204
      %p211 = scmp.eq.s32.totalorder %s27, 1
      %p212 = por %p210, %p211
      %p213 = scmp.ne.s32.totalorder %s205, %s208
      %p214 = scmp.eq.s32.totalorder %s27, 0
      %p215 = por %p213, %p214
      %p216 = scmp.ne.s32.totalorder %s205, %s208
      %p217 = scmp.eq.s32.totalorder %s32, 1
      %p218 = por %p216, %p217
      %p219 = scmp.ne.s32.totalorder %s208, %s209
      %p220 = scmp.eq.s32.totalorder %s32, 0
      %p221 = por %p219, %p220
      %p222 = scmp.ne.s32.totalorder %s208, %s209
      %p223 = scmp.eq.s32.totalorder %s33, 1
      %p224 = por %p222, %p223
      %p226 = scmp.ne.s32.totalorder %s209, %s225
      %p227 = scmp.eq.s32.totalorder %s33, 0
      %p228 = por %p226, %p227
      %s229 = ssub.s32 %s34, %s46
      %s230 = ssub.s32 %s35, %s42
      %s231 = sor.u32 %s229, %s230
      %p232 = scmp.eq.s32.totalorder %s231, 0
      %s234 = sadd.s32 %s233, 1
      %s235 = scalar_select %p232, %s233, %s234
      %p238 = pneg %p232
      %p239 = scmp.eq.s32.totalorder %s27, 1
      %p240 = por %p238, %p239
      %p241 = scmp.ne.s32.totalorder %s233, %s236
      %p242 = scmp.eq.s32.totalorder %s27, 0
      %p243 = por %p241, %p242
      %p244 = scmp.ne.s32.totalorder %s233, %s236
      %p245 = scmp.eq.s32.totalorder %s32, 1
      %p246 = por %p244, %p245
      %p247 = scmp.ne.s32.totalorder %s236, %s237
      %p248 = scmp.eq.s32.totalorder %s32, 0
      %p249 = por %p247, %p248
      %p250 = scmp.ne.s32.totalorder %s236, %s237
      %p251 = scmp.eq.s32.totalorder %s33, 1
      %p252 = por %p250, %p251
      %p254 = scmp.ne.s32.totalorder %s237, %s253
      %p255 = scmp.eq.s32.totalorder %s33, 0
      %p256 = por %p254, %p255
      %p257 = scmp.le.s32.totalorder 1, %s27
      %p258 = scmp.lt.s32.totalorder %s27, 3
      %p259 = pnand %p257, %p258
      %p260 = pneg %p259
      // Predicated region
      $region9: #{tpu_custom_call.1} parent=5 // pred_check
        _
      $region10: #{tpu_custom_call.1} parent=5 // pred_check_branch
        %262 = sbr.rel (%p259) target = $region12
      $region11: #{tpu_custom_call.1} parent=5 // pred_region
        %s263 = ssub.s32 %s27, 1
        // Predicated region
        $region13: #{tpu_custom_call.1} parent=11 // pred_check
          %p264 = pneg %p88
        $region14: #{tpu_custom_call.1} parent=11 // pred_check_branch
          %266 = sbr.rel (%p264) target = $region16
        $region15: #{tpu_custom_call.1} parent=11 // pred_region
          %268 = vsyncadd [#allocation6], 0
          %s269 = sshll.u32 %s1, 4
          %s270 = int_to_ptr.hbm [resolvable:$true] %s269
          %s271 = sshll.u32 [#allocation5], 4
          %s272 = int_to_ptr.vmem [resolvable:$true] %s271
          %277 = dma.hbm_to_vmem [thread:$0]  %s270, 4096, %s272, [#allocation6], 128, 128, 8
        $region16: #{tpu_custom_call.1} parent=11 // pred_fallthru
          _
        // Predicated region
        $region17: #{tpu_custom_call.1} parent=11 // pred_check
          %p278 = pneg %p109
        $region18: #{tpu_custom_call.1} parent=11 // pred_check_branch
          %280 = sbr.rel (%p278) target = $region20
        $region19: #{tpu_custom_call.1} parent=11 // pred_region
          %282 = vsyncadd [#allocation6], 0
          %s283 = sshll.u32 %s2, 4
          %s284 = int_to_ptr.hbm [resolvable:$true] %s283
          %s285 = sshll.u32 [#allocation7], 4
          %s286 = int_to_ptr.vmem [resolvable:$true] %s285
          %291 = dma.hbm_to_vmem [thread:$0]  %s284, 4096, %s286, [#allocation6], 128, 128, 8
        $region20: #{tpu_custom_call.1} parent=11 // pred_fallthru
          _
        // Predicated region
        $region21: #{tpu_custom_call.1} parent=11 // pred_check
          %p292 = pneg %p130
        $region22: #{tpu_custom_call.1} parent=11 // pred_check_branch
          %294 = sbr.rel (%p292) target = $region24
        $region23: #{tpu_custom_call.1} parent=11 // pred_region
          %296 = vsyncadd [#allocation9], 0
          %s297 = sshll.u32 %s3, 4
          %s298 = int_to_ptr.hbm [resolvable:$true] %s297
          %s299 = sshll.u32 [#allocation8], 4
          %s300 = int_to_ptr.vmem [resolvable:$true] %s299
          %305 = dma.hbm_to_vmem [thread:$0]  %s298, 4096, %s300, [#allocation9], 128, 128, 8
        $region24: #{tpu_custom_call.1} parent=11 // pred_fallthru
          _
        // Predicated region
        $region25: #{tpu_custom_call.1} parent=11 // pred_check
          %p306 = pneg %p151
        $region26: #{tpu_custom_call.1} parent=11 // pred_check_branch
          %308 = sbr.rel (%p306) target = $region28
        $region27: #{tpu_custom_call.1} parent=11 // pred_region
          %310 = vsyncadd [#allocation9], 0
          %s311 = sshll.u32 %s4, 4
          %s312 = int_to_ptr.hbm [resolvable:$true] %s311
          %s313 = sshll.u32 [#allocation10], 4
          %s314 = int_to_ptr.vmem [resolvable:$true] %s313
          %319 = dma.hbm_to_vmem [thread:$0]  %s312, 4096, %s314, [#allocation9], 128, 128, 8
        $region28: #{tpu_custom_call.1} parent=11 // pred_fallthru
          _
        // Predicated region
        $region29: #{tpu_custom_call.1} parent=11 // pred_check
          %p320 = pneg %p172
        $region30: #{tpu_custom_call.1} parent=11 // pred_check_branch
          %322 = sbr.rel (%p320) target = $region32
        $region31: #{tpu_custom_call.1} parent=11 // pred_region
          %324 = vsyncadd [#allocation12], 0
          %s325 = sshll.u32 %s5, 4
          %s326 = int_to_ptr.hbm [resolvable:$true] %s325
          %s327 = sshll.u32 [#allocation11], 4
          %s328 = int_to_ptr.vmem [resolvable:$true] %s327
          %333 = dma.hbm_to_vmem [thread:$0]  %s326, 4096, %s328, [#allocation12], 128, 128, 8
        $region32: #{tpu_custom_call.1} parent=11 // pred_fallthru
          _
        // Predicated region
        $region33: #{tpu_custom_call.1} parent=11 // pred_check
          %p334 = pneg %p193
        $region34: #{tpu_custom_call.1} parent=11 // pred_check_branch
          %336 = sbr.rel (%p334) target = $region36
        $region35: #{tpu_custom_call.1} parent=11 // pred_region
          %338 = vsyncadd [#allocation12], 0
          %s339 = sshll.u32 %s6, 4
          %s340 = int_to_ptr.hbm [resolvable:$true] %s339
          %s341 = sshll.u32 [#allocation13], 4
          %s342 = int_to_ptr.vmem [resolvable:$true] %s341
          %347 = dma.hbm_to_vmem [thread:$0]  %s340, 4096, %s342, [#allocation12], 128, 128, 8
        $region36: #{tpu_custom_call.1} parent=11 // pred_fallthru
          _
      $region12: #{tpu_custom_call.1} parent=5 // pred_fallthru
        _
      %p348 = scmp.lt.s32.totalorder %s27, 2
      // Predicated region
      $region37: #{tpu_custom_call.1} parent=5 // pred_check
        %p349 = pneg %p348
      $region38: #{tpu_custom_call.1} parent=5 // pred_check_branch
        %351 = sbr.rel (%p349) target = $region40
      $region39: #{tpu_custom_call.1} parent=5 // pred_region
        // Predicated region
        $region41: #{tpu_custom_call.1} parent=39 // pred_check
          %p352 = pneg %p61
        $region42: #{tpu_custom_call.1} parent=39 // pred_check_branch
          %354 = sbr.rel (%p352) target = $region44
        $region43: #{tpu_custom_call.1} parent=39 // pred_region
          %s355 = sand.u32 %s51, 1
          %s356 = scalar_lea.sflag [#allocation3], %s355
          %s357 = sand.u32 %s51, 1
          %s358 = smul.addr %s357, 1024
          %s359 = scalar_lea.vmem [#allocation2], %s358
          %s360 = smul.u32 2, %s34
          %362 = vsyncadd %s356, 0
          %s363 = smul.addr %s35, 64
          %s364 = smul.addr %s360, 64
          %s365 = sadd.s32 %s363, %s364
          %s366 = smul.addr %s365, 8
          %s367 = scalar_lea.hbm %s0, %s366
          %s368 = sshll.u32 %s367, 4
          %s369 = int_to_ptr.hbm [resolvable:$true] %s368
          %s370 = sshll.u32 %s359, 4
          %s371 = int_to_ptr.vmem [resolvable:$true] %s370
          %376 = dma.hbm_to_vmem [thread:$0]  %s369, 16384, %s371, %s356, 256, 256, 16
        $region44: #{tpu_custom_call.1} parent=39 // pred_fallthru
          _
      $region40: #{tpu_custom_call.1} parent=5 // pred_fallthru
        _
      %p377 = scmp.le.s32.totalorder 1, %s27
      %p378 = scmp.lt.s32.totalorder %s27, 3
      %p379 = pnand %p377, %p378
      %p380 = pneg %p379
      // Predicated region
      $region45: #{tpu_custom_call.1} parent=5 // pred_check
        _
      $region46: #{tpu_custom_call.1} parent=5 // pred_check_branch
        %382 = sbr.rel (%p379) target = $region48
      $region47: #{tpu_custom_call.1} parent=5 // pred_region
        %s383 = ssub.s32 %s27, 1
        %s384 = sand.u32 %s54, 1
        %s385 = scalar_lea.sflag [#allocation3], %s384
        %s386 = sand.u32 %s54, 1
        %s387 = smul.addr %s386, 1024
        %s388 = scalar_lea.vmem [#allocation2], %s387
        // Predicated region
        $region49: #{tpu_custom_call.1} parent=47 // pred_check
          %p389 = pneg %p67
        $region50: #{tpu_custom_call.1} parent=47 // pred_check_branch
          %391 = sbr.rel (%p389) target = $region52
        $region51: #{tpu_custom_call.1} parent=47 // pred_region
          %393 = dma.done %s385, 16384
        $region52: #{tpu_custom_call.1} parent=47 // pred_fallthru
          _
        // Predicated region
        $region53: #{tpu_custom_call.1} parent=47 // pred_check
          %p394 = pneg %p88
        $region54: #{tpu_custom_call.1} parent=47 // pred_check_branch
          %396 = sbr.rel (%p394) target = $region56
        $region55: #{tpu_custom_call.1} parent=47 // pred_region
          %398 = dma.done [#allocation6], 4096
        $region56: #{tpu_custom_call.1} parent=47 // pred_fallthru
          _
        // Predicated region
        $region57: #{tpu_custom_call.1} parent=47 // pred_check
          %p399 = pneg %p109
        $region58: #{tpu_custom_call.1} parent=47 // pred_check_branch
          %401 = sbr.rel (%p399) target = $region60
        $region59: #{tpu_custom_call.1} parent=47 // pred_region
          %403 = dma.done [#allocation6], 4096
        $region60: #{tpu_custom_call.1} parent=47 // pred_fallthru
          _
        // Predicated region
        $region61: #{tpu_custom_call.1} parent=47 // pred_check
          %p404 = pneg %p130
        $region62: #{tpu_custom_call.1} parent=47 // pred_check_branch
          %406 = sbr.rel (%p404) target = $region64
        $region63: #{tpu_custom_call.1} parent=47 // pred_region
          %408 = dma.done [#allocation9], 4096
        $region64: #{tpu_custom_call.1} parent=47 // pred_fallthru
          _
        // Predicated region
        $region65: #{tpu_custom_call.1} parent=47 // pred_check
          %p409 = pneg %p151
        $region66: #{tpu_custom_call.1} parent=47 // pred_check_branch
          %411 = sbr.rel (%p409) target = $region68
        $region67: #{tpu_custom_call.1} parent=47 // pred_region
          %413 = dma.done [#allocation9], 4096
        $region68: #{tpu_custom_call.1} parent=47 // pred_fallthru
          _
        // Predicated region
        $region69: #{tpu_custom_call.1} parent=47 // pred_check
          %p414 = pneg %p172
        $region70: #{tpu_custom_call.1} parent=47 // pred_check_branch
          %416 = sbr.rel (%p414) target = $region72
        $region71: #{tpu_custom_call.1} parent=47 // pred_region
          %418 = dma.done [#allocation12], 4096
        $region72: #{tpu_custom_call.1} parent=47 // pred_fallthru
          _
        // Predicated region
        $region73: #{tpu_custom_call.1} parent=47 // pred_check
          %p419 = pneg %p193
        $region74: #{tpu_custom_call.1} parent=47 // pred_check_branch
          %421 = sbr.rel (%p419) target = $region76
        $region75: #{tpu_custom_call.1} parent=47 // pred_region
          %423 = dma.done [#allocation12], 4096
        $region76: #{tpu_custom_call.1} parent=47 // pred_fallthru
          _
        %s424 = sand.u32 %s54, 1
        %s425 = scalar_lea.sflag [#allocation3], %s424
        %s426 = sand.u32 %s54, 1
        %s427 = smul.addr %s426, 1024
        %s428 = scalar_lea.vmem [#allocation2], %s427
        %p429 = pneg %p67
        %p430 = pneg %p64
        %p431 = pneg %p88
        %p432 = pneg %p85
        %p433 = pneg %p109
        %p434 = pneg %p106
        %p435 = pneg %p130
        %p436 = pneg %p127
        %p437 = pneg %p151
        %p438 = pneg %p148
        %p439 = pneg %p172
        %p440 = pneg %p169
        %p441 = pneg %p193
        %p442 = pneg %p190
        %p443 = pneg %p221
        %p444 = pneg %p218
        %s445 = sand.u32 %s208, 1
        %s446 = scalar_lea.sflag [#allocation4], %s445
        %s447 = sand.u32 %s208, 1
        %s448 = smul.addr %s447, 1024
        %s449 = scalar_lea.vmem [#allocation14], %s448
        %p450 = pneg %p249
        %p451 = pneg %p246
        %s452 = sand.u32 %s236, 1
        %s453 = scalar_lea.sflag [#allocation16], %s452
        %s454 = sand.u32 %s236, 1
        %s455 = smul.addr %s454, 1024
        %s456 = scalar_lea.vmem [#allocation15], %s455
        %s457 = smul.u32 2, %s36
        %s458 = smul.u32 2, %s36
        %s459 = smul.u32 2, %s36
        %v460 = vld [vmem:[%s388] sm:$0xff]
        %v461 = vld [vmem:[%s388 + $0x8] sm:$0xff]
        %v462 = vld [vmem:[%s388 + $0x10] sm:$0xff]
        %v463 = vld [vmem:[%s388 + $0x18] sm:$0xff]
        %v464 = vld [vmem:[%s388 + $0x20] sm:$0xff]
        %v465 = vld [vmem:[%s388 + $0x28] sm:$0xff]
        %v466 = vld [vmem:[%s388 + $0x30] sm:$0xff]
        %v467 = vld [vmem:[%s388 + $0x38] sm:$0xff]
        %v468 = vld [vmem:[%s388 + $0x40] sm:$0xff]
        %v469 = vld [vmem:[%s388 + $0x48] sm:$0xff]
        %v470 = vld [vmem:[%s388 + $0x50] sm:$0xff]
        %v471 = vld [vmem:[%s388 + $0x58] sm:$0xff]
        %v472 = vld [vmem:[%s388 + $0x60] sm:$0xff]
        %v473 = vld [vmem:[%s388 + $0x68] sm:$0xff]
        %v474 = vld [vmem:[%s388 + $0x70] sm:$0xff]
        %v475 = vld [vmem:[%s388 + $0x78] sm:$0xff]
        %v476 = vld [vmem:[%s388 + $0x80] sm:$0xff]
        %v477 = vld [vmem:[%s388 + $0x88] sm:$0xff]
        %v478 = vld [vmem:[%s388 + $0x90] sm:$0xff]
        %v479 = vld [vmem:[%s388 + $0x98] sm:$0xff]
        %v480 = vld [vmem:[%s388 + $0xa0] sm:$0xff]
        %v481 = vld [vmem:[%s388 + $0xa8] sm:$0xff]
        %v482 = vld [vmem:[%s388 + $0xb0] sm:$0xff]
        %v483 = vld [vmem:[%s388 + $0xb8] sm:$0xff]
        %v484 = vld [vmem:[%s388 + $0xc0] sm:$0xff]
        %v485 = vld [vmem:[%s388 + $0xc8] sm:$0xff]
        %v486 = vld [vmem:[%s388 + $0xd0] sm:$0xff]
        %v487 = vld [vmem:[%s388 + $0xd8] sm:$0xff]
        %v488 = vld [vmem:[%s388 + $0xe0] sm:$0xff]
        %v489 = vld [vmem:[%s388 + $0xe8] sm:$0xff]
        %v490 = vld [vmem:[%s388 + $0xf0] sm:$0xff]
        %v491 = vld [vmem:[%s388 + $0xf8] sm:$0xff]
        %v492 = vld [vmem:[%s388 + $0x100] sm:$0xff]
        %v493 = vld [vmem:[%s388 + $0x108] sm:$0xff]
        %v494 = vld [vmem:[%s388 + $0x110] sm:$0xff]
        %v495 = vld [vmem:[%s388 + $0x118] sm:$0xff]
        %v496 = vld [vmem:[%s388 + $0x120] sm:$0xff]
        %v497 = vld [vmem:[%s388 + $0x128] sm:$0xff]
        %v498 = vld [vmem:[%s388 + $0x130] sm:$0xff]
        %v499 = vld [vmem:[%s388 + $0x138] sm:$0xff]
        %v500 = vld [vmem:[%s388 + $0x140] sm:$0xff]
        %v501 = vld [vmem:[%s388 + $0x148] sm:$0xff]
        %v502 = vld [vmem:[%s388 + $0x150] sm:$0xff]
        %v503 = vld [vmem:[%s388 + $0x158] sm:$0xff]
        %v504 = vld [vmem:[%s388 + $0x160] sm:$0xff]
        %v505 = vld [vmem:[%s388 + $0x168] sm:$0xff]
        %v506 = vld [vmem:[%s388 + $0x170] sm:$0xff]
        %v507 = vld [vmem:[%s388 + $0x178] sm:$0xff]
        %v508 = vld [vmem:[%s388 + $0x180] sm:$0xff]
        %v509 = vld [vmem:[%s388 + $0x188] sm:$0xff]
        %v510 = vld [vmem:[%s388 + $0x190] sm:$0xff]
        %v511 = vld [vmem:[%s388 + $0x198] sm:$0xff]
        %v512 = vld [vmem:[%s388 + $0x1a0] sm:$0xff]
        %v513 = vld [vmem:[%s388 + $0x1a8] sm:$0xff]
        %v514 = vld [vmem:[%s388 + $0x1b0] sm:$0xff]
        %v515 = vld [vmem:[%s388 + $0x1b8] sm:$0xff]
        %v516 = vld [vmem:[%s388 + $0x1c0] sm:$0xff]
        %v517 = vld [vmem:[%s388 + $0x1c8] sm:$0xff]
        %v518 = vld [vmem:[%s388 + $0x1d0] sm:$0xff]
        %v519 = vld [vmem:[%s388 + $0x1d8] sm:$0xff]
        %v520 = vld [vmem:[%s388 + $0x1e0] sm:$0xff]
        %v521 = vld [vmem:[%s388 + $0x1e8] sm:$0xff]
        %v522 = vld [vmem:[%s388 + $0x1f0] sm:$0xff]
        %v523 = vld [vmem:[%s388 + $0x1f8] sm:$0xff]
        %v524 = vld [vmem:[%s388 + $0x200] sm:$0xff]
        %v525 = vld [vmem:[%s388 + $0x208] sm:$0xff]
        %v526 = vld [vmem:[%s388 + $0x210] sm:$0xff]
        %v527 = vld [vmem:[%s388 + $0x218] sm:$0xff]
        %v528 = vld [vmem:[%s388 + $0x220] sm:$0xff]
        %v529 = vld [vmem:[%s388 + $0x228] sm:$0xff]
        %v530 = vld [vmem:[%s388 + $0x230] sm:$0xff]
        %v531 = vld [vmem:[%s388 + $0x238] sm:$0xff]
        %v532 = vld [vmem:[%s388 + $0x240] sm:$0xff]
        %v533 = vld [vmem:[%s388 + $0x248] sm:$0xff]
        %v534 = vld [vmem:[%s388 + $0x250] sm:$0xff]
        %v535 = vld [vmem:[%s388 + $0x258] sm:$0xff]
        %v536 = vld [vmem:[%s388 + $0x260] sm:$0xff]
        %v537 = vld [vmem:[%s388 + $0x268] sm:$0xff]
        %v538 = vld [vmem:[%s388 + $0x270] sm:$0xff]
        %v539 = vld [vmem:[%s388 + $0x278] sm:$0xff]
        %v540 = vld [vmem:[%s388 + $0x280] sm:$0xff]
        %v541 = vld [vmem:[%s388 + $0x288] sm:$0xff]
        %v542 = vld [vmem:[%s388 + $0x290] sm:$0xff]
        %v543 = vld [vmem:[%s388 + $0x298] sm:$0xff]
        %v544 = vld [vmem:[%s388 + $0x2a0] sm:$0xff]
        %v545 = vld [vmem:[%s388 + $0x2a8] sm:$0xff]
        %v546 = vld [vmem:[%s388 + $0x2b0] sm:$0xff]
        %v547 = vld [vmem:[%s388 + $0x2b8] sm:$0xff]
        %v548 = vld [vmem:[%s388 + $0x2c0] sm:$0xff]
        %v549 = vld [vmem:[%s388 + $0x2c8] sm:$0xff]
        %v550 = vld [vmem:[%s388 + $0x2d0] sm:$0xff]
        %v551 = vld [vmem:[%s388 + $0x2d8] sm:$0xff]
        %v552 = vld [vmem:[%s388 + $0x2e0] sm:$0xff]
        %v553 = vld [vmem:[%s388 + $0x2e8] sm:$0xff]
        %v554 = vld [vmem:[%s388 + $0x2f0] sm:$0xff]
        %v555 = vld [vmem:[%s388 + $0x2f8] sm:$0xff]
        %v556 = vld [vmem:[%s388 + $0x300] sm:$0xff]
        %v557 = vld [vmem:[%s388 + $0x308] sm:$0xff]
        %v558 = vld [vmem:[%s388 + $0x310] sm:$0xff]
        %v559 = vld [vmem:[%s388 + $0x318] sm:$0xff]
        %v560 = vld [vmem:[%s388 + $0x320] sm:$0xff]
        %v561 = vld [vmem:[%s388 + $0x328] sm:$0xff]
        %v562 = vld [vmem:[%s388 + $0x330] sm:$0xff]
        %v563 = vld [vmem:[%s388 + $0x338] sm:$0xff]
        %v564 = vld [vmem:[%s388 + $0x340] sm:$0xff]
        %v565 = vld [vmem:[%s388 + $0x348] sm:$0xff]
        %v566 = vld [vmem:[%s388 + $0x350] sm:$0xff]
        %v567 = vld [vmem:[%s388 + $0x358] sm:$0xff]
        %v568 = vld [vmem:[%s388 + $0x360] sm:$0xff]
        %v569 = vld [vmem:[%s388 + $0x368] sm:$0xff]
        %v570 = vld [vmem:[%s388 + $0x370] sm:$0xff]
        %v571 = vld [vmem:[%s388 + $0x378] sm:$0xff]
        %v572 = vld [vmem:[%s388 + $0x380] sm:$0xff]
        %v573 = vld [vmem:[%s388 + $0x388] sm:$0xff]
        %v574 = vld [vmem:[%s388 + $0x390] sm:$0xff]
        %v575 = vld [vmem:[%s388 + $0x398] sm:$0xff]
        %v576 = vld [vmem:[%s388 + $0x3a0] sm:$0xff]
        %v577 = vld [vmem:[%s388 + $0x3a8] sm:$0xff]
        %v578 = vld [vmem:[%s388 + $0x3b0] sm:$0xff]
        %v579 = vld [vmem:[%s388 + $0x3b8] sm:$0xff]
        %v580 = vld [vmem:[%s388 + $0x3c0] sm:$0xff]
        %v581 = vld [vmem:[%s388 + $0x3c8] sm:$0xff]
        %v582 = vld [vmem:[%s388 + $0x3d0] sm:$0xff]
        %v583 = vld [vmem:[%s388 + $0x3d8] sm:$0xff]
        %v584 = vld [vmem:[%s388 + $0x3e0] sm:$0xff]
        %v585 = vld [vmem:[%s388 + $0x3e8] sm:$0xff]
        %v586 = vld [vmem:[%s388 + $0x3f0] sm:$0xff]
        %v587 = vld [vmem:[%s388 + $0x3f8] sm:$0xff]
        %v588 = vrsqrt.pop %v460
        %v589 = vmul.f32 %v588, %v460
        %v590 = vmul.f32 %v589, %v588
        %v591 = vmul.f32 0.5, %v590
        %v592 = vsub.f32 1.5, %v591
        %v593 = vmul.f32 %v588, %v592
        %v594 = vmul.f32 %v460, %v593
        %vm595 = vcmp.eq.f32.partialorder %v460, inf
        %v596 = vsel %vm595, %v460, %v594
        %vm597 = vcmp.eq.f32.partialorder %v460, 0.0
        %v598 = vand.u32 %v460, 2147483648
        %v599 = vsel %vm597, %v598, %v596
        %v600 = vrsqrt.pop %v461
        %v601 = vmul.f32 %v600, %v461
        %v602 = vmul.f32 %v601, %v600
        %v603 = vmul.f32 0.5, %v602
        %v604 = vsub.f32 1.5, %v603
        %v605 = vmul.f32 %v600, %v604
        %v606 = vmul.f32 %v461, %v605
        %vm607 = vcmp.eq.f32.partialorder %v461, inf
        %v608 = vsel %vm607, %v461, %v606
        %vm609 = vcmp.eq.f32.partialorder %v461, 0.0
        %v610 = vand.u32 %v461, 2147483648
        %v611 = vsel %vm609, %v610, %v608
        %v612 = vrsqrt.pop %v462
        %v613 = vmul.f32 %v612, %v462
        %v614 = vmul.f32 %v613, %v612
        %v615 = vmul.f32 0.5, %v614
        %v616 = vsub.f32 1.5, %v615
        %v617 = vmul.f32 %v612, %v616
        %v618 = vmul.f32 %v462, %v617
        %vm619 = vcmp.eq.f32.partialorder %v462, inf
        %v620 = vsel %vm619, %v462, %v618
        %vm621 = vcmp.eq.f32.partialorder %v462, 0.0
        %v622 = vand.u32 %v462, 2147483648
        %v623 = vsel %vm621, %v622, %v620
        %v624 = vrsqrt.pop %v463
        %v625 = vmul.f32 %v624, %v463
        %v626 = vmul.f32 %v625, %v624
        %v627 = vmul.f32 0.5, %v626
        %v628 = vsub.f32 1.5, %v627
        %v629 = vmul.f32 %v624, %v628
        %v630 = vmul.f32 %v463, %v629
        %vm631 = vcmp.eq.f32.partialorder %v463, inf
        %v632 = vsel %vm631, %v463, %v630
        %vm633 = vcmp.eq.f32.partialorder %v463, 0.0
        %v634 = vand.u32 %v463, 2147483648
        %v635 = vsel %vm633, %v634, %v632
        %v636 = vrsqrt.pop %v464
        %v637 = vmul.f32 %v636, %v464
        %v638 = vmul.f32 %v637, %v636
        %v639 = vmul.f32 0.5, %v638
        %v640 = vsub.f32 1.5, %v639
        %v641 = vmul.f32 %v636, %v640
        %v642 = vmul.f32 %v464, %v641
        %vm643 = vcmp.eq.f32.partialorder %v464, inf
        %v644 = vsel %vm643, %v464, %v642
        %vm645 = vcmp.eq.f32.partialorder %v464, 0.0
        %v646 = vand.u32 %v464, 2147483648
        %v647 = vsel %vm645, %v646, %v644
        %v648 = vrsqrt.pop %v465
        %v649 = vmul.f32 %v648, %v465
        %v650 = vmul.f32 %v649, %v648
        %v651 = vmul.f32 0.5, %v650
        %v652 = vsub.f32 1.5, %v651
        %v653 = vmul.f32 %v648, %v652
        %v654 = vmul.f32 %v465, %v653
        %vm655 = vcmp.eq.f32.partialorder %v465, inf
        %v656 = vsel %vm655, %v465, %v654
        %vm657 = vcmp.eq.f32.partialorder %v465, 0.0
        %v658 = vand.u32 %v465, 2147483648
        %v659 = vsel %vm657, %v658, %v656
        %v660 = vrsqrt.pop %v466
        %v661 = vmul.f32 %v660, %v466
        %v662 = vmul.f32 %v661, %v660
        %v663 = vmul.f32 0.5, %v662
        %v664 = vsub.f32 1.5, %v663
        %v665 = vmul.f32 %v660, %v664
        %v666 = vmul.f32 %v466, %v665
        %vm667 = vcmp.eq.f32.partialorder %v466, inf
        %v668 = vsel %vm667, %v466, %v666
        %vm669 = vcmp.eq.f32.partialorder %v466, 0.0
        %v670 = vand.u32 %v466, 2147483648
        %v671 = vsel %vm669, %v670, %v668
        %v672 = vrsqrt.pop %v467
        %v673 = vmul.f32 %v672, %v467
        %v674 = vmul.f32 %v673, %v672
        %v675 = vmul.f32 0.5, %v674
        %v676 = vsub.f32 1.5, %v675
        %v677 = vmul.f32 %v672, %v676
        %v678 = vmul.f32 %v467, %v677
        %vm679 = vcmp.eq.f32.partialorder %v467, inf
        %v680 = vsel %vm679, %v467, %v678
        %vm681 = vcmp.eq.f32.partialorder %v467, 0.0
        %v682 = vand.u32 %v467, 2147483648
        %v683 = vsel %vm681, %v682, %v680
        %v684 = vrsqrt.pop %v468
        %v685 = vmul.f32 %v684, %v468
        %v686 = vmul.f32 %v685, %v684
        %v687 = vmul.f32 0.5, %v686
        %v688 = vsub.f32 1.5, %v687
        %v689 = vmul.f32 %v684, %v688
        %v690 = vmul.f32 %v468, %v689
        %vm691 = vcmp.eq.f32.partialorder %v468, inf
        %v692 = vsel %vm691, %v468, %v690
        %vm693 = vcmp.eq.f32.partialorder %v468, 0.0
        %v694 = vand.u32 %v468, 2147483648
        %v695 = vsel %vm693, %v694, %v692
        %v696 = vrsqrt.pop %v469
        %v697 = vmul.f32 %v696, %v469
        %v698 = vmul.f32 %v697, %v696
        %v699 = vmul.f32 0.5, %v698
        %v700 = vsub.f32 1.5, %v699
        %v701 = vmul.f32 %v696, %v700
        %v702 = vmul.f32 %v469, %v701
        %vm703 = vcmp.eq.f32.partialorder %v469, inf
        %v704 = vsel %vm703, %v469, %v702
        %vm705 = vcmp.eq.f32.partialorder %v469, 0.0
        %v706 = vand.u32 %v469, 2147483648
        %v707 = vsel %vm705, %v706, %v704
        %v708 = vrsqrt.pop %v470
        %v709 = vmul.f32 %v708, %v470
        %v710 = vmul.f32 %v709, %v708
        %v711 = vmul.f32 0.5, %v710
        %v712 = vsub.f32 1.5, %v711
        %v713 = vmul.f32 %v708, %v712
        %v714 = vmul.f32 %v470, %v713
        %vm715 = vcmp.eq.f32.partialorder %v470, inf
        %v716 = vsel %vm715, %v470, %v714
        %vm717 = vcmp.eq.f32.partialorder %v470, 0.0
        %v718 = vand.u32 %v470, 2147483648
        %v719 = vsel %vm717, %v718, %v716
        %v720 = vrsqrt.pop %v471
        %v721 = vmul.f32 %v720, %v471
        %v722 = vmul.f32 %v721, %v720
        %v723 = vmul.f32 0.5, %v722
        %v724 = vsub.f32 1.5, %v723
        %v725 = vmul.f32 %v720, %v724
        %v726 = vmul.f32 %v471, %v725
        %vm727 = vcmp.eq.f32.partialorder %v471, inf
        %v728 = vsel %vm727, %v471, %v726
        %vm729 = vcmp.eq.f32.partialorder %v471, 0.0
        %v730 = vand.u32 %v471, 2147483648
        %v731 = vsel %vm729, %v730, %v728
        %v732 = vrsqrt.pop %v472
        %v733 = vmul.f32 %v732, %v472
        %v734 = vmul.f32 %v733, %v732
        %v735 = vmul.f32 0.5, %v734
        %v736 = vsub.f32 1.5, %v735
        %v737 = vmul.f32 %v732, %v736
        %v738 = vmul.f32 %v472, %v737
        %vm739 = vcmp.eq.f32.partialorder %v472, inf
        %v740 = vsel %vm739, %v472, %v738
        %vm741 = vcmp.eq.f32.partialorder %v472, 0.0
        %v742 = vand.u32 %v472, 2147483648
        %v743 = vsel %vm741, %v742, %v740
        %v744 = vrsqrt.pop %v473
        %v745 = vmul.f32 %v744, %v473
        %v746 = vmul.f32 %v745, %v744
        %v747 = vmul.f32 0.5, %v746
        %v748 = vsub.f32 1.5, %v747
        %v749 = vmul.f32 %v744, %v748
        %v750 = vmul.f32 %v473, %v749
        %vm751 = vcmp.eq.f32.partialorder %v473, inf
        %v752 = vsel %vm751, %v473, %v750
        %vm753 = vcmp.eq.f32.partialorder %v473, 0.0
        %v754 = vand.u32 %v473, 2147483648
        %v755 = vsel %vm753, %v754, %v752
        %v756 = vrsqrt.pop %v474
        %v757 = vmul.f32 %v756, %v474
        %v758 = vmul.f32 %v757, %v756
        %v759 = vmul.f32 0.5, %v758
        %v760 = vsub.f32 1.5, %v759
        %v761 = vmul.f32 %v756, %v760
        %v762 = vmul.f32 %v474, %v761
        %vm763 = vcmp.eq.f32.partialorder %v474, inf
        %v764 = vsel %vm763, %v474, %v762
        %vm765 = vcmp.eq.f32.partialorder %v474, 0.0
        %v766 = vand.u32 %v474, 2147483648
        %v767 = vsel %vm765, %v766, %v764
        %v768 = vrsqrt.pop %v475
        %v769 = vmul.f32 %v768, %v475
        %v770 = vmul.f32 %v769, %v768
        %v771 = vmul.f32 0.5, %v770
        %v772 = vsub.f32 1.5, %v771
        %v773 = vmul.f32 %v768, %v772
        %v774 = vmul.f32 %v475, %v773
        %vm775 = vcmp.eq.f32.partialorder %v475, inf
        %v776 = vsel %vm775, %v475, %v774
        %vm777 = vcmp.eq.f32.partialorder %v475, 0.0
        %v778 = vand.u32 %v475, 2147483648
        %v779 = vsel %vm777, %v778, %v776
        %v780 = vrsqrt.pop %v476
        %v781 = vmul.f32 %v780, %v476
        %v782 = vmul.f32 %v781, %v780
        %v783 = vmul.f32 0.5, %v782
        %v784 = vsub.f32 1.5, %v783
        %v785 = vmul.f32 %v780, %v784
        %v786 = vmul.f32 %v476, %v785
        %vm787 = vcmp.eq.f32.partialorder %v476, inf
        %v788 = vsel %vm787, %v476, %v786
        %vm789 = vcmp.eq.f32.partialorder %v476, 0.0
        %v790 = vand.u32 %v476, 2147483648
        %v791 = vsel %vm789, %v790, %v788
        %v792 = vrsqrt.pop %v477
        %v793 = vmul.f32 %v792, %v477
        %v794 = vmul.f32 %v793, %v792
        %v795 = vmul.f32 0.5, %v794
        %v796 = vsub.f32 1.5, %v795
        %v797 = vmul.f32 %v792, %v796
        %v798 = vmul.f32 %v477, %v797
        %vm799 = vcmp.eq.f32.partialorder %v477, inf
        %v800 = vsel %vm799, %v477, %v798
        %vm801 = vcmp.eq.f32.partialorder %v477, 0.0
        %v802 = vand.u32 %v477, 2147483648
        %v803 = vsel %vm801, %v802, %v800
        %v804 = vrsqrt.pop %v478
        %v805 = vmul.f32 %v804, %v478
        %v806 = vmul.f32 %v805, %v804
        %v807 = vmul.f32 0.5, %v806
        %v808 = vsub.f32 1.5, %v807
        %v809 = vmul.f32 %v804, %v808
        %v810 = vmul.f32 %v478, %v809
        %vm811 = vcmp.eq.f32.partialorder %v478, inf
        %v812 = vsel %vm811, %v478, %v810
        %vm813 = vcmp.eq.f32.partialorder %v478, 0.0
        %v814 = vand.u32 %v478, 2147483648
        %v815 = vsel %vm813, %v814, %v812
        %v816 = vrsqrt.pop %v479
        %v817 = vmul.f32 %v816, %v479
        %v818 = vmul.f32 %v817, %v816
        %v819 = vmul.f32 0.5, %v818
        %v820 = vsub.f32 1.5, %v819
        %v821 = vmul.f32 %v816, %v820
        %v822 = vmul.f32 %v479, %v821
        %vm823 = vcmp.eq.f32.partialorder %v479, inf
        %v824 = vsel %vm823, %v479, %v822
        %vm825 = vcmp.eq.f32.partialorder %v479, 0.0
        %v826 = vand.u32 %v479, 2147483648
        %v827 = vsel %vm825, %v826, %v824
        %v828 = vrsqrt.pop %v480
        %v829 = vmul.f32 %v828, %v480
        %v830 = vmul.f32 %v829, %v828
        %v831 = vmul.f32 0.5, %v830
        %v832 = vsub.f32 1.5, %v831
        %v833 = vmul.f32 %v828, %v832
        %v834 = vmul.f32 %v480, %v833
        %vm835 = vcmp.eq.f32.partialorder %v480, inf
        %v836 = vsel %vm835, %v480, %v834
        %vm837 = vcmp.eq.f32.partialorder %v480, 0.0
        %v838 = vand.u32 %v480, 2147483648
        %v839 = vsel %vm837, %v838, %v836
        %v840 = vrsqrt.pop %v481
        %v841 = vmul.f32 %v840, %v481
        %v842 = vmul.f32 %v841, %v840
        %v843 = vmul.f32 0.5, %v842
        %v844 = vsub.f32 1.5, %v843
        %v845 = vmul.f32 %v840, %v844
        %v846 = vmul.f32 %v481, %v845
        %vm847 = vcmp.eq.f32.partialorder %v481, inf
        %v848 = vsel %vm847, %v481, %v846
        %vm849 = vcmp.eq.f32.partialorder %v481, 0.0
        %v850 = vand.u32 %v481, 2147483648
        %v851 = vsel %vm849, %v850, %v848
        %v852 = vrsqrt.pop %v482
        %v853 = vmul.f32 %v852, %v482
        %v854 = vmul.f32 %v853, %v852
        %v855 = vmul.f32 0.5, %v854
        %v856 = vsub.f32 1.5, %v855
        %v857 = vmul.f32 %v852, %v856
        %v858 = vmul.f32 %v482, %v857
        %vm859 = vcmp.eq.f32.partialorder %v482, inf
        %v860 = vsel %vm859, %v482, %v858
        %vm861 = vcmp.eq.f32.partialorder %v482, 0.0
        %v862 = vand.u32 %v482, 2147483648
        %v863 = vsel %vm861, %v862, %v860
        %v864 = vrsqrt.pop %v483
        %v865 = vmul.f32 %v864, %v483
        %v866 = vmul.f32 %v865, %v864
        %v867 = vmul.f32 0.5, %v866
        %v868 = vsub.f32 1.5, %v867
        %v869 = vmul.f32 %v864, %v868
        %v870 = vmul.f32 %v483, %v869
        %vm871 = vcmp.eq.f32.partialorder %v483, inf
        %v872 = vsel %vm871, %v483, %v870
        %vm873 = vcmp.eq.f32.partialorder %v483, 0.0
        %v874 = vand.u32 %v483, 2147483648
        %v875 = vsel %vm873, %v874, %v872
        %v876 = vrsqrt.pop %v484
        %v877 = vmul.f32 %v876, %v484
        %v878 = vmul.f32 %v877, %v876
        %v879 = vmul.f32 0.5, %v878
        %v880 = vsub.f32 1.5, %v879
        %v881 = vmul.f32 %v876, %v880
        %v882 = vmul.f32 %v484, %v881
        %vm883 = vcmp.eq.f32.partialorder %v484, inf
        %v884 = vsel %vm883, %v484, %v882
        %vm885 = vcmp.eq.f32.partialorder %v484, 0.0
        %v886 = vand.u32 %v484, 2147483648
        %v887 = vsel %vm885, %v886, %v884
        %v888 = vrsqrt.pop %v485
        %v889 = vmul.f32 %v888, %v485
        %v890 = vmul.f32 %v889, %v888
        %v891 = vmul.f32 0.5, %v890
        %v892 = vsub.f32 1.5, %v891
        %v893 = vmul.f32 %v888, %v892
        %v894 = vmul.f32 %v485, %v893
        %vm895 = vcmp.eq.f32.partialorder %v485, inf
        %v896 = vsel %vm895, %v485, %v894
        %vm897 = vcmp.eq.f32.partialorder %v485, 0.0
        %v898 = vand.u32 %v485, 2147483648
        %v899 = vsel %vm897, %v898, %v896
        %v900 = vrsqrt.pop %v486
        %v901 = vmul.f32 %v900, %v486
        %v902 = vmul.f32 %v901, %v900
        %v903 = vmul.f32 0.5, %v902
        %v904 = vsub.f32 1.5, %v903
        %v905 = vmul.f32 %v900, %v904
        %v906 = vmul.f32 %v486, %v905
        %vm907 = vcmp.eq.f32.partialorder %v486, inf
        %v908 = vsel %vm907, %v486, %v906
        %vm909 = vcmp.eq.f32.partialorder %v486, 0.0
        %v910 = vand.u32 %v486, 2147483648
        %v911 = vsel %vm909, %v910, %v908
        %v912 = vrsqrt.pop %v487
        %v913 = vmul.f32 %v912, %v487
        %v914 = vmul.f32 %v913, %v912
        %v915 = vmul.f32 0.5, %v914
        %v916 = vsub.f32 1.5, %v915
        %v917 = vmul.f32 %v912, %v916
        %v918 = vmul.f32 %v487, %v917
        %vm919 = vcmp.eq.f32.partialorder %v487, inf
        %v920 = vsel %vm919, %v487, %v918
        %vm921 = vcmp.eq.f32.partialorder %v487, 0.0
        %v922 = vand.u32 %v487, 2147483648
        %v923 = vsel %vm921, %v922, %v920
        %v924 = vrsqrt.pop %v488
        %v925 = vmul.f32 %v924, %v488
        %v926 = vmul.f32 %v925, %v924
        %v927 = vmul.f32 0.5, %v926
        %v928 = vsub.f32 1.5, %v927
        %v929 = vmul.f32 %v924, %v928
        %v930 = vmul.f32 %v488, %v929
        %vm931 = vcmp.eq.f32.partialorder %v488, inf
        %v932 = vsel %vm931, %v488, %v930
        %vm933 = vcmp.eq.f32.partialorder %v488, 0.0
        %v934 = vand.u32 %v488, 2147483648
        %v935 = vsel %vm933, %v934, %v932
        %v936 = vrsqrt.pop %v489
        %v937 = vmul.f32 %v936, %v489
        %v938 = vmul.f32 %v937, %v936
        %v939 = vmul.f32 0.5, %v938
        %v940 = vsub.f32 1.5, %v939
        %v941 = vmul.f32 %v936, %v940
        %v942 = vmul.f32 %v489, %v941
        %vm943 = vcmp.eq.f32.partialorder %v489, inf
        %v944 = vsel %vm943, %v489, %v942
        %vm945 = vcmp.eq.f32.partialorder %v489, 0.0
        %v946 = vand.u32 %v489, 2147483648
        %v947 = vsel %vm945, %v946, %v944
        %v948 = vrsqrt.pop %v490
        %v949 = vmul.f32 %v948, %v490
        %v950 = vmul.f32 %v949, %v948
        %v951 = vmul.f32 0.5, %v950
        %v952 = vsub.f32 1.5, %v951
        %v953 = vmul.f32 %v948, %v952
        %v954 = vmul.f32 %v490, %v953
        %vm955 = vcmp.eq.f32.partialorder %v490, inf
        %v956 = vsel %vm955, %v490, %v954
        %vm957 = vcmp.eq.f32.partialorder %v490, 0.0
        %v958 = vand.u32 %v490, 2147483648
        %v959 = vsel %vm957, %v958, %v956
        %v960 = vrsqrt.pop %v491
        %v961 = vmul.f32 %v960, %v491
        %v962 = vmul.f32 %v961, %v960
        %v963 = vmul.f32 0.5, %v962
        %v964 = vsub.f32 1.5, %v963
        %v965 = vmul.f32 %v960, %v964
        %v966 = vmul.f32 %v491, %v965
        %vm967 = vcmp.eq.f32.partialorder %v491, inf
        %v968 = vsel %vm967, %v491, %v966
        %vm969 = vcmp.eq.f32.partialorder %v491, 0.0
        %v970 = vand.u32 %v491, 2147483648
        %v971 = vsel %vm969, %v970, %v968
        %v972 = vrsqrt.pop %v492
        %v973 = vmul.f32 %v972, %v492
        %v974 = vmul.f32 %v973, %v972
        %v975 = vmul.f32 0.5, %v974
        %v976 = vsub.f32 1.5, %v975
        %v977 = vmul.f32 %v972, %v976
        %v978 = vmul.f32 %v492, %v977
        %vm979 = vcmp.eq.f32.partialorder %v492, inf
        %v980 = vsel %vm979, %v492, %v978
        %vm981 = vcmp.eq.f32.partialorder %v492, 0.0
        %v982 = vand.u32 %v492, 2147483648
        %v983 = vsel %vm981, %v982, %v980
        %v984 = vrsqrt.pop %v493
        %v985 = vmul.f32 %v984, %v493
        %v986 = vmul.f32 %v985, %v984
        %v987 = vmul.f32 0.5, %v986
        %v988 = vsub.f32 1.5, %v987
        %v989 = vmul.f32 %v984, %v988
        %v990 = vmul.f32 %v493, %v989
        %vm991 = vcmp.eq.f32.partialorder %v493, inf
        %v992 = vsel %vm991, %v493, %v990
        %vm993 = vcmp.eq.f32.partialorder %v493, 0.0
        %v994 = vand.u32 %v493, 2147483648
        %v995 = vsel %vm993, %v994, %v992
        %v996 = vrsqrt.pop %v494
        %v997 = vmul.f32 %v996, %v494
        %v998 = vmul.f32 %v997, %v996
        %v999 = vmul.f32 0.5, %v998
        %v1000 = vsub.f32 1.5, %v999
        %v1001 = vmul.f32 %v996, %v1000
        %v1002 = vmul.f32 %v494, %v1001
        %vm1003 = vcmp.eq.f32.partialorder %v494, inf
        %v1004 = vsel %vm1003, %v494, %v1002
        %vm1005 = vcmp.eq.f32.partialorder %v494, 0.0
        %v1006 = vand.u32 %v494, 2147483648
        %v1007 = vsel %vm1005, %v1006, %v1004
        %v1008 = vrsqrt.pop %v495
        %v1009 = vmul.f32 %v1008, %v495
        %v1010 = vmul.f32 %v1009, %v1008
        %v1011 = vmul.f32 0.5, %v1010
        %v1012 = vsub.f32 1.5, %v1011
        %v1013 = vmul.f32 %v1008, %v1012
        %v1014 = vmul.f32 %v495, %v1013
        %vm1015 = vcmp.eq.f32.partialorder %v495, inf
        %v1016 = vsel %vm1015, %v495, %v1014
        %vm1017 = vcmp.eq.f32.partialorder %v495, 0.0
        %v1018 = vand.u32 %v495, 2147483648
        %v1019 = vsel %vm1017, %v1018, %v1016
        %v1020 = vrsqrt.pop %v496
        %v1021 = vmul.f32 %v1020, %v496
        %v1022 = vmul.f32 %v1021, %v1020
        %v1023 = vmul.f32 0.5, %v1022
        %v1024 = vsub.f32 1.5, %v1023
        %v1025 = vmul.f32 %v1020, %v1024
        %v1026 = vmul.f32 %v496, %v1025
        %vm1027 = vcmp.eq.f32.partialorder %v496, inf
        %v1028 = vsel %vm1027, %v496, %v1026
        %vm1029 = vcmp.eq.f32.partialorder %v496, 0.0
        %v1030 = vand.u32 %v496, 2147483648
        %v1031 = vsel %vm1029, %v1030, %v1028
        %v1032 = vrsqrt.pop %v497
        %v1033 = vmul.f32 %v1032, %v497
        %v1034 = vmul.f32 %v1033, %v1032
        %v1035 = vmul.f32 0.5, %v1034
        %v1036 = vsub.f32 1.5, %v1035
        %v1037 = vmul.f32 %v1032, %v1036
        %v1038 = vmul.f32 %v497, %v1037
        %vm1039 = vcmp.eq.f32.partialorder %v497, inf
        %v1040 = vsel %vm1039, %v497, %v1038
        %vm1041 = vcmp.eq.f32.partialorder %v497, 0.0
        %v1042 = vand.u32 %v497, 2147483648
        %v1043 = vsel %vm1041, %v1042, %v1040
        %v1044 = vrsqrt.pop %v498
        %v1045 = vmul.f32 %v1044, %v498
        %v1046 = vmul.f32 %v1045, %v1044
        %v1047 = vmul.f32 0.5, %v1046
        %v1048 = vsub.f32 1.5, %v1047
        %v1049 = vmul.f32 %v1044, %v1048
        %v1050 = vmul.f32 %v498, %v1049
        %vm1051 = vcmp.eq.f32.partialorder %v498, inf
        %v1052 = vsel %vm1051, %v498, %v1050
        %vm1053 = vcmp.eq.f32.partialorder %v498, 0.0
        %v1054 = vand.u32 %v498, 2147483648
        %v1055 = vsel %vm1053, %v1054, %v1052
        %v1056 = vrsqrt.pop %v499
        %v1057 = vmul.f32 %v1056, %v499
        %v1058 = vmul.f32 %v1057, %v1056
        %v1059 = vmul.f32 0.5, %v1058
        %v1060 = vsub.f32 1.5, %v1059
        %v1061 = vmul.f32 %v1056, %v1060
        %v1062 = vmul.f32 %v499, %v1061
        %vm1063 = vcmp.eq.f32.partialorder %v499, inf
        %v1064 = vsel %vm1063, %v499, %v1062
        %vm1065 = vcmp.eq.f32.partialorder %v499, 0.0
        %v1066 = vand.u32 %v499, 2147483648
        %v1067 = vsel %vm1065, %v1066, %v1064
        %v1068 = vrsqrt.pop %v500
        %v1069 = vmul.f32 %v1068, %v500
        %v1070 = vmul.f32 %v1069, %v1068
        %v1071 = vmul.f32 0.5, %v1070
        %v1072 = vsub.f32 1.5, %v1071
        %v1073 = vmul.f32 %v1068, %v1072
        %v1074 = vmul.f32 %v500, %v1073
        %vm1075 = vcmp.eq.f32.partialorder %v500, inf
        %v1076 = vsel %vm1075, %v500, %v1074
        %vm1077 = vcmp.eq.f32.partialorder %v500, 0.0
        %v1078 = vand.u32 %v500, 2147483648
        %v1079 = vsel %vm1077, %v1078, %v1076
        %v1080 = vrsqrt.pop %v501
        %v1081 = vmul.f32 %v1080, %v501
        %v1082 = vmul.f32 %v1081, %v1080
        %v1083 = vmul.f32 0.5, %v1082
        %v1084 = vsub.f32 1.5, %v1083
        %v1085 = vmul.f32 %v1080, %v1084
        %v1086 = vmul.f32 %v501, %v1085
        %vm1087 = vcmp.eq.f32.partialorder %v501, inf
        %v1088 = vsel %vm1087, %v501, %v1086
        %vm1089 = vcmp.eq.f32.partialorder %v501, 0.0
        %v1090 = vand.u32 %v501, 2147483648
        %v1091 = vsel %vm1089, %v1090, %v1088
        %v1092 = vrsqrt.pop %v502
        %v1093 = vmul.f32 %v1092, %v502
        %v1094 = vmul.f32 %v1093, %v1092
        %v1095 = vmul.f32 0.5, %v1094
        %v1096 = vsub.f32 1.5, %v1095
        %v1097 = vmul.f32 %v1092, %v1096
        %v1098 = vmul.f32 %v502, %v1097
        %vm1099 = vcmp.eq.f32.partialorder %v502, inf
        %v1100 = vsel %vm1099, %v502, %v1098
        %vm1101 = vcmp.eq.f32.partialorder %v502, 0.0
        %v1102 = vand.u32 %v502, 2147483648
        %v1103 = vsel %vm1101, %v1102, %v1100
        %v1104 = vrsqrt.pop %v503
        %v1105 = vmul.f32 %v1104, %v503
        %v1106 = vmul.f32 %v1105, %v1104
        %v1107 = vmul.f32 0.5, %v1106
        %v1108 = vsub.f32 1.5, %v1107
        %v1109 = vmul.f32 %v1104, %v1108
        %v1110 = vmul.f32 %v503, %v1109
        %vm1111 = vcmp.eq.f32.partialorder %v503, inf
        %v1112 = vsel %vm1111, %v503, %v1110
        %vm1113 = vcmp.eq.f32.partialorder %v503, 0.0
        %v1114 = vand.u32 %v503, 2147483648
        %v1115 = vsel %vm1113, %v1114, %v1112
        %v1116 = vrsqrt.pop %v504
        %v1117 = vmul.f32 %v1116, %v504
        %v1118 = vmul.f32 %v1117, %v1116
        %v1119 = vmul.f32 0.5, %v1118
        %v1120 = vsub.f32 1.5, %v1119
        %v1121 = vmul.f32 %v1116, %v1120
        %v1122 = vmul.f32 %v504, %v1121
        %vm1123 = vcmp.eq.f32.partialorder %v504, inf
        %v1124 = vsel %vm1123, %v504, %v1122
        %vm1125 = vcmp.eq.f32.partialorder %v504, 0.0
        %v1126 = vand.u32 %v504, 2147483648
        %v1127 = vsel %vm1125, %v1126, %v1124
        %v1128 = vrsqrt.pop %v505
        %v1129 = vmul.f32 %v1128, %v505
        %v1130 = vmul.f32 %v1129, %v1128
        %v1131 = vmul.f32 0.5, %v1130
        %v1132 = vsub.f32 1.5, %v1131
        %v1133 = vmul.f32 %v1128, %v1132
        %v1134 = vmul.f32 %v505, %v1133
        %vm1135 = vcmp.eq.f32.partialorder %v505, inf
        %v1136 = vsel %vm1135, %v505, %v1134
        %vm1137 = vcmp.eq.f32.partialorder %v505, 0.0
        %v1138 = vand.u32 %v505, 2147483648
        %v1139 = vsel %vm1137, %v1138, %v1136
        %v1140 = vrsqrt.pop %v506
        %v1141 = vmul.f32 %v1140, %v506
        %v1142 = vmul.f32 %v1141, %v1140
        %v1143 = vmul.f32 0.5, %v1142
        %v1144 = vsub.f32 1.5, %v1143
        %v1145 = vmul.f32 %v1140, %v1144
        %v1146 = vmul.f32 %v506, %v1145
        %vm1147 = vcmp.eq.f32.partialorder %v506, inf
        %v1148 = vsel %vm1147, %v506, %v1146
        %vm1149 = vcmp.eq.f32.partialorder %v506, 0.0
        %v1150 = vand.u32 %v506, 2147483648
        %v1151 = vsel %vm1149, %v1150, %v1148
        %v1152 = vrsqrt.pop %v507
        %v1153 = vmul.f32 %v1152, %v507
        %v1154 = vmul.f32 %v1153, %v1152
        %v1155 = vmul.f32 0.5, %v1154
        %v1156 = vsub.f32 1.5, %v1155
        %v1157 = vmul.f32 %v1152, %v1156
        %v1158 = vmul.f32 %v507, %v1157
        %vm1159 = vcmp.eq.f32.partialorder %v507, inf
        %v1160 = vsel %vm1159, %v507, %v1158
        %vm1161 = vcmp.eq.f32.partialorder %v507, 0.0
        %v1162 = vand.u32 %v507, 2147483648
        %v1163 = vsel %vm1161, %v1162, %v1160
        %v1164 = vrsqrt.pop %v508
        %v1165 = vmul.f32 %v1164, %v508
        %v1166 = vmul.f32 %v1165, %v1164
        %v1167 = vmul.f32 0.5, %v1166
        %v1168 = vsub.f32 1.5, %v1167
        %v1169 = vmul.f32 %v1164, %v1168
        %v1170 = vmul.f32 %v508, %v1169
        %vm1171 = vcmp.eq.f32.partialorder %v508, inf
        %v1172 = vsel %vm1171, %v508, %v1170
        %vm1173 = vcmp.eq.f32.partialorder %v508, 0.0
        %v1174 = vand.u32 %v508, 2147483648
        %v1175 = vsel %vm1173, %v1174, %v1172
        %v1176 = vrsqrt.pop %v509
        %v1177 = vmul.f32 %v1176, %v509
        %v1178 = vmul.f32 %v1177, %v1176
        %v1179 = vmul.f32 0.5, %v1178
        %v1180 = vsub.f32 1.5, %v1179
        %v1181 = vmul.f32 %v1176, %v1180
        %v1182 = vmul.f32 %v509, %v1181
        %vm1183 = vcmp.eq.f32.partialorder %v509, inf
        %v1184 = vsel %vm1183, %v509, %v1182
        %vm1185 = vcmp.eq.f32.partialorder %v509, 0.0
        %v1186 = vand.u32 %v509, 2147483648
        %v1187 = vsel %vm1185, %v1186, %v1184
        %v1188 = vrsqrt.pop %v510
        %v1189 = vmul.f32 %v1188, %v510
        %v1190 = vmul.f32 %v1189, %v1188
        %v1191 = vmul.f32 0.5, %v1190
        %v1192 = vsub.f32 1.5, %v1191
        %v1193 = vmul.f32 %v1188, %v1192
        %v1194 = vmul.f32 %v510, %v1193
        %vm1195 = vcmp.eq.f32.partialorder %v510, inf
        %v1196 = vsel %vm1195, %v510, %v1194
        %vm1197 = vcmp.eq.f32.partialorder %v510, 0.0
        %v1198 = vand.u32 %v510, 2147483648
        %v1199 = vsel %vm1197, %v1198, %v1196
        %v1200 = vrsqrt.pop %v511
        %v1201 = vmul.f32 %v1200, %v511
        %v1202 = vmul.f32 %v1201, %v1200
        %v1203 = vmul.f32 0.5, %v1202
        %v1204 = vsub.f32 1.5, %v1203
        %v1205 = vmul.f32 %v1200, %v1204
        %v1206 = vmul.f32 %v511, %v1205
        %vm1207 = vcmp.eq.f32.partialorder %v511, inf
        %v1208 = vsel %vm1207, %v511, %v1206
        %vm1209 = vcmp.eq.f32.partialorder %v511, 0.0
        %v1210 = vand.u32 %v511, 2147483648
        %v1211 = vsel %vm1209, %v1210, %v1208
        %v1212 = vrsqrt.pop %v512
        %v1213 = vmul.f32 %v1212, %v512
        %v1214 = vmul.f32 %v1213, %v1212
        %v1215 = vmul.f32 0.5, %v1214
        %v1216 = vsub.f32 1.5, %v1215
        %v1217 = vmul.f32 %v1212, %v1216
        %v1218 = vmul.f32 %v512, %v1217
        %vm1219 = vcmp.eq.f32.partialorder %v512, inf
        %v1220 = vsel %vm1219, %v512, %v1218
        %vm1221 = vcmp.eq.f32.partialorder %v512, 0.0
        %v1222 = vand.u32 %v512, 2147483648
        %v1223 = vsel %vm1221, %v1222, %v1220
        %v1224 = vrsqrt.pop %v513
        %v1225 = vmul.f32 %v1224, %v513
        %v1226 = vmul.f32 %v1225, %v1224
        %v1227 = vmul.f32 0.5, %v1226
        %v1228 = vsub.f32 1.5, %v1227
        %v1229 = vmul.f32 %v1224, %v1228
        %v1230 = vmul.f32 %v513, %v1229
        %vm1231 = vcmp.eq.f32.partialorder %v513, inf
        %v1232 = vsel %vm1231, %v513, %v1230
        %vm1233 = vcmp.eq.f32.partialorder %v513, 0.0
        %v1234 = vand.u32 %v513, 2147483648
        %v1235 = vsel %vm1233, %v1234, %v1232
        %v1236 = vrsqrt.pop %v514
        %v1237 = vmul.f32 %v1236, %v514
        %v1238 = vmul.f32 %v1237, %v1236
        %v1239 = vmul.f32 0.5, %v1238
        %v1240 = vsub.f32 1.5, %v1239
        %v1241 = vmul.f32 %v1236, %v1240
        %v1242 = vmul.f32 %v514, %v1241
        %vm1243 = vcmp.eq.f32.partialorder %v514, inf
        %v1244 = vsel %vm1243, %v514, %v1242
        %vm1245 = vcmp.eq.f32.partialorder %v514, 0.0
        %v1246 = vand.u32 %v514, 2147483648
        %v1247 = vsel %vm1245, %v1246, %v1244
        %v1248 = vrsqrt.pop %v515
        %v1249 = vmul.f32 %v1248, %v515
        %v1250 = vmul.f32 %v1249, %v1248
        %v1251 = vmul.f32 0.5, %v1250
        %v1252 = vsub.f32 1.5, %v1251
        %v1253 = vmul.f32 %v1248, %v1252
        %v1254 = vmul.f32 %v515, %v1253
        %vm1255 = vcmp.eq.f32.partialorder %v515, inf
        %v1256 = vsel %vm1255, %v515, %v1254
        %vm1257 = vcmp.eq.f32.partialorder %v515, 0.0
        %v1258 = vand.u32 %v515, 2147483648
        %v1259 = vsel %vm1257, %v1258, %v1256
        %v1260 = vrsqrt.pop %v516
        %v1261 = vmul.f32 %v1260, %v516
        %v1262 = vmul.f32 %v1261, %v1260
        %v1263 = vmul.f32 0.5, %v1262
        %v1264 = vsub.f32 1.5, %v1263
        %v1265 = vmul.f32 %v1260, %v1264
        %v1266 = vmul.f32 %v516, %v1265
        %vm1267 = vcmp.eq.f32.partialorder %v516, inf
        %v1268 = vsel %vm1267, %v516, %v1266
        %vm1269 = vcmp.eq.f32.partialorder %v516, 0.0
        %v1270 = vand.u32 %v516, 2147483648
        %v1271 = vsel %vm1269, %v1270, %v1268
        %v1272 = vrsqrt.pop %v517
        %v1273 = vmul.f32 %v1272, %v517
        %v1274 = vmul.f32 %v1273, %v1272
        %v1275 = vmul.f32 0.5, %v1274
        %v1276 = vsub.f32 1.5, %v1275
        %v1277 = vmul.f32 %v1272, %v1276
        %v1278 = vmul.f32 %v517, %v1277
        %vm1279 = vcmp.eq.f32.partialorder %v517, inf
        %v1280 = vsel %vm1279, %v517, %v1278
        %vm1281 = vcmp.eq.f32.partialorder %v517, 0.0
        %v1282 = vand.u32 %v517, 2147483648
        %v1283 = vsel %vm1281, %v1282, %v1280
        %v1284 = vrsqrt.pop %v518
        %v1285 = vmul.f32 %v1284, %v518
        %v1286 = vmul.f32 %v1285, %v1284
        %v1287 = vmul.f32 0.5, %v1286
        %v1288 = vsub.f32 1.5, %v1287
        %v1289 = vmul.f32 %v1284, %v1288
        %v1290 = vmul.f32 %v518, %v1289
        %vm1291 = vcmp.eq.f32.partialorder %v518, inf
        %v1292 = vsel %vm1291, %v518, %v1290
        %vm1293 = vcmp.eq.f32.partialorder %v518, 0.0
        %v1294 = vand.u32 %v518, 2147483648
        %v1295 = vsel %vm1293, %v1294, %v1292
        %v1296 = vrsqrt.pop %v519
        %v1297 = vmul.f32 %v1296, %v519
        %v1298 = vmul.f32 %v1297, %v1296
        %v1299 = vmul.f32 0.5, %v1298
        %v1300 = vsub.f32 1.5, %v1299
        %v1301 = vmul.f32 %v1296, %v1300
        %v1302 = vmul.f32 %v519, %v1301
        %vm1303 = vcmp.eq.f32.partialorder %v519, inf
        %v1304 = vsel %vm1303, %v519, %v1302
        %vm1305 = vcmp.eq.f32.partialorder %v519, 0.0
        %v1306 = vand.u32 %v519, 2147483648
        %v1307 = vsel %vm1305, %v1306, %v1304
        %v1308 = vrsqrt.pop %v520
        %v1309 = vmul.f32 %v1308, %v520
        %v1310 = vmul.f32 %v1309, %v1308
        %v1311 = vmul.f32 0.5, %v1310
        %v1312 = vsub.f32 1.5, %v1311
        %v1313 = vmul.f32 %v1308, %v1312
        %v1314 = vmul.f32 %v520, %v1313
        %vm1315 = vcmp.eq.f32.partialorder %v520, inf
        %v1316 = vsel %vm1315, %v520, %v1314
        %vm1317 = vcmp.eq.f32.partialorder %v520, 0.0
        %v1318 = vand.u32 %v520, 2147483648
        %v1319 = vsel %vm1317, %v1318, %v1316
        %v1320 = vrsqrt.pop %v521
        %v1321 = vmul.f32 %v1320, %v521
        %v1322 = vmul.f32 %v1321, %v1320
        %v1323 = vmul.f32 0.5, %v1322
        %v1324 = vsub.f32 1.5, %v1323
        %v1325 = vmul.f32 %v1320, %v1324
        %v1326 = vmul.f32 %v521, %v1325
        %vm1327 = vcmp.eq.f32.partialorder %v521, inf
        %v1328 = vsel %vm1327, %v521, %v1326
        %vm1329 = vcmp.eq.f32.partialorder %v521, 0.0
        %v1330 = vand.u32 %v521, 2147483648
        %v1331 = vsel %vm1329, %v1330, %v1328
        %v1332 = vrsqrt.pop %v522
        %v1333 = vmul.f32 %v1332, %v522
        %v1334 = vmul.f32 %v1333, %v1332
        %v1335 = vmul.f32 0.5, %v1334
        %v1336 = vsub.f32 1.5, %v1335
        %v1337 = vmul.f32 %v1332, %v1336
        %v1338 = vmul.f32 %v522, %v1337
        %vm1339 = vcmp.eq.f32.partialorder %v522, inf
        %v1340 = vsel %vm1339, %v522, %v1338
        %vm1341 = vcmp.eq.f32.partialorder %v522, 0.0
        %v1342 = vand.u32 %v522, 2147483648
        %v1343 = vsel %vm1341, %v1342, %v1340
        %v1344 = vrsqrt.pop %v523
        %v1345 = vmul.f32 %v1344, %v523
        %v1346 = vmul.f32 %v1345, %v1344
        %v1347 = vmul.f32 0.5, %v1346
        %v1348 = vsub.f32 1.5, %v1347
        %v1349 = vmul.f32 %v1344, %v1348
        %v1350 = vmul.f32 %v523, %v1349
        %vm1351 = vcmp.eq.f32.partialorder %v523, inf
        %v1352 = vsel %vm1351, %v523, %v1350
        %vm1353 = vcmp.eq.f32.partialorder %v523, 0.0
        %v1354 = vand.u32 %v523, 2147483648
        %v1355 = vsel %vm1353, %v1354, %v1352
        %v1356 = vrsqrt.pop %v524
        %v1357 = vmul.f32 %v1356, %v524
        %v1358 = vmul.f32 %v1357, %v1356
        %v1359 = vmul.f32 0.5, %v1358
        %v1360 = vsub.f32 1.5, %v1359
        %v1361 = vmul.f32 %v1356, %v1360
        %v1362 = vmul.f32 %v524, %v1361
        %vm1363 = vcmp.eq.f32.partialorder %v524, inf
        %v1364 = vsel %vm1363, %v524, %v1362
        %vm1365 = vcmp.eq.f32.partialorder %v524, 0.0
        %v1366 = vand.u32 %v524, 2147483648
        %v1367 = vsel %vm1365, %v1366, %v1364
        %v1368 = vrsqrt.pop %v525
        %v1369 = vmul.f32 %v1368, %v525
        %v1370 = vmul.f32 %v1369, %v1368
        %v1371 = vmul.f32 0.5, %v1370
        %v1372 = vsub.f32 1.5, %v1371
        %v1373 = vmul.f32 %v1368, %v1372
        %v1374 = vmul.f32 %v525, %v1373
        %vm1375 = vcmp.eq.f32.partialorder %v525, inf
        %v1376 = vsel %vm1375, %v525, %v1374
        %vm1377 = vcmp.eq.f32.partialorder %v525, 0.0
        %v1378 = vand.u32 %v525, 2147483648
        %v1379 = vsel %vm1377, %v1378, %v1376
        %v1380 = vrsqrt.pop %v526
        %v1381 = vmul.f32 %v1380, %v526
        %v1382 = vmul.f32 %v1381, %v1380
        %v1383 = vmul.f32 0.5, %v1382
        %v1384 = vsub.f32 1.5, %v1383
        %v1385 = vmul.f32 %v1380, %v1384
        %v1386 = vmul.f32 %v526, %v1385
        %vm1387 = vcmp.eq.f32.partialorder %v526, inf
        %v1388 = vsel %vm1387, %v526, %v1386
        %vm1389 = vcmp.eq.f32.partialorder %v526, 0.0
        %v1390 = vand.u32 %v526, 2147483648
        %v1391 = vsel %vm1389, %v1390, %v1388
        %v1392 = vrsqrt.pop %v527
        %v1393 = vmul.f32 %v1392, %v527
        %v1394 = vmul.f32 %v1393, %v1392
        %v1395 = vmul.f32 0.5, %v1394
        %v1396 = vsub.f32 1.5, %v1395
        %v1397 = vmul.f32 %v1392, %v1396
        %v1398 = vmul.f32 %v527, %v1397
        %vm1399 = vcmp.eq.f32.partialorder %v527, inf
        %v1400 = vsel %vm1399, %v527, %v1398
        %vm1401 = vcmp.eq.f32.partialorder %v527, 0.0
        %v1402 = vand.u32 %v527, 2147483648
        %v1403 = vsel %vm1401, %v1402, %v1400
        %v1404 = vrsqrt.pop %v528
        %v1405 = vmul.f32 %v1404, %v528
        %v1406 = vmul.f32 %v1405, %v1404
        %v1407 = vmul.f32 0.5, %v1406
        %v1408 = vsub.f32 1.5, %v1407
        %v1409 = vmul.f32 %v1404, %v1408
        %v1410 = vmul.f32 %v528, %v1409
        %vm1411 = vcmp.eq.f32.partialorder %v528, inf
        %v1412 = vsel %vm1411, %v528, %v1410
        %vm1413 = vcmp.eq.f32.partialorder %v528, 0.0
        %v1414 = vand.u32 %v528, 2147483648
        %v1415 = vsel %vm1413, %v1414, %v1412
        %v1416 = vrsqrt.pop %v529
        %v1417 = vmul.f32 %v1416, %v529
        %v1418 = vmul.f32 %v1417, %v1416
        %v1419 = vmul.f32 0.5, %v1418
        %v1420 = vsub.f32 1.5, %v1419
        %v1421 = vmul.f32 %v1416, %v1420
        %v1422 = vmul.f32 %v529, %v1421
        %vm1423 = vcmp.eq.f32.partialorder %v529, inf
        %v1424 = vsel %vm1423, %v529, %v1422
        %vm1425 = vcmp.eq.f32.partialorder %v529, 0.0
        %v1426 = vand.u32 %v529, 2147483648
        %v1427 = vsel %vm1425, %v1426, %v1424
        %v1428 = vrsqrt.pop %v530
        %v1429 = vmul.f32 %v1428, %v530
        %v1430 = vmul.f32 %v1429, %v1428
        %v1431 = vmul.f32 0.5, %v1430
        %v1432 = vsub.f32 1.5, %v1431
        %v1433 = vmul.f32 %v1428, %v1432
        %v1434 = vmul.f32 %v530, %v1433
        %vm1435 = vcmp.eq.f32.partialorder %v530, inf
        %v1436 = vsel %vm1435, %v530, %v1434
        %vm1437 = vcmp.eq.f32.partialorder %v530, 0.0
        %v1438 = vand.u32 %v530, 2147483648
        %v1439 = vsel %vm1437, %v1438, %v1436
        %v1440 = vrsqrt.pop %v531
        %v1441 = vmul.f32 %v1440, %v531
        %v1442 = vmul.f32 %v1441, %v1440
        %v1443 = vmul.f32 0.5, %v1442
        %v1444 = vsub.f32 1.5, %v1443
        %v1445 = vmul.f32 %v1440, %v1444
        %v1446 = vmul.f32 %v531, %v1445
        %vm1447 = vcmp.eq.f32.partialorder %v531, inf
        %v1448 = vsel %vm1447, %v531, %v1446
        %vm1449 = vcmp.eq.f32.partialorder %v531, 0.0
        %v1450 = vand.u32 %v531, 2147483648
        %v1451 = vsel %vm1449, %v1450, %v1448
        %v1452 = vrsqrt.pop %v532
        %v1453 = vmul.f32 %v1452, %v532
        %v1454 = vmul.f32 %v1453, %v1452
        %v1455 = vmul.f32 0.5, %v1454
        %v1456 = vsub.f32 1.5, %v1455
        %v1457 = vmul.f32 %v1452, %v1456
        %v1458 = vmul.f32 %v532, %v1457
        %vm1459 = vcmp.eq.f32.partialorder %v532, inf
        %v1460 = vsel %vm1459, %v532, %v1458
        %vm1461 = vcmp.eq.f32.partialorder %v532, 0.0
        %v1462 = vand.u32 %v532, 2147483648
        %v1463 = vsel %vm1461, %v1462, %v1460
        %v1464 = vrsqrt.pop %v533
        %v1465 = vmul.f32 %v1464, %v533
        %v1466 = vmul.f32 %v1465, %v1464
        %v1467 = vmul.f32 0.5, %v1466
        %v1468 = vsub.f32 1.5, %v1467
        %v1469 = vmul.f32 %v1464, %v1468
        %v1470 = vmul.f32 %v533, %v1469
        %vm1471 = vcmp.eq.f32.partialorder %v533, inf
        %v1472 = vsel %vm1471, %v533, %v1470
        %vm1473 = vcmp.eq.f32.partialorder %v533, 0.0
        %v1474 = vand.u32 %v533, 2147483648
        %v1475 = vsel %vm1473, %v1474, %v1472
        %v1476 = vrsqrt.pop %v534
        %v1477 = vmul.f32 %v1476, %v534
        %v1478 = vmul.f32 %v1477, %v1476
        %v1479 = vmul.f32 0.5, %v1478
        %v1480 = vsub.f32 1.5, %v1479
        %v1481 = vmul.f32 %v1476, %v1480
        %v1482 = vmul.f32 %v534, %v1481
        %vm1483 = vcmp.eq.f32.partialorder %v534, inf
        %v1484 = vsel %vm1483, %v534, %v1482
        %vm1485 = vcmp.eq.f32.partialorder %v534, 0.0
        %v1486 = vand.u32 %v534, 2147483648
        %v1487 = vsel %vm1485, %v1486, %v1484
        %v1488 = vrsqrt.pop %v535
        %v1489 = vmul.f32 %v1488, %v535
        %v1490 = vmul.f32 %v1489, %v1488
        %v1491 = vmul.f32 0.5, %v1490
        %v1492 = vsub.f32 1.5, %v1491
        %v1493 = vmul.f32 %v1488, %v1492
        %v1494 = vmul.f32 %v535, %v1493
        %vm1495 = vcmp.eq.f32.partialorder %v535, inf
        %v1496 = vsel %vm1495, %v535, %v1494
        %vm1497 = vcmp.eq.f32.partialorder %v535, 0.0
        %v1498 = vand.u32 %v535, 2147483648
        %v1499 = vsel %vm1497, %v1498, %v1496
        %v1500 = vrsqrt.pop %v536
        %v1501 = vmul.f32 %v1500, %v536
        %v1502 = vmul.f32 %v1501, %v1500
        %v1503 = vmul.f32 0.5, %v1502
        %v1504 = vsub.f32 1.5, %v1503
        %v1505 = vmul.f32 %v1500, %v1504
        %v1506 = vmul.f32 %v536, %v1505
        %vm1507 = vcmp.eq.f32.partialorder %v536, inf
        %v1508 = vsel %vm1507, %v536, %v1506
        %vm1509 = vcmp.eq.f32.partialorder %v536, 0.0
        %v1510 = vand.u32 %v536, 2147483648
        %v1511 = vsel %vm1509, %v1510, %v1508
        %v1512 = vrsqrt.pop %v537
        %v1513 = vmul.f32 %v1512, %v537
        %v1514 = vmul.f32 %v1513, %v1512
        %v1515 = vmul.f32 0.5, %v1514
        %v1516 = vsub.f32 1.5, %v1515
        %v1517 = vmul.f32 %v1512, %v1516
        %v1518 = vmul.f32 %v537, %v1517
        %vm1519 = vcmp.eq.f32.partialorder %v537, inf
        %v1520 = vsel %vm1519, %v537, %v1518
        %vm1521 = vcmp.eq.f32.partialorder %v537, 0.0
        %v1522 = vand.u32 %v537, 2147483648
        %v1523 = vsel %vm1521, %v1522, %v1520
        %v1524 = vrsqrt.pop %v538
        %v1525 = vmul.f32 %v1524, %v538
        %v1526 = vmul.f32 %v1525, %v1524
        %v1527 = vmul.f32 0.5, %v1526
        %v1528 = vsub.f32 1.5, %v1527
        %v1529 = vmul.f32 %v1524, %v1528
        %v1530 = vmul.f32 %v538, %v1529
        %vm1531 = vcmp.eq.f32.partialorder %v538, inf
        %v1532 = vsel %vm1531, %v538, %v1530
        %vm1533 = vcmp.eq.f32.partialorder %v538, 0.0
        %v1534 = vand.u32 %v538, 2147483648
        %v1535 = vsel %vm1533, %v1534, %v1532
        %v1536 = vrsqrt.pop %v539
        %v1537 = vmul.f32 %v1536, %v539
        %v1538 = vmul.f32 %v1537, %v1536
        %v1539 = vmul.f32 0.5, %v1538
        %v1540 = vsub.f32 1.5, %v1539
        %v1541 = vmul.f32 %v1536, %v1540
        %v1542 = vmul.f32 %v539, %v1541
        %vm1543 = vcmp.eq.f32.partialorder %v539, inf
        %v1544 = vsel %vm1543, %v539, %v1542
        %vm1545 = vcmp.eq.f32.partialorder %v539, 0.0
        %v1546 = vand.u32 %v539, 2147483648
        %v1547 = vsel %vm1545, %v1546, %v1544
        %v1548 = vrsqrt.pop %v540
        %v1549 = vmul.f32 %v1548, %v540
        %v1550 = vmul.f32 %v1549, %v1548
        %v1551 = vmul.f32 0.5, %v1550
        %v1552 = vsub.f32 1.5, %v1551
        %v1553 = vmul.f32 %v1548, %v1552
        %v1554 = vmul.f32 %v540, %v1553
        %vm1555 = vcmp.eq.f32.partialorder %v540, inf
        %v1556 = vsel %vm1555, %v540, %v1554
        %vm1557 = vcmp.eq.f32.partialorder %v540, 0.0
        %v1558 = vand.u32 %v540, 2147483648
        %v1559 = vsel %vm1557, %v1558, %v1556
        %v1560 = vrsqrt.pop %v541
        %v1561 = vmul.f32 %v1560, %v541
        %v1562 = vmul.f32 %v1561, %v1560
        %v1563 = vmul.f32 0.5, %v1562
        %v1564 = vsub.f32 1.5, %v1563
        %v1565 = vmul.f32 %v1560, %v1564
        %v1566 = vmul.f32 %v541, %v1565
        %vm1567 = vcmp.eq.f32.partialorder %v541, inf
        %v1568 = vsel %vm1567, %v541, %v1566
        %vm1569 = vcmp.eq.f32.partialorder %v541, 0.0
        %v1570 = vand.u32 %v541, 2147483648
        %v1571 = vsel %vm1569, %v1570, %v1568
        %v1572 = vrsqrt.pop %v542
        %v1573 = vmul.f32 %v1572, %v542
        %v1574 = vmul.f32 %v1573, %v1572
        %v1575 = vmul.f32 0.5, %v1574
        %v1576 = vsub.f32 1.5, %v1575
        %v1577 = vmul.f32 %v1572, %v1576
        %v1578 = vmul.f32 %v542, %v1577
        %vm1579 = vcmp.eq.f32.partialorder %v542, inf
        %v1580 = vsel %vm1579, %v542, %v1578
        %vm1581 = vcmp.eq.f32.partialorder %v542, 0.0
        %v1582 = vand.u32 %v542, 2147483648
        %v1583 = vsel %vm1581, %v1582, %v1580
        %v1584 = vrsqrt.pop %v543
        %v1585 = vmul.f32 %v1584, %v543
        %v1586 = vmul.f32 %v1585, %v1584
        %v1587 = vmul.f32 0.5, %v1586
        %v1588 = vsub.f32 1.5, %v1587
        %v1589 = vmul.f32 %v1584, %v1588
        %v1590 = vmul.f32 %v543, %v1589
        %vm1591 = vcmp.eq.f32.partialorder %v543, inf
        %v1592 = vsel %vm1591, %v543, %v1590
        %vm1593 = vcmp.eq.f32.partialorder %v543, 0.0
        %v1594 = vand.u32 %v543, 2147483648
        %v1595 = vsel %vm1593, %v1594, %v1592
        %v1596 = vrsqrt.pop %v544
        %v1597 = vmul.f32 %v1596, %v544
        %v1598 = vmul.f32 %v1597, %v1596
        %v1599 = vmul.f32 0.5, %v1598
        %v1600 = vsub.f32 1.5, %v1599
        %v1601 = vmul.f32 %v1596, %v1600
        %v1602 = vmul.f32 %v544, %v1601
        %vm1603 = vcmp.eq.f32.partialorder %v544, inf
        %v1604 = vsel %vm1603, %v544, %v1602
        %vm1605 = vcmp.eq.f32.partialorder %v544, 0.0
        %v1606 = vand.u32 %v544, 2147483648
        %v1607 = vsel %vm1605, %v1606, %v1604
        %v1608 = vrsqrt.pop %v545
        %v1609 = vmul.f32 %v1608, %v545
        %v1610 = vmul.f32 %v1609, %v1608
        %v1611 = vmul.f32 0.5, %v1610
        %v1612 = vsub.f32 1.5, %v1611
        %v1613 = vmul.f32 %v1608, %v1612
        %v1614 = vmul.f32 %v545, %v1613
        %vm1615 = vcmp.eq.f32.partialorder %v545, inf
        %v1616 = vsel %vm1615, %v545, %v1614
        %vm1617 = vcmp.eq.f32.partialorder %v545, 0.0
        %v1618 = vand.u32 %v545, 2147483648
        %v1619 = vsel %vm1617, %v1618, %v1616
        %v1620 = vrsqrt.pop %v546
        %v1621 = vmul.f32 %v1620, %v546
        %v1622 = vmul.f32 %v1621, %v1620
        %v1623 = vmul.f32 0.5, %v1622
        %v1624 = vsub.f32 1.5, %v1623
        %v1625 = vmul.f32 %v1620, %v1624
        %v1626 = vmul.f32 %v546, %v1625
        %vm1627 = vcmp.eq.f32.partialorder %v546, inf
        %v1628 = vsel %vm1627, %v546, %v1626
        %vm1629 = vcmp.eq.f32.partialorder %v546, 0.0
        %v1630 = vand.u32 %v546, 2147483648
        %v1631 = vsel %vm1629, %v1630, %v1628
        %v1632 = vrsqrt.pop %v547
        %v1633 = vmul.f32 %v1632, %v547
        %v1634 = vmul.f32 %v1633, %v1632
        %v1635 = vmul.f32 0.5, %v1634
        %v1636 = vsub.f32 1.5, %v1635
        %v1637 = vmul.f32 %v1632, %v1636
        %v1638 = vmul.f32 %v547, %v1637
        %vm1639 = vcmp.eq.f32.partialorder %v547, inf
        %v1640 = vsel %vm1639, %v547, %v1638
        %vm1641 = vcmp.eq.f32.partialorder %v547, 0.0
        %v1642 = vand.u32 %v547, 2147483648
        %v1643 = vsel %vm1641, %v1642, %v1640
        %v1644 = vrsqrt.pop %v548
        %v1645 = vmul.f32 %v1644, %v548
        %v1646 = vmul.f32 %v1645, %v1644
        %v1647 = vmul.f32 0.5, %v1646
        %v1648 = vsub.f32 1.5, %v1647
        %v1649 = vmul.f32 %v1644, %v1648
        %v1650 = vmul.f32 %v548, %v1649
        %vm1651 = vcmp.eq.f32.partialorder %v548, inf
        %v1652 = vsel %vm1651, %v548, %v1650
        %vm1653 = vcmp.eq.f32.partialorder %v548, 0.0
        %v1654 = vand.u32 %v548, 2147483648
        %v1655 = vsel %vm1653, %v1654, %v1652
        %v1656 = vrsqrt.pop %v549
        %v1657 = vmul.f32 %v1656, %v549
        %v1658 = vmul.f32 %v1657, %v1656
        %v1659 = vmul.f32 0.5, %v1658
        %v1660 = vsub.f32 1.5, %v1659
        %v1661 = vmul.f32 %v1656, %v1660
        %v1662 = vmul.f32 %v549, %v1661
        %vm1663 = vcmp.eq.f32.partialorder %v549, inf
        %v1664 = vsel %vm1663, %v549, %v1662
        %vm1665 = vcmp.eq.f32.partialorder %v549, 0.0
        %v1666 = vand.u32 %v549, 2147483648
        %v1667 = vsel %vm1665, %v1666, %v1664
        %v1668 = vrsqrt.pop %v550
        %v1669 = vmul.f32 %v1668, %v550
        %v1670 = vmul.f32 %v1669, %v1668
        %v1671 = vmul.f32 0.5, %v1670
        %v1672 = vsub.f32 1.5, %v1671
        %v1673 = vmul.f32 %v1668, %v1672
        %v1674 = vmul.f32 %v550, %v1673
        %vm1675 = vcmp.eq.f32.partialorder %v550, inf
        %v1676 = vsel %vm1675, %v550, %v1674
        %vm1677 = vcmp.eq.f32.partialorder %v550, 0.0
        %v1678 = vand.u32 %v550, 2147483648
        %v1679 = vsel %vm1677, %v1678, %v1676
        %v1680 = vrsqrt.pop %v551
        %v1681 = vmul.f32 %v1680, %v551
        %v1682 = vmul.f32 %v1681, %v1680
        %v1683 = vmul.f32 0.5, %v1682
        %v1684 = vsub.f32 1.5, %v1683
        %v1685 = vmul.f32 %v1680, %v1684
        %v1686 = vmul.f32 %v551, %v1685
        %vm1687 = vcmp.eq.f32.partialorder %v551, inf
        %v1688 = vsel %vm1687, %v551, %v1686
        %vm1689 = vcmp.eq.f32.partialorder %v551, 0.0
        %v1690 = vand.u32 %v551, 2147483648
        %v1691 = vsel %vm1689, %v1690, %v1688
        %v1692 = vrsqrt.pop %v552
        %v1693 = vmul.f32 %v1692, %v552
        %v1694 = vmul.f32 %v1693, %v1692
        %v1695 = vmul.f32 0.5, %v1694
        %v1696 = vsub.f32 1.5, %v1695
        %v1697 = vmul.f32 %v1692, %v1696
        %v1698 = vmul.f32 %v552, %v1697
        %vm1699 = vcmp.eq.f32.partialorder %v552, inf
        %v1700 = vsel %vm1699, %v552, %v1698
        %vm1701 = vcmp.eq.f32.partialorder %v552, 0.0
        %v1702 = vand.u32 %v552, 2147483648
        %v1703 = vsel %vm1701, %v1702, %v1700
        %v1704 = vrsqrt.pop %v553
        %v1705 = vmul.f32 %v1704, %v553
        %v1706 = vmul.f32 %v1705, %v1704
        %v1707 = vmul.f32 0.5, %v1706
        %v1708 = vsub.f32 1.5, %v1707
        %v1709 = vmul.f32 %v1704, %v1708
        %v1710 = vmul.f32 %v553, %v1709
        %vm1711 = vcmp.eq.f32.partialorder %v553, inf
        %v1712 = vsel %vm1711, %v553, %v1710
        %vm1713 = vcmp.eq.f32.partialorder %v553, 0.0
        %v1714 = vand.u32 %v553, 2147483648
        %v1715 = vsel %vm1713, %v1714, %v1712
        %v1716 = vrsqrt.pop %v554
        %v1717 = vmul.f32 %v1716, %v554
        %v1718 = vmul.f32 %v1717, %v1716
        %v1719 = vmul.f32 0.5, %v1718
        %v1720 = vsub.f32 1.5, %v1719
        %v1721 = vmul.f32 %v1716, %v1720
        %v1722 = vmul.f32 %v554, %v1721
        %vm1723 = vcmp.eq.f32.partialorder %v554, inf
        %v1724 = vsel %vm1723, %v554, %v1722
        %vm1725 = vcmp.eq.f32.partialorder %v554, 0.0
        %v1726 = vand.u32 %v554, 2147483648
        %v1727 = vsel %vm1725, %v1726, %v1724
        %v1728 = vrsqrt.pop %v555
        %v1729 = vmul.f32 %v1728, %v555
        %v1730 = vmul.f32 %v1729, %v1728
        %v1731 = vmul.f32 0.5, %v1730
        %v1732 = vsub.f32 1.5, %v1731
        %v1733 = vmul.f32 %v1728, %v1732
        %v1734 = vmul.f32 %v555, %v1733
        %vm1735 = vcmp.eq.f32.partialorder %v555, inf
        %v1736 = vsel %vm1735, %v555, %v1734
        %vm1737 = vcmp.eq.f32.partialorder %v555, 0.0
        %v1738 = vand.u32 %v555, 2147483648
        %v1739 = vsel %vm1737, %v1738, %v1736
        %v1740 = vrsqrt.pop %v556
        %v1741 = vmul.f32 %v1740, %v556
        %v1742 = vmul.f32 %v1741, %v1740
        %v1743 = vmul.f32 0.5, %v1742
        %v1744 = vsub.f32 1.5, %v1743
        %v1745 = vmul.f32 %v1740, %v1744
        %v1746 = vmul.f32 %v556, %v1745
        %vm1747 = vcmp.eq.f32.partialorder %v556, inf
        %v1748 = vsel %vm1747, %v556, %v1746
        %vm1749 = vcmp.eq.f32.partialorder %v556, 0.0
        %v1750 = vand.u32 %v556, 2147483648
        %v1751 = vsel %vm1749, %v1750, %v1748
        %v1752 = vrsqrt.pop %v557
        %v1753 = vmul.f32 %v1752, %v557
        %v1754 = vmul.f32 %v1753, %v1752
        %v1755 = vmul.f32 0.5, %v1754
        %v1756 = vsub.f32 1.5, %v1755
        %v1757 = vmul.f32 %v1752, %v1756
        %v1758 = vmul.f32 %v557, %v1757
        %vm1759 = vcmp.eq.f32.partialorder %v557, inf
        %v1760 = vsel %vm1759, %v557, %v1758
        %vm1761 = vcmp.eq.f32.partialorder %v557, 0.0
        %v1762 = vand.u32 %v557, 2147483648
        %v1763 = vsel %vm1761, %v1762, %v1760
        %v1764 = vrsqrt.pop %v558
        %v1765 = vmul.f32 %v1764, %v558
        %v1766 = vmul.f32 %v1765, %v1764
        %v1767 = vmul.f32 0.5, %v1766
        %v1768 = vsub.f32 1.5, %v1767
        %v1769 = vmul.f32 %v1764, %v1768
        %v1770 = vmul.f32 %v558, %v1769
        %vm1771 = vcmp.eq.f32.partialorder %v558, inf
        %v1772 = vsel %vm1771, %v558, %v1770
        %vm1773 = vcmp.eq.f32.partialorder %v558, 0.0
        %v1774 = vand.u32 %v558, 2147483648
        %v1775 = vsel %vm1773, %v1774, %v1772
        %v1776 = vrsqrt.pop %v559
        %v1777 = vmul.f32 %v1776, %v559
        %v1778 = vmul.f32 %v1777, %v1776
        %v1779 = vmul.f32 0.5, %v1778
        %v1780 = vsub.f32 1.5, %v1779
        %v1781 = vmul.f32 %v1776, %v1780
        %v1782 = vmul.f32 %v559, %v1781
        %vm1783 = vcmp.eq.f32.partialorder %v559, inf
        %v1784 = vsel %vm1783, %v559, %v1782
        %vm1785 = vcmp.eq.f32.partialorder %v559, 0.0
        %v1786 = vand.u32 %v559, 2147483648
        %v1787 = vsel %vm1785, %v1786, %v1784
        %v1788 = vrsqrt.pop %v560
        %v1789 = vmul.f32 %v1788, %v560
        %v1790 = vmul.f32 %v1789, %v1788
        %v1791 = vmul.f32 0.5, %v1790
        %v1792 = vsub.f32 1.5, %v1791
        %v1793 = vmul.f32 %v1788, %v1792
        %v1794 = vmul.f32 %v560, %v1793
        %vm1795 = vcmp.eq.f32.partialorder %v560, inf
        %v1796 = vsel %vm1795, %v560, %v1794
        %vm1797 = vcmp.eq.f32.partialorder %v560, 0.0
        %v1798 = vand.u32 %v560, 2147483648
        %v1799 = vsel %vm1797, %v1798, %v1796
        %v1800 = vrsqrt.pop %v561
        %v1801 = vmul.f32 %v1800, %v561
        %v1802 = vmul.f32 %v1801, %v1800
        %v1803 = vmul.f32 0.5, %v1802
        %v1804 = vsub.f32 1.5, %v1803
        %v1805 = vmul.f32 %v1800, %v1804
        %v1806 = vmul.f32 %v561, %v1805
        %vm1807 = vcmp.eq.f32.partialorder %v561, inf
        %v1808 = vsel %vm1807, %v561, %v1806
        %vm1809 = vcmp.eq.f32.partialorder %v561, 0.0
        %v1810 = vand.u32 %v561, 2147483648
        %v1811 = vsel %vm1809, %v1810, %v1808
        %v1812 = vrsqrt.pop %v562
        %v1813 = vmul.f32 %v1812, %v562
        %v1814 = vmul.f32 %v1813, %v1812
        %v1815 = vmul.f32 0.5, %v1814
        %v1816 = vsub.f32 1.5, %v1815
        %v1817 = vmul.f32 %v1812, %v1816
        %v1818 = vmul.f32 %v562, %v1817
        %vm1819 = vcmp.eq.f32.partialorder %v562, inf
        %v1820 = vsel %vm1819, %v562, %v1818
        %vm1821 = vcmp.eq.f32.partialorder %v562, 0.0
        %v1822 = vand.u32 %v562, 2147483648
        %v1823 = vsel %vm1821, %v1822, %v1820
        %v1824 = vrsqrt.pop %v563
        %v1825 = vmul.f32 %v1824, %v563
        %v1826 = vmul.f32 %v1825, %v1824
        %v1827 = vmul.f32 0.5, %v1826
        %v1828 = vsub.f32 1.5, %v1827
        %v1829 = vmul.f32 %v1824, %v1828
        %v1830 = vmul.f32 %v563, %v1829
        %vm1831 = vcmp.eq.f32.partialorder %v563, inf
        %v1832 = vsel %vm1831, %v563, %v1830
        %vm1833 = vcmp.eq.f32.partialorder %v563, 0.0
        %v1834 = vand.u32 %v563, 2147483648
        %v1835 = vsel %vm1833, %v1834, %v1832
        %v1836 = vrsqrt.pop %v564
        %v1837 = vmul.f32 %v1836, %v564
        %v1838 = vmul.f32 %v1837, %v1836
        %v1839 = vmul.f32 0.5, %v1838
        %v1840 = vsub.f32 1.5, %v1839
        %v1841 = vmul.f32 %v1836, %v1840
        %v1842 = vmul.f32 %v564, %v1841
        %vm1843 = vcmp.eq.f32.partialorder %v564, inf
        %v1844 = vsel %vm1843, %v564, %v1842
        %vm1845 = vcmp.eq.f32.partialorder %v564, 0.0
        %v1846 = vand.u32 %v564, 2147483648
        %v1847 = vsel %vm1845, %v1846, %v1844
        %v1848 = vrsqrt.pop %v565
        %v1849 = vmul.f32 %v1848, %v565
        %v1850 = vmul.f32 %v1849, %v1848
        %v1851 = vmul.f32 0.5, %v1850
        %v1852 = vsub.f32 1.5, %v1851
        %v1853 = vmul.f32 %v1848, %v1852
        %v1854 = vmul.f32 %v565, %v1853
        %vm1855 = vcmp.eq.f32.partialorder %v565, inf
        %v1856 = vsel %vm1855, %v565, %v1854
        %vm1857 = vcmp.eq.f32.partialorder %v565, 0.0
        %v1858 = vand.u32 %v565, 2147483648
        %v1859 = vsel %vm1857, %v1858, %v1856
        %v1860 = vrsqrt.pop %v566
        %v1861 = vmul.f32 %v1860, %v566
        %v1862 = vmul.f32 %v1861, %v1860
        %v1863 = vmul.f32 0.5, %v1862
        %v1864 = vsub.f32 1.5, %v1863
        %v1865 = vmul.f32 %v1860, %v1864
        %v1866 = vmul.f32 %v566, %v1865
        %vm1867 = vcmp.eq.f32.partialorder %v566, inf
        %v1868 = vsel %vm1867, %v566, %v1866
        %vm1869 = vcmp.eq.f32.partialorder %v566, 0.0
        %v1870 = vand.u32 %v566, 2147483648
        %v1871 = vsel %vm1869, %v1870, %v1868
        %v1872 = vrsqrt.pop %v567
        %v1873 = vmul.f32 %v1872, %v567
        %v1874 = vmul.f32 %v1873, %v1872
        %v1875 = vmul.f32 0.5, %v1874
        %v1876 = vsub.f32 1.5, %v1875
        %v1877 = vmul.f32 %v1872, %v1876
        %v1878 = vmul.f32 %v567, %v1877
        %vm1879 = vcmp.eq.f32.partialorder %v567, inf
        %v1880 = vsel %vm1879, %v567, %v1878
        %vm1881 = vcmp.eq.f32.partialorder %v567, 0.0
        %v1882 = vand.u32 %v567, 2147483648
        %v1883 = vsel %vm1881, %v1882, %v1880
        %v1884 = vrsqrt.pop %v568
        %v1885 = vmul.f32 %v1884, %v568
        %v1886 = vmul.f32 %v1885, %v1884
        %v1887 = vmul.f32 0.5, %v1886
        %v1888 = vsub.f32 1.5, %v1887
        %v1889 = vmul.f32 %v1884, %v1888
        %v1890 = vmul.f32 %v568, %v1889
        %vm1891 = vcmp.eq.f32.partialorder %v568, inf
        %v1892 = vsel %vm1891, %v568, %v1890
        %vm1893 = vcmp.eq.f32.partialorder %v568, 0.0
        %v1894 = vand.u32 %v568, 2147483648
        %v1895 = vsel %vm1893, %v1894, %v1892
        %v1896 = vrsqrt.pop %v569
        %v1897 = vmul.f32 %v1896, %v569
        %v1898 = vmul.f32 %v1897, %v1896
        %v1899 = vmul.f32 0.5, %v1898
        %v1900 = vsub.f32 1.5, %v1899
        %v1901 = vmul.f32 %v1896, %v1900
        %v1902 = vmul.f32 %v569, %v1901
        %vm1903 = vcmp.eq.f32.partialorder %v569, inf
        %v1904 = vsel %vm1903, %v569, %v1902
        %vm1905 = vcmp.eq.f32.partialorder %v569, 0.0
        %v1906 = vand.u32 %v569, 2147483648
        %v1907 = vsel %vm1905, %v1906, %v1904
        %v1908 = vrsqrt.pop %v570
        %v1909 = vmul.f32 %v1908, %v570
        %v1910 = vmul.f32 %v1909, %v1908
        %v1911 = vmul.f32 0.5, %v1910
        %v1912 = vsub.f32 1.5, %v1911
        %v1913 = vmul.f32 %v1908, %v1912
        %v1914 = vmul.f32 %v570, %v1913
        %vm1915 = vcmp.eq.f32.partialorder %v570, inf
        %v1916 = vsel %vm1915, %v570, %v1914
        %vm1917 = vcmp.eq.f32.partialorder %v570, 0.0
        %v1918 = vand.u32 %v570, 2147483648
        %v1919 = vsel %vm1917, %v1918, %v1916
        %v1920 = vrsqrt.pop %v571
        %v1921 = vmul.f32 %v1920, %v571
        %v1922 = vmul.f32 %v1921, %v1920
        %v1923 = vmul.f32 0.5, %v1922
        %v1924 = vsub.f32 1.5, %v1923
        %v1925 = vmul.f32 %v1920, %v1924
        %v1926 = vmul.f32 %v571, %v1925
        %vm1927 = vcmp.eq.f32.partialorder %v571, inf
        %v1928 = vsel %vm1927, %v571, %v1926
        %vm1929 = vcmp.eq.f32.partialorder %v571, 0.0
        %v1930 = vand.u32 %v571, 2147483648
        %v1931 = vsel %vm1929, %v1930, %v1928
        %v1932 = vrsqrt.pop %v572
        %v1933 = vmul.f32 %v1932, %v572
        %v1934 = vmul.f32 %v1933, %v1932
        %v1935 = vmul.f32 0.5, %v1934
        %v1936 = vsub.f32 1.5, %v1935
        %v1937 = vmul.f32 %v1932, %v1936
        %v1938 = vmul.f32 %v572, %v1937
        %vm1939 = vcmp.eq.f32.partialorder %v572, inf
        %v1940 = vsel %vm1939, %v572, %v1938
        %vm1941 = vcmp.eq.f32.partialorder %v572, 0.0
        %v1942 = vand.u32 %v572, 2147483648
        %v1943 = vsel %vm1941, %v1942, %v1940
        %v1944 = vrsqrt.pop %v573
        %v1945 = vmul.f32 %v1944, %v573
        %v1946 = vmul.f32 %v1945, %v1944
        %v1947 = vmul.f32 0.5, %v1946
        %v1948 = vsub.f32 1.5, %v1947
        %v1949 = vmul.f32 %v1944, %v1948
        %v1950 = vmul.f32 %v573, %v1949
        %vm1951 = vcmp.eq.f32.partialorder %v573, inf
        %v1952 = vsel %vm1951, %v573, %v1950
        %vm1953 = vcmp.eq.f32.partialorder %v573, 0.0
        %v1954 = vand.u32 %v573, 2147483648
        %v1955 = vsel %vm1953, %v1954, %v1952
        %v1956 = vrsqrt.pop %v574
        %v1957 = vmul.f32 %v1956, %v574
        %v1958 = vmul.f32 %v1957, %v1956
        %v1959 = vmul.f32 0.5, %v1958
        %v1960 = vsub.f32 1.5, %v1959
        %v1961 = vmul.f32 %v1956, %v1960
        %v1962 = vmul.f32 %v574, %v1961
        %vm1963 = vcmp.eq.f32.partialorder %v574, inf
        %v1964 = vsel %vm1963, %v574, %v1962
        %vm1965 = vcmp.eq.f32.partialorder %v574, 0.0
        %v1966 = vand.u32 %v574, 2147483648
        %v1967 = vsel %vm1965, %v1966, %v1964
        %v1968 = vrsqrt.pop %v575
        %v1969 = vmul.f32 %v1968, %v575
        %v1970 = vmul.f32 %v1969, %v1968
        %v1971 = vmul.f32 0.5, %v1970
        %v1972 = vsub.f32 1.5, %v1971
        %v1973 = vmul.f32 %v1968, %v1972
        %v1974 = vmul.f32 %v575, %v1973
        %vm1975 = vcmp.eq.f32.partialorder %v575, inf
        %v1976 = vsel %vm1975, %v575, %v1974
        %vm1977 = vcmp.eq.f32.partialorder %v575, 0.0
        %v1978 = vand.u32 %v575, 2147483648
        %v1979 = vsel %vm1977, %v1978, %v1976
        %v1980 = vrsqrt.pop %v576
        %v1981 = vmul.f32 %v1980, %v576
        %v1982 = vmul.f32 %v1981, %v1980
        %v1983 = vmul.f32 0.5, %v1982
        %v1984 = vsub.f32 1.5, %v1983
        %v1985 = vmul.f32 %v1980, %v1984
        %v1986 = vmul.f32 %v576, %v1985
        %vm1987 = vcmp.eq.f32.partialorder %v576, inf
        %v1988 = vsel %vm1987, %v576, %v1986
        %vm1989 = vcmp.eq.f32.partialorder %v576, 0.0
        %v1990 = vand.u32 %v576, 2147483648
        %v1991 = vsel %vm1989, %v1990, %v1988
        %v1992 = vrsqrt.pop %v577
        %v1993 = vmul.f32 %v1992, %v577
        %v1994 = vmul.f32 %v1993, %v1992
        %v1995 = vmul.f32 0.5, %v1994
        %v1996 = vsub.f32 1.5, %v1995
        %v1997 = vmul.f32 %v1992, %v1996
        %v1998 = vmul.f32 %v577, %v1997
        %vm1999 = vcmp.eq.f32.partialorder %v577, inf
        %v2000 = vsel %vm1999, %v577, %v1998
        %vm2001 = vcmp.eq.f32.partialorder %v577, 0.0
        %v2002 = vand.u32 %v577, 2147483648
        %v2003 = vsel %vm2001, %v2002, %v2000
        %v2004 = vrsqrt.pop %v578
        %v2005 = vmul.f32 %v2004, %v578
        %v2006 = vmul.f32 %v2005, %v2004
        %v2007 = vmul.f32 0.5, %v2006
        %v2008 = vsub.f32 1.5, %v2007
        %v2009 = vmul.f32 %v2004, %v2008
        %v2010 = vmul.f32 %v578, %v2009
        %vm2011 = vcmp.eq.f32.partialorder %v578, inf
        %v2012 = vsel %vm2011, %v578, %v2010
        %vm2013 = vcmp.eq.f32.partialorder %v578, 0.0
        %v2014 = vand.u32 %v578, 2147483648
        %v2015 = vsel %vm2013, %v2014, %v2012
        %v2016 = vrsqrt.pop %v579
        %v2017 = vmul.f32 %v2016, %v579
        %v2018 = vmul.f32 %v2017, %v2016
        %v2019 = vmul.f32 0.5, %v2018
        %v2020 = vsub.f32 1.5, %v2019
        %v2021 = vmul.f32 %v2016, %v2020
        %v2022 = vmul.f32 %v579, %v2021
        %vm2023 = vcmp.eq.f32.partialorder %v579, inf
        %v2024 = vsel %vm2023, %v579, %v2022
        %vm2025 = vcmp.eq.f32.partialorder %v579, 0.0
        %v2026 = vand.u32 %v579, 2147483648
        %v2027 = vsel %vm2025, %v2026, %v2024
        %v2028 = vrsqrt.pop %v580
        %v2029 = vmul.f32 %v2028, %v580
        %v2030 = vmul.f32 %v2029, %v2028
        %v2031 = vmul.f32 0.5, %v2030
        %v2032 = vsub.f32 1.5, %v2031
        %v2033 = vmul.f32 %v2028, %v2032
        %v2034 = vmul.f32 %v580, %v2033
        %vm2035 = vcmp.eq.f32.partialorder %v580, inf
        %v2036 = vsel %vm2035, %v580, %v2034
        %vm2037 = vcmp.eq.f32.partialorder %v580, 0.0
        %v2038 = vand.u32 %v580, 2147483648
        %v2039 = vsel %vm2037, %v2038, %v2036
        %v2040 = vrsqrt.pop %v581
        %v2041 = vmul.f32 %v2040, %v581
        %v2042 = vmul.f32 %v2041, %v2040
        %v2043 = vmul.f32 0.5, %v2042
        %v2044 = vsub.f32 1.5, %v2043
        %v2045 = vmul.f32 %v2040, %v2044
        %v2046 = vmul.f32 %v581, %v2045
        %vm2047 = vcmp.eq.f32.partialorder %v581, inf
        %v2048 = vsel %vm2047, %v581, %v2046
        %vm2049 = vcmp.eq.f32.partialorder %v581, 0.0
        %v2050 = vand.u32 %v581, 2147483648
        %v2051 = vsel %vm2049, %v2050, %v2048
        %v2052 = vrsqrt.pop %v582
        %v2053 = vmul.f32 %v2052, %v582
        %v2054 = vmul.f32 %v2053, %v2052
        %v2055 = vmul.f32 0.5, %v2054
        %v2056 = vsub.f32 1.5, %v2055
        %v2057 = vmul.f32 %v2052, %v2056
        %v2058 = vmul.f32 %v582, %v2057
        %vm2059 = vcmp.eq.f32.partialorder %v582, inf
        %v2060 = vsel %vm2059, %v582, %v2058
        %vm2061 = vcmp.eq.f32.partialorder %v582, 0.0
        %v2062 = vand.u32 %v582, 2147483648
        %v2063 = vsel %vm2061, %v2062, %v2060
        %v2064 = vrsqrt.pop %v583
        %v2065 = vmul.f32 %v2064, %v583
        %v2066 = vmul.f32 %v2065, %v2064
        %v2067 = vmul.f32 0.5, %v2066
        %v2068 = vsub.f32 1.5, %v2067
        %v2069 = vmul.f32 %v2064, %v2068
        %v2070 = vmul.f32 %v583, %v2069
        %vm2071 = vcmp.eq.f32.partialorder %v583, inf
        %v2072 = vsel %vm2071, %v583, %v2070
        %vm2073 = vcmp.eq.f32.partialorder %v583, 0.0
        %v2074 = vand.u32 %v583, 2147483648
        %v2075 = vsel %vm2073, %v2074, %v2072
        %v2076 = vrsqrt.pop %v584
        %v2077 = vmul.f32 %v2076, %v584
        %v2078 = vmul.f32 %v2077, %v2076
        %v2079 = vmul.f32 0.5, %v2078
        %v2080 = vsub.f32 1.5, %v2079
        %v2081 = vmul.f32 %v2076, %v2080
        %v2082 = vmul.f32 %v584, %v2081
        %vm2083 = vcmp.eq.f32.partialorder %v584, inf
        %v2084 = vsel %vm2083, %v584, %v2082
        %vm2085 = vcmp.eq.f32.partialorder %v584, 0.0
        %v2086 = vand.u32 %v584, 2147483648
        %v2087 = vsel %vm2085, %v2086, %v2084
        %v2088 = vrsqrt.pop %v585
        %v2089 = vmul.f32 %v2088, %v585
        %v2090 = vmul.f32 %v2089, %v2088
        %v2091 = vmul.f32 0.5, %v2090
        %v2092 = vsub.f32 1.5, %v2091
        %v2093 = vmul.f32 %v2088, %v2092
        %v2094 = vmul.f32 %v585, %v2093
        %vm2095 = vcmp.eq.f32.partialorder %v585, inf
        %v2096 = vsel %vm2095, %v585, %v2094
        %vm2097 = vcmp.eq.f32.partialorder %v585, 0.0
        %v2098 = vand.u32 %v585, 2147483648
        %v2099 = vsel %vm2097, %v2098, %v2096
        %v2100 = vrsqrt.pop %v586
        %v2101 = vmul.f32 %v2100, %v586
        %v2102 = vmul.f32 %v2101, %v2100
        %v2103 = vmul.f32 0.5, %v2102
        %v2104 = vsub.f32 1.5, %v2103
        %v2105 = vmul.f32 %v2100, %v2104
        %v2106 = vmul.f32 %v586, %v2105
        %vm2107 = vcmp.eq.f32.partialorder %v586, inf
        %v2108 = vsel %vm2107, %v586, %v2106
        %vm2109 = vcmp.eq.f32.partialorder %v586, 0.0
        %v2110 = vand.u32 %v586, 2147483648
        %v2111 = vsel %vm2109, %v2110, %v2108
        %v2112 = vrsqrt.pop %v587
        %v2113 = vmul.f32 %v2112, %v587
        %v2114 = vmul.f32 %v2113, %v2112
        %v2115 = vmul.f32 0.5, %v2114
        %v2116 = vsub.f32 1.5, %v2115
        %v2117 = vmul.f32 %v2112, %v2116
        %v2118 = vmul.f32 %v587, %v2117
        %vm2119 = vcmp.eq.f32.partialorder %v587, inf
        %v2120 = vsel %vm2119, %v587, %v2118
        %vm2121 = vcmp.eq.f32.partialorder %v587, 0.0
        %v2122 = vand.u32 %v587, 2147483648
        %v2123 = vsel %vm2121, %v2122, %v2120
        %v2124 = vld [vmem:[#allocation5] sm:$0xff]
        %v2125 = vld [vmem:[#allocation5 + $0x8] sm:$0xff]
        %v2126 = vld [vmem:[#allocation5 + $0x10] sm:$0xff]
        %v2127 = vld [vmem:[#allocation5 + $0x18] sm:$0xff]
        %v2128 = vld [vmem:[#allocation5 + $0x20] sm:$0xff]
        %v2129 = vld [vmem:[#allocation5 + $0x28] sm:$0xff]
        %v2130 = vld [vmem:[#allocation5 + $0x30] sm:$0xff]
        %v2131 = vld [vmem:[#allocation5 + $0x38] sm:$0xff]
        %v2132 = vld [vmem:[#allocation5 + $0x40] sm:$0xff]
        %v2133 = vld [vmem:[#allocation5 + $0x48] sm:$0xff]
        %v2134 = vld [vmem:[#allocation5 + $0x50] sm:$0xff]
        %v2135 = vld [vmem:[#allocation5 + $0x58] sm:$0xff]
        %v2136 = vld [vmem:[#allocation5 + $0x60] sm:$0xff]
        %v2137 = vld [vmem:[#allocation5 + $0x68] sm:$0xff]
        %v2138 = vld [vmem:[#allocation5 + $0x70] sm:$0xff]
        %v2139 = vld [vmem:[#allocation5 + $0x78] sm:$0xff]
        %v2140 = vld [vmem:[#allocation5 + $0x80] sm:$0xff]
        %v2141 = vld [vmem:[#allocation5 + $0x88] sm:$0xff]
        %v2142 = vld [vmem:[#allocation5 + $0x90] sm:$0xff]
        %v2143 = vld [vmem:[#allocation5 + $0x98] sm:$0xff]
        %v2144 = vld [vmem:[#allocation5 + $0xa0] sm:$0xff]
        %v2145 = vld [vmem:[#allocation5 + $0xa8] sm:$0xff]
        %v2146 = vld [vmem:[#allocation5 + $0xb0] sm:$0xff]
        %v2147 = vld [vmem:[#allocation5 + $0xb8] sm:$0xff]
        %v2148 = vld [vmem:[#allocation5 + $0xc0] sm:$0xff]
        %v2149 = vld [vmem:[#allocation5 + $0xc8] sm:$0xff]
        %v2150 = vld [vmem:[#allocation5 + $0xd0] sm:$0xff]
        %v2151 = vld [vmem:[#allocation5 + $0xd8] sm:$0xff]
        %v2152 = vld [vmem:[#allocation5 + $0xe0] sm:$0xff]
        %v2153 = vld [vmem:[#allocation5 + $0xe8] sm:$0xff]
        %v2154 = vld [vmem:[#allocation5 + $0xf0] sm:$0xff]
        %v2155 = vld [vmem:[#allocation5 + $0xf8] sm:$0xff]
        %v2156 = vunpack.c.l.bf16 %v2124
        %v2157 = vunpack.c.h.bf16 %v2124
        %v2158 = vunpack.c.l.bf16 %v2125
        %v2159 = vunpack.c.h.bf16 %v2125
        %v2160 = vunpack.c.l.bf16 %v2126
        %v2161 = vunpack.c.h.bf16 %v2126
        %v2162 = vunpack.c.l.bf16 %v2127
        %v2163 = vunpack.c.h.bf16 %v2127
        %v2164 = vunpack.c.l.bf16 %v2128
        %v2165 = vunpack.c.h.bf16 %v2128
        %v2166 = vunpack.c.l.bf16 %v2129
        %v2167 = vunpack.c.h.bf16 %v2129
        %v2168 = vunpack.c.l.bf16 %v2130
        %v2169 = vunpack.c.h.bf16 %v2130
        %v2170 = vunpack.c.l.bf16 %v2131
        %v2171 = vunpack.c.h.bf16 %v2131
        %v2172 = vunpack.c.l.bf16 %v2132
        %v2173 = vunpack.c.h.bf16 %v2132
        %v2174 = vunpack.c.l.bf16 %v2133
        %v2175 = vunpack.c.h.bf16 %v2133
        %v2176 = vunpack.c.l.bf16 %v2134
        %v2177 = vunpack.c.h.bf16 %v2134
        %v2178 = vunpack.c.l.bf16 %v2135
        %v2179 = vunpack.c.h.bf16 %v2135
        %v2180 = vunpack.c.l.bf16 %v2136
        %v2181 = vunpack.c.h.bf16 %v2136
        %v2182 = vunpack.c.l.bf16 %v2137
        %v2183 = vunpack.c.h.bf16 %v2137
        %v2184 = vunpack.c.l.bf16 %v2138
        %v2185 = vunpack.c.h.bf16 %v2138
        %v2186 = vunpack.c.l.bf16 %v2139
        %v2187 = vunpack.c.h.bf16 %v2139
        %v2188 = vunpack.c.l.bf16 %v2140
        %v2189 = vunpack.c.h.bf16 %v2140
        %v2190 = vunpack.c.l.bf16 %v2141
        %v2191 = vunpack.c.h.bf16 %v2141
        %v2192 = vunpack.c.l.bf16 %v2142
        %v2193 = vunpack.c.h.bf16 %v2142
        %v2194 = vunpack.c.l.bf16 %v2143
        %v2195 = vunpack.c.h.bf16 %v2143
        %v2196 = vunpack.c.l.bf16 %v2144
        %v2197 = vunpack.c.h.bf16 %v2144
        %v2198 = vunpack.c.l.bf16 %v2145
        %v2199 = vunpack.c.h.bf16 %v2145
        %v2200 = vunpack.c.l.bf16 %v2146
        %v2201 = vunpack.c.h.bf16 %v2146
        %v2202 = vunpack.c.l.bf16 %v2147
        %v2203 = vunpack.c.h.bf16 %v2147
        %v2204 = vunpack.c.l.bf16 %v2148
        %v2205 = vunpack.c.h.bf16 %v2148
        %v2206 = vunpack.c.l.bf16 %v2149
        %v2207 = vunpack.c.h.bf16 %v2149
        %v2208 = vunpack.c.l.bf16 %v2150
        %v2209 = vunpack.c.h.bf16 %v2150
        %v2210 = vunpack.c.l.bf16 %v2151
        %v2211 = vunpack.c.h.bf16 %v2151
        %v2212 = vunpack.c.l.bf16 %v2152
        %v2213 = vunpack.c.h.bf16 %v2152
        %v2214 = vunpack.c.l.bf16 %v2153
        %v2215 = vunpack.c.h.bf16 %v2153
        %v2216 = vunpack.c.l.bf16 %v2154
        %v2217 = vunpack.c.h.bf16 %v2154
        %v2218 = vunpack.c.l.bf16 %v2155
        %v2219 = vunpack.c.h.bf16 %v2155
        %v2220 = vmul.f32 %v599, %v2156
        %v2221 = vmul.f32 %v611, %v2157
        %v2222 = vmul.f32 %v623, %v2158
        %v2223 = vmul.f32 %v635, %v2159
        %v2224 = vmul.f32 %v647, %v2160
        %v2225 = vmul.f32 %v659, %v2161
        %v2226 = vmul.f32 %v671, %v2162
        %v2227 = vmul.f32 %v683, %v2163
        %v2228 = vmul.f32 %v695, %v2164
        %v2229 = vmul.f32 %v707, %v2165
        %v2230 = vmul.f32 %v719, %v2166
        %v2231 = vmul.f32 %v731, %v2167
        %v2232 = vmul.f32 %v743, %v2168
        %v2233 = vmul.f32 %v755, %v2169
        %v2234 = vmul.f32 %v767, %v2170
        %v2235 = vmul.f32 %v779, %v2171
        %v2236 = vmul.f32 %v791, %v2172
        %v2237 = vmul.f32 %v803, %v2173
        %v2238 = vmul.f32 %v815, %v2174
        %v2239 = vmul.f32 %v827, %v2175
        %v2240 = vmul.f32 %v839, %v2176
        %v2241 = vmul.f32 %v851, %v2177
        %v2242 = vmul.f32 %v863, %v2178
        %v2243 = vmul.f32 %v875, %v2179
        %v2244 = vmul.f32 %v887, %v2180
        %v2245 = vmul.f32 %v899, %v2181
        %v2246 = vmul.f32 %v911, %v2182
        %v2247 = vmul.f32 %v923, %v2183
        %v2248 = vmul.f32 %v935, %v2184
        %v2249 = vmul.f32 %v947, %v2185
        %v2250 = vmul.f32 %v959, %v2186
        %v2251 = vmul.f32 %v971, %v2187
        %v2252 = vmul.f32 %v983, %v2188
        %v2253 = vmul.f32 %v995, %v2189
        %v2254 = vmul.f32 %v1007, %v2190
        %v2255 = vmul.f32 %v1019, %v2191
        %v2256 = vmul.f32 %v1031, %v2192
        %v2257 = vmul.f32 %v1043, %v2193
        %v2258 = vmul.f32 %v1055, %v2194
        %v2259 = vmul.f32 %v1067, %v2195
        %v2260 = vmul.f32 %v1079, %v2196
        %v2261 = vmul.f32 %v1091, %v2197
        %v2262 = vmul.f32 %v1103, %v2198
        %v2263 = vmul.f32 %v1115, %v2199
        %v2264 = vmul.f32 %v1127, %v2200
        %v2265 = vmul.f32 %v1139, %v2201
        %v2266 = vmul.f32 %v1151, %v2202
        %v2267 = vmul.f32 %v1163, %v2203
        %v2268 = vmul.f32 %v1175, %v2204
        %v2269 = vmul.f32 %v1187, %v2205
        %v2270 = vmul.f32 %v1199, %v2206
        %v2271 = vmul.f32 %v1211, %v2207
        %v2272 = vmul.f32 %v1223, %v2208
        %v2273 = vmul.f32 %v1235, %v2209
        %v2274 = vmul.f32 %v1247, %v2210
        %v2275 = vmul.f32 %v1259, %v2211
        %v2276 = vmul.f32 %v1271, %v2212
        %v2277 = vmul.f32 %v1283, %v2213
        %v2278 = vmul.f32 %v1295, %v2214
        %v2279 = vmul.f32 %v1307, %v2215
        %v2280 = vmul.f32 %v1319, %v2216
        %v2281 = vmul.f32 %v1331, %v2217
        %v2282 = vmul.f32 %v1343, %v2218
        %v2283 = vmul.f32 %v1355, %v2219
        %v2284 = vmul.f32 %v1367, %v2156
        %v2285 = vmul.f32 %v1379, %v2157
        %v2286 = vmul.f32 %v1391, %v2158
        %v2287 = vmul.f32 %v1403, %v2159
        %v2288 = vmul.f32 %v1415, %v2160
        %v2289 = vmul.f32 %v1427, %v2161
        %v2290 = vmul.f32 %v1439, %v2162
        %v2291 = vmul.f32 %v1451, %v2163
        %v2292 = vmul.f32 %v1463, %v2164
        %v2293 = vmul.f32 %v1475, %v2165
        %v2294 = vmul.f32 %v1487, %v2166
        %v2295 = vmul.f32 %v1499, %v2167
        %v2296 = vmul.f32 %v1511, %v2168
        %v2297 = vmul.f32 %v1523, %v2169
        %v2298 = vmul.f32 %v1535, %v2170
        %v2299 = vmul.f32 %v1547, %v2171
        %v2300 = vmul.f32 %v1559, %v2172
        %v2301 = vmul.f32 %v1571, %v2173
        %v2302 = vmul.f32 %v1583, %v2174
        %v2303 = vmul.f32 %v1595, %v2175
        %v2304 = vmul.f32 %v1607, %v2176
        %v2305 = vmul.f32 %v1619, %v2177
        %v2306 = vmul.f32 %v1631, %v2178
        %v2307 = vmul.f32 %v1643, %v2179
        %v2308 = vmul.f32 %v1655, %v2180
        %v2309 = vmul.f32 %v1667, %v2181
        %v2310 = vmul.f32 %v1679, %v2182
        %v2311 = vmul.f32 %v1691, %v2183
        %v2312 = vmul.f32 %v1703, %v2184
        %v2313 = vmul.f32 %v1715, %v2185
        %v2314 = vmul.f32 %v1727, %v2186
        %v2315 = vmul.f32 %v1739, %v2187
        %v2316 = vmul.f32 %v1751, %v2188
        %v2317 = vmul.f32 %v1763, %v2189
        %v2318 = vmul.f32 %v1775, %v2190
        %v2319 = vmul.f32 %v1787, %v2191
        %v2320 = vmul.f32 %v1799, %v2192
        %v2321 = vmul.f32 %v1811, %v2193
        %v2322 = vmul.f32 %v1823, %v2194
        %v2323 = vmul.f32 %v1835, %v2195
        %v2324 = vmul.f32 %v1847, %v2196
        %v2325 = vmul.f32 %v1859, %v2197
        %v2326 = vmul.f32 %v1871, %v2198
        %v2327 = vmul.f32 %v1883, %v2199
        %v2328 = vmul.f32 %v1895, %v2200
        %v2329 = vmul.f32 %v1907, %v2201
        %v2330 = vmul.f32 %v1919, %v2202
        %v2331 = vmul.f32 %v1931, %v2203
        %v2332 = vmul.f32 %v1943, %v2204
        %v2333 = vmul.f32 %v1955, %v2205
        %v2334 = vmul.f32 %v1967, %v2206
        %v2335 = vmul.f32 %v1979, %v2207
        %v2336 = vmul.f32 %v1991, %v2208
        %v2337 = vmul.f32 %v2003, %v2209
        %v2338 = vmul.f32 %v2015, %v2210
        %v2339 = vmul.f32 %v2027, %v2211
        %v2340 = vmul.f32 %v2039, %v2212
        %v2341 = vmul.f32 %v2051, %v2213
        %v2342 = vmul.f32 %v2063, %v2214
        %v2343 = vmul.f32 %v2075, %v2215
        %v2344 = vmul.f32 %v2087, %v2216
        %v2345 = vmul.f32 %v2099, %v2217
        %v2346 = vmul.f32 %v2111, %v2218
        %v2347 = vmul.f32 %v2123, %v2219
        %v2348 = vpack.c.bf16 %v2221, %v2220
        %v2349 = vpack.c.bf16 %v2223, %v2222
        %v2350 = vpack.c.bf16 %v2225, %v2224
        %v2351 = vpack.c.bf16 %v2227, %v2226
        %v2352 = vpack.c.bf16 %v2229, %v2228
        %v2353 = vpack.c.bf16 %v2231, %v2230
        %v2354 = vpack.c.bf16 %v2233, %v2232
        %v2355 = vpack.c.bf16 %v2235, %v2234
        %v2356 = vpack.c.bf16 %v2237, %v2236
        %v2357 = vpack.c.bf16 %v2239, %v2238
        %v2358 = vpack.c.bf16 %v2241, %v2240
        %v2359 = vpack.c.bf16 %v2243, %v2242
        %v2360 = vpack.c.bf16 %v2245, %v2244
        %v2361 = vpack.c.bf16 %v2247, %v2246
        %v2362 = vpack.c.bf16 %v2249, %v2248
        %v2363 = vpack.c.bf16 %v2251, %v2250
        %v2364 = vpack.c.bf16 %v2253, %v2252
        %v2365 = vpack.c.bf16 %v2255, %v2254
        %v2366 = vpack.c.bf16 %v2257, %v2256
        %v2367 = vpack.c.bf16 %v2259, %v2258
        %v2368 = vpack.c.bf16 %v2261, %v2260
        %v2369 = vpack.c.bf16 %v2263, %v2262
        %v2370 = vpack.c.bf16 %v2265, %v2264
        %v2371 = vpack.c.bf16 %v2267, %v2266
        %v2372 = vpack.c.bf16 %v2269, %v2268
        %v2373 = vpack.c.bf16 %v2271, %v2270
        %v2374 = vpack.c.bf16 %v2273, %v2272
        %v2375 = vpack.c.bf16 %v2275, %v2274
        %v2376 = vpack.c.bf16 %v2277, %v2276
        %v2377 = vpack.c.bf16 %v2279, %v2278
        %v2378 = vpack.c.bf16 %v2281, %v2280
        %v2379 = vpack.c.bf16 %v2283, %v2282
        %v2380 = vpack.c.bf16 %v2285, %v2284
        %v2381 = vpack.c.bf16 %v2287, %v2286
        %v2382 = vpack.c.bf16 %v2289, %v2288
        %v2383 = vpack.c.bf16 %v2291, %v2290
        %v2384 = vpack.c.bf16 %v2293, %v2292
        %v2385 = vpack.c.bf16 %v2295, %v2294
        %v2386 = vpack.c.bf16 %v2297, %v2296
        %v2387 = vpack.c.bf16 %v2299, %v2298
        %v2388 = vpack.c.bf16 %v2301, %v2300
        %v2389 = vpack.c.bf16 %v2303, %v2302
        %v2390 = vpack.c.bf16 %v2305, %v2304
        %v2391 = vpack.c.bf16 %v2307, %v2306
        %v2392 = vpack.c.bf16 %v2309, %v2308
        %v2393 = vpack.c.bf16 %v2311, %v2310
        %v2394 = vpack.c.bf16 %v2313, %v2312
        %v2395 = vpack.c.bf16 %v2315, %v2314
        %v2396 = vpack.c.bf16 %v2317, %v2316
        %v2397 = vpack.c.bf16 %v2319, %v2318
        %v2398 = vpack.c.bf16 %v2321, %v2320
        %v2399 = vpack.c.bf16 %v2323, %v2322
        %v2400 = vpack.c.bf16 %v2325, %v2324
        %v2401 = vpack.c.bf16 %v2327, %v2326
        %v2402 = vpack.c.bf16 %v2329, %v2328
        %v2403 = vpack.c.bf16 %v2331, %v2330
        %v2404 = vpack.c.bf16 %v2333, %v2332
        %v2405 = vpack.c.bf16 %v2335, %v2334
        %v2406 = vpack.c.bf16 %v2337, %v2336
        %v2407 = vpack.c.bf16 %v2339, %v2338
        %v2408 = vpack.c.bf16 %v2341, %v2340
        %v2409 = vpack.c.bf16 %v2343, %v2342
        %v2410 = vpack.c.bf16 %v2345, %v2344
        %v2411 = vpack.c.bf16 %v2347, %v2346
        %v2412 = vld [vmem:[#allocation7] sm:$0xff]
        %v2413 = vld [vmem:[#allocation7 + $0x8] sm:$0xff]
        %v2414 = vld [vmem:[#allocation7 + $0x10] sm:$0xff]
        %v2415 = vld [vmem:[#allocation7 + $0x18] sm:$0xff]
        %v2416 = vld [vmem:[#allocation7 + $0x20] sm:$0xff]
        %v2417 = vld [vmem:[#allocation7 + $0x28] sm:$0xff]
        %v2418 = vld [vmem:[#allocation7 + $0x30] sm:$0xff]
        %v2419 = vld [vmem:[#allocation7 + $0x38] sm:$0xff]
        %v2420 = vld [vmem:[#allocation7 + $0x40] sm:$0xff]
        %v2421 = vld [vmem:[#allocation7 + $0x48] sm:$0xff]
        %v2422 = vld [vmem:[#allocation7 + $0x50] sm:$0xff]
        %v2423 = vld [vmem:[#allocation7 + $0x58] sm:$0xff]
        %v2424 = vld [vmem:[#allocation7 + $0x60] sm:$0xff]
        %v2425 = vld [vmem:[#allocation7 + $0x68] sm:$0xff]
        %v2426 = vld [vmem:[#allocation7 + $0x70] sm:$0xff]
        %v2427 = vld [vmem:[#allocation7 + $0x78] sm:$0xff]
        %v2428 = vld [vmem:[#allocation7 + $0x80] sm:$0xff]
        %v2429 = vld [vmem:[#allocation7 + $0x88] sm:$0xff]
        %v2430 = vld [vmem:[#allocation7 + $0x90] sm:$0xff]
        %v2431 = vld [vmem:[#allocation7 + $0x98] sm:$0xff]
        %v2432 = vld [vmem:[#allocation7 + $0xa0] sm:$0xff]
        %v2433 = vld [vmem:[#allocation7 + $0xa8] sm:$0xff]
        %v2434 = vld [vmem:[#allocation7 + $0xb0] sm:$0xff]
        %v2435 = vld [vmem:[#allocation7 + $0xb8] sm:$0xff]
        %v2436 = vld [vmem:[#allocation7 + $0xc0] sm:$0xff]
        %v2437 = vld [vmem:[#allocation7 + $0xc8] sm:$0xff]
        %v2438 = vld [vmem:[#allocation7 + $0xd0] sm:$0xff]
        %v2439 = vld [vmem:[#allocation7 + $0xd8] sm:$0xff]
        %v2440 = vld [vmem:[#allocation7 + $0xe0] sm:$0xff]
        %v2441 = vld [vmem:[#allocation7 + $0xe8] sm:$0xff]
        %v2442 = vld [vmem:[#allocation7 + $0xf0] sm:$0xff]
        %v2443 = vld [vmem:[#allocation7 + $0xf8] sm:$0xff]
        %v2444 = vunpack.c.l.bf16 %v2412
        %v2445 = vunpack.c.h.bf16 %v2412
        %v2446 = vunpack.c.l.bf16 %v2413
        %v2447 = vunpack.c.h.bf16 %v2413
        %v2448 = vunpack.c.l.bf16 %v2414
        %v2449 = vunpack.c.h.bf16 %v2414
        %v2450 = vunpack.c.l.bf16 %v2415
        %v2451 = vunpack.c.h.bf16 %v2415
        %v2452 = vunpack.c.l.bf16 %v2416
        %v2453 = vunpack.c.h.bf16 %v2416
        %v2454 = vunpack.c.l.bf16 %v2417
        %v2455 = vunpack.c.h.bf16 %v2417
        %v2456 = vunpack.c.l.bf16 %v2418
        %v2457 = vunpack.c.h.bf16 %v2418
        %v2458 = vunpack.c.l.bf16 %v2419
        %v2459 = vunpack.c.h.bf16 %v2419
        %v2460 = vunpack.c.l.bf16 %v2420
        %v2461 = vunpack.c.h.bf16 %v2420
        %v2462 = vunpack.c.l.bf16 %v2421
        %v2463 = vunpack.c.h.bf16 %v2421
        %v2464 = vunpack.c.l.bf16 %v2422
        %v2465 = vunpack.c.h.bf16 %v2422
        %v2466 = vunpack.c.l.bf16 %v2423
        %v2467 = vunpack.c.h.bf16 %v2423
        %v2468 = vunpack.c.l.bf16 %v2424
        %v2469 = vunpack.c.h.bf16 %v2424
        %v2470 = vunpack.c.l.bf16 %v2425
        %v2471 = vunpack.c.h.bf16 %v2425
        %v2472 = vunpack.c.l.bf16 %v2426
        %v2473 = vunpack.c.h.bf16 %v2426
        %v2474 = vunpack.c.l.bf16 %v2427
        %v2475 = vunpack.c.h.bf16 %v2427
        %v2476 = vunpack.c.l.bf16 %v2428
        %v2477 = vunpack.c.h.bf16 %v2428
        %v2478 = vunpack.c.l.bf16 %v2429
        %v2479 = vunpack.c.h.bf16 %v2429
        %v2480 = vunpack.c.l.bf16 %v2430
        %v2481 = vunpack.c.h.bf16 %v2430
        %v2482 = vunpack.c.l.bf16 %v2431
        %v2483 = vunpack.c.h.bf16 %v2431
        %v2484 = vunpack.c.l.bf16 %v2432
        %v2485 = vunpack.c.h.bf16 %v2432
        %v2486 = vunpack.c.l.bf16 %v2433
        %v2487 = vunpack.c.h.bf16 %v2433
        %v2488 = vunpack.c.l.bf16 %v2434
        %v2489 = vunpack.c.h.bf16 %v2434
        %v2490 = vunpack.c.l.bf16 %v2435
        %v2491 = vunpack.c.h.bf16 %v2435
        %v2492 = vunpack.c.l.bf16 %v2436
        %v2493 = vunpack.c.h.bf16 %v2436
        %v2494 = vunpack.c.l.bf16 %v2437
        %v2495 = vunpack.c.h.bf16 %v2437
        %v2496 = vunpack.c.l.bf16 %v2438
        %v2497 = vunpack.c.h.bf16 %v2438
        %v2498 = vunpack.c.l.bf16 %v2439
        %v2499 = vunpack.c.h.bf16 %v2439
        %v2500 = vunpack.c.l.bf16 %v2440
        %v2501 = vunpack.c.h.bf16 %v2440
        %v2502 = vunpack.c.l.bf16 %v2441
        %v2503 = vunpack.c.h.bf16 %v2441
        %v2504 = vunpack.c.l.bf16 %v2442
        %v2505 = vunpack.c.h.bf16 %v2442
        %v2506 = vunpack.c.l.bf16 %v2443
        %v2507 = vunpack.c.h.bf16 %v2443
        %v2508 = vmul.f32 %v599, %v2444
        %v2509 = vmul.f32 %v611, %v2445
        %v2510 = vmul.f32 %v623, %v2446
        %v2511 = vmul.f32 %v635, %v2447
        %v2512 = vmul.f32 %v647, %v2448
        %v2513 = vmul.f32 %v659, %v2449
        %v2514 = vmul.f32 %v671, %v2450
        %v2515 = vmul.f32 %v683, %v2451
        %v2516 = vmul.f32 %v695, %v2452
        %v2517 = vmul.f32 %v707, %v2453
        %v2518 = vmul.f32 %v719, %v2454
        %v2519 = vmul.f32 %v731, %v2455
        %v2520 = vmul.f32 %v743, %v2456
        %v2521 = vmul.f32 %v755, %v2457
        %v2522 = vmul.f32 %v767, %v2458
        %v2523 = vmul.f32 %v779, %v2459
        %v2524 = vmul.f32 %v791, %v2460
        %v2525 = vmul.f32 %v803, %v2461
        %v2526 = vmul.f32 %v815, %v2462
        %v2527 = vmul.f32 %v827, %v2463
        %v2528 = vmul.f32 %v839, %v2464
        %v2529 = vmul.f32 %v851, %v2465
        %v2530 = vmul.f32 %v863, %v2466
        %v2531 = vmul.f32 %v875, %v2467
        %v2532 = vmul.f32 %v887, %v2468
        %v2533 = vmul.f32 %v899, %v2469
        %v2534 = vmul.f32 %v911, %v2470
        %v2535 = vmul.f32 %v923, %v2471
        %v2536 = vmul.f32 %v935, %v2472
        %v2537 = vmul.f32 %v947, %v2473
        %v2538 = vmul.f32 %v959, %v2474
        %v2539 = vmul.f32 %v971, %v2475
        %v2540 = vmul.f32 %v983, %v2476
        %v2541 = vmul.f32 %v995, %v2477
        %v2542 = vmul.f32 %v1007, %v2478
        %v2543 = vmul.f32 %v1019, %v2479
        %v2544 = vmul.f32 %v1031, %v2480
        %v2545 = vmul.f32 %v1043, %v2481
        %v2546 = vmul.f32 %v1055, %v2482
        %v2547 = vmul.f32 %v1067, %v2483
        %v2548 = vmul.f32 %v1079, %v2484
        %v2549 = vmul.f32 %v1091, %v2485
        %v2550 = vmul.f32 %v1103, %v2486
        %v2551 = vmul.f32 %v1115, %v2487
        %v2552 = vmul.f32 %v1127, %v2488
        %v2553 = vmul.f32 %v1139, %v2489
        %v2554 = vmul.f32 %v1151, %v2490
        %v2555 = vmul.f32 %v1163, %v2491
        %v2556 = vmul.f32 %v1175, %v2492
        %v2557 = vmul.f32 %v1187, %v2493
        %v2558 = vmul.f32 %v1199, %v2494
        %v2559 = vmul.f32 %v1211, %v2495
        %v2560 = vmul.f32 %v1223, %v2496
        %v2561 = vmul.f32 %v1235, %v2497
        %v2562 = vmul.f32 %v1247, %v2498
        %v2563 = vmul.f32 %v1259, %v2499
        %v2564 = vmul.f32 %v1271, %v2500
        %v2565 = vmul.f32 %v1283, %v2501
        %v2566 = vmul.f32 %v1295, %v2502
        %v2567 = vmul.f32 %v1307, %v2503
        %v2568 = vmul.f32 %v1319, %v2504
        %v2569 = vmul.f32 %v1331, %v2505
        %v2570 = vmul.f32 %v1343, %v2506
        %v2571 = vmul.f32 %v1355, %v2507
        %v2572 = vmul.f32 %v1367, %v2444
        %v2573 = vmul.f32 %v1379, %v2445
        %v2574 = vmul.f32 %v1391, %v2446
        %v2575 = vmul.f32 %v1403, %v2447
        %v2576 = vmul.f32 %v1415, %v2448
        %v2577 = vmul.f32 %v1427, %v2449
        %v2578 = vmul.f32 %v1439, %v2450
        %v2579 = vmul.f32 %v1451, %v2451
        %v2580 = vmul.f32 %v1463, %v2452
        %v2581 = vmul.f32 %v1475, %v2453
        %v2582 = vmul.f32 %v1487, %v2454
        %v2583 = vmul.f32 %v1499, %v2455
        %v2584 = vmul.f32 %v1511, %v2456
        %v2585 = vmul.f32 %v1523, %v2457
        %v2586 = vmul.f32 %v1535, %v2458
        %v2587 = vmul.f32 %v1547, %v2459
        %v2588 = vmul.f32 %v1559, %v2460
        %v2589 = vmul.f32 %v1571, %v2461
        %v2590 = vmul.f32 %v1583, %v2462
        %v2591 = vmul.f32 %v1595, %v2463
        %v2592 = vmul.f32 %v1607, %v2464
        %v2593 = vmul.f32 %v1619, %v2465
        %v2594 = vmul.f32 %v1631, %v2466
        %v2595 = vmul.f32 %v1643, %v2467
        %v2596 = vmul.f32 %v1655, %v2468
        %v2597 = vmul.f32 %v1667, %v2469
        %v2598 = vmul.f32 %v1679, %v2470
        %v2599 = vmul.f32 %v1691, %v2471
        %v2600 = vmul.f32 %v1703, %v2472
        %v2601 = vmul.f32 %v1715, %v2473
        %v2602 = vmul.f32 %v1727, %v2474
        %v2603 = vmul.f32 %v1739, %v2475
        %v2604 = vmul.f32 %v1751, %v2476
        %v2605 = vmul.f32 %v1763, %v2477
        %v2606 = vmul.f32 %v1775, %v2478
        %v2607 = vmul.f32 %v1787, %v2479
        %v2608 = vmul.f32 %v1799, %v2480
        %v2609 = vmul.f32 %v1811, %v2481
        %v2610 = vmul.f32 %v1823, %v2482
        %v2611 = vmul.f32 %v1835, %v2483
        %v2612 = vmul.f32 %v1847, %v2484
        %v2613 = vmul.f32 %v1859, %v2485
        %v2614 = vmul.f32 %v1871, %v2486
        %v2615 = vmul.f32 %v1883, %v2487
        %v2616 = vmul.f32 %v1895, %v2488
        %v2617 = vmul.f32 %v1907, %v2489
        %v2618 = vmul.f32 %v1919, %v2490
        %v2619 = vmul.f32 %v1931, %v2491
        %v2620 = vmul.f32 %v1943, %v2492
        %v2621 = vmul.f32 %v1955, %v2493
        %v2622 = vmul.f32 %v1967, %v2494
        %v2623 = vmul.f32 %v1979, %v2495
        %v2624 = vmul.f32 %v1991, %v2496
        %v2625 = vmul.f32 %v2003, %v2497
        %v2626 = vmul.f32 %v2015, %v2498
        %v2627 = vmul.f32 %v2027, %v2499
        %v2628 = vmul.f32 %v2039, %v2500
        %v2629 = vmul.f32 %v2051, %v2501
        %v2630 = vmul.f32 %v2063, %v2502
        %v2631 = vmul.f32 %v2075, %v2503
        %v2632 = vmul.f32 %v2087, %v2504
        %v2633 = vmul.f32 %v2099, %v2505
        %v2634 = vmul.f32 %v2111, %v2506
        %v2635 = vmul.f32 %v2123, %v2507
        %v2636 = vpack.c.bf16 %v2509, %v2508
        %v2637 = vpack.c.bf16 %v2511, %v2510
        %v2638 = vpack.c.bf16 %v2513, %v2512
        %v2639 = vpack.c.bf16 %v2515, %v2514
        %v2640 = vpack.c.bf16 %v2517, %v2516
        %v2641 = vpack.c.bf16 %v2519, %v2518
        %v2642 = vpack.c.bf16 %v2521, %v2520
        %v2643 = vpack.c.bf16 %v2523, %v2522
        %v2644 = vpack.c.bf16 %v2525, %v2524
        %v2645 = vpack.c.bf16 %v2527, %v2526
        %v2646 = vpack.c.bf16 %v2529, %v2528
        %v2647 = vpack.c.bf16 %v2531, %v2530
        %v2648 = vpack.c.bf16 %v2533, %v2532
        %v2649 = vpack.c.bf16 %v2535, %v2534
        %v2650 = vpack.c.bf16 %v2537, %v2536
        %v2651 = vpack.c.bf16 %v2539, %v2538
        %v2652 = vpack.c.bf16 %v2541, %v2540
        %v2653 = vpack.c.bf16 %v2543, %v2542
        %v2654 = vpack.c.bf16 %v2545, %v2544
        %v2655 = vpack.c.bf16 %v2547, %v2546
        %v2656 = vpack.c.bf16 %v2549, %v2548
        %v2657 = vpack.c.bf16 %v2551, %v2550
        %v2658 = vpack.c.bf16 %v2553, %v2552
        %v2659 = vpack.c.bf16 %v2555, %v2554
        %v2660 = vpack.c.bf16 %v2557, %v2556
        %v2661 = vpack.c.bf16 %v2559, %v2558
        %v2662 = vpack.c.bf16 %v2561, %v2560
        %v2663 = vpack.c.bf16 %v2563, %v2562
        %v2664 = vpack.c.bf16 %v2565, %v2564
        %v2665 = vpack.c.bf16 %v2567, %v2566
        %v2666 = vpack.c.bf16 %v2569, %v2568
        %v2667 = vpack.c.bf16 %v2571, %v2570
        %v2668 = vpack.c.bf16 %v2573, %v2572
        %v2669 = vpack.c.bf16 %v2575, %v2574
        %v2670 = vpack.c.bf16 %v2577, %v2576
        %v2671 = vpack.c.bf16 %v2579, %v2578
        %v2672 = vpack.c.bf16 %v2581, %v2580
        %v2673 = vpack.c.bf16 %v2583, %v2582
        %v2674 = vpack.c.bf16 %v2585, %v2584
        %v2675 = vpack.c.bf16 %v2587, %v2586
        %v2676 = vpack.c.bf16 %v2589, %v2588
        %v2677 = vpack.c.bf16 %v2591, %v2590
        %v2678 = vpack.c.bf16 %v2593, %v2592
        %v2679 = vpack.c.bf16 %v2595, %v2594
        %v2680 = vpack.c.bf16 %v2597, %v2596
        %v2681 = vpack.c.bf16 %v2599, %v2598
        %v2682 = vpack.c.bf16 %v2601, %v2600
        %v2683 = vpack.c.bf16 %v2603, %v2602
        %v2684 = vpack.c.bf16 %v2605, %v2604
        %v2685 = vpack.c.bf16 %v2607, %v2606
        %v2686 = vpack.c.bf16 %v2609, %v2608
        %v2687 = vpack.c.bf16 %v2611, %v2610
        %v2688 = vpack.c.bf16 %v2613, %v2612
        %v2689 = vpack.c.bf16 %v2615, %v2614
        %v2690 = vpack.c.bf16 %v2617, %v2616
        %v2691 = vpack.c.bf16 %v2619, %v2618
        %v2692 = vpack.c.bf16 %v2621, %v2620
        %v2693 = vpack.c.bf16 %v2623, %v2622
        %v2694 = vpack.c.bf16 %v2625, %v2624
        %v2695 = vpack.c.bf16 %v2627, %v2626
        %v2696 = vpack.c.bf16 %v2629, %v2628
        %v2697 = vpack.c.bf16 %v2631, %v2630
        %v2698 = vpack.c.bf16 %v2633, %v2632
        %v2699 = vpack.c.bf16 %v2635, %v2634
        %v2700 = vld [vmem:[#allocation8] sm:$0xff]
        %v2701 = vld [vmem:[#allocation8 + $0x8] sm:$0xff]
        %v2702 = vld [vmem:[#allocation8 + $0x10] sm:$0xff]
        %v2703 = vld [vmem:[#allocation8 + $0x18] sm:$0xff]
        %v2704 = vld [vmem:[#allocation8 + $0x20] sm:$0xff]
        %v2705 = vld [vmem:[#allocation8 + $0x28] sm:$0xff]
        %v2706 = vld [vmem:[#allocation8 + $0x30] sm:$0xff]
        %v2707 = vld [vmem:[#allocation8 + $0x38] sm:$0xff]
        %v2708 = vld [vmem:[#allocation8 + $0x40] sm:$0xff]
        %v2709 = vld [vmem:[#allocation8 + $0x48] sm:$0xff]
        %v2710 = vld [vmem:[#allocation8 + $0x50] sm:$0xff]
        %v2711 = vld [vmem:[#allocation8 + $0x58] sm:$0xff]
        %v2712 = vld [vmem:[#allocation8 + $0x60] sm:$0xff]
        %v2713 = vld [vmem:[#allocation8 + $0x68] sm:$0xff]
        %v2714 = vld [vmem:[#allocation8 + $0x70] sm:$0xff]
        %v2715 = vld [vmem:[#allocation8 + $0x78] sm:$0xff]
        %v2716 = vld [vmem:[#allocation8 + $0x80] sm:$0xff]
        %v2717 = vld [vmem:[#allocation8 + $0x88] sm:$0xff]
        %v2718 = vld [vmem:[#allocation8 + $0x90] sm:$0xff]
        %v2719 = vld [vmem:[#allocation8 + $0x98] sm:$0xff]
        %v2720 = vld [vmem:[#allocation8 + $0xa0] sm:$0xff]
        %v2721 = vld [vmem:[#allocation8 + $0xa8] sm:$0xff]
        %v2722 = vld [vmem:[#allocation8 + $0xb0] sm:$0xff]
        %v2723 = vld [vmem:[#allocation8 + $0xb8] sm:$0xff]
        %v2724 = vld [vmem:[#allocation8 + $0xc0] sm:$0xff]
        %v2725 = vld [vmem:[#allocation8 + $0xc8] sm:$0xff]
        %v2726 = vld [vmem:[#allocation8 + $0xd0] sm:$0xff]
        %v2727 = vld [vmem:[#allocation8 + $0xd8] sm:$0xff]
        %v2728 = vld [vmem:[#allocation8 + $0xe0] sm:$0xff]
        %v2729 = vld [vmem:[#allocation8 + $0xe8] sm:$0xff]
        %v2730 = vld [vmem:[#allocation8 + $0xf0] sm:$0xff]
        %v2731 = vld [vmem:[#allocation8 + $0xf8] sm:$0xff]
        %v2732 = vld [vmem:[#allocation10] sm:$0xff]
        %v2733 = vld [vmem:[#allocation10 + $0x8] sm:$0xff]
        %v2734 = vld [vmem:[#allocation10 + $0x10] sm:$0xff]
        %v2735 = vld [vmem:[#allocation10 + $0x18] sm:$0xff]
        %v2736 = vld [vmem:[#allocation10 + $0x20] sm:$0xff]
        %v2737 = vld [vmem:[#allocation10 + $0x28] sm:$0xff]
        %v2738 = vld [vmem:[#allocation10 + $0x30] sm:$0xff]
        %v2739 = vld [vmem:[#allocation10 + $0x38] sm:$0xff]
        %v2740 = vld [vmem:[#allocation10 + $0x40] sm:$0xff]
        %v2741 = vld [vmem:[#allocation10 + $0x48] sm:$0xff]
        %v2742 = vld [vmem:[#allocation10 + $0x50] sm:$0xff]
        %v2743 = vld [vmem:[#allocation10 + $0x58] sm:$0xff]
        %v2744 = vld [vmem:[#allocation10 + $0x60] sm:$0xff]
        %v2745 = vld [vmem:[#allocation10 + $0x68] sm:$0xff]
        %v2746 = vld [vmem:[#allocation10 + $0x70] sm:$0xff]
        %v2747 = vld [vmem:[#allocation10 + $0x78] sm:$0xff]
        %v2748 = vld [vmem:[#allocation10 + $0x80] sm:$0xff]
        %v2749 = vld [vmem:[#allocation10 + $0x88] sm:$0xff]
        %v2750 = vld [vmem:[#allocation10 + $0x90] sm:$0xff]
        %v2751 = vld [vmem:[#allocation10 + $0x98] sm:$0xff]
        %v2752 = vld [vmem:[#allocation10 + $0xa0] sm:$0xff]
        %v2753 = vld [vmem:[#allocation10 + $0xa8] sm:$0xff]
        %v2754 = vld [vmem:[#allocation10 + $0xb0] sm:$0xff]
        %v2755 = vld [vmem:[#allocation10 + $0xb8] sm:$0xff]
        %v2756 = vld [vmem:[#allocation10 + $0xc0] sm:$0xff]
        %v2757 = vld [vmem:[#allocation10 + $0xc8] sm:$0xff]
        %v2758 = vld [vmem:[#allocation10 + $0xd0] sm:$0xff]
        %v2759 = vld [vmem:[#allocation10 + $0xd8] sm:$0xff]
        %v2760 = vld [vmem:[#allocation10 + $0xe0] sm:$0xff]
        %v2761 = vld [vmem:[#allocation10 + $0xe8] sm:$0xff]
        %v2762 = vld [vmem:[#allocation10 + $0xf0] sm:$0xff]
        %v2763 = vld [vmem:[#allocation10 + $0xf8] sm:$0xff]
        %v2764 = vld [vmem:[#allocation11] sm:$0xff]
        %v2765 = vld [vmem:[#allocation11 + $0x8] sm:$0xff]
        %v2766 = vld [vmem:[#allocation11 + $0x10] sm:$0xff]
        %v2767 = vld [vmem:[#allocation11 + $0x18] sm:$0xff]
        %v2768 = vld [vmem:[#allocation11 + $0x20] sm:$0xff]
        %v2769 = vld [vmem:[#allocation11 + $0x28] sm:$0xff]
        %v2770 = vld [vmem:[#allocation11 + $0x30] sm:$0xff]
        %v2771 = vld [vmem:[#allocation11 + $0x38] sm:$0xff]
        %v2772 = vld [vmem:[#allocation11 + $0x40] sm:$0xff]
        %v2773 = vld [vmem:[#allocation11 + $0x48] sm:$0xff]
        %v2774 = vld [vmem:[#allocation11 + $0x50] sm:$0xff]
        %v2775 = vld [vmem:[#allocation11 + $0x58] sm:$0xff]
        %v2776 = vld [vmem:[#allocation11 + $0x60] sm:$0xff]
        %v2777 = vld [vmem:[#allocation11 + $0x68] sm:$0xff]
        %v2778 = vld [vmem:[#allocation11 + $0x70] sm:$0xff]
        %v2779 = vld [vmem:[#allocation11 + $0x78] sm:$0xff]
        %v2780 = vld [vmem:[#allocation11 + $0x80] sm:$0xff]
        %v2781 = vld [vmem:[#allocation11 + $0x88] sm:$0xff]
        %v2782 = vld [vmem:[#allocation11 + $0x90] sm:$0xff]
        %v2783 = vld [vmem:[#allocation11 + $0x98] sm:$0xff]
        %v2784 = vld [vmem:[#allocation11 + $0xa0] sm:$0xff]
        %v2785 = vld [vmem:[#allocation11 + $0xa8] sm:$0xff]
        %v2786 = vld [vmem:[#allocation11 + $0xb0] sm:$0xff]
        %v2787 = vld [vmem:[#allocation11 + $0xb8] sm:$0xff]
        %v2788 = vld [vmem:[#allocation11 + $0xc0] sm:$0xff]
        %v2789 = vld [vmem:[#allocation11 + $0xc8] sm:$0xff]
        %v2790 = vld [vmem:[#allocation11 + $0xd0] sm:$0xff]
        %v2791 = vld [vmem:[#allocation11 + $0xd8] sm:$0xff]
        %v2792 = vld [vmem:[#allocation11 + $0xe0] sm:$0xff]
        %v2793 = vld [vmem:[#allocation11 + $0xe8] sm:$0xff]
        %v2794 = vld [vmem:[#allocation11 + $0xf0] sm:$0xff]
        %v2795 = vld [vmem:[#allocation11 + $0xf8] sm:$0xff]
        %v2796 = vld [vmem:[#allocation13] sm:$0xff]
        %v2797 = vld [vmem:[#allocation13 + $0x8] sm:$0xff]
        %v2798 = vld [vmem:[#allocation13 + $0x10] sm:$0xff]
        %v2799 = vld [vmem:[#allocation13 + $0x18] sm:$0xff]
        %v2800 = vld [vmem:[#allocation13 + $0x20] sm:$0xff]
        %v2801 = vld [vmem:[#allocation13 + $0x28] sm:$0xff]
        %v2802 = vld [vmem:[#allocation13 + $0x30] sm:$0xff]
        %v2803 = vld [vmem:[#allocation13 + $0x38] sm:$0xff]
        %v2804 = vld [vmem:[#allocation13 + $0x40] sm:$0xff]
        %v2805 = vld [vmem:[#allocation13 + $0x48] sm:$0xff]
        %v2806 = vld [vmem:[#allocation13 + $0x50] sm:$0xff]
        %v2807 = vld [vmem:[#allocation13 + $0x58] sm:$0xff]
        %v2808 = vld [vmem:[#allocation13 + $0x60] sm:$0xff]
        %v2809 = vld [vmem:[#allocation13 + $0x68] sm:$0xff]
        %v2810 = vld [vmem:[#allocation13 + $0x70] sm:$0xff]
        %v2811 = vld [vmem:[#allocation13 + $0x78] sm:$0xff]
        %v2812 = vld [vmem:[#allocation13 + $0x80] sm:$0xff]
        %v2813 = vld [vmem:[#allocation13 + $0x88] sm:$0xff]
        %v2814 = vld [vmem:[#allocation13 + $0x90] sm:$0xff]
        %v2815 = vld [vmem:[#allocation13 + $0x98] sm:$0xff]
        %v2816 = vld [vmem:[#allocation13 + $0xa0] sm:$0xff]
        %v2817 = vld [vmem:[#allocation13 + $0xa8] sm:$0xff]
        %v2818 = vld [vmem:[#allocation13 + $0xb0] sm:$0xff]
        %v2819 = vld [vmem:[#allocation13 + $0xb8] sm:$0xff]
        %v2820 = vld [vmem:[#allocation13 + $0xc0] sm:$0xff]
        %v2821 = vld [vmem:[#allocation13 + $0xc8] sm:$0xff]
        %v2822 = vld [vmem:[#allocation13 + $0xd0] sm:$0xff]
        %v2823 = vld [vmem:[#allocation13 + $0xd8] sm:$0xff]
        %v2824 = vld [vmem:[#allocation13 + $0xe0] sm:$0xff]
        %v2825 = vld [vmem:[#allocation13 + $0xe8] sm:$0xff]
        %v2826 = vld [vmem:[#allocation13 + $0xf0] sm:$0xff]
        %v2827 = vld [vmem:[#allocation13 + $0xf8] sm:$0xff]
        %v2892 = vunpack.c.l.b16 %v2348
        %v2893 = vunpack.c.h.b16 %v2348
        %v2894 = vunpack.c.l.b16 %v2349
        %v2895 = vunpack.c.h.b16 %v2349
        %v2896 = vunpack.c.l.b16 %v2350
        %v2897 = vunpack.c.h.b16 %v2350
        %v2898 = vunpack.c.l.b16 %v2351
        %v2899 = vunpack.c.h.b16 %v2351
        %v2900 = vunpack.c.l.b16 %v2352
        %v2901 = vunpack.c.h.b16 %v2352
        %v2902 = vunpack.c.l.b16 %v2353
        %v2903 = vunpack.c.h.b16 %v2353
        %v2904 = vunpack.c.l.b16 %v2354
        %v2905 = vunpack.c.h.b16 %v2354
        %v2906 = vunpack.c.l.b16 %v2355
        %v2907 = vunpack.c.h.b16 %v2355
        %v2908 = vunpack.c.l.b16 %v2356
        %v2909 = vunpack.c.h.b16 %v2356
        %v2910 = vunpack.c.l.b16 %v2357
        %v2911 = vunpack.c.h.b16 %v2357
        %v2912 = vunpack.c.l.b16 %v2358
        %v2913 = vunpack.c.h.b16 %v2358
        %v2914 = vunpack.c.l.b16 %v2359
        %v2915 = vunpack.c.h.b16 %v2359
        %v2916 = vunpack.c.l.b16 %v2360
        %v2917 = vunpack.c.h.b16 %v2360
        %v2918 = vunpack.c.l.b16 %v2361
        %v2919 = vunpack.c.h.b16 %v2361
        %v2920 = vunpack.c.l.b16 %v2362
        %v2921 = vunpack.c.h.b16 %v2362
        %v2922 = vunpack.c.l.b16 %v2363
        %v2923 = vunpack.c.h.b16 %v2363
        %v2924 = vunpack.c.l.b16 %v2364
        %v2925 = vunpack.c.h.b16 %v2364
        %v2926 = vunpack.c.l.b16 %v2365
        %v2927 = vunpack.c.h.b16 %v2365
        %v2928 = vunpack.c.l.b16 %v2366
        %v2929 = vunpack.c.h.b16 %v2366
        %v2930 = vunpack.c.l.b16 %v2367
        %v2931 = vunpack.c.h.b16 %v2367
        %v2932 = vunpack.c.l.b16 %v2368
        %v2933 = vunpack.c.h.b16 %v2368
        %v2934 = vunpack.c.l.b16 %v2369
        %v2935 = vunpack.c.h.b16 %v2369
        %v2936 = vunpack.c.l.b16 %v2370
        %v2937 = vunpack.c.h.b16 %v2370
        %v2938 = vunpack.c.l.b16 %v2371
        %v2939 = vunpack.c.h.b16 %v2371
        %v2940 = vunpack.c.l.b16 %v2372
        %v2941 = vunpack.c.h.b16 %v2372
        %v2942 = vunpack.c.l.b16 %v2373
        %v2943 = vunpack.c.h.b16 %v2373
        %v2944 = vunpack.c.l.b16 %v2374
        %v2945 = vunpack.c.h.b16 %v2374
        %v2946 = vunpack.c.l.b16 %v2375
        %v2947 = vunpack.c.h.b16 %v2375
        %v2948 = vunpack.c.l.b16 %v2376
        %v2949 = vunpack.c.h.b16 %v2376
        %v2950 = vunpack.c.l.b16 %v2377
        %v2951 = vunpack.c.h.b16 %v2377
        %v2952 = vunpack.c.l.b16 %v2378
        %v2953 = vunpack.c.h.b16 %v2378
        %v2954 = vunpack.c.l.b16 %v2379
        %v2955 = vunpack.c.h.b16 %v2379
        %v2956 = vunpack.c.l.b16 %v2380
        %v2957 = vunpack.c.h.b16 %v2380
        %v2958 = vunpack.c.l.b16 %v2381
        %v2959 = vunpack.c.h.b16 %v2381
        %v2960 = vunpack.c.l.b16 %v2382
        %v2961 = vunpack.c.h.b16 %v2382
        %v2962 = vunpack.c.l.b16 %v2383
        %v2963 = vunpack.c.h.b16 %v2383
        %v2964 = vunpack.c.l.b16 %v2384
        %v2965 = vunpack.c.h.b16 %v2384
        %v2966 = vunpack.c.l.b16 %v2385
        %v2967 = vunpack.c.h.b16 %v2385
        %v2968 = vunpack.c.l.b16 %v2386
        %v2969 = vunpack.c.h.b16 %v2386
        %v2970 = vunpack.c.l.b16 %v2387
        %v2971 = vunpack.c.h.b16 %v2387
        %v2972 = vunpack.c.l.b16 %v2388
        %v2973 = vunpack.c.h.b16 %v2388
        %v2974 = vunpack.c.l.b16 %v2389
        %v2975 = vunpack.c.h.b16 %v2389
        %v2976 = vunpack.c.l.b16 %v2390
        %v2977 = vunpack.c.h.b16 %v2390
        %v2978 = vunpack.c.l.b16 %v2391
        %v2979 = vunpack.c.h.b16 %v2391
        %v2980 = vunpack.c.l.b16 %v2392
        %v2981 = vunpack.c.h.b16 %v2392
        %v2982 = vunpack.c.l.b16 %v2393
        %v2983 = vunpack.c.h.b16 %v2393
        %v2984 = vunpack.c.l.b16 %v2394
        %v2985 = vunpack.c.h.b16 %v2394
        %v2986 = vunpack.c.l.b16 %v2395
        %v2987 = vunpack.c.h.b16 %v2395
        %v2988 = vunpack.c.l.b16 %v2396
        %v2989 = vunpack.c.h.b16 %v2396
        %v2990 = vunpack.c.l.b16 %v2397
        %v2991 = vunpack.c.h.b16 %v2397
        %v2992 = vunpack.c.l.b16 %v2398
        %v2993 = vunpack.c.h.b16 %v2398
        %v2994 = vunpack.c.l.b16 %v2399
        %v2995 = vunpack.c.h.b16 %v2399
        %v2996 = vunpack.c.l.b16 %v2400
        %v2997 = vunpack.c.h.b16 %v2400
        %v2998 = vunpack.c.l.b16 %v2401
        %v2999 = vunpack.c.h.b16 %v2401
        %v3000 = vunpack.c.l.b16 %v2402
        %v3001 = vunpack.c.h.b16 %v2402
        %v3002 = vunpack.c.l.b16 %v2403
        %v3003 = vunpack.c.h.b16 %v2403
        %v3004 = vunpack.c.l.b16 %v2404
        %v3005 = vunpack.c.h.b16 %v2404
        %v3006 = vunpack.c.l.b16 %v2405
        %v3007 = vunpack.c.h.b16 %v2405
        %v3008 = vunpack.c.l.b16 %v2406
        %v3009 = vunpack.c.h.b16 %v2406
        %v3010 = vunpack.c.l.b16 %v2407
        %v3011 = vunpack.c.h.b16 %v2407
        %v3012 = vunpack.c.l.b16 %v2408
        %v3013 = vunpack.c.h.b16 %v2408
        %v3014 = vunpack.c.l.b16 %v2409
        %v3015 = vunpack.c.h.b16 %v2409
        %v3016 = vunpack.c.l.b16 %v2410
        %v3017 = vunpack.c.h.b16 %v2410
        %v3018 = vunpack.c.l.b16 %v2411
        %v3019 = vunpack.c.h.b16 %v2411
        %v3020 = vpack.c.b16 %v2894, %v2892
        %v3021 = vpack.c.b16 %v2895, %v2893
        %v3022 = vpack.c.b16 %v2898, %v2896
        %v3023 = vpack.c.b16 %v2899, %v2897
        %v3024 = vpack.c.b16 %v2902, %v2900
        %v3025 = vpack.c.b16 %v2903, %v2901
        %v3026 = vpack.c.b16 %v2906, %v2904
        %v3027 = vpack.c.b16 %v2907, %v2905
        %v3028 = vpack.c.b16 %v2910, %v2908
        %v3029 = vpack.c.b16 %v2911, %v2909
        %v3030 = vpack.c.b16 %v2914, %v2912
        %v3031 = vpack.c.b16 %v2915, %v2913
        %v3032 = vpack.c.b16 %v2918, %v2916
        %v3033 = vpack.c.b16 %v2919, %v2917
        %v3034 = vpack.c.b16 %v2922, %v2920
        %v3035 = vpack.c.b16 %v2923, %v2921
        %v3036 = vpack.c.b16 %v2926, %v2924
        %v3037 = vpack.c.b16 %v2927, %v2925
        %v3038 = vpack.c.b16 %v2930, %v2928
        %v3039 = vpack.c.b16 %v2931, %v2929
        %v3040 = vpack.c.b16 %v2934, %v2932
        %v3041 = vpack.c.b16 %v2935, %v2933
        %v3042 = vpack.c.b16 %v2938, %v2936
        %v3043 = vpack.c.b16 %v2939, %v2937
        %v3044 = vpack.c.b16 %v2942, %v2940
        %v3045 = vpack.c.b16 %v2943, %v2941
        %v3046 = vpack.c.b16 %v2946, %v2944
        %v3047 = vpack.c.b16 %v2947, %v2945
        %v3048 = vpack.c.b16 %v2950, %v2948
        %v3049 = vpack.c.b16 %v2951, %v2949
        %v3050 = vpack.c.b16 %v2954, %v2952
        %v3051 = vpack.c.b16 %v2955, %v2953
        %v3052 = vpack.c.b16 %v2958, %v2956
        %v3053 = vpack.c.b16 %v2959, %v2957
        %v3054 = vpack.c.b16 %v2962, %v2960
        %v3055 = vpack.c.b16 %v2963, %v2961
        %v3056 = vpack.c.b16 %v2966, %v2964
        %v3057 = vpack.c.b16 %v2967, %v2965
        %v3058 = vpack.c.b16 %v2970, %v2968
        %v3059 = vpack.c.b16 %v2971, %v2969
        %v3060 = vpack.c.b16 %v2974, %v2972
        %v3061 = vpack.c.b16 %v2975, %v2973
        %v3062 = vpack.c.b16 %v2978, %v2976
        %v3063 = vpack.c.b16 %v2979, %v2977
        %v3064 = vpack.c.b16 %v2982, %v2980
        %v3065 = vpack.c.b16 %v2983, %v2981
        %v3066 = vpack.c.b16 %v2986, %v2984
        %v3067 = vpack.c.b16 %v2987, %v2985
        %v3068 = vpack.c.b16 %v2990, %v2988
        %v3069 = vpack.c.b16 %v2991, %v2989
        %v3070 = vpack.c.b16 %v2994, %v2992
        %v3071 = vpack.c.b16 %v2995, %v2993
        %v3072 = vpack.c.b16 %v2998, %v2996
        %v3073 = vpack.c.b16 %v2999, %v2997
        %v3074 = vpack.c.b16 %v3002, %v3000
        %v3075 = vpack.c.b16 %v3003, %v3001
        %v3076 = vpack.c.b16 %v3006, %v3004
        %v3077 = vpack.c.b16 %v3007, %v3005
        %v3078 = vpack.c.b16 %v3010, %v3008
        %v3079 = vpack.c.b16 %v3011, %v3009
        %v3080 = vpack.c.b16 %v3014, %v3012
        %v3081 = vpack.c.b16 %v3015, %v3013
        %v3082 = vpack.c.b16 %v3018, %v3016
        %v3083 = vpack.c.b16 %v3019, %v3017
        %v3180 = vunpack.c.l.b16 %v2764
        %v3181 = vunpack.c.h.b16 %v2764
        %v3182 = vunpack.c.l.b16 %v2765
        %v3183 = vunpack.c.h.b16 %v2765
        %v3184 = vunpack.c.l.b16 %v2766
        %v3185 = vunpack.c.h.b16 %v2766
        %v3186 = vunpack.c.l.b16 %v2767
        %v3187 = vunpack.c.h.b16 %v2767
        %v3188 = vunpack.c.l.b16 %v2768
        %v3189 = vunpack.c.h.b16 %v2768
        %v3190 = vunpack.c.l.b16 %v2769
        %v3191 = vunpack.c.h.b16 %v2769
        %v3192 = vunpack.c.l.b16 %v2770
        %v3193 = vunpack.c.h.b16 %v2770
        %v3194 = vunpack.c.l.b16 %v2771
        %v3195 = vunpack.c.h.b16 %v2771
        %v3196 = vunpack.c.l.b16 %v2772
        %v3197 = vunpack.c.h.b16 %v2772
        %v3198 = vunpack.c.l.b16 %v2773
        %v3199 = vunpack.c.h.b16 %v2773
        %v3200 = vunpack.c.l.b16 %v2774
        %v3201 = vunpack.c.h.b16 %v2774
        %v3202 = vunpack.c.l.b16 %v2775
        %v3203 = vunpack.c.h.b16 %v2775
        %v3204 = vunpack.c.l.b16 %v2776
        %v3205 = vunpack.c.h.b16 %v2776
        %v3206 = vunpack.c.l.b16 %v2777
        %v3207 = vunpack.c.h.b16 %v2777
        %v3208 = vunpack.c.l.b16 %v2778
        %v3209 = vunpack.c.h.b16 %v2778
        %v3210 = vunpack.c.l.b16 %v2779
        %v3211 = vunpack.c.h.b16 %v2779
        %v3212 = vunpack.c.l.b16 %v2780
        %v3213 = vunpack.c.h.b16 %v2780
        %v3214 = vunpack.c.l.b16 %v2781
        %v3215 = vunpack.c.h.b16 %v2781
        %v3216 = vunpack.c.l.b16 %v2782
        %v3217 = vunpack.c.h.b16 %v2782
        %v3218 = vunpack.c.l.b16 %v2783
        %v3219 = vunpack.c.h.b16 %v2783
        %v3220 = vunpack.c.l.b16 %v2784
        %v3221 = vunpack.c.h.b16 %v2784
        %v3222 = vunpack.c.l.b16 %v2785
        %v3223 = vunpack.c.h.b16 %v2785
        %v3224 = vunpack.c.l.b16 %v2786
        %v3225 = vunpack.c.h.b16 %v2786
        %v3226 = vunpack.c.l.b16 %v2787
        %v3227 = vunpack.c.h.b16 %v2787
        %v3228 = vunpack.c.l.b16 %v2788
        %v3229 = vunpack.c.h.b16 %v2788
        %v3230 = vunpack.c.l.b16 %v2789
        %v3231 = vunpack.c.h.b16 %v2789
        %v3232 = vunpack.c.l.b16 %v2790
        %v3233 = vunpack.c.h.b16 %v2790
        %v3234 = vunpack.c.l.b16 %v2791
        %v3235 = vunpack.c.h.b16 %v2791
        %v3236 = vunpack.c.l.b16 %v2792
        %v3237 = vunpack.c.h.b16 %v2792
        %v3238 = vunpack.c.l.b16 %v2793
        %v3239 = vunpack.c.h.b16 %v2793
        %v3240 = vunpack.c.l.b16 %v2794
        %v3241 = vunpack.c.h.b16 %v2794
        %v3242 = vunpack.c.l.b16 %v2795
        %v3243 = vunpack.c.h.b16 %v2795
        %v3244 = vpack.c.b16 %v3182, %v3180
        %v3245 = vpack.c.b16 %v3183, %v3181
        %v3246 = vpack.c.b16 %v3186, %v3184
        %v3247 = vpack.c.b16 %v3187, %v3185
        %v3248 = vpack.c.b16 %v3190, %v3188
        %v3249 = vpack.c.b16 %v3191, %v3189
        %v3250 = vpack.c.b16 %v3194, %v3192
        %v3251 = vpack.c.b16 %v3195, %v3193
        %v3252 = vpack.c.b16 %v3198, %v3196
        %v3253 = vpack.c.b16 %v3199, %v3197
        %v3254 = vpack.c.b16 %v3202, %v3200
        %v3255 = vpack.c.b16 %v3203, %v3201
        %v3256 = vpack.c.b16 %v3206, %v3204
        %v3257 = vpack.c.b16 %v3207, %v3205
        %v3258 = vpack.c.b16 %v3210, %v3208
        %v3259 = vpack.c.b16 %v3211, %v3209
        %v3260 = vpack.c.b16 %v3214, %v3212
        %v3261 = vpack.c.b16 %v3215, %v3213
        %v3262 = vpack.c.b16 %v3218, %v3216
        %v3263 = vpack.c.b16 %v3219, %v3217
        %v3264 = vpack.c.b16 %v3222, %v3220
        %v3265 = vpack.c.b16 %v3223, %v3221
        %v3266 = vpack.c.b16 %v3226, %v3224
        %v3267 = vpack.c.b16 %v3227, %v3225
        %v3268 = vpack.c.b16 %v3230, %v3228
        %v3269 = vpack.c.b16 %v3231, %v3229
        %v3270 = vpack.c.b16 %v3234, %v3232
        %v3271 = vpack.c.b16 %v3235, %v3233
        %v3272 = vpack.c.b16 %v3238, %v3236
        %v3273 = vpack.c.b16 %v3239, %v3237
        %v3274 = vpack.c.b16 %v3242, %v3240
        %v3275 = vpack.c.b16 %v3243, %v3241
        %3308 = vmatpush.bf16.msra.mxu0 %v3258
        %3309 = vmatpush.bf16.msra.mxu0 %v3256
        %3310 = vmatpush.bf16.msra.mxu0 %v3254
        %3311 = vmatpush.bf16.msra.mxu0 %v3252
        %3312 = vmatpush.bf16.msra.mxu0 %v3250
        %3313 = vmatpush.bf16.msra.mxu0 %v3248
        %3314 = vmatpush.bf16.msra.mxu0 %v3246
        %3315 = vmatpush.bf16.msra.mxu0 %v3244
        %3316 = vmatmul.bf16.gmra.mxu0 %v3020
        %v3317 = vpop.f32.mrf.mxu0
        %v3318 = vadd.f32 0.0, %v3317
        %v3319 = vpop.f32.mrf.mxu0
        %v3320 = vadd.f32 0.0, %v3319
        %3321 = vmatmul.bf16.gmra.mxu0 %v3022
        %v3322 = vpop.f32.mrf.mxu0
        %v3323 = vadd.f32 0.0, %v3322
        %v3324 = vpop.f32.mrf.mxu0
        %v3325 = vadd.f32 0.0, %v3324
        %3326 = vmatmul.bf16.gmra.mxu0 %v3024
        %v3327 = vpop.f32.mrf.mxu0
        %v3328 = vadd.f32 0.0, %v3327
        %v3329 = vpop.f32.mrf.mxu0
        %v3330 = vadd.f32 0.0, %v3329
        %3331 = vmatmul.bf16.gmra.mxu0 %v3026
        %v3332 = vpop.f32.mrf.mxu0
        %v3333 = vadd.f32 0.0, %v3332
        %v3334 = vpop.f32.mrf.mxu0
        %v3335 = vadd.f32 0.0, %v3334
        %3336 = vmatmul.bf16.gmra.mxu0 %v3028
        %v3337 = vpop.f32.mrf.mxu0
        %v3338 = vadd.f32 0.0, %v3337
        %v3339 = vpop.f32.mrf.mxu0
        %v3340 = vadd.f32 0.0, %v3339
        %3341 = vmatmul.bf16.gmra.mxu0 %v3030
        %v3342 = vpop.f32.mrf.mxu0
        %v3343 = vadd.f32 0.0, %v3342
        %v3344 = vpop.f32.mrf.mxu0
        %v3345 = vadd.f32 0.0, %v3344
        %3346 = vmatmul.bf16.gmra.mxu0 %v3032
        %v3347 = vpop.f32.mrf.mxu0
        %v3348 = vadd.f32 0.0, %v3347
        %v3349 = vpop.f32.mrf.mxu0
        %v3350 = vadd.f32 0.0, %v3349
        %3351 = vmatmul.bf16.gmra.mxu0 %v3034
        %v3352 = vpop.f32.mrf.mxu0
        %v3353 = vadd.f32 0.0, %v3352
        %v3354 = vpop.f32.mrf.mxu0
        %v3355 = vadd.f32 0.0, %v3354
        %3356 = vmatmul.bf16.gmra.mxu0 %v3036
        %v3357 = vpop.f32.mrf.mxu0
        %v3358 = vadd.f32 0.0, %v3357
        %v3359 = vpop.f32.mrf.mxu0
        %v3360 = vadd.f32 0.0, %v3359
        %3361 = vmatmul.bf16.gmra.mxu0 %v3038
        %v3362 = vpop.f32.mrf.mxu0
        %v3363 = vadd.f32 0.0, %v3362
        %v3364 = vpop.f32.mrf.mxu0
        %v3365 = vadd.f32 0.0, %v3364
        %3366 = vmatmul.bf16.gmra.mxu0 %v3040
        %v3367 = vpop.f32.mrf.mxu0
        %v3368 = vadd.f32 0.0, %v3367
        %v3369 = vpop.f32.mrf.mxu0
        %v3370 = vadd.f32 0.0, %v3369
        %3371 = vmatmul.bf16.gmra.mxu0 %v3042
        %v3372 = vpop.f32.mrf.mxu0
        %v3373 = vadd.f32 0.0, %v3372
        %v3374 = vpop.f32.mrf.mxu0
        %v3375 = vadd.f32 0.0, %v3374
        %3376 = vmatmul.bf16.gmra.mxu0 %v3044
        %v3377 = vpop.f32.mrf.mxu0
        %v3378 = vadd.f32 0.0, %v3377
        %v3379 = vpop.f32.mrf.mxu0
        %v3380 = vadd.f32 0.0, %v3379
        %3381 = vmatmul.bf16.gmra.mxu0 %v3046
        %v3382 = vpop.f32.mrf.mxu0
        %v3383 = vadd.f32 0.0, %v3382
        %v3384 = vpop.f32.mrf.mxu0
        %v3385 = vadd.f32 0.0, %v3384
        %3386 = vmatmul.bf16.gmra.mxu0 %v3048
        %v3387 = vpop.f32.mrf.mxu0
        %v3388 = vadd.f32 0.0, %v3387
        %v3389 = vpop.f32.mrf.mxu0
        %v3390 = vadd.f32 0.0, %v3389
        %3391 = vmatmul.bf16.gmra.mxu0 %v3050
        %v3392 = vpop.f32.mrf.mxu0
        %v3393 = vadd.f32 0.0, %v3392
        %v3394 = vpop.f32.mrf.mxu0
        %v3395 = vadd.f32 0.0, %v3394
        %3396 = vmatmul.bf16.gmra.mxu0 %v3052
        %v3397 = vpop.f32.mrf.mxu0
        %v3398 = vadd.f32 0.0, %v3397
        %v3399 = vpop.f32.mrf.mxu0
        %v3400 = vadd.f32 0.0, %v3399
        %3401 = vmatmul.bf16.gmra.mxu0 %v3054
        %v3402 = vpop.f32.mrf.mxu0
        %v3403 = vadd.f32 0.0, %v3402
        %v3404 = vpop.f32.mrf.mxu0
        %v3405 = vadd.f32 0.0, %v3404
        %3406 = vmatmul.bf16.gmra.mxu0 %v3056
        %v3407 = vpop.f32.mrf.mxu0
        %v3408 = vadd.f32 0.0, %v3407
        %v3409 = vpop.f32.mrf.mxu0
        %v3410 = vadd.f32 0.0, %v3409
        %3411 = vmatmul.bf16.gmra.mxu0 %v3058
        %v3412 = vpop.f32.mrf.mxu0
        %v3413 = vadd.f32 0.0, %v3412
        %v3414 = vpop.f32.mrf.mxu0
        %v3415 = vadd.f32 0.0, %v3414
        %3416 = vmatmul.bf16.gmra.mxu0 %v3060
        %v3417 = vpop.f32.mrf.mxu0
        %v3418 = vadd.f32 0.0, %v3417
        %v3419 = vpop.f32.mrf.mxu0
        %v3420 = vadd.f32 0.0, %v3419
        %3421 = vmatmul.bf16.gmra.mxu0 %v3062
        %v3422 = vpop.f32.mrf.mxu0
        %v3423 = vadd.f32 0.0, %v3422
        %v3424 = vpop.f32.mrf.mxu0
        %v3425 = vadd.f32 0.0, %v3424
        %3426 = vmatmul.bf16.gmra.mxu0 %v3064
        %v3427 = vpop.f32.mrf.mxu0
        %v3428 = vadd.f32 0.0, %v3427
        %v3429 = vpop.f32.mrf.mxu0
        %v3430 = vadd.f32 0.0, %v3429
        %3431 = vmatmul.bf16.gmra.mxu0 %v3066
        %v3432 = vpop.f32.mrf.mxu0
        %v3433 = vadd.f32 0.0, %v3432
        %v3434 = vpop.f32.mrf.mxu0
        %v3435 = vadd.f32 0.0, %v3434
        %3436 = vmatmul.bf16.gmra.mxu0 %v3068
        %v3437 = vpop.f32.mrf.mxu0
        %v3438 = vadd.f32 0.0, %v3437
        %v3439 = vpop.f32.mrf.mxu0
        %v3440 = vadd.f32 0.0, %v3439
        %3441 = vmatmul.bf16.gmra.mxu0 %v3070
        %v3442 = vpop.f32.mrf.mxu0
        %v3443 = vadd.f32 0.0, %v3442
        %v3444 = vpop.f32.mrf.mxu0
        %v3445 = vadd.f32 0.0, %v3444
        %3446 = vmatmul.bf16.gmra.mxu0 %v3072
        %v3447 = vpop.f32.mrf.mxu0
        %v3448 = vadd.f32 0.0, %v3447
        %v3449 = vpop.f32.mrf.mxu0
        %v3450 = vadd.f32 0.0, %v3449
        %3451 = vmatmul.bf16.gmra.mxu0 %v3074
        %v3452 = vpop.f32.mrf.mxu0
        %v3453 = vadd.f32 0.0, %v3452
        %v3454 = vpop.f32.mrf.mxu0
        %v3455 = vadd.f32 0.0, %v3454
        %3456 = vmatmul.bf16.gmra.mxu0 %v3076
        %v3457 = vpop.f32.mrf.mxu0
        %v3458 = vadd.f32 0.0, %v3457
        %v3459 = vpop.f32.mrf.mxu0
        %v3460 = vadd.f32 0.0, %v3459
        %3461 = vmatmul.bf16.gmra.mxu0 %v3078
        %v3462 = vpop.f32.mrf.mxu0
        %v3463 = vadd.f32 0.0, %v3462
        %v3464 = vpop.f32.mrf.mxu0
        %v3465 = vadd.f32 0.0, %v3464
        %3466 = vmatmul.bf16.gmra.mxu0 %v3080
        %v3467 = vpop.f32.mrf.mxu0
        %v3468 = vadd.f32 0.0, %v3467
        %v3469 = vpop.f32.mrf.mxu0
        %v3470 = vadd.f32 0.0, %v3469
        %3471 = vmatmul.bf16.gmra.mxu0 %v3082
        %v3472 = vpop.f32.mrf.mxu0
        %v3473 = vadd.f32 0.0, %v3472
        %v3474 = vpop.f32.mrf.mxu0
        %v3475 = vadd.f32 0.0, %v3474
        %3476 = vdwg.mxu0
        %3477 = vmatpush.bf16.msra.mxu0 %v3274
        %3478 = vmatpush.bf16.msra.mxu0 %v3272
        %3479 = vmatpush.bf16.msra.mxu0 %v3270
        %3480 = vmatpush.bf16.msra.mxu0 %v3268
        %3481 = vmatpush.bf16.msra.mxu0 %v3266
        %3482 = vmatpush.bf16.msra.mxu0 %v3264
        %3483 = vmatpush.bf16.msra.mxu0 %v3262
        %3484 = vmatpush.bf16.msra.mxu0 %v3260
        %3485 = vmatmul.bf16.gmra.mxu0 %v3021
        %v3486 = vpop.f32.mrf.mxu0
        %v3487 = vadd.f32 %v3318, %v3486
        %v3488 = vpop.f32.mrf.mxu0
        %v3489 = vadd.f32 %v3320, %v3488
        %3490 = vmatmul.bf16.gmra.mxu0 %v3023
        %v3491 = vpop.f32.mrf.mxu0
        %v3492 = vadd.f32 %v3323, %v3491
        %v3493 = vpop.f32.mrf.mxu0
        %v3494 = vadd.f32 %v3325, %v3493
        %3495 = vmatmul.bf16.gmra.mxu0 %v3025
        %v3496 = vpop.f32.mrf.mxu0
        %v3497 = vadd.f32 %v3328, %v3496
        %v3498 = vpop.f32.mrf.mxu0
        %v3499 = vadd.f32 %v3330, %v3498
        %3500 = vmatmul.bf16.gmra.mxu0 %v3027
        %v3501 = vpop.f32.mrf.mxu0
        %v3502 = vadd.f32 %v3333, %v3501
        %v3503 = vpop.f32.mrf.mxu0
        %v3504 = vadd.f32 %v3335, %v3503
        %3505 = vmatmul.bf16.gmra.mxu0 %v3029
        %v3506 = vpop.f32.mrf.mxu0
        %v3507 = vadd.f32 %v3338, %v3506
        %v3508 = vpop.f32.mrf.mxu0
        %v3509 = vadd.f32 %v3340, %v3508
        %3510 = vmatmul.bf16.gmra.mxu0 %v3031
        %v3511 = vpop.f32.mrf.mxu0
        %v3512 = vadd.f32 %v3343, %v3511
        %v3513 = vpop.f32.mrf.mxu0
        %v3514 = vadd.f32 %v3345, %v3513
        %3515 = vmatmul.bf16.gmra.mxu0 %v3033
        %v3516 = vpop.f32.mrf.mxu0
        %v3517 = vadd.f32 %v3348, %v3516
        %v3518 = vpop.f32.mrf.mxu0
        %v3519 = vadd.f32 %v3350, %v3518
        %3520 = vmatmul.bf16.gmra.mxu0 %v3035
        %v3521 = vpop.f32.mrf.mxu0
        %v3522 = vadd.f32 %v3353, %v3521
        %v3523 = vpop.f32.mrf.mxu0
        %v3524 = vadd.f32 %v3355, %v3523
        %3525 = vmatmul.bf16.gmra.mxu0 %v3037
        %v3526 = vpop.f32.mrf.mxu0
        %v3527 = vadd.f32 %v3358, %v3526
        %v3528 = vpop.f32.mrf.mxu0
        %v3529 = vadd.f32 %v3360, %v3528
        %3530 = vmatmul.bf16.gmra.mxu0 %v3039
        %v3531 = vpop.f32.mrf.mxu0
        %v3532 = vadd.f32 %v3363, %v3531
        %v3533 = vpop.f32.mrf.mxu0
        %v3534 = vadd.f32 %v3365, %v3533
        %3535 = vmatmul.bf16.gmra.mxu0 %v3041
        %v3536 = vpop.f32.mrf.mxu0
        %v3537 = vadd.f32 %v3368, %v3536
        %v3538 = vpop.f32.mrf.mxu0
        %v3539 = vadd.f32 %v3370, %v3538
        %3540 = vmatmul.bf16.gmra.mxu0 %v3043
        %v3541 = vpop.f32.mrf.mxu0
        %v3542 = vadd.f32 %v3373, %v3541
        %v3543 = vpop.f32.mrf.mxu0
        %v3544 = vadd.f32 %v3375, %v3543
        %3545 = vmatmul.bf16.gmra.mxu0 %v3045
        %v3546 = vpop.f32.mrf.mxu0
        %v3547 = vadd.f32 %v3378, %v3546
        %v3548 = vpop.f32.mrf.mxu0
        %v3549 = vadd.f32 %v3380, %v3548
        %3550 = vmatmul.bf16.gmra.mxu0 %v3047
        %v3551 = vpop.f32.mrf.mxu0
        %v3552 = vadd.f32 %v3383, %v3551
        %v3553 = vpop.f32.mrf.mxu0
        %v3554 = vadd.f32 %v3385, %v3553
        %3555 = vmatmul.bf16.gmra.mxu0 %v3049
        %v3556 = vpop.f32.mrf.mxu0
        %v3557 = vadd.f32 %v3388, %v3556
        %v3558 = vpop.f32.mrf.mxu0
        %v3559 = vadd.f32 %v3390, %v3558
        %3560 = vmatmul.bf16.gmra.mxu0 %v3051
        %v3561 = vpop.f32.mrf.mxu0
        %v3562 = vadd.f32 %v3393, %v3561
        %v3563 = vpop.f32.mrf.mxu0
        %v3564 = vadd.f32 %v3395, %v3563
        %3565 = vmatmul.bf16.gmra.mxu0 %v3053
        %v3566 = vpop.f32.mrf.mxu0
        %v3567 = vadd.f32 %v3398, %v3566
        %v3568 = vpop.f32.mrf.mxu0
        %v3569 = vadd.f32 %v3400, %v3568
        %3570 = vmatmul.bf16.gmra.mxu0 %v3055
        %v3571 = vpop.f32.mrf.mxu0
        %v3572 = vadd.f32 %v3403, %v3571
        %v3573 = vpop.f32.mrf.mxu0
        %v3574 = vadd.f32 %v3405, %v3573
        %3575 = vmatmul.bf16.gmra.mxu0 %v3057
        %v3576 = vpop.f32.mrf.mxu0
        %v3577 = vadd.f32 %v3408, %v3576
        %v3578 = vpop.f32.mrf.mxu0
        %v3579 = vadd.f32 %v3410, %v3578
        %3580 = vmatmul.bf16.gmra.mxu0 %v3059
        %v3581 = vpop.f32.mrf.mxu0
        %v3582 = vadd.f32 %v3413, %v3581
        %v3583 = vpop.f32.mrf.mxu0
        %v3584 = vadd.f32 %v3415, %v3583
        %3585 = vmatmul.bf16.gmra.mxu0 %v3061
        %v3586 = vpop.f32.mrf.mxu0
        %v3587 = vadd.f32 %v3418, %v3586
        %v3588 = vpop.f32.mrf.mxu0
        %v3589 = vadd.f32 %v3420, %v3588
        %3590 = vmatmul.bf16.gmra.mxu0 %v3063
        %v3591 = vpop.f32.mrf.mxu0
        %v3592 = vadd.f32 %v3423, %v3591
        %v3593 = vpop.f32.mrf.mxu0
        %v3594 = vadd.f32 %v3425, %v3593
        %3595 = vmatmul.bf16.gmra.mxu0 %v3065
        %v3596 = vpop.f32.mrf.mxu0
        %v3597 = vadd.f32 %v3428, %v3596
        %v3598 = vpop.f32.mrf.mxu0
        %v3599 = vadd.f32 %v3430, %v3598
        %3600 = vmatmul.bf16.gmra.mxu0 %v3067
        %v3601 = vpop.f32.mrf.mxu0
        %v3602 = vadd.f32 %v3433, %v3601
        %v3603 = vpop.f32.mrf.mxu0
        %v3604 = vadd.f32 %v3435, %v3603
        %3605 = vmatmul.bf16.gmra.mxu0 %v3069
        %v3606 = vpop.f32.mrf.mxu0
        %v3607 = vadd.f32 %v3438, %v3606
        %v3608 = vpop.f32.mrf.mxu0
        %v3609 = vadd.f32 %v3440, %v3608
        %3610 = vmatmul.bf16.gmra.mxu0 %v3071
        %v3611 = vpop.f32.mrf.mxu0
        %v3612 = vadd.f32 %v3443, %v3611
        %v3613 = vpop.f32.mrf.mxu0
        %v3614 = vadd.f32 %v3445, %v3613
        %3615 = vmatmul.bf16.gmra.mxu0 %v3073
        %v3616 = vpop.f32.mrf.mxu0
        %v3617 = vadd.f32 %v3448, %v3616
        %v3618 = vpop.f32.mrf.mxu0
        %v3619 = vadd.f32 %v3450, %v3618
        %3620 = vmatmul.bf16.gmra.mxu0 %v3075
        %v3621 = vpop.f32.mrf.mxu0
        %v3622 = vadd.f32 %v3453, %v3621
        %v3623 = vpop.f32.mrf.mxu0
        %v3624 = vadd.f32 %v3455, %v3623
        %3625 = vmatmul.bf16.gmra.mxu0 %v3077
        %v3626 = vpop.f32.mrf.mxu0
        %v3627 = vadd.f32 %v3458, %v3626
        %v3628 = vpop.f32.mrf.mxu0
        %v3629 = vadd.f32 %v3460, %v3628
        %3630 = vmatmul.bf16.gmra.mxu0 %v3079
        %v3631 = vpop.f32.mrf.mxu0
        %v3632 = vadd.f32 %v3463, %v3631
        %v3633 = vpop.f32.mrf.mxu0
        %v3634 = vadd.f32 %v3465, %v3633
        %3635 = vmatmul.bf16.gmra.mxu0 %v3081
        %v3636 = vpop.f32.mrf.mxu0
        %v3637 = vadd.f32 %v3468, %v3636
        %v3638 = vpop.f32.mrf.mxu0
        %v3639 = vadd.f32 %v3470, %v3638
        %3640 = vmatmul.bf16.gmra.mxu0 %v3083
        %v3641 = vpop.f32.mrf.mxu0
        %v3642 = vadd.f32 %v3473, %v3641
        %v3643 = vpop.f32.mrf.mxu0
        %v3644 = vadd.f32 %v3475, %v3643
        %3645 = vdwg.mxu0
        %3646 = vmatpush.bf16.msra.mxu0 %v3259
        %3647 = vmatpush.bf16.msra.mxu0 %v3257
        %3648 = vmatpush.bf16.msra.mxu0 %v3255
        %3649 = vmatpush.bf16.msra.mxu0 %v3253
        %3650 = vmatpush.bf16.msra.mxu0 %v3251
        %3651 = vmatpush.bf16.msra.mxu0 %v3249
        %3652 = vmatpush.bf16.msra.mxu0 %v3247
        %3653 = vmatpush.bf16.msra.mxu0 %v3245
        %3654 = vmatmul.bf16.gmra.mxu0 %v3020
        %v3655 = vpop.f32.mrf.mxu0
        %v3656 = vadd.f32 0.0, %v3655
        %v3657 = vpop.f32.mrf.mxu0
        %v3658 = vadd.f32 0.0, %v3657
        %3659 = vmatmul.bf16.gmra.mxu0 %v3022
        %v3660 = vpop.f32.mrf.mxu0
        %v3661 = vadd.f32 0.0, %v3660
        %v3662 = vpop.f32.mrf.mxu0
        %v3663 = vadd.f32 0.0, %v3662
        %3664 = vmatmul.bf16.gmra.mxu0 %v3024
        %v3665 = vpop.f32.mrf.mxu0
        %v3666 = vadd.f32 0.0, %v3665
        %v3667 = vpop.f32.mrf.mxu0
        %v3668 = vadd.f32 0.0, %v3667
        %3669 = vmatmul.bf16.gmra.mxu0 %v3026
        %v3670 = vpop.f32.mrf.mxu0
        %v3671 = vadd.f32 0.0, %v3670
        %v3672 = vpop.f32.mrf.mxu0
        %v3673 = vadd.f32 0.0, %v3672
        %3674 = vmatmul.bf16.gmra.mxu0 %v3028
        %v3675 = vpop.f32.mrf.mxu0
        %v3676 = vadd.f32 0.0, %v3675
        %v3677 = vpop.f32.mrf.mxu0
        %v3678 = vadd.f32 0.0, %v3677
        %3679 = vmatmul.bf16.gmra.mxu0 %v3030
        %v3680 = vpop.f32.mrf.mxu0
        %v3681 = vadd.f32 0.0, %v3680
        %v3682 = vpop.f32.mrf.mxu0
        %v3683 = vadd.f32 0.0, %v3682
        %3684 = vmatmul.bf16.gmra.mxu0 %v3032
        %v3685 = vpop.f32.mrf.mxu0
        %v3686 = vadd.f32 0.0, %v3685
        %v3687 = vpop.f32.mrf.mxu0
        %v3688 = vadd.f32 0.0, %v3687
        %3689 = vmatmul.bf16.gmra.mxu0 %v3034
        %v3690 = vpop.f32.mrf.mxu0
        %v3691 = vadd.f32 0.0, %v3690
        %v3692 = vpop.f32.mrf.mxu0
        %v3693 = vadd.f32 0.0, %v3692
        %3694 = vmatmul.bf16.gmra.mxu0 %v3036
        %v3695 = vpop.f32.mrf.mxu0
        %v3696 = vadd.f32 0.0, %v3695
        %v3697 = vpop.f32.mrf.mxu0
        %v3698 = vadd.f32 0.0, %v3697
        %3699 = vmatmul.bf16.gmra.mxu0 %v3038
        %v3700 = vpop.f32.mrf.mxu0
        %v3701 = vadd.f32 0.0, %v3700
        %v3702 = vpop.f32.mrf.mxu0
        %v3703 = vadd.f32 0.0, %v3702
        %3704 = vmatmul.bf16.gmra.mxu0 %v3040
        %v3705 = vpop.f32.mrf.mxu0
        %v3706 = vadd.f32 0.0, %v3705
        %v3707 = vpop.f32.mrf.mxu0
        %v3708 = vadd.f32 0.0, %v3707
        %3709 = vmatmul.bf16.gmra.mxu0 %v3042
        %v3710 = vpop.f32.mrf.mxu0
        %v3711 = vadd.f32 0.0, %v3710
        %v3712 = vpop.f32.mrf.mxu0
        %v3713 = vadd.f32 0.0, %v3712
        %3714 = vmatmul.bf16.gmra.mxu0 %v3044
        %v3715 = vpop.f32.mrf.mxu0
        %v3716 = vadd.f32 0.0, %v3715
        %v3717 = vpop.f32.mrf.mxu0
        %v3718 = vadd.f32 0.0, %v3717
        %3719 = vmatmul.bf16.gmra.mxu0 %v3046
        %v3720 = vpop.f32.mrf.mxu0
        %v3721 = vadd.f32 0.0, %v3720
        %v3722 = vpop.f32.mrf.mxu0
        %v3723 = vadd.f32 0.0, %v3722
        %3724 = vmatmul.bf16.gmra.mxu0 %v3048
        %v3725 = vpop.f32.mrf.mxu0
        %v3726 = vadd.f32 0.0, %v3725
        %v3727 = vpop.f32.mrf.mxu0
        %v3728 = vadd.f32 0.0, %v3727
        %3729 = vmatmul.bf16.gmra.mxu0 %v3050
        %v3730 = vpop.f32.mrf.mxu0
        %v3731 = vadd.f32 0.0, %v3730
        %v3732 = vpop.f32.mrf.mxu0
        %v3733 = vadd.f32 0.0, %v3732
        %3734 = vmatmul.bf16.gmra.mxu0 %v3052
        %v3735 = vpop.f32.mrf.mxu0
        %v3736 = vadd.f32 0.0, %v3735
        %v3737 = vpop.f32.mrf.mxu0
        %v3738 = vadd.f32 0.0, %v3737
        %3739 = vmatmul.bf16.gmra.mxu0 %v3054
        %v3740 = vpop.f32.mrf.mxu0
        %v3741 = vadd.f32 0.0, %v3740
        %v3742 = vpop.f32.mrf.mxu0
        %v3743 = vadd.f32 0.0, %v3742
        %3744 = vmatmul.bf16.gmra.mxu0 %v3056
        %v3745 = vpop.f32.mrf.mxu0
        %v3746 = vadd.f32 0.0, %v3745
        %v3747 = vpop.f32.mrf.mxu0
        %v3748 = vadd.f32 0.0, %v3747
        %3749 = vmatmul.bf16.gmra.mxu0 %v3058
        %v3750 = vpop.f32.mrf.mxu0
        %v3751 = vadd.f32 0.0, %v3750
        %v3752 = vpop.f32.mrf.mxu0
        %v3753 = vadd.f32 0.0, %v3752
        %3754 = vmatmul.bf16.gmra.mxu0 %v3060
        %v3755 = vpop.f32.mrf.mxu0
        %v3756 = vadd.f32 0.0, %v3755
        %v3757 = vpop.f32.mrf.mxu0
        %v3758 = vadd.f32 0.0, %v3757
        %3759 = vmatmul.bf16.gmra.mxu0 %v3062
        %v3760 = vpop.f32.mrf.mxu0
        %v3761 = vadd.f32 0.0, %v3760
        %v3762 = vpop.f32.mrf.mxu0
        %v3763 = vadd.f32 0.0, %v3762
        %3764 = vmatmul.bf16.gmra.mxu0 %v3064
        %v3765 = vpop.f32.mrf.mxu0
        %v3766 = vadd.f32 0.0, %v3765
        %v3767 = vpop.f32.mrf.mxu0
        %v3768 = vadd.f32 0.0, %v3767
        %3769 = vmatmul.bf16.gmra.mxu0 %v3066
        %v3770 = vpop.f32.mrf.mxu0
        %v3771 = vadd.f32 0.0, %v3770
        %v3772 = vpop.f32.mrf.mxu0
        %v3773 = vadd.f32 0.0, %v3772
        %3774 = vmatmul.bf16.gmra.mxu0 %v3068
        %v3775 = vpop.f32.mrf.mxu0
        %v3776 = vadd.f32 0.0, %v3775
        %v3777 = vpop.f32.mrf.mxu0
        %v3778 = vadd.f32 0.0, %v3777
        %3779 = vmatmul.bf16.gmra.mxu0 %v3070
        %v3780 = vpop.f32.mrf.mxu0
        %v3781 = vadd.f32 0.0, %v3780
        %v3782 = vpop.f32.mrf.mxu0
        %v3783 = vadd.f32 0.0, %v3782
        %3784 = vmatmul.bf16.gmra.mxu0 %v3072
        %v3785 = vpop.f32.mrf.mxu0
        %v3786 = vadd.f32 0.0, %v3785
        %v3787 = vpop.f32.mrf.mxu0
        %v3788 = vadd.f32 0.0, %v3787
        %3789 = vmatmul.bf16.gmra.mxu0 %v3074
        %v3790 = vpop.f32.mrf.mxu0
        %v3791 = vadd.f32 0.0, %v3790
        %v3792 = vpop.f32.mrf.mxu0
        %v3793 = vadd.f32 0.0, %v3792
        %3794 = vmatmul.bf16.gmra.mxu0 %v3076
        %v3795 = vpop.f32.mrf.mxu0
        %v3796 = vadd.f32 0.0, %v3795
        %v3797 = vpop.f32.mrf.mxu0
        %v3798 = vadd.f32 0.0, %v3797
        %3799 = vmatmul.bf16.gmra.mxu0 %v3078
        %v3800 = vpop.f32.mrf.mxu0
        %v3801 = vadd.f32 0.0, %v3800
        %v3802 = vpop.f32.mrf.mxu0
        %v3803 = vadd.f32 0.0, %v3802
        %3804 = vmatmul.bf16.gmra.mxu0 %v3080
        %v3805 = vpop.f32.mrf.mxu0
        %v3806 = vadd.f32 0.0, %v3805
        %v3807 = vpop.f32.mrf.mxu0
        %v3808 = vadd.f32 0.0, %v3807
        %3809 = vmatmul.bf16.gmra.mxu0 %v3082
        %v3810 = vpop.f32.mrf.mxu0
        %v3811 = vadd.f32 0.0, %v3810
        %v3812 = vpop.f32.mrf.mxu0
        %v3813 = vadd.f32 0.0, %v3812
        %3814 = vdwg.mxu0
        %3815 = vmatpush.bf16.msra.mxu0 %v3275
        %3816 = vmatpush.bf16.msra.mxu0 %v3273
        %3817 = vmatpush.bf16.msra.mxu0 %v3271
        %3818 = vmatpush.bf16.msra.mxu0 %v3269
        %3819 = vmatpush.bf16.msra.mxu0 %v3267
        %3820 = vmatpush.bf16.msra.mxu0 %v3265
        %3821 = vmatpush.bf16.msra.mxu0 %v3263
        %3822 = vmatpush.bf16.msra.mxu0 %v3261
        %3823 = vmatmul.bf16.gmra.mxu0 %v3021
        %v3824 = vpop.f32.mrf.mxu0
        %v3825 = vadd.f32 %v3656, %v3824
        %v3826 = vpop.f32.mrf.mxu0
        %v3827 = vadd.f32 %v3658, %v3826
        %3828 = vmatmul.bf16.gmra.mxu0 %v3023
        %v3829 = vpop.f32.mrf.mxu0
        %v3830 = vadd.f32 %v3661, %v3829
        %v3831 = vpop.f32.mrf.mxu0
        %v3832 = vadd.f32 %v3663, %v3831
        %3833 = vmatmul.bf16.gmra.mxu0 %v3025
        %v3834 = vpop.f32.mrf.mxu0
        %v3835 = vadd.f32 %v3666, %v3834
        %v3836 = vpop.f32.mrf.mxu0
        %v3837 = vadd.f32 %v3668, %v3836
        %3838 = vmatmul.bf16.gmra.mxu0 %v3027
        %v3839 = vpop.f32.mrf.mxu0
        %v3840 = vadd.f32 %v3671, %v3839
        %v3841 = vpop.f32.mrf.mxu0
        %v3842 = vadd.f32 %v3673, %v3841
        %3843 = vmatmul.bf16.gmra.mxu0 %v3029
        %v3844 = vpop.f32.mrf.mxu0
        %v3845 = vadd.f32 %v3676, %v3844
        %v3846 = vpop.f32.mrf.mxu0
        %v3847 = vadd.f32 %v3678, %v3846
        %3848 = vmatmul.bf16.gmra.mxu0 %v3031
        %v3849 = vpop.f32.mrf.mxu0
        %v3850 = vadd.f32 %v3681, %v3849
        %v3851 = vpop.f32.mrf.mxu0
        %v3852 = vadd.f32 %v3683, %v3851
        %3853 = vmatmul.bf16.gmra.mxu0 %v3033
        %v3854 = vpop.f32.mrf.mxu0
        %v3855 = vadd.f32 %v3686, %v3854
        %v3856 = vpop.f32.mrf.mxu0
        %v3857 = vadd.f32 %v3688, %v3856
        %3858 = vmatmul.bf16.gmra.mxu0 %v3035
        %v3859 = vpop.f32.mrf.mxu0
        %v3860 = vadd.f32 %v3691, %v3859
        %v3861 = vpop.f32.mrf.mxu0
        %v3862 = vadd.f32 %v3693, %v3861
        %3863 = vmatmul.bf16.gmra.mxu0 %v3037
        %v3864 = vpop.f32.mrf.mxu0
        %v3865 = vadd.f32 %v3696, %v3864
        %v3866 = vpop.f32.mrf.mxu0
        %v3867 = vadd.f32 %v3698, %v3866
        %3868 = vmatmul.bf16.gmra.mxu0 %v3039
        %v3869 = vpop.f32.mrf.mxu0
        %v3870 = vadd.f32 %v3701, %v3869
        %v3871 = vpop.f32.mrf.mxu0
        %v3872 = vadd.f32 %v3703, %v3871
        %3873 = vmatmul.bf16.gmra.mxu0 %v3041
        %v3874 = vpop.f32.mrf.mxu0
        %v3875 = vadd.f32 %v3706, %v3874
        %v3876 = vpop.f32.mrf.mxu0
        %v3877 = vadd.f32 %v3708, %v3876
        %3878 = vmatmul.bf16.gmra.mxu0 %v3043
        %v3879 = vpop.f32.mrf.mxu0
        %v3880 = vadd.f32 %v3711, %v3879
        %v3881 = vpop.f32.mrf.mxu0
        %v3882 = vadd.f32 %v3713, %v3881
        %3883 = vmatmul.bf16.gmra.mxu0 %v3045
        %v3884 = vpop.f32.mrf.mxu0
        %v3885 = vadd.f32 %v3716, %v3884
        %v3886 = vpop.f32.mrf.mxu0
        %v3887 = vadd.f32 %v3718, %v3886
        %3888 = vmatmul.bf16.gmra.mxu0 %v3047
        %v3889 = vpop.f32.mrf.mxu0
        %v3890 = vadd.f32 %v3721, %v3889
        %v3891 = vpop.f32.mrf.mxu0
        %v3892 = vadd.f32 %v3723, %v3891
        %3893 = vmatmul.bf16.gmra.mxu0 %v3049
        %v3894 = vpop.f32.mrf.mxu0
        %v3895 = vadd.f32 %v3726, %v3894
        %v3896 = vpop.f32.mrf.mxu0
        %v3897 = vadd.f32 %v3728, %v3896
        %3898 = vmatmul.bf16.gmra.mxu0 %v3051
        %v3899 = vpop.f32.mrf.mxu0
        %v3900 = vadd.f32 %v3731, %v3899
        %v3901 = vpop.f32.mrf.mxu0
        %v3902 = vadd.f32 %v3733, %v3901
        %3903 = vmatmul.bf16.gmra.mxu0 %v3053
        %v3904 = vpop.f32.mrf.mxu0
        %v3905 = vadd.f32 %v3736, %v3904
        %v3906 = vpop.f32.mrf.mxu0
        %v3907 = vadd.f32 %v3738, %v3906
        %3908 = vmatmul.bf16.gmra.mxu0 %v3055
        %v3909 = vpop.f32.mrf.mxu0
        %v3910 = vadd.f32 %v3741, %v3909
        %v3911 = vpop.f32.mrf.mxu0
        %v3912 = vadd.f32 %v3743, %v3911
        %3913 = vmatmul.bf16.gmra.mxu0 %v3057
        %v3914 = vpop.f32.mrf.mxu0
        %v3915 = vadd.f32 %v3746, %v3914
        %v3916 = vpop.f32.mrf.mxu0
        %v3917 = vadd.f32 %v3748, %v3916
        %3918 = vmatmul.bf16.gmra.mxu0 %v3059
        %v3919 = vpop.f32.mrf.mxu0
        %v3920 = vadd.f32 %v3751, %v3919
        %v3921 = vpop.f32.mrf.mxu0
        %v3922 = vadd.f32 %v3753, %v3921
        %3923 = vmatmul.bf16.gmra.mxu0 %v3061
        %v3924 = vpop.f32.mrf.mxu0
        %v3925 = vadd.f32 %v3756, %v3924
        %v3926 = vpop.f32.mrf.mxu0
        %v3927 = vadd.f32 %v3758, %v3926
        %3928 = vmatmul.bf16.gmra.mxu0 %v3063
        %v3929 = vpop.f32.mrf.mxu0
        %v3930 = vadd.f32 %v3761, %v3929
        %v3931 = vpop.f32.mrf.mxu0
        %v3932 = vadd.f32 %v3763, %v3931
        %3933 = vmatmul.bf16.gmra.mxu0 %v3065
        %v3934 = vpop.f32.mrf.mxu0
        %v3935 = vadd.f32 %v3766, %v3934
        %v3936 = vpop.f32.mrf.mxu0
        %v3937 = vadd.f32 %v3768, %v3936
        %3938 = vmatmul.bf16.gmra.mxu0 %v3067
        %v3939 = vpop.f32.mrf.mxu0
        %v3940 = vadd.f32 %v3771, %v3939
        %v3941 = vpop.f32.mrf.mxu0
        %v3942 = vadd.f32 %v3773, %v3941
        %3943 = vmatmul.bf16.gmra.mxu0 %v3069
        %v3944 = vpop.f32.mrf.mxu0
        %v3945 = vadd.f32 %v3776, %v3944
        %v3946 = vpop.f32.mrf.mxu0
        %v3947 = vadd.f32 %v3778, %v3946
        %3948 = vmatmul.bf16.gmra.mxu0 %v3071
        %v3949 = vpop.f32.mrf.mxu0
        %v3950 = vadd.f32 %v3781, %v3949
        %v3951 = vpop.f32.mrf.mxu0
        %v3952 = vadd.f32 %v3783, %v3951
        %3953 = vmatmul.bf16.gmra.mxu0 %v3073
        %v3954 = vpop.f32.mrf.mxu0
        %v3955 = vadd.f32 %v3786, %v3954
        %v3956 = vpop.f32.mrf.mxu0
        %v3957 = vadd.f32 %v3788, %v3956
        %3958 = vmatmul.bf16.gmra.mxu0 %v3075
        %v3959 = vpop.f32.mrf.mxu0
        %v3960 = vadd.f32 %v3791, %v3959
        %v3961 = vpop.f32.mrf.mxu0
        %v3962 = vadd.f32 %v3793, %v3961
        %3963 = vmatmul.bf16.gmra.mxu0 %v3077
        %v3964 = vpop.f32.mrf.mxu0
        %v3965 = vadd.f32 %v3796, %v3964
        %v3966 = vpop.f32.mrf.mxu0
        %v3967 = vadd.f32 %v3798, %v3966
        %3968 = vmatmul.bf16.gmra.mxu0 %v3079
        %v3969 = vpop.f32.mrf.mxu0
        %v3970 = vadd.f32 %v3801, %v3969
        %v3971 = vpop.f32.mrf.mxu0
        %v3972 = vadd.f32 %v3803, %v3971
        %3973 = vmatmul.bf16.gmra.mxu0 %v3081
        %v3974 = vpop.f32.mrf.mxu0
        %v3975 = vadd.f32 %v3806, %v3974
        %v3976 = vpop.f32.mrf.mxu0
        %v3977 = vadd.f32 %v3808, %v3976
        %3978 = vmatmul.bf16.gmra.mxu0 %v3083
        %v3979 = vpop.f32.mrf.mxu0
        %v3980 = vadd.f32 %v3811, %v3979
        %v3981 = vpop.f32.mrf.mxu0
        %v3982 = vadd.f32 %v3813, %v3981
        %3983 = vdwg.mxu0
        %v4048 = vunpack.c.l.b16 %v2636
        %v4049 = vunpack.c.h.b16 %v2636
        %v4050 = vunpack.c.l.b16 %v2637
        %v4051 = vunpack.c.h.b16 %v2637
        %v4052 = vunpack.c.l.b16 %v2638
        %v4053 = vunpack.c.h.b16 %v2638
        %v4054 = vunpack.c.l.b16 %v2639
        %v4055 = vunpack.c.h.b16 %v2639
        %v4056 = vunpack.c.l.b16 %v2640
        %v4057 = vunpack.c.h.b16 %v2640
        %v4058 = vunpack.c.l.b16 %v2641
        %v4059 = vunpack.c.h.b16 %v2641
        %v4060 = vunpack.c.l.b16 %v2642
        %v4061 = vunpack.c.h.b16 %v2642
        %v4062 = vunpack.c.l.b16 %v2643
        %v4063 = vunpack.c.h.b16 %v2643
        %v4064 = vunpack.c.l.b16 %v2644
        %v4065 = vunpack.c.h.b16 %v2644
        %v4066 = vunpack.c.l.b16 %v2645
        %v4067 = vunpack.c.h.b16 %v2645
        %v4068 = vunpack.c.l.b16 %v2646
        %v4069 = vunpack.c.h.b16 %v2646
        %v4070 = vunpack.c.l.b16 %v2647
        %v4071 = vunpack.c.h.b16 %v2647
        %v4072 = vunpack.c.l.b16 %v2648
        %v4073 = vunpack.c.h.b16 %v2648
        %v4074 = vunpack.c.l.b16 %v2649
        %v4075 = vunpack.c.h.b16 %v2649
        %v4076 = vunpack.c.l.b16 %v2650
        %v4077 = vunpack.c.h.b16 %v2650
        %v4078 = vunpack.c.l.b16 %v2651
        %v4079 = vunpack.c.h.b16 %v2651
        %v4080 = vunpack.c.l.b16 %v2652
        %v4081 = vunpack.c.h.b16 %v2652
        %v4082 = vunpack.c.l.b16 %v2653
        %v4083 = vunpack.c.h.b16 %v2653
        %v4084 = vunpack.c.l.b16 %v2654
        %v4085 = vunpack.c.h.b16 %v2654
        %v4086 = vunpack.c.l.b16 %v2655
        %v4087 = vunpack.c.h.b16 %v2655
        %v4088 = vunpack.c.l.b16 %v2656
        %v4089 = vunpack.c.h.b16 %v2656
        %v4090 = vunpack.c.l.b16 %v2657
        %v4091 = vunpack.c.h.b16 %v2657
        %v4092 = vunpack.c.l.b16 %v2658
        %v4093 = vunpack.c.h.b16 %v2658
        %v4094 = vunpack.c.l.b16 %v2659
        %v4095 = vunpack.c.h.b16 %v2659
        %v4096 = vunpack.c.l.b16 %v2660
        %v4097 = vunpack.c.h.b16 %v2660
        %v4098 = vunpack.c.l.b16 %v2661
        %v4099 = vunpack.c.h.b16 %v2661
        %v4100 = vunpack.c.l.b16 %v2662
        %v4101 = vunpack.c.h.b16 %v2662
        %v4102 = vunpack.c.l.b16 %v2663
        %v4103 = vunpack.c.h.b16 %v2663
        %v4104 = vunpack.c.l.b16 %v2664
        %v4105 = vunpack.c.h.b16 %v2664
        %v4106 = vunpack.c.l.b16 %v2665
        %v4107 = vunpack.c.h.b16 %v2665
        %v4108 = vunpack.c.l.b16 %v2666
        %v4109 = vunpack.c.h.b16 %v2666
        %v4110 = vunpack.c.l.b16 %v2667
        %v4111 = vunpack.c.h.b16 %v2667
        %v4112 = vunpack.c.l.b16 %v2668
        %v4113 = vunpack.c.h.b16 %v2668
        %v4114 = vunpack.c.l.b16 %v2669
        %v4115 = vunpack.c.h.b16 %v2669
        %v4116 = vunpack.c.l.b16 %v2670
        %v4117 = vunpack.c.h.b16 %v2670
        %v4118 = vunpack.c.l.b16 %v2671
        %v4119 = vunpack.c.h.b16 %v2671
        %v4120 = vunpack.c.l.b16 %v2672
        %v4121 = vunpack.c.h.b16 %v2672
        %v4122 = vunpack.c.l.b16 %v2673
        %v4123 = vunpack.c.h.b16 %v2673
        %v4124 = vunpack.c.l.b16 %v2674
        %v4125 = vunpack.c.h.b16 %v2674
        %v4126 = vunpack.c.l.b16 %v2675
        %v4127 = vunpack.c.h.b16 %v2675
        %v4128 = vunpack.c.l.b16 %v2676
        %v4129 = vunpack.c.h.b16 %v2676
        %v4130 = vunpack.c.l.b16 %v2677
        %v4131 = vunpack.c.h.b16 %v2677
        %v4132 = vunpack.c.l.b16 %v2678
        %v4133 = vunpack.c.h.b16 %v2678
        %v4134 = vunpack.c.l.b16 %v2679
        %v4135 = vunpack.c.h.b16 %v2679
        %v4136 = vunpack.c.l.b16 %v2680
        %v4137 = vunpack.c.h.b16 %v2680
        %v4138 = vunpack.c.l.b16 %v2681
        %v4139 = vunpack.c.h.b16 %v2681
        %v4140 = vunpack.c.l.b16 %v2682
        %v4141 = vunpack.c.h.b16 %v2682
        %v4142 = vunpack.c.l.b16 %v2683
        %v4143 = vunpack.c.h.b16 %v2683
        %v4144 = vunpack.c.l.b16 %v2684
        %v4145 = vunpack.c.h.b16 %v2684
        %v4146 = vunpack.c.l.b16 %v2685
        %v4147 = vunpack.c.h.b16 %v2685
        %v4148 = vunpack.c.l.b16 %v2686
        %v4149 = vunpack.c.h.b16 %v2686
        %v4150 = vunpack.c.l.b16 %v2687
        %v4151 = vunpack.c.h.b16 %v2687
        %v4152 = vunpack.c.l.b16 %v2688
        %v4153 = vunpack.c.h.b16 %v2688
        %v4154 = vunpack.c.l.b16 %v2689
        %v4155 = vunpack.c.h.b16 %v2689
        %v4156 = vunpack.c.l.b16 %v2690
        %v4157 = vunpack.c.h.b16 %v2690
        %v4158 = vunpack.c.l.b16 %v2691
        %v4159 = vunpack.c.h.b16 %v2691
        %v4160 = vunpack.c.l.b16 %v2692
        %v4161 = vunpack.c.h.b16 %v2692
        %v4162 = vunpack.c.l.b16 %v2693
        %v4163 = vunpack.c.h.b16 %v2693
        %v4164 = vunpack.c.l.b16 %v2694
        %v4165 = vunpack.c.h.b16 %v2694
        %v4166 = vunpack.c.l.b16 %v2695
        %v4167 = vunpack.c.h.b16 %v2695
        %v4168 = vunpack.c.l.b16 %v2696
        %v4169 = vunpack.c.h.b16 %v2696
        %v4170 = vunpack.c.l.b16 %v2697
        %v4171 = vunpack.c.h.b16 %v2697
        %v4172 = vunpack.c.l.b16 %v2698
        %v4173 = vunpack.c.h.b16 %v2698
        %v4174 = vunpack.c.l.b16 %v2699
        %v4175 = vunpack.c.h.b16 %v2699
        %v4176 = vpack.c.b16 %v4050, %v4048
        %v4177 = vpack.c.b16 %v4051, %v4049
        %v4178 = vpack.c.b16 %v4054, %v4052
        %v4179 = vpack.c.b16 %v4055, %v4053
        %v4180 = vpack.c.b16 %v4058, %v4056
        %v4181 = vpack.c.b16 %v4059, %v4057
        %v4182 = vpack.c.b16 %v4062, %v4060
        %v4183 = vpack.c.b16 %v4063, %v4061
        %v4184 = vpack.c.b16 %v4066, %v4064
        %v4185 = vpack.c.b16 %v4067, %v4065
        %v4186 = vpack.c.b16 %v4070, %v4068
        %v4187 = vpack.c.b16 %v4071, %v4069
        %v4188 = vpack.c.b16 %v4074, %v4072
        %v4189 = vpack.c.b16 %v4075, %v4073
        %v4190 = vpack.c.b16 %v4078, %v4076
        %v4191 = vpack.c.b16 %v4079, %v4077
        %v4192 = vpack.c.b16 %v4082, %v4080
        %v4193 = vpack.c.b16 %v4083, %v4081
        %v4194 = vpack.c.b16 %v4086, %v4084
        %v4195 = vpack.c.b16 %v4087, %v4085
        %v4196 = vpack.c.b16 %v4090, %v4088
        %v4197 = vpack.c.b16 %v4091, %v4089
        %v4198 = vpack.c.b16 %v4094, %v4092
        %v4199 = vpack.c.b16 %v4095, %v4093
        %v4200 = vpack.c.b16 %v4098, %v4096
        %v4201 = vpack.c.b16 %v4099, %v4097
        %v4202 = vpack.c.b16 %v4102, %v4100
        %v4203 = vpack.c.b16 %v4103, %v4101
        %v4204 = vpack.c.b16 %v4106, %v4104
        %v4205 = vpack.c.b16 %v4107, %v4105
        %v4206 = vpack.c.b16 %v4110, %v4108
        %v4207 = vpack.c.b16 %v4111, %v4109
        %v4208 = vpack.c.b16 %v4114, %v4112
        %v4209 = vpack.c.b16 %v4115, %v4113
        %v4210 = vpack.c.b16 %v4118, %v4116
        %v4211 = vpack.c.b16 %v4119, %v4117
        %v4212 = vpack.c.b16 %v4122, %v4120
        %v4213 = vpack.c.b16 %v4123, %v4121
        %v4214 = vpack.c.b16 %v4126, %v4124
        %v4215 = vpack.c.b16 %v4127, %v4125
        %v4216 = vpack.c.b16 %v4130, %v4128
        %v4217 = vpack.c.b16 %v4131, %v4129
        %v4218 = vpack.c.b16 %v4134, %v4132
        %v4219 = vpack.c.b16 %v4135, %v4133
        %v4220 = vpack.c.b16 %v4138, %v4136
        %v4221 = vpack.c.b16 %v4139, %v4137
        %v4222 = vpack.c.b16 %v4142, %v4140
        %v4223 = vpack.c.b16 %v4143, %v4141
        %v4224 = vpack.c.b16 %v4146, %v4144
        %v4225 = vpack.c.b16 %v4147, %v4145
        %v4226 = vpack.c.b16 %v4150, %v4148
        %v4227 = vpack.c.b16 %v4151, %v4149
        %v4228 = vpack.c.b16 %v4154, %v4152
        %v4229 = vpack.c.b16 %v4155, %v4153
        %v4230 = vpack.c.b16 %v4158, %v4156
        %v4231 = vpack.c.b16 %v4159, %v4157
        %v4232 = vpack.c.b16 %v4162, %v4160
        %v4233 = vpack.c.b16 %v4163, %v4161
        %v4234 = vpack.c.b16 %v4166, %v4164
        %v4235 = vpack.c.b16 %v4167, %v4165
        %v4236 = vpack.c.b16 %v4170, %v4168
        %v4237 = vpack.c.b16 %v4171, %v4169
        %v4238 = vpack.c.b16 %v4174, %v4172
        %v4239 = vpack.c.b16 %v4175, %v4173
        %v4336 = vunpack.c.l.b16 %v2796
        %v4337 = vunpack.c.h.b16 %v2796
        %v4338 = vunpack.c.l.b16 %v2797
        %v4339 = vunpack.c.h.b16 %v2797
        %v4340 = vunpack.c.l.b16 %v2798
        %v4341 = vunpack.c.h.b16 %v2798
        %v4342 = vunpack.c.l.b16 %v2799
        %v4343 = vunpack.c.h.b16 %v2799
        %v4344 = vunpack.c.l.b16 %v2800
        %v4345 = vunpack.c.h.b16 %v2800
        %v4346 = vunpack.c.l.b16 %v2801
        %v4347 = vunpack.c.h.b16 %v2801
        %v4348 = vunpack.c.l.b16 %v2802
        %v4349 = vunpack.c.h.b16 %v2802
        %v4350 = vunpack.c.l.b16 %v2803
        %v4351 = vunpack.c.h.b16 %v2803
        %v4352 = vunpack.c.l.b16 %v2804
        %v4353 = vunpack.c.h.b16 %v2804
        %v4354 = vunpack.c.l.b16 %v2805
        %v4355 = vunpack.c.h.b16 %v2805
        %v4356 = vunpack.c.l.b16 %v2806
        %v4357 = vunpack.c.h.b16 %v2806
        %v4358 = vunpack.c.l.b16 %v2807
        %v4359 = vunpack.c.h.b16 %v2807
        %v4360 = vunpack.c.l.b16 %v2808
        %v4361 = vunpack.c.h.b16 %v2808
        %v4362 = vunpack.c.l.b16 %v2809
        %v4363 = vunpack.c.h.b16 %v2809
        %v4364 = vunpack.c.l.b16 %v2810
        %v4365 = vunpack.c.h.b16 %v2810
        %v4366 = vunpack.c.l.b16 %v2811
        %v4367 = vunpack.c.h.b16 %v2811
        %v4368 = vunpack.c.l.b16 %v2812
        %v4369 = vunpack.c.h.b16 %v2812
        %v4370 = vunpack.c.l.b16 %v2813
        %v4371 = vunpack.c.h.b16 %v2813
        %v4372 = vunpack.c.l.b16 %v2814
        %v4373 = vunpack.c.h.b16 %v2814
        %v4374 = vunpack.c.l.b16 %v2815
        %v4375 = vunpack.c.h.b16 %v2815
        %v4376 = vunpack.c.l.b16 %v2816
        %v4377 = vunpack.c.h.b16 %v2816
        %v4378 = vunpack.c.l.b16 %v2817
        %v4379 = vunpack.c.h.b16 %v2817
        %v4380 = vunpack.c.l.b16 %v2818
        %v4381 = vunpack.c.h.b16 %v2818
        %v4382 = vunpack.c.l.b16 %v2819
        %v4383 = vunpack.c.h.b16 %v2819
        %v4384 = vunpack.c.l.b16 %v2820
        %v4385 = vunpack.c.h.b16 %v2820
        %v4386 = vunpack.c.l.b16 %v2821
        %v4387 = vunpack.c.h.b16 %v2821
        %v4388 = vunpack.c.l.b16 %v2822
        %v4389 = vunpack.c.h.b16 %v2822
        %v4390 = vunpack.c.l.b16 %v2823
        %v4391 = vunpack.c.h.b16 %v2823
        %v4392 = vunpack.c.l.b16 %v2824
        %v4393 = vunpack.c.h.b16 %v2824
        %v4394 = vunpack.c.l.b16 %v2825
        %v4395 = vunpack.c.h.b16 %v2825
        %v4396 = vunpack.c.l.b16 %v2826
        %v4397 = vunpack.c.h.b16 %v2826
        %v4398 = vunpack.c.l.b16 %v2827
        %v4399 = vunpack.c.h.b16 %v2827
        %v4400 = vpack.c.b16 %v4338, %v4336
        %v4401 = vpack.c.b16 %v4339, %v4337
        %v4402 = vpack.c.b16 %v4342, %v4340
        %v4403 = vpack.c.b16 %v4343, %v4341
        %v4404 = vpack.c.b16 %v4346, %v4344
        %v4405 = vpack.c.b16 %v4347, %v4345
        %v4406 = vpack.c.b16 %v4350, %v4348
        %v4407 = vpack.c.b16 %v4351, %v4349
        %v4408 = vpack.c.b16 %v4354, %v4352
        %v4409 = vpack.c.b16 %v4355, %v4353
        %v4410 = vpack.c.b16 %v4358, %v4356
        %v4411 = vpack.c.b16 %v4359, %v4357
        %v4412 = vpack.c.b16 %v4362, %v4360
        %v4413 = vpack.c.b16 %v4363, %v4361
        %v4414 = vpack.c.b16 %v4366, %v4364
        %v4415 = vpack.c.b16 %v4367, %v4365
        %v4416 = vpack.c.b16 %v4370, %v4368
        %v4417 = vpack.c.b16 %v4371, %v4369
        %v4418 = vpack.c.b16 %v4374, %v4372
        %v4419 = vpack.c.b16 %v4375, %v4373
        %v4420 = vpack.c.b16 %v4378, %v4376
        %v4421 = vpack.c.b16 %v4379, %v4377
        %v4422 = vpack.c.b16 %v4382, %v4380
        %v4423 = vpack.c.b16 %v4383, %v4381
        %v4424 = vpack.c.b16 %v4386, %v4384
        %v4425 = vpack.c.b16 %v4387, %v4385
        %v4426 = vpack.c.b16 %v4390, %v4388
        %v4427 = vpack.c.b16 %v4391, %v4389
        %v4428 = vpack.c.b16 %v4394, %v4392
        %v4429 = vpack.c.b16 %v4395, %v4393
        %v4430 = vpack.c.b16 %v4398, %v4396
        %v4431 = vpack.c.b16 %v4399, %v4397
        %4464 = vmatpush.bf16.msra.mxu0 %v4414
        %4465 = vmatpush.bf16.msra.mxu0 %v4412
        %4466 = vmatpush.bf16.msra.mxu0 %v4410
        %4467 = vmatpush.bf16.msra.mxu0 %v4408
        %4468 = vmatpush.bf16.msra.mxu0 %v4406
        %4469 = vmatpush.bf16.msra.mxu0 %v4404
        %4470 = vmatpush.bf16.msra.mxu0 %v4402
        %4471 = vmatpush.bf16.msra.mxu0 %v4400
        %4472 = vmatmul.bf16.gmra.mxu0 %v4176
        %v4473 = vpop.f32.mrf.mxu0
        %v4474 = vadd.f32 0.0, %v4473
        %v4475 = vpop.f32.mrf.mxu0
        %v4476 = vadd.f32 0.0, %v4475
        %4477 = vmatmul.bf16.gmra.mxu0 %v4178
        %v4478 = vpop.f32.mrf.mxu0
        %v4479 = vadd.f32 0.0, %v4478
        %v4480 = vpop.f32.mrf.mxu0
        %v4481 = vadd.f32 0.0, %v4480
        %4482 = vmatmul.bf16.gmra.mxu0 %v4180
        %v4483 = vpop.f32.mrf.mxu0
        %v4484 = vadd.f32 0.0, %v4483
        %v4485 = vpop.f32.mrf.mxu0
        %v4486 = vadd.f32 0.0, %v4485
        %4487 = vmatmul.bf16.gmra.mxu0 %v4182
        %v4488 = vpop.f32.mrf.mxu0
        %v4489 = vadd.f32 0.0, %v4488
        %v4490 = vpop.f32.mrf.mxu0
        %v4491 = vadd.f32 0.0, %v4490
        %4492 = vmatmul.bf16.gmra.mxu0 %v4184
        %v4493 = vpop.f32.mrf.mxu0
        %v4494 = vadd.f32 0.0, %v4493
        %v4495 = vpop.f32.mrf.mxu0
        %v4496 = vadd.f32 0.0, %v4495
        %4497 = vmatmul.bf16.gmra.mxu0 %v4186
        %v4498 = vpop.f32.mrf.mxu0
        %v4499 = vadd.f32 0.0, %v4498
        %v4500 = vpop.f32.mrf.mxu0
        %v4501 = vadd.f32 0.0, %v4500
        %4502 = vmatmul.bf16.gmra.mxu0 %v4188
        %v4503 = vpop.f32.mrf.mxu0
        %v4504 = vadd.f32 0.0, %v4503
        %v4505 = vpop.f32.mrf.mxu0
        %v4506 = vadd.f32 0.0, %v4505
        %4507 = vmatmul.bf16.gmra.mxu0 %v4190
        %v4508 = vpop.f32.mrf.mxu0
        %v4509 = vadd.f32 0.0, %v4508
        %v4510 = vpop.f32.mrf.mxu0
        %v4511 = vadd.f32 0.0, %v4510
        %4512 = vmatmul.bf16.gmra.mxu0 %v4192
        %v4513 = vpop.f32.mrf.mxu0
        %v4514 = vadd.f32 0.0, %v4513
        %v4515 = vpop.f32.mrf.mxu0
        %v4516 = vadd.f32 0.0, %v4515
        %4517 = vmatmul.bf16.gmra.mxu0 %v4194
        %v4518 = vpop.f32.mrf.mxu0
        %v4519 = vadd.f32 0.0, %v4518
        %v4520 = vpop.f32.mrf.mxu0
        %v4521 = vadd.f32 0.0, %v4520
        %4522 = vmatmul.bf16.gmra.mxu0 %v4196
        %v4523 = vpop.f32.mrf.mxu0
        %v4524 = vadd.f32 0.0, %v4523
        %v4525 = vpop.f32.mrf.mxu0
        %v4526 = vadd.f32 0.0, %v4525
        %4527 = vmatmul.bf16.gmra.mxu0 %v4198
        %v4528 = vpop.f32.mrf.mxu0
        %v4529 = vadd.f32 0.0, %v4528
        %v4530 = vpop.f32.mrf.mxu0
        %v4531 = vadd.f32 0.0, %v4530
        %4532 = vmatmul.bf16.gmra.mxu0 %v4200
        %v4533 = vpop.f32.mrf.mxu0
        %v4534 = vadd.f32 0.0, %v4533
        %v4535 = vpop.f32.mrf.mxu0
        %v4536 = vadd.f32 0.0, %v4535
        %4537 = vmatmul.bf16.gmra.mxu0 %v4202
        %v4538 = vpop.f32.mrf.mxu0
        %v4539 = vadd.f32 0.0, %v4538
        %v4540 = vpop.f32.mrf.mxu0
        %v4541 = vadd.f32 0.0, %v4540
        %4542 = vmatmul.bf16.gmra.mxu0 %v4204
        %v4543 = vpop.f32.mrf.mxu0
        %v4544 = vadd.f32 0.0, %v4543
        %v4545 = vpop.f32.mrf.mxu0
        %v4546 = vadd.f32 0.0, %v4545
        %4547 = vmatmul.bf16.gmra.mxu0 %v4206
        %v4548 = vpop.f32.mrf.mxu0
        %v4549 = vadd.f32 0.0, %v4548
        %v4550 = vpop.f32.mrf.mxu0
        %v4551 = vadd.f32 0.0, %v4550
        %4552 = vmatmul.bf16.gmra.mxu0 %v4208
        %v4553 = vpop.f32.mrf.mxu0
        %v4554 = vadd.f32 0.0, %v4553
        %v4555 = vpop.f32.mrf.mxu0
        %v4556 = vadd.f32 0.0, %v4555
        %4557 = vmatmul.bf16.gmra.mxu0 %v4210
        %v4558 = vpop.f32.mrf.mxu0
        %v4559 = vadd.f32 0.0, %v4558
        %v4560 = vpop.f32.mrf.mxu0
        %v4561 = vadd.f32 0.0, %v4560
        %4562 = vmatmul.bf16.gmra.mxu0 %v4212
        %v4563 = vpop.f32.mrf.mxu0
        %v4564 = vadd.f32 0.0, %v4563
        %v4565 = vpop.f32.mrf.mxu0
        %v4566 = vadd.f32 0.0, %v4565
        %4567 = vmatmul.bf16.gmra.mxu0 %v4214
        %v4568 = vpop.f32.mrf.mxu0
        %v4569 = vadd.f32 0.0, %v4568
        %v4570 = vpop.f32.mrf.mxu0
        %v4571 = vadd.f32 0.0, %v4570
        %4572 = vmatmul.bf16.gmra.mxu0 %v4216
        %v4573 = vpop.f32.mrf.mxu0
        %v4574 = vadd.f32 0.0, %v4573
        %v4575 = vpop.f32.mrf.mxu0
        %v4576 = vadd.f32 0.0, %v4575
        %4577 = vmatmul.bf16.gmra.mxu0 %v4218
        %v4578 = vpop.f32.mrf.mxu0
        %v4579 = vadd.f32 0.0, %v4578
        %v4580 = vpop.f32.mrf.mxu0
        %v4581 = vadd.f32 0.0, %v4580
        %4582 = vmatmul.bf16.gmra.mxu0 %v4220
        %v4583 = vpop.f32.mrf.mxu0
        %v4584 = vadd.f32 0.0, %v4583
        %v4585 = vpop.f32.mrf.mxu0
        %v4586 = vadd.f32 0.0, %v4585
        %4587 = vmatmul.bf16.gmra.mxu0 %v4222
        %v4588 = vpop.f32.mrf.mxu0
        %v4589 = vadd.f32 0.0, %v4588
        %v4590 = vpop.f32.mrf.mxu0
        %v4591 = vadd.f32 0.0, %v4590
        %4592 = vmatmul.bf16.gmra.mxu0 %v4224
        %v4593 = vpop.f32.mrf.mxu0
        %v4594 = vadd.f32 0.0, %v4593
        %v4595 = vpop.f32.mrf.mxu0
        %v4596 = vadd.f32 0.0, %v4595
        %4597 = vmatmul.bf16.gmra.mxu0 %v4226
        %v4598 = vpop.f32.mrf.mxu0
        %v4599 = vadd.f32 0.0, %v4598
        %v4600 = vpop.f32.mrf.mxu0
        %v4601 = vadd.f32 0.0, %v4600
        %4602 = vmatmul.bf16.gmra.mxu0 %v4228
        %v4603 = vpop.f32.mrf.mxu0
        %v4604 = vadd.f32 0.0, %v4603
        %v4605 = vpop.f32.mrf.mxu0
        %v4606 = vadd.f32 0.0, %v4605
        %4607 = vmatmul.bf16.gmra.mxu0 %v4230
        %v4608 = vpop.f32.mrf.mxu0
        %v4609 = vadd.f32 0.0, %v4608
        %v4610 = vpop.f32.mrf.mxu0
        %v4611 = vadd.f32 0.0, %v4610
        %4612 = vmatmul.bf16.gmra.mxu0 %v4232
        %v4613 = vpop.f32.mrf.mxu0
        %v4614 = vadd.f32 0.0, %v4613
        %v4615 = vpop.f32.mrf.mxu0
        %v4616 = vadd.f32 0.0, %v4615
        %4617 = vmatmul.bf16.gmra.mxu0 %v4234
        %v4618 = vpop.f32.mrf.mxu0
        %v4619 = vadd.f32 0.0, %v4618
        %v4620 = vpop.f32.mrf.mxu0
        %v4621 = vadd.f32 0.0, %v4620
        %4622 = vmatmul.bf16.gmra.mxu0 %v4236
        %v4623 = vpop.f32.mrf.mxu0
        %v4624 = vadd.f32 0.0, %v4623
        %v4625 = vpop.f32.mrf.mxu0
        %v4626 = vadd.f32 0.0, %v4625
        %4627 = vmatmul.bf16.gmra.mxu0 %v4238
        %v4628 = vpop.f32.mrf.mxu0
        %v4629 = vadd.f32 0.0, %v4628
        %v4630 = vpop.f32.mrf.mxu0
        %v4631 = vadd.f32 0.0, %v4630
        %4632 = vdwg.mxu0
        %4633 = vmatpush.bf16.msra.mxu0 %v4430
        %4634 = vmatpush.bf16.msra.mxu0 %v4428
        %4635 = vmatpush.bf16.msra.mxu0 %v4426
        %4636 = vmatpush.bf16.msra.mxu0 %v4424
        %4637 = vmatpush.bf16.msra.mxu0 %v4422
        %4638 = vmatpush.bf16.msra.mxu0 %v4420
        %4639 = vmatpush.bf16.msra.mxu0 %v4418
        %4640 = vmatpush.bf16.msra.mxu0 %v4416
        %4641 = vmatmul.bf16.gmra.mxu0 %v4177
        %v4642 = vpop.f32.mrf.mxu0
        %v4643 = vadd.f32 %v4474, %v4642
        %v4644 = vpop.f32.mrf.mxu0
        %v4645 = vadd.f32 %v4476, %v4644
        %4646 = vmatmul.bf16.gmra.mxu0 %v4179
        %v4647 = vpop.f32.mrf.mxu0
        %v4648 = vadd.f32 %v4479, %v4647
        %v4649 = vpop.f32.mrf.mxu0
        %v4650 = vadd.f32 %v4481, %v4649
        %4651 = vmatmul.bf16.gmra.mxu0 %v4181
        %v4652 = vpop.f32.mrf.mxu0
        %v4653 = vadd.f32 %v4484, %v4652
        %v4654 = vpop.f32.mrf.mxu0
        %v4655 = vadd.f32 %v4486, %v4654
        %4656 = vmatmul.bf16.gmra.mxu0 %v4183
        %v4657 = vpop.f32.mrf.mxu0
        %v4658 = vadd.f32 %v4489, %v4657
        %v4659 = vpop.f32.mrf.mxu0
        %v4660 = vadd.f32 %v4491, %v4659
        %4661 = vmatmul.bf16.gmra.mxu0 %v4185
        %v4662 = vpop.f32.mrf.mxu0
        %v4663 = vadd.f32 %v4494, %v4662
        %v4664 = vpop.f32.mrf.mxu0
        %v4665 = vadd.f32 %v4496, %v4664
        %4666 = vmatmul.bf16.gmra.mxu0 %v4187
        %v4667 = vpop.f32.mrf.mxu0
        %v4668 = vadd.f32 %v4499, %v4667
        %v4669 = vpop.f32.mrf.mxu0
        %v4670 = vadd.f32 %v4501, %v4669
        %4671 = vmatmul.bf16.gmra.mxu0 %v4189
        %v4672 = vpop.f32.mrf.mxu0
        %v4673 = vadd.f32 %v4504, %v4672
        %v4674 = vpop.f32.mrf.mxu0
        %v4675 = vadd.f32 %v4506, %v4674
        %4676 = vmatmul.bf16.gmra.mxu0 %v4191
        %v4677 = vpop.f32.mrf.mxu0
        %v4678 = vadd.f32 %v4509, %v4677
        %v4679 = vpop.f32.mrf.mxu0
        %v4680 = vadd.f32 %v4511, %v4679
        %4681 = vmatmul.bf16.gmra.mxu0 %v4193
        %v4682 = vpop.f32.mrf.mxu0
        %v4683 = vadd.f32 %v4514, %v4682
        %v4684 = vpop.f32.mrf.mxu0
        %v4685 = vadd.f32 %v4516, %v4684
        %4686 = vmatmul.bf16.gmra.mxu0 %v4195
        %v4687 = vpop.f32.mrf.mxu0
        %v4688 = vadd.f32 %v4519, %v4687
        %v4689 = vpop.f32.mrf.mxu0
        %v4690 = vadd.f32 %v4521, %v4689
        %4691 = vmatmul.bf16.gmra.mxu0 %v4197
        %v4692 = vpop.f32.mrf.mxu0
        %v4693 = vadd.f32 %v4524, %v4692
        %v4694 = vpop.f32.mrf.mxu0
        %v4695 = vadd.f32 %v4526, %v4694
        %4696 = vmatmul.bf16.gmra.mxu0 %v4199
        %v4697 = vpop.f32.mrf.mxu0
        %v4698 = vadd.f32 %v4529, %v4697
        %v4699 = vpop.f32.mrf.mxu0
        %v4700 = vadd.f32 %v4531, %v4699
        %4701 = vmatmul.bf16.gmra.mxu0 %v4201
        %v4702 = vpop.f32.mrf.mxu0
        %v4703 = vadd.f32 %v4534, %v4702
        %v4704 = vpop.f32.mrf.mxu0
        %v4705 = vadd.f32 %v4536, %v4704
        %4706 = vmatmul.bf16.gmra.mxu0 %v4203
        %v4707 = vpop.f32.mrf.mxu0
        %v4708 = vadd.f32 %v4539, %v4707
        %v4709 = vpop.f32.mrf.mxu0
        %v4710 = vadd.f32 %v4541, %v4709
        %4711 = vmatmul.bf16.gmra.mxu0 %v4205
        %v4712 = vpop.f32.mrf.mxu0
        %v4713 = vadd.f32 %v4544, %v4712
        %v4714 = vpop.f32.mrf.mxu0
        %v4715 = vadd.f32 %v4546, %v4714
        %4716 = vmatmul.bf16.gmra.mxu0 %v4207
        %v4717 = vpop.f32.mrf.mxu0
        %v4718 = vadd.f32 %v4549, %v4717
        %v4719 = vpop.f32.mrf.mxu0
        %v4720 = vadd.f32 %v4551, %v4719
        %4721 = vmatmul.bf16.gmra.mxu0 %v4209
        %v4722 = vpop.f32.mrf.mxu0
        %v4723 = vadd.f32 %v4554, %v4722
        %v4724 = vpop.f32.mrf.mxu0
        %v4725 = vadd.f32 %v4556, %v4724
        %4726 = vmatmul.bf16.gmra.mxu0 %v4211
        %v4727 = vpop.f32.mrf.mxu0
        %v4728 = vadd.f32 %v4559, %v4727
        %v4729 = vpop.f32.mrf.mxu0
        %v4730 = vadd.f32 %v4561, %v4729
        %4731 = vmatmul.bf16.gmra.mxu0 %v4213
        %v4732 = vpop.f32.mrf.mxu0
        %v4733 = vadd.f32 %v4564, %v4732
        %v4734 = vpop.f32.mrf.mxu0
        %v4735 = vadd.f32 %v4566, %v4734
        %4736 = vmatmul.bf16.gmra.mxu0 %v4215
        %v4737 = vpop.f32.mrf.mxu0
        %v4738 = vadd.f32 %v4569, %v4737
        %v4739 = vpop.f32.mrf.mxu0
        %v4740 = vadd.f32 %v4571, %v4739
        %4741 = vmatmul.bf16.gmra.mxu0 %v4217
        %v4742 = vpop.f32.mrf.mxu0
        %v4743 = vadd.f32 %v4574, %v4742
        %v4744 = vpop.f32.mrf.mxu0
        %v4745 = vadd.f32 %v4576, %v4744
        %4746 = vmatmul.bf16.gmra.mxu0 %v4219
        %v4747 = vpop.f32.mrf.mxu0
        %v4748 = vadd.f32 %v4579, %v4747
        %v4749 = vpop.f32.mrf.mxu0
        %v4750 = vadd.f32 %v4581, %v4749
        %4751 = vmatmul.bf16.gmra.mxu0 %v4221
        %v4752 = vpop.f32.mrf.mxu0
        %v4753 = vadd.f32 %v4584, %v4752
        %v4754 = vpop.f32.mrf.mxu0
        %v4755 = vadd.f32 %v4586, %v4754
        %4756 = vmatmul.bf16.gmra.mxu0 %v4223
        %v4757 = vpop.f32.mrf.mxu0
        %v4758 = vadd.f32 %v4589, %v4757
        %v4759 = vpop.f32.mrf.mxu0
        %v4760 = vadd.f32 %v4591, %v4759
        %4761 = vmatmul.bf16.gmra.mxu0 %v4225
        %v4762 = vpop.f32.mrf.mxu0
        %v4763 = vadd.f32 %v4594, %v4762
        %v4764 = vpop.f32.mrf.mxu0
        %v4765 = vadd.f32 %v4596, %v4764
        %4766 = vmatmul.bf16.gmra.mxu0 %v4227
        %v4767 = vpop.f32.mrf.mxu0
        %v4768 = vadd.f32 %v4599, %v4767
        %v4769 = vpop.f32.mrf.mxu0
        %v4770 = vadd.f32 %v4601, %v4769
        %4771 = vmatmul.bf16.gmra.mxu0 %v4229
        %v4772 = vpop.f32.mrf.mxu0
        %v4773 = vadd.f32 %v4604, %v4772
        %v4774 = vpop.f32.mrf.mxu0
        %v4775 = vadd.f32 %v4606, %v4774
        %4776 = vmatmul.bf16.gmra.mxu0 %v4231
        %v4777 = vpop.f32.mrf.mxu0
        %v4778 = vadd.f32 %v4609, %v4777
        %v4779 = vpop.f32.mrf.mxu0
        %v4780 = vadd.f32 %v4611, %v4779
        %4781 = vmatmul.bf16.gmra.mxu0 %v4233
        %v4782 = vpop.f32.mrf.mxu0
        %v4783 = vadd.f32 %v4614, %v4782
        %v4784 = vpop.f32.mrf.mxu0
        %v4785 = vadd.f32 %v4616, %v4784
        %4786 = vmatmul.bf16.gmra.mxu0 %v4235
        %v4787 = vpop.f32.mrf.mxu0
        %v4788 = vadd.f32 %v4619, %v4787
        %v4789 = vpop.f32.mrf.mxu0
        %v4790 = vadd.f32 %v4621, %v4789
        %4791 = vmatmul.bf16.gmra.mxu0 %v4237
        %v4792 = vpop.f32.mrf.mxu0
        %v4793 = vadd.f32 %v4624, %v4792
        %v4794 = vpop.f32.mrf.mxu0
        %v4795 = vadd.f32 %v4626, %v4794
        %4796 = vmatmul.bf16.gmra.mxu0 %v4239
        %v4797 = vpop.f32.mrf.mxu0
        %v4798 = vadd.f32 %v4629, %v4797
        %v4799 = vpop.f32.mrf.mxu0
        %v4800 = vadd.f32 %v4631, %v4799
        %4801 = vdwg.mxu0
        %4802 = vmatpush.bf16.msra.mxu0 %v4415
        %4803 = vmatpush.bf16.msra.mxu0 %v4413
        %4804 = vmatpush.bf16.msra.mxu0 %v4411
        %4805 = vmatpush.bf16.msra.mxu0 %v4409
        %4806 = vmatpush.bf16.msra.mxu0 %v4407
        %4807 = vmatpush.bf16.msra.mxu0 %v4405
        %4808 = vmatpush.bf16.msra.mxu0 %v4403
        %4809 = vmatpush.bf16.msra.mxu0 %v4401
        %4810 = vmatmul.bf16.gmra.mxu0 %v4176
        %v4811 = vpop.f32.mrf.mxu0
        %v4812 = vadd.f32 0.0, %v4811
        %v4813 = vpop.f32.mrf.mxu0
        %v4814 = vadd.f32 0.0, %v4813
        %4815 = vmatmul.bf16.gmra.mxu0 %v4178
        %v4816 = vpop.f32.mrf.mxu0
        %v4817 = vadd.f32 0.0, %v4816
        %v4818 = vpop.f32.mrf.mxu0
        %v4819 = vadd.f32 0.0, %v4818
        %4820 = vmatmul.bf16.gmra.mxu0 %v4180
        %v4821 = vpop.f32.mrf.mxu0
        %v4822 = vadd.f32 0.0, %v4821
        %v4823 = vpop.f32.mrf.mxu0
        %v4824 = vadd.f32 0.0, %v4823
        %4825 = vmatmul.bf16.gmra.mxu0 %v4182
        %v4826 = vpop.f32.mrf.mxu0
        %v4827 = vadd.f32 0.0, %v4826
        %v4828 = vpop.f32.mrf.mxu0
        %v4829 = vadd.f32 0.0, %v4828
        %4830 = vmatmul.bf16.gmra.mxu0 %v4184
        %v4831 = vpop.f32.mrf.mxu0
        %v4832 = vadd.f32 0.0, %v4831
        %v4833 = vpop.f32.mrf.mxu0
        %v4834 = vadd.f32 0.0, %v4833
        %4835 = vmatmul.bf16.gmra.mxu0 %v4186
        %v4836 = vpop.f32.mrf.mxu0
        %v4837 = vadd.f32 0.0, %v4836
        %v4838 = vpop.f32.mrf.mxu0
        %v4839 = vadd.f32 0.0, %v4838
        %4840 = vmatmul.bf16.gmra.mxu0 %v4188
        %v4841 = vpop.f32.mrf.mxu0
        %v4842 = vadd.f32 0.0, %v4841
        %v4843 = vpop.f32.mrf.mxu0
        %v4844 = vadd.f32 0.0, %v4843
        %4845 = vmatmul.bf16.gmra.mxu0 %v4190
        %v4846 = vpop.f32.mrf.mxu0
        %v4847 = vadd.f32 0.0, %v4846
        %v4848 = vpop.f32.mrf.mxu0
        %v4849 = vadd.f32 0.0, %v4848
        %4850 = vmatmul.bf16.gmra.mxu0 %v4192
        %v4851 = vpop.f32.mrf.mxu0
        %v4852 = vadd.f32 0.0, %v4851
        %v4853 = vpop.f32.mrf.mxu0
        %v4854 = vadd.f32 0.0, %v4853
        %4855 = vmatmul.bf16.gmra.mxu0 %v4194
        %v4856 = vpop.f32.mrf.mxu0
        %v4857 = vadd.f32 0.0, %v4856
        %v4858 = vpop.f32.mrf.mxu0
        %v4859 = vadd.f32 0.0, %v4858
        %4860 = vmatmul.bf16.gmra.mxu0 %v4196
        %v4861 = vpop.f32.mrf.mxu0
        %v4862 = vadd.f32 0.0, %v4861
        %v4863 = vpop.f32.mrf.mxu0
        %v4864 = vadd.f32 0.0, %v4863
        %4865 = vmatmul.bf16.gmra.mxu0 %v4198
        %v4866 = vpop.f32.mrf.mxu0
        %v4867 = vadd.f32 0.0, %v4866
        %v4868 = vpop.f32.mrf.mxu0
        %v4869 = vadd.f32 0.0, %v4868
        %4870 = vmatmul.bf16.gmra.mxu0 %v4200
        %v4871 = vpop.f32.mrf.mxu0
        %v4872 = vadd.f32 0.0, %v4871
        %v4873 = vpop.f32.mrf.mxu0
        %v4874 = vadd.f32 0.0, %v4873
        %4875 = vmatmul.bf16.gmra.mxu0 %v4202
        %v4876 = vpop.f32.mrf.mxu0
        %v4877 = vadd.f32 0.0, %v4876
        %v4878 = vpop.f32.mrf.mxu0
        %v4879 = vadd.f32 0.0, %v4878
        %4880 = vmatmul.bf16.gmra.mxu0 %v4204
        %v4881 = vpop.f32.mrf.mxu0
        %v4882 = vadd.f32 0.0, %v4881
        %v4883 = vpop.f32.mrf.mxu0
        %v4884 = vadd.f32 0.0, %v4883
        %4885 = vmatmul.bf16.gmra.mxu0 %v4206
        %v4886 = vpop.f32.mrf.mxu0
        %v4887 = vadd.f32 0.0, %v4886
        %v4888 = vpop.f32.mrf.mxu0
        %v4889 = vadd.f32 0.0, %v4888
        %4890 = vmatmul.bf16.gmra.mxu0 %v4208
        %v4891 = vpop.f32.mrf.mxu0
        %v4892 = vadd.f32 0.0, %v4891
        %v4893 = vpop.f32.mrf.mxu0
        %v4894 = vadd.f32 0.0, %v4893
        %4895 = vmatmul.bf16.gmra.mxu0 %v4210
        %v4896 = vpop.f32.mrf.mxu0
        %v4897 = vadd.f32 0.0, %v4896
        %v4898 = vpop.f32.mrf.mxu0
        %v4899 = vadd.f32 0.0, %v4898
        %4900 = vmatmul.bf16.gmra.mxu0 %v4212
        %v4901 = vpop.f32.mrf.mxu0
        %v4902 = vadd.f32 0.0, %v4901
        %v4903 = vpop.f32.mrf.mxu0
        %v4904 = vadd.f32 0.0, %v4903
        %4905 = vmatmul.bf16.gmra.mxu0 %v4214
        %v4906 = vpop.f32.mrf.mxu0
        %v4907 = vadd.f32 0.0, %v4906
        %v4908 = vpop.f32.mrf.mxu0
        %v4909 = vadd.f32 0.0, %v4908
        %4910 = vmatmul.bf16.gmra.mxu0 %v4216
        %v4911 = vpop.f32.mrf.mxu0
        %v4912 = vadd.f32 0.0, %v4911
        %v4913 = vpop.f32.mrf.mxu0
        %v4914 = vadd.f32 0.0, %v4913
        %4915 = vmatmul.bf16.gmra.mxu0 %v4218
        %v4916 = vpop.f32.mrf.mxu0
        %v4917 = vadd.f32 0.0, %v4916
        %v4918 = vpop.f32.mrf.mxu0
        %v4919 = vadd.f32 0.0, %v4918
        %4920 = vmatmul.bf16.gmra.mxu0 %v4220
        %v4921 = vpop.f32.mrf.mxu0
        %v4922 = vadd.f32 0.0, %v4921
        %v4923 = vpop.f32.mrf.mxu0
        %v4924 = vadd.f32 0.0, %v4923
        %4925 = vmatmul.bf16.gmra.mxu0 %v4222
        %v4926 = vpop.f32.mrf.mxu0
        %v4927 = vadd.f32 0.0, %v4926
        %v4928 = vpop.f32.mrf.mxu0
        %v4929 = vadd.f32 0.0, %v4928
        %4930 = vmatmul.bf16.gmra.mxu0 %v4224
        %v4931 = vpop.f32.mrf.mxu0
        %v4932 = vadd.f32 0.0, %v4931
        %v4933 = vpop.f32.mrf.mxu0
        %v4934 = vadd.f32 0.0, %v4933
        %4935 = vmatmul.bf16.gmra.mxu0 %v4226
        %v4936 = vpop.f32.mrf.mxu0
        %v4937 = vadd.f32 0.0, %v4936
        %v4938 = vpop.f32.mrf.mxu0
        %v4939 = vadd.f32 0.0, %v4938
        %4940 = vmatmul.bf16.gmra.mxu0 %v4228
        %v4941 = vpop.f32.mrf.mxu0
        %v4942 = vadd.f32 0.0, %v4941
        %v4943 = vpop.f32.mrf.mxu0
        %v4944 = vadd.f32 0.0, %v4943
        %4945 = vmatmul.bf16.gmra.mxu0 %v4230
        %v4946 = vpop.f32.mrf.mxu0
        %v4947 = vadd.f32 0.0, %v4946
        %v4948 = vpop.f32.mrf.mxu0
        %v4949 = vadd.f32 0.0, %v4948
        %4950 = vmatmul.bf16.gmra.mxu0 %v4232
        %v4951 = vpop.f32.mrf.mxu0
        %v4952 = vadd.f32 0.0, %v4951
        %v4953 = vpop.f32.mrf.mxu0
        %v4954 = vadd.f32 0.0, %v4953
        %4955 = vmatmul.bf16.gmra.mxu0 %v4234
        %v4956 = vpop.f32.mrf.mxu0
        %v4957 = vadd.f32 0.0, %v4956
        %v4958 = vpop.f32.mrf.mxu0
        %v4959 = vadd.f32 0.0, %v4958
        %4960 = vmatmul.bf16.gmra.mxu0 %v4236
        %v4961 = vpop.f32.mrf.mxu0
        %v4962 = vadd.f32 0.0, %v4961
        %v4963 = vpop.f32.mrf.mxu0
        %v4964 = vadd.f32 0.0, %v4963
        %4965 = vmatmul.bf16.gmra.mxu0 %v4238
        %v4966 = vpop.f32.mrf.mxu0
        %v4967 = vadd.f32 0.0, %v4966
        %v4968 = vpop.f32.mrf.mxu0
        %v4969 = vadd.f32 0.0, %v4968
        %4970 = vdwg.mxu0
        %4971 = vmatpush.bf16.msra.mxu0 %v4431
        %4972 = vmatpush.bf16.msra.mxu0 %v4429
        %4973 = vmatpush.bf16.msra.mxu0 %v4427
        %4974 = vmatpush.bf16.msra.mxu0 %v4425
        %4975 = vmatpush.bf16.msra.mxu0 %v4423
        %4976 = vmatpush.bf16.msra.mxu0 %v4421
        %4977 = vmatpush.bf16.msra.mxu0 %v4419
        %4978 = vmatpush.bf16.msra.mxu0 %v4417
        %4979 = vmatmul.bf16.gmra.mxu0 %v4177
        %v4980 = vpop.f32.mrf.mxu0
        %v4981 = vadd.f32 %v4812, %v4980
        %v4982 = vpop.f32.mrf.mxu0
        %v4983 = vadd.f32 %v4814, %v4982
        %4984 = vmatmul.bf16.gmra.mxu0 %v4179
        %v4985 = vpop.f32.mrf.mxu0
        %v4986 = vadd.f32 %v4817, %v4985
        %v4987 = vpop.f32.mrf.mxu0
        %v4988 = vadd.f32 %v4819, %v4987
        %4989 = vmatmul.bf16.gmra.mxu0 %v4181
        %v4990 = vpop.f32.mrf.mxu0
        %v4991 = vadd.f32 %v4822, %v4990
        %v4992 = vpop.f32.mrf.mxu0
        %v4993 = vadd.f32 %v4824, %v4992
        %4994 = vmatmul.bf16.gmra.mxu0 %v4183
        %v4995 = vpop.f32.mrf.mxu0
        %v4996 = vadd.f32 %v4827, %v4995
        %v4997 = vpop.f32.mrf.mxu0
        %v4998 = vadd.f32 %v4829, %v4997
        %4999 = vmatmul.bf16.gmra.mxu0 %v4185
        %v5000 = vpop.f32.mrf.mxu0
        %v5001 = vadd.f32 %v4832, %v5000
        %v5002 = vpop.f32.mrf.mxu0
        %v5003 = vadd.f32 %v4834, %v5002
        %5004 = vmatmul.bf16.gmra.mxu0 %v4187
        %v5005 = vpop.f32.mrf.mxu0
        %v5006 = vadd.f32 %v4837, %v5005
        %v5007 = vpop.f32.mrf.mxu0
        %v5008 = vadd.f32 %v4839, %v5007
        %5009 = vmatmul.bf16.gmra.mxu0 %v4189
        %v5010 = vpop.f32.mrf.mxu0
        %v5011 = vadd.f32 %v4842, %v5010
        %v5012 = vpop.f32.mrf.mxu0
        %v5013 = vadd.f32 %v4844, %v5012
        %5014 = vmatmul.bf16.gmra.mxu0 %v4191
        %v5015 = vpop.f32.mrf.mxu0
        %v5016 = vadd.f32 %v4847, %v5015
        %v5017 = vpop.f32.mrf.mxu0
        %v5018 = vadd.f32 %v4849, %v5017
        %5019 = vmatmul.bf16.gmra.mxu0 %v4193
        %v5020 = vpop.f32.mrf.mxu0
        %v5021 = vadd.f32 %v4852, %v5020
        %v5022 = vpop.f32.mrf.mxu0
        %v5023 = vadd.f32 %v4854, %v5022
        %5024 = vmatmul.bf16.gmra.mxu0 %v4195
        %v5025 = vpop.f32.mrf.mxu0
        %v5026 = vadd.f32 %v4857, %v5025
        %v5027 = vpop.f32.mrf.mxu0
        %v5028 = vadd.f32 %v4859, %v5027
        %5029 = vmatmul.bf16.gmra.mxu0 %v4197
        %v5030 = vpop.f32.mrf.mxu0
        %v5031 = vadd.f32 %v4862, %v5030
        %v5032 = vpop.f32.mrf.mxu0
        %v5033 = vadd.f32 %v4864, %v5032
        %5034 = vmatmul.bf16.gmra.mxu0 %v4199
        %v5035 = vpop.f32.mrf.mxu0
        %v5036 = vadd.f32 %v4867, %v5035
        %v5037 = vpop.f32.mrf.mxu0
        %v5038 = vadd.f32 %v4869, %v5037
        %5039 = vmatmul.bf16.gmra.mxu0 %v4201
        %v5040 = vpop.f32.mrf.mxu0
        %v5041 = vadd.f32 %v4872, %v5040
        %v5042 = vpop.f32.mrf.mxu0
        %v5043 = vadd.f32 %v4874, %v5042
        %5044 = vmatmul.bf16.gmra.mxu0 %v4203
        %v5045 = vpop.f32.mrf.mxu0
        %v5046 = vadd.f32 %v4877, %v5045
        %v5047 = vpop.f32.mrf.mxu0
        %v5048 = vadd.f32 %v4879, %v5047
        %5049 = vmatmul.bf16.gmra.mxu0 %v4205
        %v5050 = vpop.f32.mrf.mxu0
        %v5051 = vadd.f32 %v4882, %v5050
        %v5052 = vpop.f32.mrf.mxu0
        %v5053 = vadd.f32 %v4884, %v5052
        %5054 = vmatmul.bf16.gmra.mxu0 %v4207
        %v5055 = vpop.f32.mrf.mxu0
        %v5056 = vadd.f32 %v4887, %v5055
        %v5057 = vpop.f32.mrf.mxu0
        %v5058 = vadd.f32 %v4889, %v5057
        %5059 = vmatmul.bf16.gmra.mxu0 %v4209
        %v5060 = vpop.f32.mrf.mxu0
        %v5061 = vadd.f32 %v4892, %v5060
        %v5062 = vpop.f32.mrf.mxu0
        %v5063 = vadd.f32 %v4894, %v5062
        %5064 = vmatmul.bf16.gmra.mxu0 %v4211
        %v5065 = vpop.f32.mrf.mxu0
        %v5066 = vadd.f32 %v4897, %v5065
        %v5067 = vpop.f32.mrf.mxu0
        %v5068 = vadd.f32 %v4899, %v5067
        %5069 = vmatmul.bf16.gmra.mxu0 %v4213
        %v5070 = vpop.f32.mrf.mxu0
        %v5071 = vadd.f32 %v4902, %v5070
        %v5072 = vpop.f32.mrf.mxu0
        %v5073 = vadd.f32 %v4904, %v5072
        %5074 = vmatmul.bf16.gmra.mxu0 %v4215
        %v5075 = vpop.f32.mrf.mxu0
        %v5076 = vadd.f32 %v4907, %v5075
        %v5077 = vpop.f32.mrf.mxu0
        %v5078 = vadd.f32 %v4909, %v5077
        %5079 = vmatmul.bf16.gmra.mxu0 %v4217
        %v5080 = vpop.f32.mrf.mxu0
        %v5081 = vadd.f32 %v4912, %v5080
        %v5082 = vpop.f32.mrf.mxu0
        %v5083 = vadd.f32 %v4914, %v5082
        %5084 = vmatmul.bf16.gmra.mxu0 %v4219
        %v5085 = vpop.f32.mrf.mxu0
        %v5086 = vadd.f32 %v4917, %v5085
        %v5087 = vpop.f32.mrf.mxu0
        %v5088 = vadd.f32 %v4919, %v5087
        %5089 = vmatmul.bf16.gmra.mxu0 %v4221
        %v5090 = vpop.f32.mrf.mxu0
        %v5091 = vadd.f32 %v4922, %v5090
        %v5092 = vpop.f32.mrf.mxu0
        %v5093 = vadd.f32 %v4924, %v5092
        %5094 = vmatmul.bf16.gmra.mxu0 %v4223
        %v5095 = vpop.f32.mrf.mxu0
        %v5096 = vadd.f32 %v4927, %v5095
        %v5097 = vpop.f32.mrf.mxu0
        %v5098 = vadd.f32 %v4929, %v5097
        %5099 = vmatmul.bf16.gmra.mxu0 %v4225
        %v5100 = vpop.f32.mrf.mxu0
        %v5101 = vadd.f32 %v4932, %v5100
        %v5102 = vpop.f32.mrf.mxu0
        %v5103 = vadd.f32 %v4934, %v5102
        %5104 = vmatmul.bf16.gmra.mxu0 %v4227
        %v5105 = vpop.f32.mrf.mxu0
        %v5106 = vadd.f32 %v4937, %v5105
        %v5107 = vpop.f32.mrf.mxu0
        %v5108 = vadd.f32 %v4939, %v5107
        %5109 = vmatmul.bf16.gmra.mxu0 %v4229
        %v5110 = vpop.f32.mrf.mxu0
        %v5111 = vadd.f32 %v4942, %v5110
        %v5112 = vpop.f32.mrf.mxu0
        %v5113 = vadd.f32 %v4944, %v5112
        %5114 = vmatmul.bf16.gmra.mxu0 %v4231
        %v5115 = vpop.f32.mrf.mxu0
        %v5116 = vadd.f32 %v4947, %v5115
        %v5117 = vpop.f32.mrf.mxu0
        %v5118 = vadd.f32 %v4949, %v5117
        %5119 = vmatmul.bf16.gmra.mxu0 %v4233
        %v5120 = vpop.f32.mrf.mxu0
        %v5121 = vadd.f32 %v4952, %v5120
        %v5122 = vpop.f32.mrf.mxu0
        %v5123 = vadd.f32 %v4954, %v5122
        %5124 = vmatmul.bf16.gmra.mxu0 %v4235
        %v5125 = vpop.f32.mrf.mxu0
        %v5126 = vadd.f32 %v4957, %v5125
        %v5127 = vpop.f32.mrf.mxu0
        %v5128 = vadd.f32 %v4959, %v5127
        %5129 = vmatmul.bf16.gmra.mxu0 %v4237
        %v5130 = vpop.f32.mrf.mxu0
        %v5131 = vadd.f32 %v4962, %v5130
        %v5132 = vpop.f32.mrf.mxu0
        %v5133 = vadd.f32 %v4964, %v5132
        %5134 = vmatmul.bf16.gmra.mxu0 %v4239
        %v5135 = vpop.f32.mrf.mxu0
        %v5136 = vadd.f32 %v4967, %v5135
        %v5137 = vpop.f32.mrf.mxu0
        %v5138 = vadd.f32 %v4969, %v5137
        %5139 = vdwg.mxu0
        %v5140 = vsub.f32 %v3487, %v4643
        %v5141 = vsub.f32 %v3825, %v4981
        %v5142 = vsub.f32 %v3489, %v4645
        %v5143 = vsub.f32 %v3827, %v4983
        %v5144 = vsub.f32 %v3492, %v4648
        %v5145 = vsub.f32 %v3830, %v4986
        %v5146 = vsub.f32 %v3494, %v4650
        %v5147 = vsub.f32 %v3832, %v4988
        %v5148 = vsub.f32 %v3497, %v4653
        %v5149 = vsub.f32 %v3835, %v4991
        %v5150 = vsub.f32 %v3499, %v4655
        %v5151 = vsub.f32 %v3837, %v4993
        %v5152 = vsub.f32 %v3502, %v4658
        %v5153 = vsub.f32 %v3840, %v4996
        %v5154 = vsub.f32 %v3504, %v4660
        %v5155 = vsub.f32 %v3842, %v4998
        %v5156 = vsub.f32 %v3507, %v4663
        %v5157 = vsub.f32 %v3845, %v5001
        %v5158 = vsub.f32 %v3509, %v4665
        %v5159 = vsub.f32 %v3847, %v5003
        %v5160 = vsub.f32 %v3512, %v4668
        %v5161 = vsub.f32 %v3850, %v5006
        %v5162 = vsub.f32 %v3514, %v4670
        %v5163 = vsub.f32 %v3852, %v5008
        %v5164 = vsub.f32 %v3517, %v4673
        %v5165 = vsub.f32 %v3855, %v5011
        %v5166 = vsub.f32 %v3519, %v4675
        %v5167 = vsub.f32 %v3857, %v5013
        %v5168 = vsub.f32 %v3522, %v4678
        %v5169 = vsub.f32 %v3860, %v5016
        %v5170 = vsub.f32 %v3524, %v4680
        %v5171 = vsub.f32 %v3862, %v5018
        %v5172 = vsub.f32 %v3527, %v4683
        %v5173 = vsub.f32 %v3865, %v5021
        %v5174 = vsub.f32 %v3529, %v4685
        %v5175 = vsub.f32 %v3867, %v5023
        %v5176 = vsub.f32 %v3532, %v4688
        %v5177 = vsub.f32 %v3870, %v5026
        %v5178 = vsub.f32 %v3534, %v4690
        %v5179 = vsub.f32 %v3872, %v5028
        %v5180 = vsub.f32 %v3537, %v4693
        %v5181 = vsub.f32 %v3875, %v5031
        %v5182 = vsub.f32 %v3539, %v4695
        %v5183 = vsub.f32 %v3877, %v5033
        %v5184 = vsub.f32 %v3542, %v4698
        %v5185 = vsub.f32 %v3880, %v5036
        %v5186 = vsub.f32 %v3544, %v4700
        %v5187 = vsub.f32 %v3882, %v5038
        %v5188 = vsub.f32 %v3547, %v4703
        %v5189 = vsub.f32 %v3885, %v5041
        %v5190 = vsub.f32 %v3549, %v4705
        %v5191 = vsub.f32 %v3887, %v5043
        %v5192 = vsub.f32 %v3552, %v4708
        %v5193 = vsub.f32 %v3890, %v5046
        %v5194 = vsub.f32 %v3554, %v4710
        %v5195 = vsub.f32 %v3892, %v5048
        %v5196 = vsub.f32 %v3557, %v4713
        %v5197 = vsub.f32 %v3895, %v5051
        %v5198 = vsub.f32 %v3559, %v4715
        %v5199 = vsub.f32 %v3897, %v5053
        %v5200 = vsub.f32 %v3562, %v4718
        %v5201 = vsub.f32 %v3900, %v5056
        %v5202 = vsub.f32 %v3564, %v4720
        %v5203 = vsub.f32 %v3902, %v5058
        %v5204 = vsub.f32 %v3567, %v4723
        %v5205 = vsub.f32 %v3905, %v5061
        %v5206 = vsub.f32 %v3569, %v4725
        %v5207 = vsub.f32 %v3907, %v5063
        %v5208 = vsub.f32 %v3572, %v4728
        %v5209 = vsub.f32 %v3910, %v5066
        %v5210 = vsub.f32 %v3574, %v4730
        %v5211 = vsub.f32 %v3912, %v5068
        %v5212 = vsub.f32 %v3577, %v4733
        %v5213 = vsub.f32 %v3915, %v5071
        %v5214 = vsub.f32 %v3579, %v4735
        %v5215 = vsub.f32 %v3917, %v5073
        %v5216 = vsub.f32 %v3582, %v4738
        %v5217 = vsub.f32 %v3920, %v5076
        %v5218 = vsub.f32 %v3584, %v4740
        %v5219 = vsub.f32 %v3922, %v5078
        %v5220 = vsub.f32 %v3587, %v4743
        %v5221 = vsub.f32 %v3925, %v5081
        %v5222 = vsub.f32 %v3589, %v4745
        %v5223 = vsub.f32 %v3927, %v5083
        %v5224 = vsub.f32 %v3592, %v4748
        %v5225 = vsub.f32 %v3930, %v5086
        %v5226 = vsub.f32 %v3594, %v4750
        %v5227 = vsub.f32 %v3932, %v5088
        %v5228 = vsub.f32 %v3597, %v4753
        %v5229 = vsub.f32 %v3935, %v5091
        %v5230 = vsub.f32 %v3599, %v4755
        %v5231 = vsub.f32 %v3937, %v5093
        %v5232 = vsub.f32 %v3602, %v4758
        %v5233 = vsub.f32 %v3940, %v5096
        %v5234 = vsub.f32 %v3604, %v4760
        %v5235 = vsub.f32 %v3942, %v5098
        %v5236 = vsub.f32 %v3607, %v4763
        %v5237 = vsub.f32 %v3945, %v5101
        %v5238 = vsub.f32 %v3609, %v4765
        %v5239 = vsub.f32 %v3947, %v5103
        %v5240 = vsub.f32 %v3612, %v4768
        %v5241 = vsub.f32 %v3950, %v5106
        %v5242 = vsub.f32 %v3614, %v4770
        %v5243 = vsub.f32 %v3952, %v5108
        %v5244 = vsub.f32 %v3617, %v4773
        %v5245 = vsub.f32 %v3955, %v5111
        %v5246 = vsub.f32 %v3619, %v4775
        %v5247 = vsub.f32 %v3957, %v5113
        %v5248 = vsub.f32 %v3622, %v4778
        %v5249 = vsub.f32 %v3960, %v5116
        %v5250 = vsub.f32 %v3624, %v4780
        %v5251 = vsub.f32 %v3962, %v5118
        %v5252 = vsub.f32 %v3627, %v4783
        %v5253 = vsub.f32 %v3965, %v5121
        %v5254 = vsub.f32 %v3629, %v4785
        %v5255 = vsub.f32 %v3967, %v5123
        %v5256 = vsub.f32 %v3632, %v4788
        %v5257 = vsub.f32 %v3970, %v5126
        %v5258 = vsub.f32 %v3634, %v4790
        %v5259 = vsub.f32 %v3972, %v5128
        %v5260 = vsub.f32 %v3637, %v4793
        %v5261 = vsub.f32 %v3975, %v5131
        %v5262 = vsub.f32 %v3639, %v4795
        %v5263 = vsub.f32 %v3977, %v5133
        %v5264 = vsub.f32 %v3642, %v4798
        %v5265 = vsub.f32 %v3980, %v5136
        %v5266 = vsub.f32 %v3644, %v4800
        %v5267 = vsub.f32 %v3982, %v5138
        %5268 = vmatpush.bf16.msra.mxu0 %v3258
        %5269 = vmatpush.bf16.msra.mxu0 %v3256
        %5270 = vmatpush.bf16.msra.mxu0 %v3254
        %5271 = vmatpush.bf16.msra.mxu0 %v3252
        %5272 = vmatpush.bf16.msra.mxu0 %v3250
        %5273 = vmatpush.bf16.msra.mxu0 %v3248
        %5274 = vmatpush.bf16.msra.mxu0 %v3246
        %5275 = vmatpush.bf16.msra.mxu0 %v3244
        %5276 = vmatmul.bf16.gmra.mxu0 %v4176
        %v5277 = vpop.f32.mrf.mxu0
        %v5278 = vadd.f32 0.0, %v5277
        %v5279 = vpop.f32.mrf.mxu0
        %v5280 = vadd.f32 0.0, %v5279
        %5281 = vmatmul.bf16.gmra.mxu0 %v4178
        %v5282 = vpop.f32.mrf.mxu0
        %v5283 = vadd.f32 0.0, %v5282
        %v5284 = vpop.f32.mrf.mxu0
        %v5285 = vadd.f32 0.0, %v5284
        %5286 = vmatmul.bf16.gmra.mxu0 %v4180
        %v5287 = vpop.f32.mrf.mxu0
        %v5288 = vadd.f32 0.0, %v5287
        %v5289 = vpop.f32.mrf.mxu0
        %v5290 = vadd.f32 0.0, %v5289
        %5291 = vmatmul.bf16.gmra.mxu0 %v4182
        %v5292 = vpop.f32.mrf.mxu0
        %v5293 = vadd.f32 0.0, %v5292
        %v5294 = vpop.f32.mrf.mxu0
        %v5295 = vadd.f32 0.0, %v5294
        %5296 = vmatmul.bf16.gmra.mxu0 %v4184
        %v5297 = vpop.f32.mrf.mxu0
        %v5298 = vadd.f32 0.0, %v5297
        %v5299 = vpop.f32.mrf.mxu0
        %v5300 = vadd.f32 0.0, %v5299
        %5301 = vmatmul.bf16.gmra.mxu0 %v4186
        %v5302 = vpop.f32.mrf.mxu0
        %v5303 = vadd.f32 0.0, %v5302
        %v5304 = vpop.f32.mrf.mxu0
        %v5305 = vadd.f32 0.0, %v5304
        %5306 = vmatmul.bf16.gmra.mxu0 %v4188
        %v5307 = vpop.f32.mrf.mxu0
        %v5308 = vadd.f32 0.0, %v5307
        %v5309 = vpop.f32.mrf.mxu0
        %v5310 = vadd.f32 0.0, %v5309
        %5311 = vmatmul.bf16.gmra.mxu0 %v4190
        %v5312 = vpop.f32.mrf.mxu0
        %v5313 = vadd.f32 0.0, %v5312
        %v5314 = vpop.f32.mrf.mxu0
        %v5315 = vadd.f32 0.0, %v5314
        %5316 = vmatmul.bf16.gmra.mxu0 %v4192
        %v5317 = vpop.f32.mrf.mxu0
        %v5318 = vadd.f32 0.0, %v5317
        %v5319 = vpop.f32.mrf.mxu0
        %v5320 = vadd.f32 0.0, %v5319
        %5321 = vmatmul.bf16.gmra.mxu0 %v4194
        %v5322 = vpop.f32.mrf.mxu0
        %v5323 = vadd.f32 0.0, %v5322
        %v5324 = vpop.f32.mrf.mxu0
        %v5325 = vadd.f32 0.0, %v5324
        %5326 = vmatmul.bf16.gmra.mxu0 %v4196
        %v5327 = vpop.f32.mrf.mxu0
        %v5328 = vadd.f32 0.0, %v5327
        %v5329 = vpop.f32.mrf.mxu0
        %v5330 = vadd.f32 0.0, %v5329
        %5331 = vmatmul.bf16.gmra.mxu0 %v4198
        %v5332 = vpop.f32.mrf.mxu0
        %v5333 = vadd.f32 0.0, %v5332
        %v5334 = vpop.f32.mrf.mxu0
        %v5335 = vadd.f32 0.0, %v5334
        %5336 = vmatmul.bf16.gmra.mxu0 %v4200
        %v5337 = vpop.f32.mrf.mxu0
        %v5338 = vadd.f32 0.0, %v5337
        %v5339 = vpop.f32.mrf.mxu0
        %v5340 = vadd.f32 0.0, %v5339
        %5341 = vmatmul.bf16.gmra.mxu0 %v4202
        %v5342 = vpop.f32.mrf.mxu0
        %v5343 = vadd.f32 0.0, %v5342
        %v5344 = vpop.f32.mrf.mxu0
        %v5345 = vadd.f32 0.0, %v5344
        %5346 = vmatmul.bf16.gmra.mxu0 %v4204
        %v5347 = vpop.f32.mrf.mxu0
        %v5348 = vadd.f32 0.0, %v5347
        %v5349 = vpop.f32.mrf.mxu0
        %v5350 = vadd.f32 0.0, %v5349
        %5351 = vmatmul.bf16.gmra.mxu0 %v4206
        %v5352 = vpop.f32.mrf.mxu0
        %v5353 = vadd.f32 0.0, %v5352
        %v5354 = vpop.f32.mrf.mxu0
        %v5355 = vadd.f32 0.0, %v5354
        %5356 = vmatmul.bf16.gmra.mxu0 %v4208
        %v5357 = vpop.f32.mrf.mxu0
        %v5358 = vadd.f32 0.0, %v5357
        %v5359 = vpop.f32.mrf.mxu0
        %v5360 = vadd.f32 0.0, %v5359
        %5361 = vmatmul.bf16.gmra.mxu0 %v4210
        %v5362 = vpop.f32.mrf.mxu0
        %v5363 = vadd.f32 0.0, %v5362
        %v5364 = vpop.f32.mrf.mxu0
        %v5365 = vadd.f32 0.0, %v5364
        %5366 = vmatmul.bf16.gmra.mxu0 %v4212
        %v5367 = vpop.f32.mrf.mxu0
        %v5368 = vadd.f32 0.0, %v5367
        %v5369 = vpop.f32.mrf.mxu0
        %v5370 = vadd.f32 0.0, %v5369
        %5371 = vmatmul.bf16.gmra.mxu0 %v4214
        %v5372 = vpop.f32.mrf.mxu0
        %v5373 = vadd.f32 0.0, %v5372
        %v5374 = vpop.f32.mrf.mxu0
        %v5375 = vadd.f32 0.0, %v5374
        %5376 = vmatmul.bf16.gmra.mxu0 %v4216
        %v5377 = vpop.f32.mrf.mxu0
        %v5378 = vadd.f32 0.0, %v5377
        %v5379 = vpop.f32.mrf.mxu0
        %v5380 = vadd.f32 0.0, %v5379
        %5381 = vmatmul.bf16.gmra.mxu0 %v4218
        %v5382 = vpop.f32.mrf.mxu0
        %v5383 = vadd.f32 0.0, %v5382
        %v5384 = vpop.f32.mrf.mxu0
        %v5385 = vadd.f32 0.0, %v5384
        %5386 = vmatmul.bf16.gmra.mxu0 %v4220
        %v5387 = vpop.f32.mrf.mxu0
        %v5388 = vadd.f32 0.0, %v5387
        %v5389 = vpop.f32.mrf.mxu0
        %v5390 = vadd.f32 0.0, %v5389
        %5391 = vmatmul.bf16.gmra.mxu0 %v4222
        %v5392 = vpop.f32.mrf.mxu0
        %v5393 = vadd.f32 0.0, %v5392
        %v5394 = vpop.f32.mrf.mxu0
        %v5395 = vadd.f32 0.0, %v5394
        %5396 = vmatmul.bf16.gmra.mxu0 %v4224
        %v5397 = vpop.f32.mrf.mxu0
        %v5398 = vadd.f32 0.0, %v5397
        %v5399 = vpop.f32.mrf.mxu0
        %v5400 = vadd.f32 0.0, %v5399
        %5401 = vmatmul.bf16.gmra.mxu0 %v4226
        %v5402 = vpop.f32.mrf.mxu0
        %v5403 = vadd.f32 0.0, %v5402
        %v5404 = vpop.f32.mrf.mxu0
        %v5405 = vadd.f32 0.0, %v5404
        %5406 = vmatmul.bf16.gmra.mxu0 %v4228
        %v5407 = vpop.f32.mrf.mxu0
        %v5408 = vadd.f32 0.0, %v5407
        %v5409 = vpop.f32.mrf.mxu0
        %v5410 = vadd.f32 0.0, %v5409
        %5411 = vmatmul.bf16.gmra.mxu0 %v4230
        %v5412 = vpop.f32.mrf.mxu0
        %v5413 = vadd.f32 0.0, %v5412
        %v5414 = vpop.f32.mrf.mxu0
        %v5415 = vadd.f32 0.0, %v5414
        %5416 = vmatmul.bf16.gmra.mxu0 %v4232
        %v5417 = vpop.f32.mrf.mxu0
        %v5418 = vadd.f32 0.0, %v5417
        %v5419 = vpop.f32.mrf.mxu0
        %v5420 = vadd.f32 0.0, %v5419
        %5421 = vmatmul.bf16.gmra.mxu0 %v4234
        %v5422 = vpop.f32.mrf.mxu0
        %v5423 = vadd.f32 0.0, %v5422
        %v5424 = vpop.f32.mrf.mxu0
        %v5425 = vadd.f32 0.0, %v5424
        %5426 = vmatmul.bf16.gmra.mxu0 %v4236
        %v5427 = vpop.f32.mrf.mxu0
        %v5428 = vadd.f32 0.0, %v5427
        %v5429 = vpop.f32.mrf.mxu0
        %v5430 = vadd.f32 0.0, %v5429
        %5431 = vmatmul.bf16.gmra.mxu0 %v4238
        %v5432 = vpop.f32.mrf.mxu0
        %v5433 = vadd.f32 0.0, %v5432
        %v5434 = vpop.f32.mrf.mxu0
        %v5435 = vadd.f32 0.0, %v5434
        %5436 = vdwg.mxu0
        %5437 = vmatpush.bf16.msra.mxu0 %v3274
        %5438 = vmatpush.bf16.msra.mxu0 %v3272
        %5439 = vmatpush.bf16.msra.mxu0 %v3270
        %5440 = vmatpush.bf16.msra.mxu0 %v3268
        %5441 = vmatpush.bf16.msra.mxu0 %v3266
        %5442 = vmatpush.bf16.msra.mxu0 %v3264
        %5443 = vmatpush.bf16.msra.mxu0 %v3262
        %5444 = vmatpush.bf16.msra.mxu0 %v3260
        %5445 = vmatmul.bf16.gmra.mxu0 %v4177
        %v5446 = vpop.f32.mrf.mxu0
        %v5447 = vadd.f32 %v5278, %v5446
        %v5448 = vpop.f32.mrf.mxu0
        %v5449 = vadd.f32 %v5280, %v5448
        %5450 = vmatmul.bf16.gmra.mxu0 %v4179
        %v5451 = vpop.f32.mrf.mxu0
        %v5452 = vadd.f32 %v5283, %v5451
        %v5453 = vpop.f32.mrf.mxu0
        %v5454 = vadd.f32 %v5285, %v5453
        %5455 = vmatmul.bf16.gmra.mxu0 %v4181
        %v5456 = vpop.f32.mrf.mxu0
        %v5457 = vadd.f32 %v5288, %v5456
        %v5458 = vpop.f32.mrf.mxu0
        %v5459 = vadd.f32 %v5290, %v5458
        %5460 = vmatmul.bf16.gmra.mxu0 %v4183
        %v5461 = vpop.f32.mrf.mxu0
        %v5462 = vadd.f32 %v5293, %v5461
        %v5463 = vpop.f32.mrf.mxu0
        %v5464 = vadd.f32 %v5295, %v5463
        %5465 = vmatmul.bf16.gmra.mxu0 %v4185
        %v5466 = vpop.f32.mrf.mxu0
        %v5467 = vadd.f32 %v5298, %v5466
        %v5468 = vpop.f32.mrf.mxu0
        %v5469 = vadd.f32 %v5300, %v5468
        %5470 = vmatmul.bf16.gmra.mxu0 %v4187
        %v5471 = vpop.f32.mrf.mxu0
        %v5472 = vadd.f32 %v5303, %v5471
        %v5473 = vpop.f32.mrf.mxu0
        %v5474 = vadd.f32 %v5305, %v5473
        %5475 = vmatmul.bf16.gmra.mxu0 %v4189
        %v5476 = vpop.f32.mrf.mxu0
        %v5477 = vadd.f32 %v5308, %v5476
        %v5478 = vpop.f32.mrf.mxu0
        %v5479 = vadd.f32 %v5310, %v5478
        %5480 = vmatmul.bf16.gmra.mxu0 %v4191
        %v5481 = vpop.f32.mrf.mxu0
        %v5482 = vadd.f32 %v5313, %v5481
        %v5483 = vpop.f32.mrf.mxu0
        %v5484 = vadd.f32 %v5315, %v5483
        %5485 = vmatmul.bf16.gmra.mxu0 %v4193
        %v5486 = vpop.f32.mrf.mxu0
        %v5487 = vadd.f32 %v5318, %v5486
        %v5488 = vpop.f32.mrf.mxu0
        %v5489 = vadd.f32 %v5320, %v5488
        %5490 = vmatmul.bf16.gmra.mxu0 %v4195
        %v5491 = vpop.f32.mrf.mxu0
        %v5492 = vadd.f32 %v5323, %v5491
        %v5493 = vpop.f32.mrf.mxu0
        %v5494 = vadd.f32 %v5325, %v5493
        %5495 = vmatmul.bf16.gmra.mxu0 %v4197
        %v5496 = vpop.f32.mrf.mxu0
        %v5497 = vadd.f32 %v5328, %v5496
        %v5498 = vpop.f32.mrf.mxu0
        %v5499 = vadd.f32 %v5330, %v5498
        %5500 = vmatmul.bf16.gmra.mxu0 %v4199
        %v5501 = vpop.f32.mrf.mxu0
        %v5502 = vadd.f32 %v5333, %v5501
        %v5503 = vpop.f32.mrf.mxu0
        %v5504 = vadd.f32 %v5335, %v5503
        %5505 = vmatmul.bf16.gmra.mxu0 %v4201
        %v5506 = vpop.f32.mrf.mxu0
        %v5507 = vadd.f32 %v5338, %v5506
        %v5508 = vpop.f32.mrf.mxu0
        %v5509 = vadd.f32 %v5340, %v5508
        %5510 = vmatmul.bf16.gmra.mxu0 %v4203
        %v5511 = vpop.f32.mrf.mxu0
        %v5512 = vadd.f32 %v5343, %v5511
        %v5513 = vpop.f32.mrf.mxu0
        %v5514 = vadd.f32 %v5345, %v5513
        %5515 = vmatmul.bf16.gmra.mxu0 %v4205
        %v5516 = vpop.f32.mrf.mxu0
        %v5517 = vadd.f32 %v5348, %v5516
        %v5518 = vpop.f32.mrf.mxu0
        %v5519 = vadd.f32 %v5350, %v5518
        %5520 = vmatmul.bf16.gmra.mxu0 %v4207
        %v5521 = vpop.f32.mrf.mxu0
        %v5522 = vadd.f32 %v5353, %v5521
        %v5523 = vpop.f32.mrf.mxu0
        %v5524 = vadd.f32 %v5355, %v5523
        %5525 = vmatmul.bf16.gmra.mxu0 %v4209
        %v5526 = vpop.f32.mrf.mxu0
        %v5527 = vadd.f32 %v5358, %v5526
        %v5528 = vpop.f32.mrf.mxu0
        %v5529 = vadd.f32 %v5360, %v5528
        %5530 = vmatmul.bf16.gmra.mxu0 %v4211
        %v5531 = vpop.f32.mrf.mxu0
        %v5532 = vadd.f32 %v5363, %v5531
        %v5533 = vpop.f32.mrf.mxu0
        %v5534 = vadd.f32 %v5365, %v5533
        %5535 = vmatmul.bf16.gmra.mxu0 %v4213
        %v5536 = vpop.f32.mrf.mxu0
        %v5537 = vadd.f32 %v5368, %v5536
        %v5538 = vpop.f32.mrf.mxu0
        %v5539 = vadd.f32 %v5370, %v5538
        %5540 = vmatmul.bf16.gmra.mxu0 %v4215
        %v5541 = vpop.f32.mrf.mxu0
        %v5542 = vadd.f32 %v5373, %v5541
        %v5543 = vpop.f32.mrf.mxu0
        %v5544 = vadd.f32 %v5375, %v5543
        %5545 = vmatmul.bf16.gmra.mxu0 %v4217
        %v5546 = vpop.f32.mrf.mxu0
        %v5547 = vadd.f32 %v5378, %v5546
        %v5548 = vpop.f32.mrf.mxu0
        %v5549 = vadd.f32 %v5380, %v5548
        %5550 = vmatmul.bf16.gmra.mxu0 %v4219
        %v5551 = vpop.f32.mrf.mxu0
        %v5552 = vadd.f32 %v5383, %v5551
        %v5553 = vpop.f32.mrf.mxu0
        %v5554 = vadd.f32 %v5385, %v5553
        %5555 = vmatmul.bf16.gmra.mxu0 %v4221
        %v5556 = vpop.f32.mrf.mxu0
        %v5557 = vadd.f32 %v5388, %v5556
        %v5558 = vpop.f32.mrf.mxu0
        %v5559 = vadd.f32 %v5390, %v5558
        %5560 = vmatmul.bf16.gmra.mxu0 %v4223
        %v5561 = vpop.f32.mrf.mxu0
        %v5562 = vadd.f32 %v5393, %v5561
        %v5563 = vpop.f32.mrf.mxu0
        %v5564 = vadd.f32 %v5395, %v5563
        %5565 = vmatmul.bf16.gmra.mxu0 %v4225
        %v5566 = vpop.f32.mrf.mxu0
        %v5567 = vadd.f32 %v5398, %v5566
        %v5568 = vpop.f32.mrf.mxu0
        %v5569 = vadd.f32 %v5400, %v5568
        %5570 = vmatmul.bf16.gmra.mxu0 %v4227
        %v5571 = vpop.f32.mrf.mxu0
        %v5572 = vadd.f32 %v5403, %v5571
        %v5573 = vpop.f32.mrf.mxu0
        %v5574 = vadd.f32 %v5405, %v5573
        %5575 = vmatmul.bf16.gmra.mxu0 %v4229
        %v5576 = vpop.f32.mrf.mxu0
        %v5577 = vadd.f32 %v5408, %v5576
        %v5578 = vpop.f32.mrf.mxu0
        %v5579 = vadd.f32 %v5410, %v5578
        %5580 = vmatmul.bf16.gmra.mxu0 %v4231
        %v5581 = vpop.f32.mrf.mxu0
        %v5582 = vadd.f32 %v5413, %v5581
        %v5583 = vpop.f32.mrf.mxu0
        %v5584 = vadd.f32 %v5415, %v5583
        %5585 = vmatmul.bf16.gmra.mxu0 %v4233
        %v5586 = vpop.f32.mrf.mxu0
        %v5587 = vadd.f32 %v5418, %v5586
        %v5588 = vpop.f32.mrf.mxu0
        %v5589 = vadd.f32 %v5420, %v5588
        %5590 = vmatmul.bf16.gmra.mxu0 %v4235
        %v5591 = vpop.f32.mrf.mxu0
        %v5592 = vadd.f32 %v5423, %v5591
        %v5593 = vpop.f32.mrf.mxu0
        %v5594 = vadd.f32 %v5425, %v5593
        %5595 = vmatmul.bf16.gmra.mxu0 %v4237
        %v5596 = vpop.f32.mrf.mxu0
        %v5597 = vadd.f32 %v5428, %v5596
        %v5598 = vpop.f32.mrf.mxu0
        %v5599 = vadd.f32 %v5430, %v5598
        %5600 = vmatmul.bf16.gmra.mxu0 %v4239
        %v5601 = vpop.f32.mrf.mxu0
        %v5602 = vadd.f32 %v5433, %v5601
        %v5603 = vpop.f32.mrf.mxu0
        %v5604 = vadd.f32 %v5435, %v5603
        %5605 = vdwg.mxu0
        %5606 = vmatpush.bf16.msra.mxu0 %v3259
        %5607 = vmatpush.bf16.msra.mxu0 %v3257
        %5608 = vmatpush.bf16.msra.mxu0 %v3255
        %5609 = vmatpush.bf16.msra.mxu0 %v3253
        %5610 = vmatpush.bf16.msra.mxu0 %v3251
        %5611 = vmatpush.bf16.msra.mxu0 %v3249
        %5612 = vmatpush.bf16.msra.mxu0 %v3247
        %5613 = vmatpush.bf16.msra.mxu0 %v3245
        %5614 = vmatmul.bf16.gmra.mxu0 %v4176
        %v5615 = vpop.f32.mrf.mxu0
        %v5616 = vadd.f32 0.0, %v5615
        %v5617 = vpop.f32.mrf.mxu0
        %v5618 = vadd.f32 0.0, %v5617
        %5619 = vmatmul.bf16.gmra.mxu0 %v4178
        %v5620 = vpop.f32.mrf.mxu0
        %v5621 = vadd.f32 0.0, %v5620
        %v5622 = vpop.f32.mrf.mxu0
        %v5623 = vadd.f32 0.0, %v5622
        %5624 = vmatmul.bf16.gmra.mxu0 %v4180
        %v5625 = vpop.f32.mrf.mxu0
        %v5626 = vadd.f32 0.0, %v5625
        %v5627 = vpop.f32.mrf.mxu0
        %v5628 = vadd.f32 0.0, %v5627
        %5629 = vmatmul.bf16.gmra.mxu0 %v4182
        %v5630 = vpop.f32.mrf.mxu0
        %v5631 = vadd.f32 0.0, %v5630
        %v5632 = vpop.f32.mrf.mxu0
        %v5633 = vadd.f32 0.0, %v5632
        %5634 = vmatmul.bf16.gmra.mxu0 %v4184
        %v5635 = vpop.f32.mrf.mxu0
        %v5636 = vadd.f32 0.0, %v5635
        %v5637 = vpop.f32.mrf.mxu0
        %v5638 = vadd.f32 0.0, %v5637
        %5639 = vmatmul.bf16.gmra.mxu0 %v4186
        %v5640 = vpop.f32.mrf.mxu0
        %v5641 = vadd.f32 0.0, %v5640
        %v5642 = vpop.f32.mrf.mxu0
        %v5643 = vadd.f32 0.0, %v5642
        %5644 = vmatmul.bf16.gmra.mxu0 %v4188
        %v5645 = vpop.f32.mrf.mxu0
        %v5646 = vadd.f32 0.0, %v5645
        %v5647 = vpop.f32.mrf.mxu0
        %v5648 = vadd.f32 0.0, %v5647
        %5649 = vmatmul.bf16.gmra.mxu0 %v4190
        %v5650 = vpop.f32.mrf.mxu0
        %v5651 = vadd.f32 0.0, %v5650
        %v5652 = vpop.f32.mrf.mxu0
        %v5653 = vadd.f32 0.0, %v5652
        %5654 = vmatmul.bf16.gmra.mxu0 %v4192
        %v5655 = vpop.f32.mrf.mxu0
        %v5656 = vadd.f32 0.0, %v5655
        %v5657 = vpop.f32.mrf.mxu0
        %v5658 = vadd.f32 0.0, %v5657
        %5659 = vmatmul.bf16.gmra.mxu0 %v4194
        %v5660 = vpop.f32.mrf.mxu0
        %v5661 = vadd.f32 0.0, %v5660
        %v5662 = vpop.f32.mrf.mxu0
        %v5663 = vadd.f32 0.0, %v5662
        %5664 = vmatmul.bf16.gmra.mxu0 %v4196
        %v5665 = vpop.f32.mrf.mxu0
        %v5666 = vadd.f32 0.0, %v5665
        %v5667 = vpop.f32.mrf.mxu0
        %v5668 = vadd.f32 0.0, %v5667
        %5669 = vmatmul.bf16.gmra.mxu0 %v4198
        %v5670 = vpop.f32.mrf.mxu0
        %v5671 = vadd.f32 0.0, %v5670
        %v5672 = vpop.f32.mrf.mxu0
        %v5673 = vadd.f32 0.0, %v5672
        %5674 = vmatmul.bf16.gmra.mxu0 %v4200
        %v5675 = vpop.f32.mrf.mxu0
        %v5676 = vadd.f32 0.0, %v5675
        %v5677 = vpop.f32.mrf.mxu0
        %v5678 = vadd.f32 0.0, %v5677
        %5679 = vmatmul.bf16.gmra.mxu0 %v4202
        %v5680 = vpop.f32.mrf.mxu0
        %v5681 = vadd.f32 0.0, %v5680
        %v5682 = vpop.f32.mrf.mxu0
        %v5683 = vadd.f32 0.0, %v5682
        %5684 = vmatmul.bf16.gmra.mxu0 %v4204
        %v5685 = vpop.f32.mrf.mxu0
        %v5686 = vadd.f32 0.0, %v5685
        %v5687 = vpop.f32.mrf.mxu0
        %v5688 = vadd.f32 0.0, %v5687
        %5689 = vmatmul.bf16.gmra.mxu0 %v4206
        %v5690 = vpop.f32.mrf.mxu0
        %v5691 = vadd.f32 0.0, %v5690
        %v5692 = vpop.f32.mrf.mxu0
        %v5693 = vadd.f32 0.0, %v5692
        %5694 = vmatmul.bf16.gmra.mxu0 %v4208
        %v5695 = vpop.f32.mrf.mxu0
        %v5696 = vadd.f32 0.0, %v5695
        %v5697 = vpop.f32.mrf.mxu0
        %v5698 = vadd.f32 0.0, %v5697
        %5699 = vmatmul.bf16.gmra.mxu0 %v4210
        %v5700 = vpop.f32.mrf.mxu0
        %v5701 = vadd.f32 0.0, %v5700
        %v5702 = vpop.f32.mrf.mxu0
        %v5703 = vadd.f32 0.0, %v5702
        %5704 = vmatmul.bf16.gmra.mxu0 %v4212
        %v5705 = vpop.f32.mrf.mxu0
        %v5706 = vadd.f32 0.0, %v5705
        %v5707 = vpop.f32.mrf.mxu0
        %v5708 = vadd.f32 0.0, %v5707
        %5709 = vmatmul.bf16.gmra.mxu0 %v4214
        %v5710 = vpop.f32.mrf.mxu0
        %v5711 = vadd.f32 0.0, %v5710
        %v5712 = vpop.f32.mrf.mxu0
        %v5713 = vadd.f32 0.0, %v5712
        %5714 = vmatmul.bf16.gmra.mxu0 %v4216
        %v5715 = vpop.f32.mrf.mxu0
        %v5716 = vadd.f32 0.0, %v5715
        %v5717 = vpop.f32.mrf.mxu0
        %v5718 = vadd.f32 0.0, %v5717
        %5719 = vmatmul.bf16.gmra.mxu0 %v4218
        %v5720 = vpop.f32.mrf.mxu0
        %v5721 = vadd.f32 0.0, %v5720
        %v5722 = vpop.f32.mrf.mxu0
        %v5723 = vadd.f32 0.0, %v5722
        %5724 = vmatmul.bf16.gmra.mxu0 %v4220
        %v5725 = vpop.f32.mrf.mxu0
        %v5726 = vadd.f32 0.0, %v5725
        %v5727 = vpop.f32.mrf.mxu0
        %v5728 = vadd.f32 0.0, %v5727
        %5729 = vmatmul.bf16.gmra.mxu0 %v4222
        %v5730 = vpop.f32.mrf.mxu0
        %v5731 = vadd.f32 0.0, %v5730
        %v5732 = vpop.f32.mrf.mxu0
        %v5733 = vadd.f32 0.0, %v5732
        %5734 = vmatmul.bf16.gmra.mxu0 %v4224
        %v5735 = vpop.f32.mrf.mxu0
        %v5736 = vadd.f32 0.0, %v5735
        %v5737 = vpop.f32.mrf.mxu0
        %v5738 = vadd.f32 0.0, %v5737
        %5739 = vmatmul.bf16.gmra.mxu0 %v4226
        %v5740 = vpop.f32.mrf.mxu0
        %v5741 = vadd.f32 0.0, %v5740
        %v5742 = vpop.f32.mrf.mxu0
        %v5743 = vadd.f32 0.0, %v5742
        %5744 = vmatmul.bf16.gmra.mxu0 %v4228
        %v5745 = vpop.f32.mrf.mxu0
        %v5746 = vadd.f32 0.0, %v5745
        %v5747 = vpop.f32.mrf.mxu0
        %v5748 = vadd.f32 0.0, %v5747
        %5749 = vmatmul.bf16.gmra.mxu0 %v4230
        %v5750 = vpop.f32.mrf.mxu0
        %v5751 = vadd.f32 0.0, %v5750
        %v5752 = vpop.f32.mrf.mxu0
        %v5753 = vadd.f32 0.0, %v5752
        %5754 = vmatmul.bf16.gmra.mxu0 %v4232
        %v5755 = vpop.f32.mrf.mxu0
        %v5756 = vadd.f32 0.0, %v5755
        %v5757 = vpop.f32.mrf.mxu0
        %v5758 = vadd.f32 0.0, %v5757
        %5759 = vmatmul.bf16.gmra.mxu0 %v4234
        %v5760 = vpop.f32.mrf.mxu0
        %v5761 = vadd.f32 0.0, %v5760
        %v5762 = vpop.f32.mrf.mxu0
        %v5763 = vadd.f32 0.0, %v5762
        %5764 = vmatmul.bf16.gmra.mxu0 %v4236
        %v5765 = vpop.f32.mrf.mxu0
        %v5766 = vadd.f32 0.0, %v5765
        %v5767 = vpop.f32.mrf.mxu0
        %v5768 = vadd.f32 0.0, %v5767
        %5769 = vmatmul.bf16.gmra.mxu0 %v4238
        %v5770 = vpop.f32.mrf.mxu0
        %v5771 = vadd.f32 0.0, %v5770
        %v5772 = vpop.f32.mrf.mxu0
        %v5773 = vadd.f32 0.0, %v5772
        %5774 = vdwg.mxu0
        %5775 = vmatpush.bf16.msra.mxu0 %v3275
        %5776 = vmatpush.bf16.msra.mxu0 %v3273
        %5777 = vmatpush.bf16.msra.mxu0 %v3271
        %5778 = vmatpush.bf16.msra.mxu0 %v3269
        %5779 = vmatpush.bf16.msra.mxu0 %v3267
        %5780 = vmatpush.bf16.msra.mxu0 %v3265
        %5781 = vmatpush.bf16.msra.mxu0 %v3263
        %5782 = vmatpush.bf16.msra.mxu0 %v3261
        %5783 = vmatmul.bf16.gmra.mxu0 %v4177
        %v5784 = vpop.f32.mrf.mxu0
        %v5785 = vadd.f32 %v5616, %v5784
        %v5786 = vpop.f32.mrf.mxu0
        %v5787 = vadd.f32 %v5618, %v5786
        %5788 = vmatmul.bf16.gmra.mxu0 %v4179
        %v5789 = vpop.f32.mrf.mxu0
        %v5790 = vadd.f32 %v5621, %v5789
        %v5791 = vpop.f32.mrf.mxu0
        %v5792 = vadd.f32 %v5623, %v5791
        %5793 = vmatmul.bf16.gmra.mxu0 %v4181
        %v5794 = vpop.f32.mrf.mxu0
        %v5795 = vadd.f32 %v5626, %v5794
        %v5796 = vpop.f32.mrf.mxu0
        %v5797 = vadd.f32 %v5628, %v5796
        %5798 = vmatmul.bf16.gmra.mxu0 %v4183
        %v5799 = vpop.f32.mrf.mxu0
        %v5800 = vadd.f32 %v5631, %v5799
        %v5801 = vpop.f32.mrf.mxu0
        %v5802 = vadd.f32 %v5633, %v5801
        %5803 = vmatmul.bf16.gmra.mxu0 %v4185
        %v5804 = vpop.f32.mrf.mxu0
        %v5805 = vadd.f32 %v5636, %v5804
        %v5806 = vpop.f32.mrf.mxu0
        %v5807 = vadd.f32 %v5638, %v5806
        %5808 = vmatmul.bf16.gmra.mxu0 %v4187
        %v5809 = vpop.f32.mrf.mxu0
        %v5810 = vadd.f32 %v5641, %v5809
        %v5811 = vpop.f32.mrf.mxu0
        %v5812 = vadd.f32 %v5643, %v5811
        %5813 = vmatmul.bf16.gmra.mxu0 %v4189
        %v5814 = vpop.f32.mrf.mxu0
        %v5815 = vadd.f32 %v5646, %v5814
        %v5816 = vpop.f32.mrf.mxu0
        %v5817 = vadd.f32 %v5648, %v5816
        %5818 = vmatmul.bf16.gmra.mxu0 %v4191
        %v5819 = vpop.f32.mrf.mxu0
        %v5820 = vadd.f32 %v5651, %v5819
        %v5821 = vpop.f32.mrf.mxu0
        %v5822 = vadd.f32 %v5653, %v5821
        %5823 = vmatmul.bf16.gmra.mxu0 %v4193
        %v5824 = vpop.f32.mrf.mxu0
        %v5825 = vadd.f32 %v5656, %v5824
        %v5826 = vpop.f32.mrf.mxu0
        %v5827 = vadd.f32 %v5658, %v5826
        %5828 = vmatmul.bf16.gmra.mxu0 %v4195
        %v5829 = vpop.f32.mrf.mxu0
        %v5830 = vadd.f32 %v5661, %v5829
        %v5831 = vpop.f32.mrf.mxu0
        %v5832 = vadd.f32 %v5663, %v5831
        %5833 = vmatmul.bf16.gmra.mxu0 %v4197
        %v5834 = vpop.f32.mrf.mxu0
        %v5835 = vadd.f32 %v5666, %v5834
        %v5836 = vpop.f32.mrf.mxu0
        %v5837 = vadd.f32 %v5668, %v5836
        %5838 = vmatmul.bf16.gmra.mxu0 %v4199
        %v5839 = vpop.f32.mrf.mxu0
        %v5840 = vadd.f32 %v5671, %v5839
        %v5841 = vpop.f32.mrf.mxu0
        %v5842 = vadd.f32 %v5673, %v5841
        %5843 = vmatmul.bf16.gmra.mxu0 %v4201
        %v5844 = vpop.f32.mrf.mxu0
        %v5845 = vadd.f32 %v5676, %v5844
        %v5846 = vpop.f32.mrf.mxu0
        %v5847 = vadd.f32 %v5678, %v5846
        %5848 = vmatmul.bf16.gmra.mxu0 %v4203
        %v5849 = vpop.f32.mrf.mxu0
        %v5850 = vadd.f32 %v5681, %v5849
        %v5851 = vpop.f32.mrf.mxu0
        %v5852 = vadd.f32 %v5683, %v5851
        %5853 = vmatmul.bf16.gmra.mxu0 %v4205
        %v5854 = vpop.f32.mrf.mxu0
        %v5855 = vadd.f32 %v5686, %v5854
        %v5856 = vpop.f32.mrf.mxu0
        %v5857 = vadd.f32 %v5688, %v5856
        %5858 = vmatmul.bf16.gmra.mxu0 %v4207
        %v5859 = vpop.f32.mrf.mxu0
        %v5860 = vadd.f32 %v5691, %v5859
        %v5861 = vpop.f32.mrf.mxu0
        %v5862 = vadd.f32 %v5693, %v5861
        %5863 = vmatmul.bf16.gmra.mxu0 %v4209
        %v5864 = vpop.f32.mrf.mxu0
        %v5865 = vadd.f32 %v5696, %v5864
        %v5866 = vpop.f32.mrf.mxu0
        %v5867 = vadd.f32 %v5698, %v5866
        %5868 = vmatmul.bf16.gmra.mxu0 %v4211
        %v5869 = vpop.f32.mrf.mxu0
        %v5870 = vadd.f32 %v5701, %v5869
        %v5871 = vpop.f32.mrf.mxu0
        %v5872 = vadd.f32 %v5703, %v5871
        %5873 = vmatmul.bf16.gmra.mxu0 %v4213
        %v5874 = vpop.f32.mrf.mxu0
        %v5875 = vadd.f32 %v5706, %v5874
        %v5876 = vpop.f32.mrf.mxu0
        %v5877 = vadd.f32 %v5708, %v5876
        %5878 = vmatmul.bf16.gmra.mxu0 %v4215
        %v5879 = vpop.f32.mrf.mxu0
        %v5880 = vadd.f32 %v5711, %v5879
        %v5881 = vpop.f32.mrf.mxu0
        %v5882 = vadd.f32 %v5713, %v5881
        %5883 = vmatmul.bf16.gmra.mxu0 %v4217
        %v5884 = vpop.f32.mrf.mxu0
        %v5885 = vadd.f32 %v5716, %v5884
        %v5886 = vpop.f32.mrf.mxu0
        %v5887 = vadd.f32 %v5718, %v5886
        %5888 = vmatmul.bf16.gmra.mxu0 %v4219
        %v5889 = vpop.f32.mrf.mxu0
        %v5890 = vadd.f32 %v5721, %v5889
        %v5891 = vpop.f32.mrf.mxu0
        %v5892 = vadd.f32 %v5723, %v5891
        %5893 = vmatmul.bf16.gmra.mxu0 %v4221
        %v5894 = vpop.f32.mrf.mxu0
        %v5895 = vadd.f32 %v5726, %v5894
        %v5896 = vpop.f32.mrf.mxu0
        %v5897 = vadd.f32 %v5728, %v5896
        %5898 = vmatmul.bf16.gmra.mxu0 %v4223
        %v5899 = vpop.f32.mrf.mxu0
        %v5900 = vadd.f32 %v5731, %v5899
        %v5901 = vpop.f32.mrf.mxu0
        %v5902 = vadd.f32 %v5733, %v5901
        %5903 = vmatmul.bf16.gmra.mxu0 %v4225
        %v5904 = vpop.f32.mrf.mxu0
        %v5905 = vadd.f32 %v5736, %v5904
        %v5906 = vpop.f32.mrf.mxu0
        %v5907 = vadd.f32 %v5738, %v5906
        %5908 = vmatmul.bf16.gmra.mxu0 %v4227
        %v5909 = vpop.f32.mrf.mxu0
        %v5910 = vadd.f32 %v5741, %v5909
        %v5911 = vpop.f32.mrf.mxu0
        %v5912 = vadd.f32 %v5743, %v5911
        %5913 = vmatmul.bf16.gmra.mxu0 %v4229
        %v5914 = vpop.f32.mrf.mxu0
        %v5915 = vadd.f32 %v5746, %v5914
        %v5916 = vpop.f32.mrf.mxu0
        %v5917 = vadd.f32 %v5748, %v5916
        %5918 = vmatmul.bf16.gmra.mxu0 %v4231
        %v5919 = vpop.f32.mrf.mxu0
        %v5920 = vadd.f32 %v5751, %v5919
        %v5921 = vpop.f32.mrf.mxu0
        %v5922 = vadd.f32 %v5753, %v5921
        %5923 = vmatmul.bf16.gmra.mxu0 %v4233
        %v5924 = vpop.f32.mrf.mxu0
        %v5925 = vadd.f32 %v5756, %v5924
        %v5926 = vpop.f32.mrf.mxu0
        %v5927 = vadd.f32 %v5758, %v5926
        %5928 = vmatmul.bf16.gmra.mxu0 %v4235
        %v5929 = vpop.f32.mrf.mxu0
        %v5930 = vadd.f32 %v5761, %v5929
        %v5931 = vpop.f32.mrf.mxu0
        %v5932 = vadd.f32 %v5763, %v5931
        %5933 = vmatmul.bf16.gmra.mxu0 %v4237
        %v5934 = vpop.f32.mrf.mxu0
        %v5935 = vadd.f32 %v5766, %v5934
        %v5936 = vpop.f32.mrf.mxu0
        %v5937 = vadd.f32 %v5768, %v5936
        %5938 = vmatmul.bf16.gmra.mxu0 %v4239
        %v5939 = vpop.f32.mrf.mxu0
        %v5940 = vadd.f32 %v5771, %v5939
        %v5941 = vpop.f32.mrf.mxu0
        %v5942 = vadd.f32 %v5773, %v5941
        %5943 = vdwg.mxu0
        %5944 = vmatpush.bf16.msra.mxu0 %v4414
        %5945 = vmatpush.bf16.msra.mxu0 %v4412
        %5946 = vmatpush.bf16.msra.mxu0 %v4410
        %5947 = vmatpush.bf16.msra.mxu0 %v4408
        %5948 = vmatpush.bf16.msra.mxu0 %v4406
        %5949 = vmatpush.bf16.msra.mxu0 %v4404
        %5950 = vmatpush.bf16.msra.mxu0 %v4402
        %5951 = vmatpush.bf16.msra.mxu0 %v4400
        %5952 = vmatmul.bf16.gmra.mxu0 %v3020
        %v5953 = vpop.f32.mrf.mxu0
        %v5954 = vadd.f32 %v5447, %v5953
        %v5955 = vpop.f32.mrf.mxu0
        %v5956 = vadd.f32 %v5449, %v5955
        %5957 = vmatmul.bf16.gmra.mxu0 %v3022
        %v5958 = vpop.f32.mrf.mxu0
        %v5959 = vadd.f32 %v5452, %v5958
        %v5960 = vpop.f32.mrf.mxu0
        %v5961 = vadd.f32 %v5454, %v5960
        %5962 = vmatmul.bf16.gmra.mxu0 %v3024
        %v5963 = vpop.f32.mrf.mxu0
        %v5964 = vadd.f32 %v5457, %v5963
        %v5965 = vpop.f32.mrf.mxu0
        %v5966 = vadd.f32 %v5459, %v5965
        %5967 = vmatmul.bf16.gmra.mxu0 %v3026
        %v5968 = vpop.f32.mrf.mxu0
        %v5969 = vadd.f32 %v5462, %v5968
        %v5970 = vpop.f32.mrf.mxu0
        %v5971 = vadd.f32 %v5464, %v5970
        %5972 = vmatmul.bf16.gmra.mxu0 %v3028
        %v5973 = vpop.f32.mrf.mxu0
        %v5974 = vadd.f32 %v5467, %v5973
        %v5975 = vpop.f32.mrf.mxu0
        %v5976 = vadd.f32 %v5469, %v5975
        %5977 = vmatmul.bf16.gmra.mxu0 %v3030
        %v5978 = vpop.f32.mrf.mxu0
        %v5979 = vadd.f32 %v5472, %v5978
        %v5980 = vpop.f32.mrf.mxu0
        %v5981 = vadd.f32 %v5474, %v5980
        %5982 = vmatmul.bf16.gmra.mxu0 %v3032
        %v5983 = vpop.f32.mrf.mxu0
        %v5984 = vadd.f32 %v5477, %v5983
        %v5985 = vpop.f32.mrf.mxu0
        %v5986 = vadd.f32 %v5479, %v5985
        %5987 = vmatmul.bf16.gmra.mxu0 %v3034
        %v5988 = vpop.f32.mrf.mxu0
        %v5989 = vadd.f32 %v5482, %v5988
        %v5990 = vpop.f32.mrf.mxu0
        %v5991 = vadd.f32 %v5484, %v5990
        %5992 = vmatmul.bf16.gmra.mxu0 %v3036
        %v5993 = vpop.f32.mrf.mxu0
        %v5994 = vadd.f32 %v5487, %v5993
        %v5995 = vpop.f32.mrf.mxu0
        %v5996 = vadd.f32 %v5489, %v5995
        %5997 = vmatmul.bf16.gmra.mxu0 %v3038
        %v5998 = vpop.f32.mrf.mxu0
        %v5999 = vadd.f32 %v5492, %v5998
        %v6000 = vpop.f32.mrf.mxu0
        %v6001 = vadd.f32 %v5494, %v6000
        %6002 = vmatmul.bf16.gmra.mxu0 %v3040
        %v6003 = vpop.f32.mrf.mxu0
        %v6004 = vadd.f32 %v5497, %v6003
        %v6005 = vpop.f32.mrf.mxu0
        %v6006 = vadd.f32 %v5499, %v6005
        %6007 = vmatmul.bf16.gmra.mxu0 %v3042
        %v6008 = vpop.f32.mrf.mxu0
        %v6009 = vadd.f32 %v5502, %v6008
        %v6010 = vpop.f32.mrf.mxu0
        %v6011 = vadd.f32 %v5504, %v6010
        %6012 = vmatmul.bf16.gmra.mxu0 %v3044
        %v6013 = vpop.f32.mrf.mxu0
        %v6014 = vadd.f32 %v5507, %v6013
        %v6015 = vpop.f32.mrf.mxu0
        %v6016 = vadd.f32 %v5509, %v6015
        %6017 = vmatmul.bf16.gmra.mxu0 %v3046
        %v6018 = vpop.f32.mrf.mxu0
        %v6019 = vadd.f32 %v5512, %v6018
        %v6020 = vpop.f32.mrf.mxu0
        %v6021 = vadd.f32 %v5514, %v6020
        %6022 = vmatmul.bf16.gmra.mxu0 %v3048
        %v6023 = vpop.f32.mrf.mxu0
        %v6024 = vadd.f32 %v5517, %v6023
        %v6025 = vpop.f32.mrf.mxu0
        %v6026 = vadd.f32 %v5519, %v6025
        %6027 = vmatmul.bf16.gmra.mxu0 %v3050
        %v6028 = vpop.f32.mrf.mxu0
        %v6029 = vadd.f32 %v5522, %v6028
        %v6030 = vpop.f32.mrf.mxu0
        %v6031 = vadd.f32 %v5524, %v6030
        %6032 = vmatmul.bf16.gmra.mxu0 %v3052
        %v6033 = vpop.f32.mrf.mxu0
        %v6034 = vadd.f32 %v5527, %v6033
        %v6035 = vpop.f32.mrf.mxu0
        %v6036 = vadd.f32 %v5529, %v6035
        %6037 = vmatmul.bf16.gmra.mxu0 %v3054
        %v6038 = vpop.f32.mrf.mxu0
        %v6039 = vadd.f32 %v5532, %v6038
        %v6040 = vpop.f32.mrf.mxu0
        %v6041 = vadd.f32 %v5534, %v6040
        %6042 = vmatmul.bf16.gmra.mxu0 %v3056
        %v6043 = vpop.f32.mrf.mxu0
        %v6044 = vadd.f32 %v5537, %v6043
        %v6045 = vpop.f32.mrf.mxu0
        %v6046 = vadd.f32 %v5539, %v6045
        %6047 = vmatmul.bf16.gmra.mxu0 %v3058
        %v6048 = vpop.f32.mrf.mxu0
        %v6049 = vadd.f32 %v5542, %v6048
        %v6050 = vpop.f32.mrf.mxu0
        %v6051 = vadd.f32 %v5544, %v6050
        %6052 = vmatmul.bf16.gmra.mxu0 %v3060
        %v6053 = vpop.f32.mrf.mxu0
        %v6054 = vadd.f32 %v5547, %v6053
        %v6055 = vpop.f32.mrf.mxu0
        %v6056 = vadd.f32 %v5549, %v6055
        %6057 = vmatmul.bf16.gmra.mxu0 %v3062
        %v6058 = vpop.f32.mrf.mxu0
        %v6059 = vadd.f32 %v5552, %v6058
        %v6060 = vpop.f32.mrf.mxu0
        %v6061 = vadd.f32 %v5554, %v6060
        %6062 = vmatmul.bf16.gmra.mxu0 %v3064
        %v6063 = vpop.f32.mrf.mxu0
        %v6064 = vadd.f32 %v5557, %v6063
        %v6065 = vpop.f32.mrf.mxu0
        %v6066 = vadd.f32 %v5559, %v6065
        %6067 = vmatmul.bf16.gmra.mxu0 %v3066
        %v6068 = vpop.f32.mrf.mxu0
        %v6069 = vadd.f32 %v5562, %v6068
        %v6070 = vpop.f32.mrf.mxu0
        %v6071 = vadd.f32 %v5564, %v6070
        %6072 = vmatmul.bf16.gmra.mxu0 %v3068
        %v6073 = vpop.f32.mrf.mxu0
        %v6074 = vadd.f32 %v5567, %v6073
        %v6075 = vpop.f32.mrf.mxu0
        %v6076 = vadd.f32 %v5569, %v6075
        %6077 = vmatmul.bf16.gmra.mxu0 %v3070
        %v6078 = vpop.f32.mrf.mxu0
        %v6079 = vadd.f32 %v5572, %v6078
        %v6080 = vpop.f32.mrf.mxu0
        %v6081 = vadd.f32 %v5574, %v6080
        %6082 = vmatmul.bf16.gmra.mxu0 %v3072
        %v6083 = vpop.f32.mrf.mxu0
        %v6084 = vadd.f32 %v5577, %v6083
        %v6085 = vpop.f32.mrf.mxu0
        %v6086 = vadd.f32 %v5579, %v6085
        %6087 = vmatmul.bf16.gmra.mxu0 %v3074
        %v6088 = vpop.f32.mrf.mxu0
        %v6089 = vadd.f32 %v5582, %v6088
        %v6090 = vpop.f32.mrf.mxu0
        %v6091 = vadd.f32 %v5584, %v6090
        %6092 = vmatmul.bf16.gmra.mxu0 %v3076
        %v6093 = vpop.f32.mrf.mxu0
        %v6094 = vadd.f32 %v5587, %v6093
        %v6095 = vpop.f32.mrf.mxu0
        %v6096 = vadd.f32 %v5589, %v6095
        %6097 = vmatmul.bf16.gmra.mxu0 %v3078
        %v6098 = vpop.f32.mrf.mxu0
        %v6099 = vadd.f32 %v5592, %v6098
        %v6100 = vpop.f32.mrf.mxu0
        %v6101 = vadd.f32 %v5594, %v6100
        %6102 = vmatmul.bf16.gmra.mxu0 %v3080
        %v6103 = vpop.f32.mrf.mxu0
        %v6104 = vadd.f32 %v5597, %v6103
        %v6105 = vpop.f32.mrf.mxu0
        %v6106 = vadd.f32 %v5599, %v6105
        %6107 = vmatmul.bf16.gmra.mxu0 %v3082
        %v6108 = vpop.f32.mrf.mxu0
        %v6109 = vadd.f32 %v5602, %v6108
        %v6110 = vpop.f32.mrf.mxu0
        %v6111 = vadd.f32 %v5604, %v6110
        %6112 = vdwg.mxu0
        %6113 = vmatpush.bf16.msra.mxu0 %v4430
        %6114 = vmatpush.bf16.msra.mxu0 %v4428
        %6115 = vmatpush.bf16.msra.mxu0 %v4426
        %6116 = vmatpush.bf16.msra.mxu0 %v4424
        %6117 = vmatpush.bf16.msra.mxu0 %v4422
        %6118 = vmatpush.bf16.msra.mxu0 %v4420
        %6119 = vmatpush.bf16.msra.mxu0 %v4418
        %6120 = vmatpush.bf16.msra.mxu0 %v4416
        %6121 = vmatmul.bf16.gmra.mxu0 %v3021
        %v6122 = vpop.f32.mrf.mxu0
        %v6123 = vadd.f32 %v5954, %v6122
        %v6124 = vpop.f32.mrf.mxu0
        %v6125 = vadd.f32 %v5956, %v6124
        %6126 = vmatmul.bf16.gmra.mxu0 %v3023
        %v6127 = vpop.f32.mrf.mxu0
        %v6128 = vadd.f32 %v5959, %v6127
        %v6129 = vpop.f32.mrf.mxu0
        %v6130 = vadd.f32 %v5961, %v6129
        %6131 = vmatmul.bf16.gmra.mxu0 %v3025
        %v6132 = vpop.f32.mrf.mxu0
        %v6133 = vadd.f32 %v5964, %v6132
        %v6134 = vpop.f32.mrf.mxu0
        %v6135 = vadd.f32 %v5966, %v6134
        %6136 = vmatmul.bf16.gmra.mxu0 %v3027
        %v6137 = vpop.f32.mrf.mxu0
        %v6138 = vadd.f32 %v5969, %v6137
        %v6139 = vpop.f32.mrf.mxu0
        %v6140 = vadd.f32 %v5971, %v6139
        %6141 = vmatmul.bf16.gmra.mxu0 %v3029
        %v6142 = vpop.f32.mrf.mxu0
        %v6143 = vadd.f32 %v5974, %v6142
        %v6144 = vpop.f32.mrf.mxu0
        %v6145 = vadd.f32 %v5976, %v6144
        %6146 = vmatmul.bf16.gmra.mxu0 %v3031
        %v6147 = vpop.f32.mrf.mxu0
        %v6148 = vadd.f32 %v5979, %v6147
        %v6149 = vpop.f32.mrf.mxu0
        %v6150 = vadd.f32 %v5981, %v6149
        %6151 = vmatmul.bf16.gmra.mxu0 %v3033
        %v6152 = vpop.f32.mrf.mxu0
        %v6153 = vadd.f32 %v5984, %v6152
        %v6154 = vpop.f32.mrf.mxu0
        %v6155 = vadd.f32 %v5986, %v6154
        %6156 = vmatmul.bf16.gmra.mxu0 %v3035
        %v6157 = vpop.f32.mrf.mxu0
        %v6158 = vadd.f32 %v5989, %v6157
        %v6159 = vpop.f32.mrf.mxu0
        %v6160 = vadd.f32 %v5991, %v6159
        %6161 = vmatmul.bf16.gmra.mxu0 %v3037
        %v6162 = vpop.f32.mrf.mxu0
        %v6163 = vadd.f32 %v5994, %v6162
        %v6164 = vpop.f32.mrf.mxu0
        %v6165 = vadd.f32 %v5996, %v6164
        %6166 = vmatmul.bf16.gmra.mxu0 %v3039
        %v6167 = vpop.f32.mrf.mxu0
        %v6168 = vadd.f32 %v5999, %v6167
        %v6169 = vpop.f32.mrf.mxu0
        %v6170 = vadd.f32 %v6001, %v6169
        %6171 = vmatmul.bf16.gmra.mxu0 %v3041
        %v6172 = vpop.f32.mrf.mxu0
        %v6173 = vadd.f32 %v6004, %v6172
        %v6174 = vpop.f32.mrf.mxu0
        %v6175 = vadd.f32 %v6006, %v6174
        %6176 = vmatmul.bf16.gmra.mxu0 %v3043
        %v6177 = vpop.f32.mrf.mxu0
        %v6178 = vadd.f32 %v6009, %v6177
        %v6179 = vpop.f32.mrf.mxu0
        %v6180 = vadd.f32 %v6011, %v6179
        %6181 = vmatmul.bf16.gmra.mxu0 %v3045
        %v6182 = vpop.f32.mrf.mxu0
        %v6183 = vadd.f32 %v6014, %v6182
        %v6184 = vpop.f32.mrf.mxu0
        %v6185 = vadd.f32 %v6016, %v6184
        %6186 = vmatmul.bf16.gmra.mxu0 %v3047
        %v6187 = vpop.f32.mrf.mxu0
        %v6188 = vadd.f32 %v6019, %v6187
        %v6189 = vpop.f32.mrf.mxu0
        %v6190 = vadd.f32 %v6021, %v6189
        %6191 = vmatmul.bf16.gmra.mxu0 %v3049
        %v6192 = vpop.f32.mrf.mxu0
        %v6193 = vadd.f32 %v6024, %v6192
        %v6194 = vpop.f32.mrf.mxu0
        %v6195 = vadd.f32 %v6026, %v6194
        %6196 = vmatmul.bf16.gmra.mxu0 %v3051
        %v6197 = vpop.f32.mrf.mxu0
        %v6198 = vadd.f32 %v6029, %v6197
        %v6199 = vpop.f32.mrf.mxu0
        %v6200 = vadd.f32 %v6031, %v6199
        %6201 = vmatmul.bf16.gmra.mxu0 %v3053
        %v6202 = vpop.f32.mrf.mxu0
        %v6203 = vadd.f32 %v6034, %v6202
        %v6204 = vpop.f32.mrf.mxu0
        %v6205 = vadd.f32 %v6036, %v6204
        %6206 = vmatmul.bf16.gmra.mxu0 %v3055
        %v6207 = vpop.f32.mrf.mxu0
        %v6208 = vadd.f32 %v6039, %v6207
        %v6209 = vpop.f32.mrf.mxu0
        %v6210 = vadd.f32 %v6041, %v6209
        %6211 = vmatmul.bf16.gmra.mxu0 %v3057
        %v6212 = vpop.f32.mrf.mxu0
        %v6213 = vadd.f32 %v6044, %v6212
        %v6214 = vpop.f32.mrf.mxu0
        %v6215 = vadd.f32 %v6046, %v6214
        %6216 = vmatmul.bf16.gmra.mxu0 %v3059
        %v6217 = vpop.f32.mrf.mxu0
        %v6218 = vadd.f32 %v6049, %v6217
        %v6219 = vpop.f32.mrf.mxu0
        %v6220 = vadd.f32 %v6051, %v6219
        %6221 = vmatmul.bf16.gmra.mxu0 %v3061
        %v6222 = vpop.f32.mrf.mxu0
        %v6223 = vadd.f32 %v6054, %v6222
        %v6224 = vpop.f32.mrf.mxu0
        %v6225 = vadd.f32 %v6056, %v6224
        %6226 = vmatmul.bf16.gmra.mxu0 %v3063
        %v6227 = vpop.f32.mrf.mxu0
        %v6228 = vadd.f32 %v6059, %v6227
        %v6229 = vpop.f32.mrf.mxu0
        %v6230 = vadd.f32 %v6061, %v6229
        %6231 = vmatmul.bf16.gmra.mxu0 %v3065
        %v6232 = vpop.f32.mrf.mxu0
        %v6233 = vadd.f32 %v6064, %v6232
        %v6234 = vpop.f32.mrf.mxu0
        %v6235 = vadd.f32 %v6066, %v6234
        %6236 = vmatmul.bf16.gmra.mxu0 %v3067
        %v6237 = vpop.f32.mrf.mxu0
        %v6238 = vadd.f32 %v6069, %v6237
        %v6239 = vpop.f32.mrf.mxu0
        %v6240 = vadd.f32 %v6071, %v6239
        %6241 = vmatmul.bf16.gmra.mxu0 %v3069
        %v6242 = vpop.f32.mrf.mxu0
        %v6243 = vadd.f32 %v6074, %v6242
        %v6244 = vpop.f32.mrf.mxu0
        %v6245 = vadd.f32 %v6076, %v6244
        %6246 = vmatmul.bf16.gmra.mxu0 %v3071
        %v6247 = vpop.f32.mrf.mxu0
        %v6248 = vadd.f32 %v6079, %v6247
        %v6249 = vpop.f32.mrf.mxu0
        %v6250 = vadd.f32 %v6081, %v6249
        %6251 = vmatmul.bf16.gmra.mxu0 %v3073
        %v6252 = vpop.f32.mrf.mxu0
        %v6253 = vadd.f32 %v6084, %v6252
        %v6254 = vpop.f32.mrf.mxu0
        %v6255 = vadd.f32 %v6086, %v6254
        %6256 = vmatmul.bf16.gmra.mxu0 %v3075
        %v6257 = vpop.f32.mrf.mxu0
        %v6258 = vadd.f32 %v6089, %v6257
        %v6259 = vpop.f32.mrf.mxu0
        %v6260 = vadd.f32 %v6091, %v6259
        %6261 = vmatmul.bf16.gmra.mxu0 %v3077
        %v6262 = vpop.f32.mrf.mxu0
        %v6263 = vadd.f32 %v6094, %v6262
        %v6264 = vpop.f32.mrf.mxu0
        %v6265 = vadd.f32 %v6096, %v6264
        %6266 = vmatmul.bf16.gmra.mxu0 %v3079
        %v6267 = vpop.f32.mrf.mxu0
        %v6268 = vadd.f32 %v6099, %v6267
        %v6269 = vpop.f32.mrf.mxu0
        %v6270 = vadd.f32 %v6101, %v6269
        %6271 = vmatmul.bf16.gmra.mxu0 %v3081
        %v6272 = vpop.f32.mrf.mxu0
        %v6273 = vadd.f32 %v6104, %v6272
        %v6274 = vpop.f32.mrf.mxu0
        %v6275 = vadd.f32 %v6106, %v6274
        %6276 = vmatmul.bf16.gmra.mxu0 %v3083
        %v6277 = vpop.f32.mrf.mxu0
        %v6278 = vadd.f32 %v6109, %v6277
        %v6279 = vpop.f32.mrf.mxu0
        %v6280 = vadd.f32 %v6111, %v6279
        %6281 = vdwg.mxu0
        %6282 = vmatpush.bf16.msra.mxu0 %v4415
        %6283 = vmatpush.bf16.msra.mxu0 %v4413
        %6284 = vmatpush.bf16.msra.mxu0 %v4411
        %6285 = vmatpush.bf16.msra.mxu0 %v4409
        %6286 = vmatpush.bf16.msra.mxu0 %v4407
        %6287 = vmatpush.bf16.msra.mxu0 %v4405
        %6288 = vmatpush.bf16.msra.mxu0 %v4403
        %6289 = vmatpush.bf16.msra.mxu0 %v4401
        %6290 = vmatmul.bf16.gmra.mxu0 %v3020
        %v6291 = vpop.f32.mrf.mxu0
        %v6292 = vadd.f32 %v5785, %v6291
        %v6293 = vpop.f32.mrf.mxu0
        %v6294 = vadd.f32 %v5787, %v6293
        %6295 = vmatmul.bf16.gmra.mxu0 %v3022
        %v6296 = vpop.f32.mrf.mxu0
        %v6297 = vadd.f32 %v5790, %v6296
        %v6298 = vpop.f32.mrf.mxu0
        %v6299 = vadd.f32 %v5792, %v6298
        %6300 = vmatmul.bf16.gmra.mxu0 %v3024
        %v6301 = vpop.f32.mrf.mxu0
        %v6302 = vadd.f32 %v5795, %v6301
        %v6303 = vpop.f32.mrf.mxu0
        %v6304 = vadd.f32 %v5797, %v6303
        %6305 = vmatmul.bf16.gmra.mxu0 %v3026
        %v6306 = vpop.f32.mrf.mxu0
        %v6307 = vadd.f32 %v5800, %v6306
        %v6308 = vpop.f32.mrf.mxu0
        %v6309 = vadd.f32 %v5802, %v6308
        %6310 = vmatmul.bf16.gmra.mxu0 %v3028
        %v6311 = vpop.f32.mrf.mxu0
        %v6312 = vadd.f32 %v5805, %v6311
        %v6313 = vpop.f32.mrf.mxu0
        %v6314 = vadd.f32 %v5807, %v6313
        %6315 = vmatmul.bf16.gmra.mxu0 %v3030
        %v6316 = vpop.f32.mrf.mxu0
        %v6317 = vadd.f32 %v5810, %v6316
        %v6318 = vpop.f32.mrf.mxu0
        %v6319 = vadd.f32 %v5812, %v6318
        %6320 = vmatmul.bf16.gmra.mxu0 %v3032
        %v6321 = vpop.f32.mrf.mxu0
        %v6322 = vadd.f32 %v5815, %v6321
        %v6323 = vpop.f32.mrf.mxu0
        %v6324 = vadd.f32 %v5817, %v6323
        %6325 = vmatmul.bf16.gmra.mxu0 %v3034
        %v6326 = vpop.f32.mrf.mxu0
        %v6327 = vadd.f32 %v5820, %v6326
        %v6328 = vpop.f32.mrf.mxu0
        %v6329 = vadd.f32 %v5822, %v6328
        %6330 = vmatmul.bf16.gmra.mxu0 %v3036
        %v6331 = vpop.f32.mrf.mxu0
        %v6332 = vadd.f32 %v5825, %v6331
        %v6333 = vpop.f32.mrf.mxu0
        %v6334 = vadd.f32 %v5827, %v6333
        %6335 = vmatmul.bf16.gmra.mxu0 %v3038
        %v6336 = vpop.f32.mrf.mxu0
        %v6337 = vadd.f32 %v5830, %v6336
        %v6338 = vpop.f32.mrf.mxu0
        %v6339 = vadd.f32 %v5832, %v6338
        %6340 = vmatmul.bf16.gmra.mxu0 %v3040
        %v6341 = vpop.f32.mrf.mxu0
        %v6342 = vadd.f32 %v5835, %v6341
        %v6343 = vpop.f32.mrf.mxu0
        %v6344 = vadd.f32 %v5837, %v6343
        %6345 = vmatmul.bf16.gmra.mxu0 %v3042
        %v6346 = vpop.f32.mrf.mxu0
        %v6347 = vadd.f32 %v5840, %v6346
        %v6348 = vpop.f32.mrf.mxu0
        %v6349 = vadd.f32 %v5842, %v6348
        %6350 = vmatmul.bf16.gmra.mxu0 %v3044
        %v6351 = vpop.f32.mrf.mxu0
        %v6352 = vadd.f32 %v5845, %v6351
        %v6353 = vpop.f32.mrf.mxu0
        %v6354 = vadd.f32 %v5847, %v6353
        %6355 = vmatmul.bf16.gmra.mxu0 %v3046
        %v6356 = vpop.f32.mrf.mxu0
        %v6357 = vadd.f32 %v5850, %v6356
        %v6358 = vpop.f32.mrf.mxu0
        %v6359 = vadd.f32 %v5852, %v6358
        %6360 = vmatmul.bf16.gmra.mxu0 %v3048
        %v6361 = vpop.f32.mrf.mxu0
        %v6362 = vadd.f32 %v5855, %v6361
        %v6363 = vpop.f32.mrf.mxu0
        %v6364 = vadd.f32 %v5857, %v6363
        %6365 = vmatmul.bf16.gmra.mxu0 %v3050
        %v6366 = vpop.f32.mrf.mxu0
        %v6367 = vadd.f32 %v5860, %v6366
        %v6368 = vpop.f32.mrf.mxu0
        %v6369 = vadd.f32 %v5862, %v6368
        %6370 = vmatmul.bf16.gmra.mxu0 %v3052
        %v6371 = vpop.f32.mrf.mxu0
        %v6372 = vadd.f32 %v5865, %v6371
        %v6373 = vpop.f32.mrf.mxu0
        %v6374 = vadd.f32 %v5867, %v6373
        %6375 = vmatmul.bf16.gmra.mxu0 %v3054
        %v6376 = vpop.f32.mrf.mxu0
        %v6377 = vadd.f32 %v5870, %v6376
        %v6378 = vpop.f32.mrf.mxu0
        %v6379 = vadd.f32 %v5872, %v6378
        %6380 = vmatmul.bf16.gmra.mxu0 %v3056
        %v6381 = vpop.f32.mrf.mxu0
        %v6382 = vadd.f32 %v5875, %v6381
        %v6383 = vpop.f32.mrf.mxu0
        %v6384 = vadd.f32 %v5877, %v6383
        %6385 = vmatmul.bf16.gmra.mxu0 %v3058
        %v6386 = vpop.f32.mrf.mxu0
        %v6387 = vadd.f32 %v5880, %v6386
        %v6388 = vpop.f32.mrf.mxu0
        %v6389 = vadd.f32 %v5882, %v6388
        %6390 = vmatmul.bf16.gmra.mxu0 %v3060
        %v6391 = vpop.f32.mrf.mxu0
        %v6392 = vadd.f32 %v5885, %v6391
        %v6393 = vpop.f32.mrf.mxu0
        %v6394 = vadd.f32 %v5887, %v6393
        %6395 = vmatmul.bf16.gmra.mxu0 %v3062
        %v6396 = vpop.f32.mrf.mxu0
        %v6397 = vadd.f32 %v5890, %v6396
        %v6398 = vpop.f32.mrf.mxu0
        %v6399 = vadd.f32 %v5892, %v6398
        %6400 = vmatmul.bf16.gmra.mxu0 %v3064
        %v6401 = vpop.f32.mrf.mxu0
        %v6402 = vadd.f32 %v5895, %v6401
        %v6403 = vpop.f32.mrf.mxu0
        %v6404 = vadd.f32 %v5897, %v6403
        %6405 = vmatmul.bf16.gmra.mxu0 %v3066
        %v6406 = vpop.f32.mrf.mxu0
        %v6407 = vadd.f32 %v5900, %v6406
        %v6408 = vpop.f32.mrf.mxu0
        %v6409 = vadd.f32 %v5902, %v6408
        %6410 = vmatmul.bf16.gmra.mxu0 %v3068
        %v6411 = vpop.f32.mrf.mxu0
        %v6412 = vadd.f32 %v5905, %v6411
        %v6413 = vpop.f32.mrf.mxu0
        %v6414 = vadd.f32 %v5907, %v6413
        %6415 = vmatmul.bf16.gmra.mxu0 %v3070
        %v6416 = vpop.f32.mrf.mxu0
        %v6417 = vadd.f32 %v5910, %v6416
        %v6418 = vpop.f32.mrf.mxu0
        %v6419 = vadd.f32 %v5912, %v6418
        %6420 = vmatmul.bf16.gmra.mxu0 %v3072
        %v6421 = vpop.f32.mrf.mxu0
        %v6422 = vadd.f32 %v5915, %v6421
        %v6423 = vpop.f32.mrf.mxu0
        %v6424 = vadd.f32 %v5917, %v6423
        %6425 = vmatmul.bf16.gmra.mxu0 %v3074
        %v6426 = vpop.f32.mrf.mxu0
        %v6427 = vadd.f32 %v5920, %v6426
        %v6428 = vpop.f32.mrf.mxu0
        %v6429 = vadd.f32 %v5922, %v6428
        %6430 = vmatmul.bf16.gmra.mxu0 %v3076
        %v6431 = vpop.f32.mrf.mxu0
        %v6432 = vadd.f32 %v5925, %v6431
        %v6433 = vpop.f32.mrf.mxu0
        %v6434 = vadd.f32 %v5927, %v6433
        %6435 = vmatmul.bf16.gmra.mxu0 %v3078
        %v6436 = vpop.f32.mrf.mxu0
        %v6437 = vadd.f32 %v5930, %v6436
        %v6438 = vpop.f32.mrf.mxu0
        %v6439 = vadd.f32 %v5932, %v6438
        %6440 = vmatmul.bf16.gmra.mxu0 %v3080
        %v6441 = vpop.f32.mrf.mxu0
        %v6442 = vadd.f32 %v5935, %v6441
        %v6443 = vpop.f32.mrf.mxu0
        %v6444 = vadd.f32 %v5937, %v6443
        %6445 = vmatmul.bf16.gmra.mxu0 %v3082
        %v6446 = vpop.f32.mrf.mxu0
        %v6447 = vadd.f32 %v5940, %v6446
        %v6448 = vpop.f32.mrf.mxu0
        %v6449 = vadd.f32 %v5942, %v6448
        %6450 = vdwg.mxu0
        %6451 = vmatpush.bf16.msra.mxu0 %v4431
        %6452 = vmatpush.bf16.msra.mxu0 %v4429
        %6453 = vmatpush.bf16.msra.mxu0 %v4427
        %6454 = vmatpush.bf16.msra.mxu0 %v4425
        %6455 = vmatpush.bf16.msra.mxu0 %v4423
        %6456 = vmatpush.bf16.msra.mxu0 %v4421
        %6457 = vmatpush.bf16.msra.mxu0 %v4419
        %6458 = vmatpush.bf16.msra.mxu0 %v4417
        %6459 = vmatmul.bf16.gmra.mxu0 %v3021
        %v6460 = vpop.f32.mrf.mxu0
        %v6461 = vadd.f32 %v6292, %v6460
        %v6462 = vpop.f32.mrf.mxu0
        %v6463 = vadd.f32 %v6294, %v6462
        %6464 = vmatmul.bf16.gmra.mxu0 %v3023
        %v6465 = vpop.f32.mrf.mxu0
        %v6466 = vadd.f32 %v6297, %v6465
        %v6467 = vpop.f32.mrf.mxu0
        %v6468 = vadd.f32 %v6299, %v6467
        %6469 = vmatmul.bf16.gmra.mxu0 %v3025
        %v6470 = vpop.f32.mrf.mxu0
        %v6471 = vadd.f32 %v6302, %v6470
        %v6472 = vpop.f32.mrf.mxu0
        %v6473 = vadd.f32 %v6304, %v6472
        %6474 = vmatmul.bf16.gmra.mxu0 %v3027
        %v6475 = vpop.f32.mrf.mxu0
        %v6476 = vadd.f32 %v6307, %v6475
        %v6477 = vpop.f32.mrf.mxu0
        %v6478 = vadd.f32 %v6309, %v6477
        %6479 = vmatmul.bf16.gmra.mxu0 %v3029
        %v6480 = vpop.f32.mrf.mxu0
        %v6481 = vadd.f32 %v6312, %v6480
        %v6482 = vpop.f32.mrf.mxu0
        %v6483 = vadd.f32 %v6314, %v6482
        %6484 = vmatmul.bf16.gmra.mxu0 %v3031
        %v6485 = vpop.f32.mrf.mxu0
        %v6486 = vadd.f32 %v6317, %v6485
        %v6487 = vpop.f32.mrf.mxu0
        %v6488 = vadd.f32 %v6319, %v6487
        %6489 = vmatmul.bf16.gmra.mxu0 %v3033
        %v6490 = vpop.f32.mrf.mxu0
        %v6491 = vadd.f32 %v6322, %v6490
        %v6492 = vpop.f32.mrf.mxu0
        %v6493 = vadd.f32 %v6324, %v6492
        %6494 = vmatmul.bf16.gmra.mxu0 %v3035
        %v6495 = vpop.f32.mrf.mxu0
        %v6496 = vadd.f32 %v6327, %v6495
        %v6497 = vpop.f32.mrf.mxu0
        %v6498 = vadd.f32 %v6329, %v6497
        %6499 = vmatmul.bf16.gmra.mxu0 %v3037
        %v6500 = vpop.f32.mrf.mxu0
        %v6501 = vadd.f32 %v6332, %v6500
        %v6502 = vpop.f32.mrf.mxu0
        %v6503 = vadd.f32 %v6334, %v6502
        %6504 = vmatmul.bf16.gmra.mxu0 %v3039
        %v6505 = vpop.f32.mrf.mxu0
        %v6506 = vadd.f32 %v6337, %v6505
        %v6507 = vpop.f32.mrf.mxu0
        %v6508 = vadd.f32 %v6339, %v6507
        %6509 = vmatmul.bf16.gmra.mxu0 %v3041
        %v6510 = vpop.f32.mrf.mxu0
        %v6511 = vadd.f32 %v6342, %v6510
        %v6512 = vpop.f32.mrf.mxu0
        %v6513 = vadd.f32 %v6344, %v6512
        %6514 = vmatmul.bf16.gmra.mxu0 %v3043
        %v6515 = vpop.f32.mrf.mxu0
        %v6516 = vadd.f32 %v6347, %v6515
        %v6517 = vpop.f32.mrf.mxu0
        %v6518 = vadd.f32 %v6349, %v6517
        %6519 = vmatmul.bf16.gmra.mxu0 %v3045
        %v6520 = vpop.f32.mrf.mxu0
        %v6521 = vadd.f32 %v6352, %v6520
        %v6522 = vpop.f32.mrf.mxu0
        %v6523 = vadd.f32 %v6354, %v6522
        %6524 = vmatmul.bf16.gmra.mxu0 %v3047
        %v6525 = vpop.f32.mrf.mxu0
        %v6526 = vadd.f32 %v6357, %v6525
        %v6527 = vpop.f32.mrf.mxu0
        %v6528 = vadd.f32 %v6359, %v6527
        %6529 = vmatmul.bf16.gmra.mxu0 %v3049
        %v6530 = vpop.f32.mrf.mxu0
        %v6531 = vadd.f32 %v6362, %v6530
        %v6532 = vpop.f32.mrf.mxu0
        %v6533 = vadd.f32 %v6364, %v6532
        %6534 = vmatmul.bf16.gmra.mxu0 %v3051
        %v6535 = vpop.f32.mrf.mxu0
        %v6536 = vadd.f32 %v6367, %v6535
        %v6537 = vpop.f32.mrf.mxu0
        %v6538 = vadd.f32 %v6369, %v6537
        %6539 = vmatmul.bf16.gmra.mxu0 %v3053
        %v6540 = vpop.f32.mrf.mxu0
        %v6541 = vadd.f32 %v6372, %v6540
        %v6542 = vpop.f32.mrf.mxu0
        %v6543 = vadd.f32 %v6374, %v6542
        %6544 = vmatmul.bf16.gmra.mxu0 %v3055
        %v6545 = vpop.f32.mrf.mxu0
        %v6546 = vadd.f32 %v6377, %v6545
        %v6547 = vpop.f32.mrf.mxu0
        %v6548 = vadd.f32 %v6379, %v6547
        %6549 = vmatmul.bf16.gmra.mxu0 %v3057
        %v6550 = vpop.f32.mrf.mxu0
        %v6551 = vadd.f32 %v6382, %v6550
        %v6552 = vpop.f32.mrf.mxu0
        %v6553 = vadd.f32 %v6384, %v6552
        %6554 = vmatmul.bf16.gmra.mxu0 %v3059
        %v6555 = vpop.f32.mrf.mxu0
        %v6556 = vadd.f32 %v6387, %v6555
        %v6557 = vpop.f32.mrf.mxu0
        %v6558 = vadd.f32 %v6389, %v6557
        %6559 = vmatmul.bf16.gmra.mxu0 %v3061
        %v6560 = vpop.f32.mrf.mxu0
        %v6561 = vadd.f32 %v6392, %v6560
        %v6562 = vpop.f32.mrf.mxu0
        %v6563 = vadd.f32 %v6394, %v6562
        %6564 = vmatmul.bf16.gmra.mxu0 %v3063
        %v6565 = vpop.f32.mrf.mxu0
        %v6566 = vadd.f32 %v6397, %v6565
        %v6567 = vpop.f32.mrf.mxu0
        %v6568 = vadd.f32 %v6399, %v6567
        %6569 = vmatmul.bf16.gmra.mxu0 %v3065
        %v6570 = vpop.f32.mrf.mxu0
        %v6571 = vadd.f32 %v6402, %v6570
        %v6572 = vpop.f32.mrf.mxu0
        %v6573 = vadd.f32 %v6404, %v6572
        %6574 = vmatmul.bf16.gmra.mxu0 %v3067
        %v6575 = vpop.f32.mrf.mxu0
        %v6576 = vadd.f32 %v6407, %v6575
        %v6577 = vpop.f32.mrf.mxu0
        %v6578 = vadd.f32 %v6409, %v6577
        %6579 = vmatmul.bf16.gmra.mxu0 %v3069
        %v6580 = vpop.f32.mrf.mxu0
        %v6581 = vadd.f32 %v6412, %v6580
        %v6582 = vpop.f32.mrf.mxu0
        %v6583 = vadd.f32 %v6414, %v6582
        %6584 = vmatmul.bf16.gmra.mxu0 %v3071
        %v6585 = vpop.f32.mrf.mxu0
        %v6586 = vadd.f32 %v6417, %v6585
        %v6587 = vpop.f32.mrf.mxu0
        %v6588 = vadd.f32 %v6419, %v6587
        %6589 = vmatmul.bf16.gmra.mxu0 %v3073
        %v6590 = vpop.f32.mrf.mxu0
        %v6591 = vadd.f32 %v6422, %v6590
        %v6592 = vpop.f32.mrf.mxu0
        %v6593 = vadd.f32 %v6424, %v6592
        %6594 = vmatmul.bf16.gmra.mxu0 %v3075
        %v6595 = vpop.f32.mrf.mxu0
        %v6596 = vadd.f32 %v6427, %v6595
        %v6597 = vpop.f32.mrf.mxu0
        %v6598 = vadd.f32 %v6429, %v6597
        %6599 = vmatmul.bf16.gmra.mxu0 %v3077
        %v6600 = vpop.f32.mrf.mxu0
        %v6601 = vadd.f32 %v6432, %v6600
        %v6602 = vpop.f32.mrf.mxu0
        %v6603 = vadd.f32 %v6434, %v6602
        %6604 = vmatmul.bf16.gmra.mxu0 %v3079
        %v6605 = vpop.f32.mrf.mxu0
        %v6606 = vadd.f32 %v6437, %v6605
        %v6607 = vpop.f32.mrf.mxu0
        %v6608 = vadd.f32 %v6439, %v6607
        %6609 = vmatmul.bf16.gmra.mxu0 %v3081
        %v6610 = vpop.f32.mrf.mxu0
        %v6611 = vadd.f32 %v6442, %v6610
        %v6612 = vpop.f32.mrf.mxu0
        %v6613 = vadd.f32 %v6444, %v6612
        %6614 = vmatmul.bf16.gmra.mxu0 %v3083
        %v6615 = vpop.f32.mrf.mxu0
        %v6616 = vadd.f32 %v6447, %v6615
        %v6617 = vpop.f32.mrf.mxu0
        %v6618 = vadd.f32 %v6449, %v6617
        %6619 = vdwg.mxu0
        %v6620 = vpack.c.bf16 %v5141, %v5140
        %v6621 = vpack.c.bf16 %v5143, %v5142
        %v6622 = vpack.c.bf16 %v5145, %v5144
        %v6623 = vpack.c.bf16 %v5147, %v5146
        %v6624 = vpack.c.bf16 %v5149, %v5148
        %v6625 = vpack.c.bf16 %v5151, %v5150
        %v6626 = vpack.c.bf16 %v5153, %v5152
        %v6627 = vpack.c.bf16 %v5155, %v5154
        %v6628 = vpack.c.bf16 %v5157, %v5156
        %v6629 = vpack.c.bf16 %v5159, %v5158
        %v6630 = vpack.c.bf16 %v5161, %v5160
        %v6631 = vpack.c.bf16 %v5163, %v5162
        %v6632 = vpack.c.bf16 %v5165, %v5164
        %v6633 = vpack.c.bf16 %v5167, %v5166
        %v6634 = vpack.c.bf16 %v5169, %v5168
        %v6635 = vpack.c.bf16 %v5171, %v5170
        %v6636 = vpack.c.bf16 %v5173, %v5172
        %v6637 = vpack.c.bf16 %v5175, %v5174
        %v6638 = vpack.c.bf16 %v5177, %v5176
        %v6639 = vpack.c.bf16 %v5179, %v5178
        %v6640 = vpack.c.bf16 %v5181, %v5180
        %v6641 = vpack.c.bf16 %v5183, %v5182
        %v6642 = vpack.c.bf16 %v5185, %v5184
        %v6643 = vpack.c.bf16 %v5187, %v5186
        %v6644 = vpack.c.bf16 %v5189, %v5188
        %v6645 = vpack.c.bf16 %v5191, %v5190
        %v6646 = vpack.c.bf16 %v5193, %v5192
        %v6647 = vpack.c.bf16 %v5195, %v5194
        %v6648 = vpack.c.bf16 %v5197, %v5196
        %v6649 = vpack.c.bf16 %v5199, %v5198
        %v6650 = vpack.c.bf16 %v5201, %v5200
        %v6651 = vpack.c.bf16 %v5203, %v5202
        %v6652 = vpack.c.bf16 %v5205, %v5204
        %v6653 = vpack.c.bf16 %v5207, %v5206
        %v6654 = vpack.c.bf16 %v5209, %v5208
        %v6655 = vpack.c.bf16 %v5211, %v5210
        %v6656 = vpack.c.bf16 %v5213, %v5212
        %v6657 = vpack.c.bf16 %v5215, %v5214
        %v6658 = vpack.c.bf16 %v5217, %v5216
        %v6659 = vpack.c.bf16 %v5219, %v5218
        %v6660 = vpack.c.bf16 %v5221, %v5220
        %v6661 = vpack.c.bf16 %v5223, %v5222
        %v6662 = vpack.c.bf16 %v5225, %v5224
        %v6663 = vpack.c.bf16 %v5227, %v5226
        %v6664 = vpack.c.bf16 %v5229, %v5228
        %v6665 = vpack.c.bf16 %v5231, %v5230
        %v6666 = vpack.c.bf16 %v5233, %v5232
        %v6667 = vpack.c.bf16 %v5235, %v5234
        %v6668 = vpack.c.bf16 %v5237, %v5236
        %v6669 = vpack.c.bf16 %v5239, %v5238
        %v6670 = vpack.c.bf16 %v5241, %v5240
        %v6671 = vpack.c.bf16 %v5243, %v5242
        %v6672 = vpack.c.bf16 %v5245, %v5244
        %v6673 = vpack.c.bf16 %v5247, %v5246
        %v6674 = vpack.c.bf16 %v5249, %v5248
        %v6675 = vpack.c.bf16 %v5251, %v5250
        %v6676 = vpack.c.bf16 %v5253, %v5252
        %v6677 = vpack.c.bf16 %v5255, %v5254
        %v6678 = vpack.c.bf16 %v5257, %v5256
        %v6679 = vpack.c.bf16 %v5259, %v5258
        %v6680 = vpack.c.bf16 %v5261, %v5260
        %v6681 = vpack.c.bf16 %v5263, %v5262
        %v6682 = vpack.c.bf16 %v5265, %v5264
        %v6683 = vpack.c.bf16 %v5267, %v5266
        %v6684 = vpack.c.bf16 %v6461, %v6123
        %v6685 = vpack.c.bf16 %v6463, %v6125
        %v6686 = vpack.c.bf16 %v6466, %v6128
        %v6687 = vpack.c.bf16 %v6468, %v6130
        %v6688 = vpack.c.bf16 %v6471, %v6133
        %v6689 = vpack.c.bf16 %v6473, %v6135
        %v6690 = vpack.c.bf16 %v6476, %v6138
        %v6691 = vpack.c.bf16 %v6478, %v6140
        %v6692 = vpack.c.bf16 %v6481, %v6143
        %v6693 = vpack.c.bf16 %v6483, %v6145
        %v6694 = vpack.c.bf16 %v6486, %v6148
        %v6695 = vpack.c.bf16 %v6488, %v6150
        %v6696 = vpack.c.bf16 %v6491, %v6153
        %v6697 = vpack.c.bf16 %v6493, %v6155
        %v6698 = vpack.c.bf16 %v6496, %v6158
        %v6699 = vpack.c.bf16 %v6498, %v6160
        %v6700 = vpack.c.bf16 %v6501, %v6163
        %v6701 = vpack.c.bf16 %v6503, %v6165
        %v6702 = vpack.c.bf16 %v6506, %v6168
        %v6703 = vpack.c.bf16 %v6508, %v6170
        %v6704 = vpack.c.bf16 %v6511, %v6173
        %v6705 = vpack.c.bf16 %v6513, %v6175
        %v6706 = vpack.c.bf16 %v6516, %v6178
        %v6707 = vpack.c.bf16 %v6518, %v6180
        %v6708 = vpack.c.bf16 %v6521, %v6183
        %v6709 = vpack.c.bf16 %v6523, %v6185
        %v6710 = vpack.c.bf16 %v6526, %v6188
        %v6711 = vpack.c.bf16 %v6528, %v6190
        %v6712 = vpack.c.bf16 %v6531, %v6193
        %v6713 = vpack.c.bf16 %v6533, %v6195
        %v6714 = vpack.c.bf16 %v6536, %v6198
        %v6715 = vpack.c.bf16 %v6538, %v6200
        %v6716 = vpack.c.bf16 %v6541, %v6203
        %v6717 = vpack.c.bf16 %v6543, %v6205
        %v6718 = vpack.c.bf16 %v6546, %v6208
        %v6719 = vpack.c.bf16 %v6548, %v6210
        %v6720 = vpack.c.bf16 %v6551, %v6213
        %v6721 = vpack.c.bf16 %v6553, %v6215
        %v6722 = vpack.c.bf16 %v6556, %v6218
        %v6723 = vpack.c.bf16 %v6558, %v6220
        %v6724 = vpack.c.bf16 %v6561, %v6223
        %v6725 = vpack.c.bf16 %v6563, %v6225
        %v6726 = vpack.c.bf16 %v6566, %v6228
        %v6727 = vpack.c.bf16 %v6568, %v6230
        %v6728 = vpack.c.bf16 %v6571, %v6233
        %v6729 = vpack.c.bf16 %v6573, %v6235
        %v6730 = vpack.c.bf16 %v6576, %v6238
        %v6731 = vpack.c.bf16 %v6578, %v6240
        %v6732 = vpack.c.bf16 %v6581, %v6243
        %v6733 = vpack.c.bf16 %v6583, %v6245
        %v6734 = vpack.c.bf16 %v6586, %v6248
        %v6735 = vpack.c.bf16 %v6588, %v6250
        %v6736 = vpack.c.bf16 %v6591, %v6253
        %v6737 = vpack.c.bf16 %v6593, %v6255
        %v6738 = vpack.c.bf16 %v6596, %v6258
        %v6739 = vpack.c.bf16 %v6598, %v6260
        %v6740 = vpack.c.bf16 %v6601, %v6263
        %v6741 = vpack.c.bf16 %v6603, %v6265
        %v6742 = vpack.c.bf16 %v6606, %v6268
        %v6743 = vpack.c.bf16 %v6608, %v6270
        %v6744 = vpack.c.bf16 %v6611, %v6273
        %v6745 = vpack.c.bf16 %v6613, %v6275
        %v6746 = vpack.c.bf16 %v6616, %v6278
        %v6747 = vpack.c.bf16 %v6618, %v6280
        %v6780 = vunpack.c.l.b16 %v2700
        %v6781 = vunpack.c.h.b16 %v2700
        %v6782 = vunpack.c.l.b16 %v2701
        %v6783 = vunpack.c.h.b16 %v2701
        %v6784 = vunpack.c.l.b16 %v2702
        %v6785 = vunpack.c.h.b16 %v2702
        %v6786 = vunpack.c.l.b16 %v2703
        %v6787 = vunpack.c.h.b16 %v2703
        %v6788 = vunpack.c.l.b16 %v2704
        %v6789 = vunpack.c.h.b16 %v2704
        %v6790 = vunpack.c.l.b16 %v2705
        %v6791 = vunpack.c.h.b16 %v2705
        %v6792 = vunpack.c.l.b16 %v2706
        %v6793 = vunpack.c.h.b16 %v2706
        %v6794 = vunpack.c.l.b16 %v2707
        %v6795 = vunpack.c.h.b16 %v2707
        %v6796 = vunpack.c.l.b16 %v2708
        %v6797 = vunpack.c.h.b16 %v2708
        %v6798 = vunpack.c.l.b16 %v2709
        %v6799 = vunpack.c.h.b16 %v2709
        %v6800 = vunpack.c.l.b16 %v2710
        %v6801 = vunpack.c.h.b16 %v2710
        %v6802 = vunpack.c.l.b16 %v2711
        %v6803 = vunpack.c.h.b16 %v2711
        %v6804 = vunpack.c.l.b16 %v2712
        %v6805 = vunpack.c.h.b16 %v2712
        %v6806 = vunpack.c.l.b16 %v2713
        %v6807 = vunpack.c.h.b16 %v2713
        %v6808 = vunpack.c.l.b16 %v2714
        %v6809 = vunpack.c.h.b16 %v2714
        %v6810 = vunpack.c.l.b16 %v2715
        %v6811 = vunpack.c.h.b16 %v2715
        %v6812 = vunpack.c.l.b16 %v2716
        %v6813 = vunpack.c.h.b16 %v2716
        %v6814 = vunpack.c.l.b16 %v2717
        %v6815 = vunpack.c.h.b16 %v2717
        %v6816 = vunpack.c.l.b16 %v2718
        %v6817 = vunpack.c.h.b16 %v2718
        %v6818 = vunpack.c.l.b16 %v2719
        %v6819 = vunpack.c.h.b16 %v2719
        %v6820 = vunpack.c.l.b16 %v2720
        %v6821 = vunpack.c.h.b16 %v2720
        %v6822 = vunpack.c.l.b16 %v2721
        %v6823 = vunpack.c.h.b16 %v2721
        %v6824 = vunpack.c.l.b16 %v2722
        %v6825 = vunpack.c.h.b16 %v2722
        %v6826 = vunpack.c.l.b16 %v2723
        %v6827 = vunpack.c.h.b16 %v2723
        %v6828 = vunpack.c.l.b16 %v2724
        %v6829 = vunpack.c.h.b16 %v2724
        %v6830 = vunpack.c.l.b16 %v2725
        %v6831 = vunpack.c.h.b16 %v2725
        %v6832 = vunpack.c.l.b16 %v2726
        %v6833 = vunpack.c.h.b16 %v2726
        %v6834 = vunpack.c.l.b16 %v2727
        %v6835 = vunpack.c.h.b16 %v2727
        %v6836 = vunpack.c.l.b16 %v2728
        %v6837 = vunpack.c.h.b16 %v2728
        %v6838 = vunpack.c.l.b16 %v2729
        %v6839 = vunpack.c.h.b16 %v2729
        %v6840 = vunpack.c.l.b16 %v2730
        %v6841 = vunpack.c.h.b16 %v2730
        %v6842 = vunpack.c.l.b16 %v2731
        %v6843 = vunpack.c.h.b16 %v2731
        %v6844 = vpack.c.b16 %v6782, %v6780
        %v6845 = vpack.c.b16 %v6783, %v6781
        %v6846 = vpack.c.b16 %v6786, %v6784
        %v6847 = vpack.c.b16 %v6787, %v6785
        %v6848 = vpack.c.b16 %v6790, %v6788
        %v6849 = vpack.c.b16 %v6791, %v6789
        %v6850 = vpack.c.b16 %v6794, %v6792
        %v6851 = vpack.c.b16 %v6795, %v6793
        %v6852 = vpack.c.b16 %v6798, %v6796
        %v6853 = vpack.c.b16 %v6799, %v6797
        %v6854 = vpack.c.b16 %v6802, %v6800
        %v6855 = vpack.c.b16 %v6803, %v6801
        %v6856 = vpack.c.b16 %v6806, %v6804
        %v6857 = vpack.c.b16 %v6807, %v6805
        %v6858 = vpack.c.b16 %v6810, %v6808
        %v6859 = vpack.c.b16 %v6811, %v6809
        %v6860 = vpack.c.b16 %v6814, %v6812
        %v6861 = vpack.c.b16 %v6815, %v6813
        %v6862 = vpack.c.b16 %v6818, %v6816
        %v6863 = vpack.c.b16 %v6819, %v6817
        %v6864 = vpack.c.b16 %v6822, %v6820
        %v6865 = vpack.c.b16 %v6823, %v6821
        %v6866 = vpack.c.b16 %v6826, %v6824
        %v6867 = vpack.c.b16 %v6827, %v6825
        %v6868 = vpack.c.b16 %v6830, %v6828
        %v6869 = vpack.c.b16 %v6831, %v6829
        %v6870 = vpack.c.b16 %v6834, %v6832
        %v6871 = vpack.c.b16 %v6835, %v6833
        %v6872 = vpack.c.b16 %v6838, %v6836
        %v6873 = vpack.c.b16 %v6839, %v6837
        %v6874 = vpack.c.b16 %v6842, %v6840
        %v6875 = vpack.c.b16 %v6843, %v6841
        %v6940 = vunpack.c.l.b16 %v6620
        %v6941 = vunpack.c.h.b16 %v6620
        %v6942 = vunpack.c.l.b16 %v6621
        %v6943 = vunpack.c.h.b16 %v6621
        %v6944 = vunpack.c.l.b16 %v6622
        %v6945 = vunpack.c.h.b16 %v6622
        %v6946 = vunpack.c.l.b16 %v6623
        %v6947 = vunpack.c.h.b16 %v6623
        %v6948 = vunpack.c.l.b16 %v6624
        %v6949 = vunpack.c.h.b16 %v6624
        %v6950 = vunpack.c.l.b16 %v6625
        %v6951 = vunpack.c.h.b16 %v6625
        %v6952 = vunpack.c.l.b16 %v6626
        %v6953 = vunpack.c.h.b16 %v6626
        %v6954 = vunpack.c.l.b16 %v6627
        %v6955 = vunpack.c.h.b16 %v6627
        %v6956 = vunpack.c.l.b16 %v6628
        %v6957 = vunpack.c.h.b16 %v6628
        %v6958 = vunpack.c.l.b16 %v6629
        %v6959 = vunpack.c.h.b16 %v6629
        %v6960 = vunpack.c.l.b16 %v6630
        %v6961 = vunpack.c.h.b16 %v6630
        %v6962 = vunpack.c.l.b16 %v6631
        %v6963 = vunpack.c.h.b16 %v6631
        %v6964 = vunpack.c.l.b16 %v6632
        %v6965 = vunpack.c.h.b16 %v6632
        %v6966 = vunpack.c.l.b16 %v6633
        %v6967 = vunpack.c.h.b16 %v6633
        %v6968 = vunpack.c.l.b16 %v6634
        %v6969 = vunpack.c.h.b16 %v6634
        %v6970 = vunpack.c.l.b16 %v6635
        %v6971 = vunpack.c.h.b16 %v6635
        %v6972 = vunpack.c.l.b16 %v6636
        %v6973 = vunpack.c.h.b16 %v6636
        %v6974 = vunpack.c.l.b16 %v6637
        %v6975 = vunpack.c.h.b16 %v6637
        %v6976 = vunpack.c.l.b16 %v6638
        %v6977 = vunpack.c.h.b16 %v6638
        %v6978 = vunpack.c.l.b16 %v6639
        %v6979 = vunpack.c.h.b16 %v6639
        %v6980 = vunpack.c.l.b16 %v6640
        %v6981 = vunpack.c.h.b16 %v6640
        %v6982 = vunpack.c.l.b16 %v6641
        %v6983 = vunpack.c.h.b16 %v6641
        %v6984 = vunpack.c.l.b16 %v6642
        %v6985 = vunpack.c.h.b16 %v6642
        %v6986 = vunpack.c.l.b16 %v6643
        %v6987 = vunpack.c.h.b16 %v6643
        %v6988 = vunpack.c.l.b16 %v6644
        %v6989 = vunpack.c.h.b16 %v6644
        %v6990 = vunpack.c.l.b16 %v6645
        %v6991 = vunpack.c.h.b16 %v6645
        %v6992 = vunpack.c.l.b16 %v6646
        %v6993 = vunpack.c.h.b16 %v6646
        %v6994 = vunpack.c.l.b16 %v6647
        %v6995 = vunpack.c.h.b16 %v6647
        %v6996 = vunpack.c.l.b16 %v6648
        %v6997 = vunpack.c.h.b16 %v6648
        %v6998 = vunpack.c.l.b16 %v6649
        %v6999 = vunpack.c.h.b16 %v6649
        %v7000 = vunpack.c.l.b16 %v6650
        %v7001 = vunpack.c.h.b16 %v6650
        %v7002 = vunpack.c.l.b16 %v6651
        %v7003 = vunpack.c.h.b16 %v6651
        %v7004 = vpack.c.b16 %v6942, %v6940
        %v7005 = vpack.c.b16 %v6943, %v6941
        %v7006 = vpack.c.b16 %v6946, %v6944
        %v7007 = vpack.c.b16 %v6947, %v6945
        %v7008 = vpack.c.b16 %v6950, %v6948
        %v7009 = vpack.c.b16 %v6951, %v6949
        %v7010 = vpack.c.b16 %v6954, %v6952
        %v7011 = vpack.c.b16 %v6955, %v6953
        %v7012 = vpack.c.b16 %v6958, %v6956
        %v7013 = vpack.c.b16 %v6959, %v6957
        %v7014 = vpack.c.b16 %v6962, %v6960
        %v7015 = vpack.c.b16 %v6963, %v6961
        %v7016 = vpack.c.b16 %v6966, %v6964
        %v7017 = vpack.c.b16 %v6967, %v6965
        %v7018 = vpack.c.b16 %v6970, %v6968
        %v7019 = vpack.c.b16 %v6971, %v6969
        %v7020 = vpack.c.b16 %v6974, %v6972
        %v7021 = vpack.c.b16 %v6975, %v6973
        %v7022 = vpack.c.b16 %v6978, %v6976
        %v7023 = vpack.c.b16 %v6979, %v6977
        %v7024 = vpack.c.b16 %v6982, %v6980
        %v7025 = vpack.c.b16 %v6983, %v6981
        %v7026 = vpack.c.b16 %v6986, %v6984
        %v7027 = vpack.c.b16 %v6987, %v6985
        %v7028 = vpack.c.b16 %v6990, %v6988
        %v7029 = vpack.c.b16 %v6991, %v6989
        %v7030 = vpack.c.b16 %v6994, %v6992
        %v7031 = vpack.c.b16 %v6995, %v6993
        %v7032 = vpack.c.b16 %v6998, %v6996
        %v7033 = vpack.c.b16 %v6999, %v6997
        %v7034 = vpack.c.b16 %v7002, %v7000
        %v7035 = vpack.c.b16 %v7003, %v7001
        %7068 = vmatpush.bf16.msra.mxu0 %v7018
        %7069 = vmatpush.bf16.msra.mxu0 %v7016
        %7070 = vmatpush.bf16.msra.mxu0 %v7014
        %7071 = vmatpush.bf16.msra.mxu0 %v7012
        %7072 = vmatpush.bf16.msra.mxu0 %v7010
        %7073 = vmatpush.bf16.msra.mxu0 %v7008
        %7074 = vmatpush.bf16.msra.mxu0 %v7006
        %7075 = vmatpush.bf16.msra.mxu0 %v7004
        %7076 = vmatmul.bf16.gmra.mxu0 %v6844
        %v7077 = vpop.f32.mrf.mxu0
        %v7078 = vadd.f32 0.0, %v7077
        %v7079 = vpop.f32.mrf.mxu0
        %v7080 = vadd.f32 0.0, %v7079
        %7081 = vmatmul.bf16.gmra.mxu0 %v6846
        %v7082 = vpop.f32.mrf.mxu0
        %v7083 = vadd.f32 0.0, %v7082
        %v7084 = vpop.f32.mrf.mxu0
        %v7085 = vadd.f32 0.0, %v7084
        %7086 = vmatmul.bf16.gmra.mxu0 %v6848
        %v7087 = vpop.f32.mrf.mxu0
        %v7088 = vadd.f32 0.0, %v7087
        %v7089 = vpop.f32.mrf.mxu0
        %v7090 = vadd.f32 0.0, %v7089
        %7091 = vmatmul.bf16.gmra.mxu0 %v6850
        %v7092 = vpop.f32.mrf.mxu0
        %v7093 = vadd.f32 0.0, %v7092
        %v7094 = vpop.f32.mrf.mxu0
        %v7095 = vadd.f32 0.0, %v7094
        %7096 = vmatmul.bf16.gmra.mxu0 %v6852
        %v7097 = vpop.f32.mrf.mxu0
        %v7098 = vadd.f32 0.0, %v7097
        %v7099 = vpop.f32.mrf.mxu0
        %v7100 = vadd.f32 0.0, %v7099
        %7101 = vmatmul.bf16.gmra.mxu0 %v6854
        %v7102 = vpop.f32.mrf.mxu0
        %v7103 = vadd.f32 0.0, %v7102
        %v7104 = vpop.f32.mrf.mxu0
        %v7105 = vadd.f32 0.0, %v7104
        %7106 = vmatmul.bf16.gmra.mxu0 %v6856
        %v7107 = vpop.f32.mrf.mxu0
        %v7108 = vadd.f32 0.0, %v7107
        %v7109 = vpop.f32.mrf.mxu0
        %v7110 = vadd.f32 0.0, %v7109
        %7111 = vmatmul.bf16.gmra.mxu0 %v6858
        %v7112 = vpop.f32.mrf.mxu0
        %v7113 = vadd.f32 0.0, %v7112
        %v7114 = vpop.f32.mrf.mxu0
        %v7115 = vadd.f32 0.0, %v7114
        %7116 = vmatmul.bf16.gmra.mxu0 %v6860
        %v7117 = vpop.f32.mrf.mxu0
        %v7118 = vadd.f32 0.0, %v7117
        %v7119 = vpop.f32.mrf.mxu0
        %v7120 = vadd.f32 0.0, %v7119
        %7121 = vmatmul.bf16.gmra.mxu0 %v6862
        %v7122 = vpop.f32.mrf.mxu0
        %v7123 = vadd.f32 0.0, %v7122
        %v7124 = vpop.f32.mrf.mxu0
        %v7125 = vadd.f32 0.0, %v7124
        %7126 = vmatmul.bf16.gmra.mxu0 %v6864
        %v7127 = vpop.f32.mrf.mxu0
        %v7128 = vadd.f32 0.0, %v7127
        %v7129 = vpop.f32.mrf.mxu0
        %v7130 = vadd.f32 0.0, %v7129
        %7131 = vmatmul.bf16.gmra.mxu0 %v6866
        %v7132 = vpop.f32.mrf.mxu0
        %v7133 = vadd.f32 0.0, %v7132
        %v7134 = vpop.f32.mrf.mxu0
        %v7135 = vadd.f32 0.0, %v7134
        %7136 = vmatmul.bf16.gmra.mxu0 %v6868
        %v7137 = vpop.f32.mrf.mxu0
        %v7138 = vadd.f32 0.0, %v7137
        %v7139 = vpop.f32.mrf.mxu0
        %v7140 = vadd.f32 0.0, %v7139
        %7141 = vmatmul.bf16.gmra.mxu0 %v6870
        %v7142 = vpop.f32.mrf.mxu0
        %v7143 = vadd.f32 0.0, %v7142
        %v7144 = vpop.f32.mrf.mxu0
        %v7145 = vadd.f32 0.0, %v7144
        %7146 = vmatmul.bf16.gmra.mxu0 %v6872
        %v7147 = vpop.f32.mrf.mxu0
        %v7148 = vadd.f32 0.0, %v7147
        %v7149 = vpop.f32.mrf.mxu0
        %v7150 = vadd.f32 0.0, %v7149
        %7151 = vmatmul.bf16.gmra.mxu0 %v6874
        %v7152 = vpop.f32.mrf.mxu0
        %v7153 = vadd.f32 0.0, %v7152
        %v7154 = vpop.f32.mrf.mxu0
        %v7155 = vadd.f32 0.0, %v7154
        %7156 = vdwg.mxu0
        %7157 = vmatpush.bf16.msra.mxu0 %v7034
        %7158 = vmatpush.bf16.msra.mxu0 %v7032
        %7159 = vmatpush.bf16.msra.mxu0 %v7030
        %7160 = vmatpush.bf16.msra.mxu0 %v7028
        %7161 = vmatpush.bf16.msra.mxu0 %v7026
        %7162 = vmatpush.bf16.msra.mxu0 %v7024
        %7163 = vmatpush.bf16.msra.mxu0 %v7022
        %7164 = vmatpush.bf16.msra.mxu0 %v7020
        %7165 = vmatmul.bf16.gmra.mxu0 %v6845
        %v7166 = vpop.f32.mrf.mxu0
        %v7167 = vadd.f32 %v7078, %v7166
        %v7168 = vpop.f32.mrf.mxu0
        %v7169 = vadd.f32 %v7080, %v7168
        %7170 = vmatmul.bf16.gmra.mxu0 %v6847
        %v7171 = vpop.f32.mrf.mxu0
        %v7172 = vadd.f32 %v7083, %v7171
        %v7173 = vpop.f32.mrf.mxu0
        %v7174 = vadd.f32 %v7085, %v7173
        %7175 = vmatmul.bf16.gmra.mxu0 %v6849
        %v7176 = vpop.f32.mrf.mxu0
        %v7177 = vadd.f32 %v7088, %v7176
        %v7178 = vpop.f32.mrf.mxu0
        %v7179 = vadd.f32 %v7090, %v7178
        %7180 = vmatmul.bf16.gmra.mxu0 %v6851
        %v7181 = vpop.f32.mrf.mxu0
        %v7182 = vadd.f32 %v7093, %v7181
        %v7183 = vpop.f32.mrf.mxu0
        %v7184 = vadd.f32 %v7095, %v7183
        %7185 = vmatmul.bf16.gmra.mxu0 %v6853
        %v7186 = vpop.f32.mrf.mxu0
        %v7187 = vadd.f32 %v7098, %v7186
        %v7188 = vpop.f32.mrf.mxu0
        %v7189 = vadd.f32 %v7100, %v7188
        %7190 = vmatmul.bf16.gmra.mxu0 %v6855
        %v7191 = vpop.f32.mrf.mxu0
        %v7192 = vadd.f32 %v7103, %v7191
        %v7193 = vpop.f32.mrf.mxu0
        %v7194 = vadd.f32 %v7105, %v7193
        %7195 = vmatmul.bf16.gmra.mxu0 %v6857
        %v7196 = vpop.f32.mrf.mxu0
        %v7197 = vadd.f32 %v7108, %v7196
        %v7198 = vpop.f32.mrf.mxu0
        %v7199 = vadd.f32 %v7110, %v7198
        %7200 = vmatmul.bf16.gmra.mxu0 %v6859
        %v7201 = vpop.f32.mrf.mxu0
        %v7202 = vadd.f32 %v7113, %v7201
        %v7203 = vpop.f32.mrf.mxu0
        %v7204 = vadd.f32 %v7115, %v7203
        %7205 = vmatmul.bf16.gmra.mxu0 %v6861
        %v7206 = vpop.f32.mrf.mxu0
        %v7207 = vadd.f32 %v7118, %v7206
        %v7208 = vpop.f32.mrf.mxu0
        %v7209 = vadd.f32 %v7120, %v7208
        %7210 = vmatmul.bf16.gmra.mxu0 %v6863
        %v7211 = vpop.f32.mrf.mxu0
        %v7212 = vadd.f32 %v7123, %v7211
        %v7213 = vpop.f32.mrf.mxu0
        %v7214 = vadd.f32 %v7125, %v7213
        %7215 = vmatmul.bf16.gmra.mxu0 %v6865
        %v7216 = vpop.f32.mrf.mxu0
        %v7217 = vadd.f32 %v7128, %v7216
        %v7218 = vpop.f32.mrf.mxu0
        %v7219 = vadd.f32 %v7130, %v7218
        %7220 = vmatmul.bf16.gmra.mxu0 %v6867
        %v7221 = vpop.f32.mrf.mxu0
        %v7222 = vadd.f32 %v7133, %v7221
        %v7223 = vpop.f32.mrf.mxu0
        %v7224 = vadd.f32 %v7135, %v7223
        %7225 = vmatmul.bf16.gmra.mxu0 %v6869
        %v7226 = vpop.f32.mrf.mxu0
        %v7227 = vadd.f32 %v7138, %v7226
        %v7228 = vpop.f32.mrf.mxu0
        %v7229 = vadd.f32 %v7140, %v7228
        %7230 = vmatmul.bf16.gmra.mxu0 %v6871
        %v7231 = vpop.f32.mrf.mxu0
        %v7232 = vadd.f32 %v7143, %v7231
        %v7233 = vpop.f32.mrf.mxu0
        %v7234 = vadd.f32 %v7145, %v7233
        %7235 = vmatmul.bf16.gmra.mxu0 %v6873
        %v7236 = vpop.f32.mrf.mxu0
        %v7237 = vadd.f32 %v7148, %v7236
        %v7238 = vpop.f32.mrf.mxu0
        %v7239 = vadd.f32 %v7150, %v7238
        %7240 = vmatmul.bf16.gmra.mxu0 %v6875
        %v7241 = vpop.f32.mrf.mxu0
        %v7242 = vadd.f32 %v7153, %v7241
        %v7243 = vpop.f32.mrf.mxu0
        %v7244 = vadd.f32 %v7155, %v7243
        %7245 = vdwg.mxu0
        %7246 = vmatpush.bf16.msra.mxu0 %v7019
        %7247 = vmatpush.bf16.msra.mxu0 %v7017
        %7248 = vmatpush.bf16.msra.mxu0 %v7015
        %7249 = vmatpush.bf16.msra.mxu0 %v7013
        %7250 = vmatpush.bf16.msra.mxu0 %v7011
        %7251 = vmatpush.bf16.msra.mxu0 %v7009
        %7252 = vmatpush.bf16.msra.mxu0 %v7007
        %7253 = vmatpush.bf16.msra.mxu0 %v7005
        %7254 = vmatmul.bf16.gmra.mxu0 %v6844
        %v7255 = vpop.f32.mrf.mxu0
        %v7256 = vadd.f32 0.0, %v7255
        %v7257 = vpop.f32.mrf.mxu0
        %v7258 = vadd.f32 0.0, %v7257
        %7259 = vmatmul.bf16.gmra.mxu0 %v6846
        %v7260 = vpop.f32.mrf.mxu0
        %v7261 = vadd.f32 0.0, %v7260
        %v7262 = vpop.f32.mrf.mxu0
        %v7263 = vadd.f32 0.0, %v7262
        %7264 = vmatmul.bf16.gmra.mxu0 %v6848
        %v7265 = vpop.f32.mrf.mxu0
        %v7266 = vadd.f32 0.0, %v7265
        %v7267 = vpop.f32.mrf.mxu0
        %v7268 = vadd.f32 0.0, %v7267
        %7269 = vmatmul.bf16.gmra.mxu0 %v6850
        %v7270 = vpop.f32.mrf.mxu0
        %v7271 = vadd.f32 0.0, %v7270
        %v7272 = vpop.f32.mrf.mxu0
        %v7273 = vadd.f32 0.0, %v7272
        %7274 = vmatmul.bf16.gmra.mxu0 %v6852
        %v7275 = vpop.f32.mrf.mxu0
        %v7276 = vadd.f32 0.0, %v7275
        %v7277 = vpop.f32.mrf.mxu0
        %v7278 = vadd.f32 0.0, %v7277
        %7279 = vmatmul.bf16.gmra.mxu0 %v6854
        %v7280 = vpop.f32.mrf.mxu0
        %v7281 = vadd.f32 0.0, %v7280
        %v7282 = vpop.f32.mrf.mxu0
        %v7283 = vadd.f32 0.0, %v7282
        %7284 = vmatmul.bf16.gmra.mxu0 %v6856
        %v7285 = vpop.f32.mrf.mxu0
        %v7286 = vadd.f32 0.0, %v7285
        %v7287 = vpop.f32.mrf.mxu0
        %v7288 = vadd.f32 0.0, %v7287
        %7289 = vmatmul.bf16.gmra.mxu0 %v6858
        %v7290 = vpop.f32.mrf.mxu0
        %v7291 = vadd.f32 0.0, %v7290
        %v7292 = vpop.f32.mrf.mxu0
        %v7293 = vadd.f32 0.0, %v7292
        %7294 = vmatmul.bf16.gmra.mxu0 %v6860
        %v7295 = vpop.f32.mrf.mxu0
        %v7296 = vadd.f32 0.0, %v7295
        %v7297 = vpop.f32.mrf.mxu0
        %v7298 = vadd.f32 0.0, %v7297
        %7299 = vmatmul.bf16.gmra.mxu0 %v6862
        %v7300 = vpop.f32.mrf.mxu0
        %v7301 = vadd.f32 0.0, %v7300
        %v7302 = vpop.f32.mrf.mxu0
        %v7303 = vadd.f32 0.0, %v7302
        %7304 = vmatmul.bf16.gmra.mxu0 %v6864
        %v7305 = vpop.f32.mrf.mxu0
        %v7306 = vadd.f32 0.0, %v7305
        %v7307 = vpop.f32.mrf.mxu0
        %v7308 = vadd.f32 0.0, %v7307
        %7309 = vmatmul.bf16.gmra.mxu0 %v6866
        %v7310 = vpop.f32.mrf.mxu0
        %v7311 = vadd.f32 0.0, %v7310
        %v7312 = vpop.f32.mrf.mxu0
        %v7313 = vadd.f32 0.0, %v7312
        %7314 = vmatmul.bf16.gmra.mxu0 %v6868
        %v7315 = vpop.f32.mrf.mxu0
        %v7316 = vadd.f32 0.0, %v7315
        %v7317 = vpop.f32.mrf.mxu0
        %v7318 = vadd.f32 0.0, %v7317
        %7319 = vmatmul.bf16.gmra.mxu0 %v6870
        %v7320 = vpop.f32.mrf.mxu0
        %v7321 = vadd.f32 0.0, %v7320
        %v7322 = vpop.f32.mrf.mxu0
        %v7323 = vadd.f32 0.0, %v7322
        %7324 = vmatmul.bf16.gmra.mxu0 %v6872
        %v7325 = vpop.f32.mrf.mxu0
        %v7326 = vadd.f32 0.0, %v7325
        %v7327 = vpop.f32.mrf.mxu0
        %v7328 = vadd.f32 0.0, %v7327
        %7329 = vmatmul.bf16.gmra.mxu0 %v6874
        %v7330 = vpop.f32.mrf.mxu0
        %v7331 = vadd.f32 0.0, %v7330
        %v7332 = vpop.f32.mrf.mxu0
        %v7333 = vadd.f32 0.0, %v7332
        %7334 = vdwg.mxu0
        %7335 = vmatpush.bf16.msra.mxu0 %v7035
        %7336 = vmatpush.bf16.msra.mxu0 %v7033
        %7337 = vmatpush.bf16.msra.mxu0 %v7031
        %7338 = vmatpush.bf16.msra.mxu0 %v7029
        %7339 = vmatpush.bf16.msra.mxu0 %v7027
        %7340 = vmatpush.bf16.msra.mxu0 %v7025
        %7341 = vmatpush.bf16.msra.mxu0 %v7023
        %7342 = vmatpush.bf16.msra.mxu0 %v7021
        %7343 = vmatmul.bf16.gmra.mxu0 %v6845
        %v7344 = vpop.f32.mrf.mxu0
        %v7345 = vadd.f32 %v7256, %v7344
        %v7346 = vpop.f32.mrf.mxu0
        %v7347 = vadd.f32 %v7258, %v7346
        %7348 = vmatmul.bf16.gmra.mxu0 %v6847
        %v7349 = vpop.f32.mrf.mxu0
        %v7350 = vadd.f32 %v7261, %v7349
        %v7351 = vpop.f32.mrf.mxu0
        %v7352 = vadd.f32 %v7263, %v7351
        %7353 = vmatmul.bf16.gmra.mxu0 %v6849
        %v7354 = vpop.f32.mrf.mxu0
        %v7355 = vadd.f32 %v7266, %v7354
        %v7356 = vpop.f32.mrf.mxu0
        %v7357 = vadd.f32 %v7268, %v7356
        %7358 = vmatmul.bf16.gmra.mxu0 %v6851
        %v7359 = vpop.f32.mrf.mxu0
        %v7360 = vadd.f32 %v7271, %v7359
        %v7361 = vpop.f32.mrf.mxu0
        %v7362 = vadd.f32 %v7273, %v7361
        %7363 = vmatmul.bf16.gmra.mxu0 %v6853
        %v7364 = vpop.f32.mrf.mxu0
        %v7365 = vadd.f32 %v7276, %v7364
        %v7366 = vpop.f32.mrf.mxu0
        %v7367 = vadd.f32 %v7278, %v7366
        %7368 = vmatmul.bf16.gmra.mxu0 %v6855
        %v7369 = vpop.f32.mrf.mxu0
        %v7370 = vadd.f32 %v7281, %v7369
        %v7371 = vpop.f32.mrf.mxu0
        %v7372 = vadd.f32 %v7283, %v7371
        %7373 = vmatmul.bf16.gmra.mxu0 %v6857
        %v7374 = vpop.f32.mrf.mxu0
        %v7375 = vadd.f32 %v7286, %v7374
        %v7376 = vpop.f32.mrf.mxu0
        %v7377 = vadd.f32 %v7288, %v7376
        %7378 = vmatmul.bf16.gmra.mxu0 %v6859
        %v7379 = vpop.f32.mrf.mxu0
        %v7380 = vadd.f32 %v7291, %v7379
        %v7381 = vpop.f32.mrf.mxu0
        %v7382 = vadd.f32 %v7293, %v7381
        %7383 = vmatmul.bf16.gmra.mxu0 %v6861
        %v7384 = vpop.f32.mrf.mxu0
        %v7385 = vadd.f32 %v7296, %v7384
        %v7386 = vpop.f32.mrf.mxu0
        %v7387 = vadd.f32 %v7298, %v7386
        %7388 = vmatmul.bf16.gmra.mxu0 %v6863
        %v7389 = vpop.f32.mrf.mxu0
        %v7390 = vadd.f32 %v7301, %v7389
        %v7391 = vpop.f32.mrf.mxu0
        %v7392 = vadd.f32 %v7303, %v7391
        %7393 = vmatmul.bf16.gmra.mxu0 %v6865
        %v7394 = vpop.f32.mrf.mxu0
        %v7395 = vadd.f32 %v7306, %v7394
        %v7396 = vpop.f32.mrf.mxu0
        %v7397 = vadd.f32 %v7308, %v7396
        %7398 = vmatmul.bf16.gmra.mxu0 %v6867
        %v7399 = vpop.f32.mrf.mxu0
        %v7400 = vadd.f32 %v7311, %v7399
        %v7401 = vpop.f32.mrf.mxu0
        %v7402 = vadd.f32 %v7313, %v7401
        %7403 = vmatmul.bf16.gmra.mxu0 %v6869
        %v7404 = vpop.f32.mrf.mxu0
        %v7405 = vadd.f32 %v7316, %v7404
        %v7406 = vpop.f32.mrf.mxu0
        %v7407 = vadd.f32 %v7318, %v7406
        %7408 = vmatmul.bf16.gmra.mxu0 %v6871
        %v7409 = vpop.f32.mrf.mxu0
        %v7410 = vadd.f32 %v7321, %v7409
        %v7411 = vpop.f32.mrf.mxu0
        %v7412 = vadd.f32 %v7323, %v7411
        %7413 = vmatmul.bf16.gmra.mxu0 %v6873
        %v7414 = vpop.f32.mrf.mxu0
        %v7415 = vadd.f32 %v7326, %v7414
        %v7416 = vpop.f32.mrf.mxu0
        %v7417 = vadd.f32 %v7328, %v7416
        %7418 = vmatmul.bf16.gmra.mxu0 %v6875
        %v7419 = vpop.f32.mrf.mxu0
        %v7420 = vadd.f32 %v7331, %v7419
        %v7421 = vpop.f32.mrf.mxu0
        %v7422 = vadd.f32 %v7333, %v7421
        %7423 = vdwg.mxu0
        %v7456 = vunpack.c.l.b16 %v2732
        %v7457 = vunpack.c.h.b16 %v2732
        %v7458 = vunpack.c.l.b16 %v2733
        %v7459 = vunpack.c.h.b16 %v2733
        %v7460 = vunpack.c.l.b16 %v2734
        %v7461 = vunpack.c.h.b16 %v2734
        %v7462 = vunpack.c.l.b16 %v2735
        %v7463 = vunpack.c.h.b16 %v2735
        %v7464 = vunpack.c.l.b16 %v2736
        %v7465 = vunpack.c.h.b16 %v2736
        %v7466 = vunpack.c.l.b16 %v2737
        %v7467 = vunpack.c.h.b16 %v2737
        %v7468 = vunpack.c.l.b16 %v2738
        %v7469 = vunpack.c.h.b16 %v2738
        %v7470 = vunpack.c.l.b16 %v2739
        %v7471 = vunpack.c.h.b16 %v2739
        %v7472 = vunpack.c.l.b16 %v2740
        %v7473 = vunpack.c.h.b16 %v2740
        %v7474 = vunpack.c.l.b16 %v2741
        %v7475 = vunpack.c.h.b16 %v2741
        %v7476 = vunpack.c.l.b16 %v2742
        %v7477 = vunpack.c.h.b16 %v2742
        %v7478 = vunpack.c.l.b16 %v2743
        %v7479 = vunpack.c.h.b16 %v2743
        %v7480 = vunpack.c.l.b16 %v2744
        %v7481 = vunpack.c.h.b16 %v2744
        %v7482 = vunpack.c.l.b16 %v2745
        %v7483 = vunpack.c.h.b16 %v2745
        %v7484 = vunpack.c.l.b16 %v2746
        %v7485 = vunpack.c.h.b16 %v2746
        %v7486 = vunpack.c.l.b16 %v2747
        %v7487 = vunpack.c.h.b16 %v2747
        %v7488 = vunpack.c.l.b16 %v2748
        %v7489 = vunpack.c.h.b16 %v2748
        %v7490 = vunpack.c.l.b16 %v2749
        %v7491 = vunpack.c.h.b16 %v2749
        %v7492 = vunpack.c.l.b16 %v2750
        %v7493 = vunpack.c.h.b16 %v2750
        %v7494 = vunpack.c.l.b16 %v2751
        %v7495 = vunpack.c.h.b16 %v2751
        %v7496 = vunpack.c.l.b16 %v2752
        %v7497 = vunpack.c.h.b16 %v2752
        %v7498 = vunpack.c.l.b16 %v2753
        %v7499 = vunpack.c.h.b16 %v2753
        %v7500 = vunpack.c.l.b16 %v2754
        %v7501 = vunpack.c.h.b16 %v2754
        %v7502 = vunpack.c.l.b16 %v2755
        %v7503 = vunpack.c.h.b16 %v2755
        %v7504 = vunpack.c.l.b16 %v2756
        %v7505 = vunpack.c.h.b16 %v2756
        %v7506 = vunpack.c.l.b16 %v2757
        %v7507 = vunpack.c.h.b16 %v2757
        %v7508 = vunpack.c.l.b16 %v2758
        %v7509 = vunpack.c.h.b16 %v2758
        %v7510 = vunpack.c.l.b16 %v2759
        %v7511 = vunpack.c.h.b16 %v2759
        %v7512 = vunpack.c.l.b16 %v2760
        %v7513 = vunpack.c.h.b16 %v2760
        %v7514 = vunpack.c.l.b16 %v2761
        %v7515 = vunpack.c.h.b16 %v2761
        %v7516 = vunpack.c.l.b16 %v2762
        %v7517 = vunpack.c.h.b16 %v2762
        %v7518 = vunpack.c.l.b16 %v2763
        %v7519 = vunpack.c.h.b16 %v2763
        %v7520 = vpack.c.b16 %v7458, %v7456
        %v7521 = vpack.c.b16 %v7459, %v7457
        %v7522 = vpack.c.b16 %v7462, %v7460
        %v7523 = vpack.c.b16 %v7463, %v7461
        %v7524 = vpack.c.b16 %v7466, %v7464
        %v7525 = vpack.c.b16 %v7467, %v7465
        %v7526 = vpack.c.b16 %v7470, %v7468
        %v7527 = vpack.c.b16 %v7471, %v7469
        %v7528 = vpack.c.b16 %v7474, %v7472
        %v7529 = vpack.c.b16 %v7475, %v7473
        %v7530 = vpack.c.b16 %v7478, %v7476
        %v7531 = vpack.c.b16 %v7479, %v7477
        %v7532 = vpack.c.b16 %v7482, %v7480
        %v7533 = vpack.c.b16 %v7483, %v7481
        %v7534 = vpack.c.b16 %v7486, %v7484
        %v7535 = vpack.c.b16 %v7487, %v7485
        %v7536 = vpack.c.b16 %v7490, %v7488
        %v7537 = vpack.c.b16 %v7491, %v7489
        %v7538 = vpack.c.b16 %v7494, %v7492
        %v7539 = vpack.c.b16 %v7495, %v7493
        %v7540 = vpack.c.b16 %v7498, %v7496
        %v7541 = vpack.c.b16 %v7499, %v7497
        %v7542 = vpack.c.b16 %v7502, %v7500
        %v7543 = vpack.c.b16 %v7503, %v7501
        %v7544 = vpack.c.b16 %v7506, %v7504
        %v7545 = vpack.c.b16 %v7507, %v7505
        %v7546 = vpack.c.b16 %v7510, %v7508
        %v7547 = vpack.c.b16 %v7511, %v7509
        %v7548 = vpack.c.b16 %v7514, %v7512
        %v7549 = vpack.c.b16 %v7515, %v7513
        %v7550 = vpack.c.b16 %v7518, %v7516
        %v7551 = vpack.c.b16 %v7519, %v7517
        %v7616 = vunpack.c.l.b16 %v6684
        %v7617 = vunpack.c.h.b16 %v6684
        %v7618 = vunpack.c.l.b16 %v6685
        %v7619 = vunpack.c.h.b16 %v6685
        %v7620 = vunpack.c.l.b16 %v6686
        %v7621 = vunpack.c.h.b16 %v6686
        %v7622 = vunpack.c.l.b16 %v6687
        %v7623 = vunpack.c.h.b16 %v6687
        %v7624 = vunpack.c.l.b16 %v6688
        %v7625 = vunpack.c.h.b16 %v6688
        %v7626 = vunpack.c.l.b16 %v6689
        %v7627 = vunpack.c.h.b16 %v6689
        %v7628 = vunpack.c.l.b16 %v6690
        %v7629 = vunpack.c.h.b16 %v6690
        %v7630 = vunpack.c.l.b16 %v6691
        %v7631 = vunpack.c.h.b16 %v6691
        %v7632 = vunpack.c.l.b16 %v6692
        %v7633 = vunpack.c.h.b16 %v6692
        %v7634 = vunpack.c.l.b16 %v6693
        %v7635 = vunpack.c.h.b16 %v6693
        %v7636 = vunpack.c.l.b16 %v6694
        %v7637 = vunpack.c.h.b16 %v6694
        %v7638 = vunpack.c.l.b16 %v6695
        %v7639 = vunpack.c.h.b16 %v6695
        %v7640 = vunpack.c.l.b16 %v6696
        %v7641 = vunpack.c.h.b16 %v6696
        %v7642 = vunpack.c.l.b16 %v6697
        %v7643 = vunpack.c.h.b16 %v6697
        %v7644 = vunpack.c.l.b16 %v6698
        %v7645 = vunpack.c.h.b16 %v6698
        %v7646 = vunpack.c.l.b16 %v6699
        %v7647 = vunpack.c.h.b16 %v6699
        %v7648 = vunpack.c.l.b16 %v6700
        %v7649 = vunpack.c.h.b16 %v6700
        %v7650 = vunpack.c.l.b16 %v6701
        %v7651 = vunpack.c.h.b16 %v6701
        %v7652 = vunpack.c.l.b16 %v6702
        %v7653 = vunpack.c.h.b16 %v6702
        %v7654 = vunpack.c.l.b16 %v6703
        %v7655 = vunpack.c.h.b16 %v6703
        %v7656 = vunpack.c.l.b16 %v6704
        %v7657 = vunpack.c.h.b16 %v6704
        %v7658 = vunpack.c.l.b16 %v6705
        %v7659 = vunpack.c.h.b16 %v6705
        %v7660 = vunpack.c.l.b16 %v6706
        %v7661 = vunpack.c.h.b16 %v6706
        %v7662 = vunpack.c.l.b16 %v6707
        %v7663 = vunpack.c.h.b16 %v6707
        %v7664 = vunpack.c.l.b16 %v6708
        %v7665 = vunpack.c.h.b16 %v6708
        %v7666 = vunpack.c.l.b16 %v6709
        %v7667 = vunpack.c.h.b16 %v6709
        %v7668 = vunpack.c.l.b16 %v6710
        %v7669 = vunpack.c.h.b16 %v6710
        %v7670 = vunpack.c.l.b16 %v6711
        %v7671 = vunpack.c.h.b16 %v6711
        %v7672 = vunpack.c.l.b16 %v6712
        %v7673 = vunpack.c.h.b16 %v6712
        %v7674 = vunpack.c.l.b16 %v6713
        %v7675 = vunpack.c.h.b16 %v6713
        %v7676 = vunpack.c.l.b16 %v6714
        %v7677 = vunpack.c.h.b16 %v6714
        %v7678 = vunpack.c.l.b16 %v6715
        %v7679 = vunpack.c.h.b16 %v6715
        %v7680 = vpack.c.b16 %v7618, %v7616
        %v7681 = vpack.c.b16 %v7619, %v7617
        %v7682 = vpack.c.b16 %v7622, %v7620
        %v7683 = vpack.c.b16 %v7623, %v7621
        %v7684 = vpack.c.b16 %v7626, %v7624
        %v7685 = vpack.c.b16 %v7627, %v7625
        %v7686 = vpack.c.b16 %v7630, %v7628
        %v7687 = vpack.c.b16 %v7631, %v7629
        %v7688 = vpack.c.b16 %v7634, %v7632
        %v7689 = vpack.c.b16 %v7635, %v7633
        %v7690 = vpack.c.b16 %v7638, %v7636
        %v7691 = vpack.c.b16 %v7639, %v7637
        %v7692 = vpack.c.b16 %v7642, %v7640
        %v7693 = vpack.c.b16 %v7643, %v7641
        %v7694 = vpack.c.b16 %v7646, %v7644
        %v7695 = vpack.c.b16 %v7647, %v7645
        %v7696 = vpack.c.b16 %v7650, %v7648
        %v7697 = vpack.c.b16 %v7651, %v7649
        %v7698 = vpack.c.b16 %v7654, %v7652
        %v7699 = vpack.c.b16 %v7655, %v7653
        %v7700 = vpack.c.b16 %v7658, %v7656
        %v7701 = vpack.c.b16 %v7659, %v7657
        %v7702 = vpack.c.b16 %v7662, %v7660
        %v7703 = vpack.c.b16 %v7663, %v7661
        %v7704 = vpack.c.b16 %v7666, %v7664
        %v7705 = vpack.c.b16 %v7667, %v7665
        %v7706 = vpack.c.b16 %v7670, %v7668
        %v7707 = vpack.c.b16 %v7671, %v7669
        %v7708 = vpack.c.b16 %v7674, %v7672
        %v7709 = vpack.c.b16 %v7675, %v7673
        %v7710 = vpack.c.b16 %v7678, %v7676
        %v7711 = vpack.c.b16 %v7679, %v7677
        %7744 = vmatpush.bf16.msra.mxu0 %v7694
        %7745 = vmatpush.bf16.msra.mxu0 %v7692
        %7746 = vmatpush.bf16.msra.mxu0 %v7690
        %7747 = vmatpush.bf16.msra.mxu0 %v7688
        %7748 = vmatpush.bf16.msra.mxu0 %v7686
        %7749 = vmatpush.bf16.msra.mxu0 %v7684
        %7750 = vmatpush.bf16.msra.mxu0 %v7682
        %7751 = vmatpush.bf16.msra.mxu0 %v7680
        %7752 = vmatmul.bf16.gmra.mxu0 %v7520
        %v7753 = vpop.f32.mrf.mxu0
        %v7754 = vadd.f32 0.0, %v7753
        %v7755 = vpop.f32.mrf.mxu0
        %v7756 = vadd.f32 0.0, %v7755
        %7757 = vmatmul.bf16.gmra.mxu0 %v7522
        %v7758 = vpop.f32.mrf.mxu0
        %v7759 = vadd.f32 0.0, %v7758
        %v7760 = vpop.f32.mrf.mxu0
        %v7761 = vadd.f32 0.0, %v7760
        %7762 = vmatmul.bf16.gmra.mxu0 %v7524
        %v7763 = vpop.f32.mrf.mxu0
        %v7764 = vadd.f32 0.0, %v7763
        %v7765 = vpop.f32.mrf.mxu0
        %v7766 = vadd.f32 0.0, %v7765
        %7767 = vmatmul.bf16.gmra.mxu0 %v7526
        %v7768 = vpop.f32.mrf.mxu0
        %v7769 = vadd.f32 0.0, %v7768
        %v7770 = vpop.f32.mrf.mxu0
        %v7771 = vadd.f32 0.0, %v7770
        %7772 = vmatmul.bf16.gmra.mxu0 %v7528
        %v7773 = vpop.f32.mrf.mxu0
        %v7774 = vadd.f32 0.0, %v7773
        %v7775 = vpop.f32.mrf.mxu0
        %v7776 = vadd.f32 0.0, %v7775
        %7777 = vmatmul.bf16.gmra.mxu0 %v7530
        %v7778 = vpop.f32.mrf.mxu0
        %v7779 = vadd.f32 0.0, %v7778
        %v7780 = vpop.f32.mrf.mxu0
        %v7781 = vadd.f32 0.0, %v7780
        %7782 = vmatmul.bf16.gmra.mxu0 %v7532
        %v7783 = vpop.f32.mrf.mxu0
        %v7784 = vadd.f32 0.0, %v7783
        %v7785 = vpop.f32.mrf.mxu0
        %v7786 = vadd.f32 0.0, %v7785
        %7787 = vmatmul.bf16.gmra.mxu0 %v7534
        %v7788 = vpop.f32.mrf.mxu0
        %v7789 = vadd.f32 0.0, %v7788
        %v7790 = vpop.f32.mrf.mxu0
        %v7791 = vadd.f32 0.0, %v7790
        %7792 = vmatmul.bf16.gmra.mxu0 %v7536
        %v7793 = vpop.f32.mrf.mxu0
        %v7794 = vadd.f32 0.0, %v7793
        %v7795 = vpop.f32.mrf.mxu0
        %v7796 = vadd.f32 0.0, %v7795
        %7797 = vmatmul.bf16.gmra.mxu0 %v7538
        %v7798 = vpop.f32.mrf.mxu0
        %v7799 = vadd.f32 0.0, %v7798
        %v7800 = vpop.f32.mrf.mxu0
        %v7801 = vadd.f32 0.0, %v7800
        %7802 = vmatmul.bf16.gmra.mxu0 %v7540
        %v7803 = vpop.f32.mrf.mxu0
        %v7804 = vadd.f32 0.0, %v7803
        %v7805 = vpop.f32.mrf.mxu0
        %v7806 = vadd.f32 0.0, %v7805
        %7807 = vmatmul.bf16.gmra.mxu0 %v7542
        %v7808 = vpop.f32.mrf.mxu0
        %v7809 = vadd.f32 0.0, %v7808
        %v7810 = vpop.f32.mrf.mxu0
        %v7811 = vadd.f32 0.0, %v7810
        %7812 = vmatmul.bf16.gmra.mxu0 %v7544
        %v7813 = vpop.f32.mrf.mxu0
        %v7814 = vadd.f32 0.0, %v7813
        %v7815 = vpop.f32.mrf.mxu0
        %v7816 = vadd.f32 0.0, %v7815
        %7817 = vmatmul.bf16.gmra.mxu0 %v7546
        %v7818 = vpop.f32.mrf.mxu0
        %v7819 = vadd.f32 0.0, %v7818
        %v7820 = vpop.f32.mrf.mxu0
        %v7821 = vadd.f32 0.0, %v7820
        %7822 = vmatmul.bf16.gmra.mxu0 %v7548
        %v7823 = vpop.f32.mrf.mxu0
        %v7824 = vadd.f32 0.0, %v7823
        %v7825 = vpop.f32.mrf.mxu0
        %v7826 = vadd.f32 0.0, %v7825
        %7827 = vmatmul.bf16.gmra.mxu0 %v7550
        %v7828 = vpop.f32.mrf.mxu0
        %v7829 = vadd.f32 0.0, %v7828
        %v7830 = vpop.f32.mrf.mxu0
        %v7831 = vadd.f32 0.0, %v7830
        %7832 = vdwg.mxu0
        %7833 = vmatpush.bf16.msra.mxu0 %v7710
        %7834 = vmatpush.bf16.msra.mxu0 %v7708
        %7835 = vmatpush.bf16.msra.mxu0 %v7706
        %7836 = vmatpush.bf16.msra.mxu0 %v7704
        %7837 = vmatpush.bf16.msra.mxu0 %v7702
        %7838 = vmatpush.bf16.msra.mxu0 %v7700
        %7839 = vmatpush.bf16.msra.mxu0 %v7698
        %7840 = vmatpush.bf16.msra.mxu0 %v7696
        %7841 = vmatmul.bf16.gmra.mxu0 %v7521
        %v7842 = vpop.f32.mrf.mxu0
        %v7843 = vadd.f32 %v7754, %v7842
        %v7844 = vpop.f32.mrf.mxu0
        %v7845 = vadd.f32 %v7756, %v7844
        %7846 = vmatmul.bf16.gmra.mxu0 %v7523
        %v7847 = vpop.f32.mrf.mxu0
        %v7848 = vadd.f32 %v7759, %v7847
        %v7849 = vpop.f32.mrf.mxu0
        %v7850 = vadd.f32 %v7761, %v7849
        %7851 = vmatmul.bf16.gmra.mxu0 %v7525
        %v7852 = vpop.f32.mrf.mxu0
        %v7853 = vadd.f32 %v7764, %v7852
        %v7854 = vpop.f32.mrf.mxu0
        %v7855 = vadd.f32 %v7766, %v7854
        %7856 = vmatmul.bf16.gmra.mxu0 %v7527
        %v7857 = vpop.f32.mrf.mxu0
        %v7858 = vadd.f32 %v7769, %v7857
        %v7859 = vpop.f32.mrf.mxu0
        %v7860 = vadd.f32 %v7771, %v7859
        %7861 = vmatmul.bf16.gmra.mxu0 %v7529
        %v7862 = vpop.f32.mrf.mxu0
        %v7863 = vadd.f32 %v7774, %v7862
        %v7864 = vpop.f32.mrf.mxu0
        %v7865 = vadd.f32 %v7776, %v7864
        %7866 = vmatmul.bf16.gmra.mxu0 %v7531
        %v7867 = vpop.f32.mrf.mxu0
        %v7868 = vadd.f32 %v7779, %v7867
        %v7869 = vpop.f32.mrf.mxu0
        %v7870 = vadd.f32 %v7781, %v7869
        %7871 = vmatmul.bf16.gmra.mxu0 %v7533
        %v7872 = vpop.f32.mrf.mxu0
        %v7873 = vadd.f32 %v7784, %v7872
        %v7874 = vpop.f32.mrf.mxu0
        %v7875 = vadd.f32 %v7786, %v7874
        %7876 = vmatmul.bf16.gmra.mxu0 %v7535
        %v7877 = vpop.f32.mrf.mxu0
        %v7878 = vadd.f32 %v7789, %v7877
        %v7879 = vpop.f32.mrf.mxu0
        %v7880 = vadd.f32 %v7791, %v7879
        %7881 = vmatmul.bf16.gmra.mxu0 %v7537
        %v7882 = vpop.f32.mrf.mxu0
        %v7883 = vadd.f32 %v7794, %v7882
        %v7884 = vpop.f32.mrf.mxu0
        %v7885 = vadd.f32 %v7796, %v7884
        %7886 = vmatmul.bf16.gmra.mxu0 %v7539
        %v7887 = vpop.f32.mrf.mxu0
        %v7888 = vadd.f32 %v7799, %v7887
        %v7889 = vpop.f32.mrf.mxu0
        %v7890 = vadd.f32 %v7801, %v7889
        %7891 = vmatmul.bf16.gmra.mxu0 %v7541
        %v7892 = vpop.f32.mrf.mxu0
        %v7893 = vadd.f32 %v7804, %v7892
        %v7894 = vpop.f32.mrf.mxu0
        %v7895 = vadd.f32 %v7806, %v7894
        %7896 = vmatmul.bf16.gmra.mxu0 %v7543
        %v7897 = vpop.f32.mrf.mxu0
        %v7898 = vadd.f32 %v7809, %v7897
        %v7899 = vpop.f32.mrf.mxu0
        %v7900 = vadd.f32 %v7811, %v7899
        %7901 = vmatmul.bf16.gmra.mxu0 %v7545
        %v7902 = vpop.f32.mrf.mxu0
        %v7903 = vadd.f32 %v7814, %v7902
        %v7904 = vpop.f32.mrf.mxu0
        %v7905 = vadd.f32 %v7816, %v7904
        %7906 = vmatmul.bf16.gmra.mxu0 %v7547
        %v7907 = vpop.f32.mrf.mxu0
        %v7908 = vadd.f32 %v7819, %v7907
        %v7909 = vpop.f32.mrf.mxu0
        %v7910 = vadd.f32 %v7821, %v7909
        %7911 = vmatmul.bf16.gmra.mxu0 %v7549
        %v7912 = vpop.f32.mrf.mxu0
        %v7913 = vadd.f32 %v7824, %v7912
        %v7914 = vpop.f32.mrf.mxu0
        %v7915 = vadd.f32 %v7826, %v7914
        %7916 = vmatmul.bf16.gmra.mxu0 %v7551
        %v7917 = vpop.f32.mrf.mxu0
        %v7918 = vadd.f32 %v7829, %v7917
        %v7919 = vpop.f32.mrf.mxu0
        %v7920 = vadd.f32 %v7831, %v7919
        %7921 = vdwg.mxu0
        %7922 = vmatpush.bf16.msra.mxu0 %v7695
        %7923 = vmatpush.bf16.msra.mxu0 %v7693
        %7924 = vmatpush.bf16.msra.mxu0 %v7691
        %7925 = vmatpush.bf16.msra.mxu0 %v7689
        %7926 = vmatpush.bf16.msra.mxu0 %v7687
        %7927 = vmatpush.bf16.msra.mxu0 %v7685
        %7928 = vmatpush.bf16.msra.mxu0 %v7683
        %7929 = vmatpush.bf16.msra.mxu0 %v7681
        %7930 = vmatmul.bf16.gmra.mxu0 %v7520
        %v7931 = vpop.f32.mrf.mxu0
        %v7932 = vadd.f32 0.0, %v7931
        %v7933 = vpop.f32.mrf.mxu0
        %v7934 = vadd.f32 0.0, %v7933
        %7935 = vmatmul.bf16.gmra.mxu0 %v7522
        %v7936 = vpop.f32.mrf.mxu0
        %v7937 = vadd.f32 0.0, %v7936
        %v7938 = vpop.f32.mrf.mxu0
        %v7939 = vadd.f32 0.0, %v7938
        %7940 = vmatmul.bf16.gmra.mxu0 %v7524
        %v7941 = vpop.f32.mrf.mxu0
        %v7942 = vadd.f32 0.0, %v7941
        %v7943 = vpop.f32.mrf.mxu0
        %v7944 = vadd.f32 0.0, %v7943
        %7945 = vmatmul.bf16.gmra.mxu0 %v7526
        %v7946 = vpop.f32.mrf.mxu0
        %v7947 = vadd.f32 0.0, %v7946
        %v7948 = vpop.f32.mrf.mxu0
        %v7949 = vadd.f32 0.0, %v7948
        %7950 = vmatmul.bf16.gmra.mxu0 %v7528
        %v7951 = vpop.f32.mrf.mxu0
        %v7952 = vadd.f32 0.0, %v7951
        %v7953 = vpop.f32.mrf.mxu0
        %v7954 = vadd.f32 0.0, %v7953
        %7955 = vmatmul.bf16.gmra.mxu0 %v7530
        %v7956 = vpop.f32.mrf.mxu0
        %v7957 = vadd.f32 0.0, %v7956
        %v7958 = vpop.f32.mrf.mxu0
        %v7959 = vadd.f32 0.0, %v7958
        %7960 = vmatmul.bf16.gmra.mxu0 %v7532
        %v7961 = vpop.f32.mrf.mxu0
        %v7962 = vadd.f32 0.0, %v7961
        %v7963 = vpop.f32.mrf.mxu0
        %v7964 = vadd.f32 0.0, %v7963
        %7965 = vmatmul.bf16.gmra.mxu0 %v7534
        %v7966 = vpop.f32.mrf.mxu0
        %v7967 = vadd.f32 0.0, %v7966
        %v7968 = vpop.f32.mrf.mxu0
        %v7969 = vadd.f32 0.0, %v7968
        %7970 = vmatmul.bf16.gmra.mxu0 %v7536
        %v7971 = vpop.f32.mrf.mxu0
        %v7972 = vadd.f32 0.0, %v7971
        %v7973 = vpop.f32.mrf.mxu0
        %v7974 = vadd.f32 0.0, %v7973
        %7975 = vmatmul.bf16.gmra.mxu0 %v7538
        %v7976 = vpop.f32.mrf.mxu0
        %v7977 = vadd.f32 0.0, %v7976
        %v7978 = vpop.f32.mrf.mxu0
        %v7979 = vadd.f32 0.0, %v7978
        %7980 = vmatmul.bf16.gmra.mxu0 %v7540
        %v7981 = vpop.f32.mrf.mxu0
        %v7982 = vadd.f32 0.0, %v7981
        %v7983 = vpop.f32.mrf.mxu0
        %v7984 = vadd.f32 0.0, %v7983
        %7985 = vmatmul.bf16.gmra.mxu0 %v7542
        %v7986 = vpop.f32.mrf.mxu0
        %v7987 = vadd.f32 0.0, %v7986
        %v7988 = vpop.f32.mrf.mxu0
        %v7989 = vadd.f32 0.0, %v7988
        %7990 = vmatmul.bf16.gmra.mxu0 %v7544
        %v7991 = vpop.f32.mrf.mxu0
        %v7992 = vadd.f32 0.0, %v7991
        %v7993 = vpop.f32.mrf.mxu0
        %v7994 = vadd.f32 0.0, %v7993
        %7995 = vmatmul.bf16.gmra.mxu0 %v7546
        %v7996 = vpop.f32.mrf.mxu0
        %v7997 = vadd.f32 0.0, %v7996
        %v7998 = vpop.f32.mrf.mxu0
        %v7999 = vadd.f32 0.0, %v7998
        %8000 = vmatmul.bf16.gmra.mxu0 %v7548
        %v8001 = vpop.f32.mrf.mxu0
        %v8002 = vadd.f32 0.0, %v8001
        %v8003 = vpop.f32.mrf.mxu0
        %v8004 = vadd.f32 0.0, %v8003
        %8005 = vmatmul.bf16.gmra.mxu0 %v7550
        %v8006 = vpop.f32.mrf.mxu0
        %v8007 = vadd.f32 0.0, %v8006
        %v8008 = vpop.f32.mrf.mxu0
        %v8009 = vadd.f32 0.0, %v8008
        %8010 = vdwg.mxu0
        %8011 = vmatpush.bf16.msra.mxu0 %v7711
        %8012 = vmatpush.bf16.msra.mxu0 %v7709
        %8013 = vmatpush.bf16.msra.mxu0 %v7707
        %8014 = vmatpush.bf16.msra.mxu0 %v7705
        %8015 = vmatpush.bf16.msra.mxu0 %v7703
        %8016 = vmatpush.bf16.msra.mxu0 %v7701
        %8017 = vmatpush.bf16.msra.mxu0 %v7699
        %8018 = vmatpush.bf16.msra.mxu0 %v7697
        %8019 = vmatmul.bf16.gmra.mxu0 %v7521
        %v8020 = vpop.f32.mrf.mxu0
        %v8021 = vadd.f32 %v7932, %v8020
        %v8022 = vpop.f32.mrf.mxu0
        %v8023 = vadd.f32 %v7934, %v8022
        %8024 = vmatmul.bf16.gmra.mxu0 %v7523
        %v8025 = vpop.f32.mrf.mxu0
        %v8026 = vadd.f32 %v7937, %v8025
        %v8027 = vpop.f32.mrf.mxu0
        %v8028 = vadd.f32 %v7939, %v8027
        %8029 = vmatmul.bf16.gmra.mxu0 %v7525
        %v8030 = vpop.f32.mrf.mxu0
        %v8031 = vadd.f32 %v7942, %v8030
        %v8032 = vpop.f32.mrf.mxu0
        %v8033 = vadd.f32 %v7944, %v8032
        %8034 = vmatmul.bf16.gmra.mxu0 %v7527
        %v8035 = vpop.f32.mrf.mxu0
        %v8036 = vadd.f32 %v7947, %v8035
        %v8037 = vpop.f32.mrf.mxu0
        %v8038 = vadd.f32 %v7949, %v8037
        %8039 = vmatmul.bf16.gmra.mxu0 %v7529
        %v8040 = vpop.f32.mrf.mxu0
        %v8041 = vadd.f32 %v7952, %v8040
        %v8042 = vpop.f32.mrf.mxu0
        %v8043 = vadd.f32 %v7954, %v8042
        %8044 = vmatmul.bf16.gmra.mxu0 %v7531
        %v8045 = vpop.f32.mrf.mxu0
        %v8046 = vadd.f32 %v7957, %v8045
        %v8047 = vpop.f32.mrf.mxu0
        %v8048 = vadd.f32 %v7959, %v8047
        %8049 = vmatmul.bf16.gmra.mxu0 %v7533
        %v8050 = vpop.f32.mrf.mxu0
        %v8051 = vadd.f32 %v7962, %v8050
        %v8052 = vpop.f32.mrf.mxu0
        %v8053 = vadd.f32 %v7964, %v8052
        %8054 = vmatmul.bf16.gmra.mxu0 %v7535
        %v8055 = vpop.f32.mrf.mxu0
        %v8056 = vadd.f32 %v7967, %v8055
        %v8057 = vpop.f32.mrf.mxu0
        %v8058 = vadd.f32 %v7969, %v8057
        %8059 = vmatmul.bf16.gmra.mxu0 %v7537
        %v8060 = vpop.f32.mrf.mxu0
        %v8061 = vadd.f32 %v7972, %v8060
        %v8062 = vpop.f32.mrf.mxu0
        %v8063 = vadd.f32 %v7974, %v8062
        %8064 = vmatmul.bf16.gmra.mxu0 %v7539
        %v8065 = vpop.f32.mrf.mxu0
        %v8066 = vadd.f32 %v7977, %v8065
        %v8067 = vpop.f32.mrf.mxu0
        %v8068 = vadd.f32 %v7979, %v8067
        %8069 = vmatmul.bf16.gmra.mxu0 %v7541
        %v8070 = vpop.f32.mrf.mxu0
        %v8071 = vadd.f32 %v7982, %v8070
        %v8072 = vpop.f32.mrf.mxu0
        %v8073 = vadd.f32 %v7984, %v8072
        %8074 = vmatmul.bf16.gmra.mxu0 %v7543
        %v8075 = vpop.f32.mrf.mxu0
        %v8076 = vadd.f32 %v7987, %v8075
        %v8077 = vpop.f32.mrf.mxu0
        %v8078 = vadd.f32 %v7989, %v8077
        %8079 = vmatmul.bf16.gmra.mxu0 %v7545
        %v8080 = vpop.f32.mrf.mxu0
        %v8081 = vadd.f32 %v7992, %v8080
        %v8082 = vpop.f32.mrf.mxu0
        %v8083 = vadd.f32 %v7994, %v8082
        %8084 = vmatmul.bf16.gmra.mxu0 %v7547
        %v8085 = vpop.f32.mrf.mxu0
        %v8086 = vadd.f32 %v7997, %v8085
        %v8087 = vpop.f32.mrf.mxu0
        %v8088 = vadd.f32 %v7999, %v8087
        %8089 = vmatmul.bf16.gmra.mxu0 %v7549
        %v8090 = vpop.f32.mrf.mxu0
        %v8091 = vadd.f32 %v8002, %v8090
        %v8092 = vpop.f32.mrf.mxu0
        %v8093 = vadd.f32 %v8004, %v8092
        %8094 = vmatmul.bf16.gmra.mxu0 %v7551
        %v8095 = vpop.f32.mrf.mxu0
        %v8096 = vadd.f32 %v8007, %v8095
        %v8097 = vpop.f32.mrf.mxu0
        %v8098 = vadd.f32 %v8009, %v8097
        %8099 = vdwg.mxu0
        %v8100 = vsub.f32 %v7167, %v7843
        %v8101 = vsub.f32 %v7345, %v8021
        %v8102 = vsub.f32 %v7169, %v7845
        %v8103 = vsub.f32 %v7347, %v8023
        %v8104 = vsub.f32 %v7172, %v7848
        %v8105 = vsub.f32 %v7350, %v8026
        %v8106 = vsub.f32 %v7174, %v7850
        %v8107 = vsub.f32 %v7352, %v8028
        %v8108 = vsub.f32 %v7177, %v7853
        %v8109 = vsub.f32 %v7355, %v8031
        %v8110 = vsub.f32 %v7179, %v7855
        %v8111 = vsub.f32 %v7357, %v8033
        %v8112 = vsub.f32 %v7182, %v7858
        %v8113 = vsub.f32 %v7360, %v8036
        %v8114 = vsub.f32 %v7184, %v7860
        %v8115 = vsub.f32 %v7362, %v8038
        %v8116 = vsub.f32 %v7187, %v7863
        %v8117 = vsub.f32 %v7365, %v8041
        %v8118 = vsub.f32 %v7189, %v7865
        %v8119 = vsub.f32 %v7367, %v8043
        %v8120 = vsub.f32 %v7192, %v7868
        %v8121 = vsub.f32 %v7370, %v8046
        %v8122 = vsub.f32 %v7194, %v7870
        %v8123 = vsub.f32 %v7372, %v8048
        %v8124 = vsub.f32 %v7197, %v7873
        %v8125 = vsub.f32 %v7375, %v8051
        %v8126 = vsub.f32 %v7199, %v7875
        %v8127 = vsub.f32 %v7377, %v8053
        %v8128 = vsub.f32 %v7202, %v7878
        %v8129 = vsub.f32 %v7380, %v8056
        %v8130 = vsub.f32 %v7204, %v7880
        %v8131 = vsub.f32 %v7382, %v8058
        %v8132 = vsub.f32 %v7207, %v7883
        %v8133 = vsub.f32 %v7385, %v8061
        %v8134 = vsub.f32 %v7209, %v7885
        %v8135 = vsub.f32 %v7387, %v8063
        %v8136 = vsub.f32 %v7212, %v7888
        %v8137 = vsub.f32 %v7390, %v8066
        %v8138 = vsub.f32 %v7214, %v7890
        %v8139 = vsub.f32 %v7392, %v8068
        %v8140 = vsub.f32 %v7217, %v7893
        %v8141 = vsub.f32 %v7395, %v8071
        %v8142 = vsub.f32 %v7219, %v7895
        %v8143 = vsub.f32 %v7397, %v8073
        %v8144 = vsub.f32 %v7222, %v7898
        %v8145 = vsub.f32 %v7400, %v8076
        %v8146 = vsub.f32 %v7224, %v7900
        %v8147 = vsub.f32 %v7402, %v8078
        %v8148 = vsub.f32 %v7227, %v7903
        %v8149 = vsub.f32 %v7405, %v8081
        %v8150 = vsub.f32 %v7229, %v7905
        %v8151 = vsub.f32 %v7407, %v8083
        %v8152 = vsub.f32 %v7232, %v7908
        %v8153 = vsub.f32 %v7410, %v8086
        %v8154 = vsub.f32 %v7234, %v7910
        %v8155 = vsub.f32 %v7412, %v8088
        %v8156 = vsub.f32 %v7237, %v7913
        %v8157 = vsub.f32 %v7415, %v8091
        %v8158 = vsub.f32 %v7239, %v7915
        %v8159 = vsub.f32 %v7417, %v8093
        %v8160 = vsub.f32 %v7242, %v7918
        %v8161 = vsub.f32 %v7420, %v8096
        %v8162 = vsub.f32 %v7244, %v7920
        %v8163 = vsub.f32 %v7422, %v8098
        %8164 = vst [vmem:[%s449] sm:$0xff] %v8100
        %8165 = vst [vmem:[%s449 + $0x8] sm:$0xff] %v8101
        %8166 = vst [vmem:[%s449 + $0x10] sm:$0xff] %v8102
        %8167 = vst [vmem:[%s449 + $0x18] sm:$0xff] %v8103
        %8168 = vst [vmem:[%s449 + $0x20] sm:$0xff] %v8104
        %8169 = vst [vmem:[%s449 + $0x28] sm:$0xff] %v8105
        %8170 = vst [vmem:[%s449 + $0x30] sm:$0xff] %v8106
        %8171 = vst [vmem:[%s449 + $0x38] sm:$0xff] %v8107
        %8172 = vst [vmem:[%s449 + $0x40] sm:$0xff] %v8108
        %8173 = vst [vmem:[%s449 + $0x48] sm:$0xff] %v8109
        %8174 = vst [vmem:[%s449 + $0x50] sm:$0xff] %v8110
        %8175 = vst [vmem:[%s449 + $0x58] sm:$0xff] %v8111
        %8176 = vst [vmem:[%s449 + $0x60] sm:$0xff] %v8112
        %8177 = vst [vmem:[%s449 + $0x68] sm:$0xff] %v8113
        %8178 = vst [vmem:[%s449 + $0x70] sm:$0xff] %v8114
        %8179 = vst [vmem:[%s449 + $0x78] sm:$0xff] %v8115
        %8180 = vst [vmem:[%s449 + $0x80] sm:$0xff] %v8116
        %8181 = vst [vmem:[%s449 + $0x88] sm:$0xff] %v8117
        %8182 = vst [vmem:[%s449 + $0x90] sm:$0xff] %v8118
        %8183 = vst [vmem:[%s449 + $0x98] sm:$0xff] %v8119
        %8184 = vst [vmem:[%s449 + $0xa0] sm:$0xff] %v8120
        %8185 = vst [vmem:[%s449 + $0xa8] sm:$0xff] %v8121
        %8186 = vst [vmem:[%s449 + $0xb0] sm:$0xff] %v8122
        %8187 = vst [vmem:[%s449 + $0xb8] sm:$0xff] %v8123
        %8188 = vst [vmem:[%s449 + $0xc0] sm:$0xff] %v8124
        %8189 = vst [vmem:[%s449 + $0xc8] sm:$0xff] %v8125
        %8190 = vst [vmem:[%s449 + $0xd0] sm:$0xff] %v8126
        %8191 = vst [vmem:[%s449 + $0xd8] sm:$0xff] %v8127
        %8192 = vst [vmem:[%s449 + $0xe0] sm:$0xff] %v8128
        %8193 = vst [vmem:[%s449 + $0xe8] sm:$0xff] %v8129
        %8194 = vst [vmem:[%s449 + $0xf0] sm:$0xff] %v8130
        %8195 = vst [vmem:[%s449 + $0xf8] sm:$0xff] %v8131
        %8196 = vst [vmem:[%s449 + $0x100] sm:$0xff] %v8132
        %8197 = vst [vmem:[%s449 + $0x108] sm:$0xff] %v8133
        %8198 = vst [vmem:[%s449 + $0x110] sm:$0xff] %v8134
        %8199 = vst [vmem:[%s449 + $0x118] sm:$0xff] %v8135
        %8200 = vst [vmem:[%s449 + $0x120] sm:$0xff] %v8136
        %8201 = vst [vmem:[%s449 + $0x128] sm:$0xff] %v8137
        %8202 = vst [vmem:[%s449 + $0x130] sm:$0xff] %v8138
        %8203 = vst [vmem:[%s449 + $0x138] sm:$0xff] %v8139
        %8204 = vst [vmem:[%s449 + $0x140] sm:$0xff] %v8140
        %8205 = vst [vmem:[%s449 + $0x148] sm:$0xff] %v8141
        %8206 = vst [vmem:[%s449 + $0x150] sm:$0xff] %v8142
        %8207 = vst [vmem:[%s449 + $0x158] sm:$0xff] %v8143
        %8208 = vst [vmem:[%s449 + $0x160] sm:$0xff] %v8144
        %8209 = vst [vmem:[%s449 + $0x168] sm:$0xff] %v8145
        %8210 = vst [vmem:[%s449 + $0x170] sm:$0xff] %v8146
        %8211 = vst [vmem:[%s449 + $0x178] sm:$0xff] %v8147
        %8212 = vst [vmem:[%s449 + $0x180] sm:$0xff] %v8148
        %8213 = vst [vmem:[%s449 + $0x188] sm:$0xff] %v8149
        %8214 = vst [vmem:[%s449 + $0x190] sm:$0xff] %v8150
        %8215 = vst [vmem:[%s449 + $0x198] sm:$0xff] %v8151
        %8216 = vst [vmem:[%s449 + $0x1a0] sm:$0xff] %v8152
        %8217 = vst [vmem:[%s449 + $0x1a8] sm:$0xff] %v8153
        %8218 = vst [vmem:[%s449 + $0x1b0] sm:$0xff] %v8154
        %8219 = vst [vmem:[%s449 + $0x1b8] sm:$0xff] %v8155
        %8220 = vst [vmem:[%s449 + $0x1c0] sm:$0xff] %v8156
        %8221 = vst [vmem:[%s449 + $0x1c8] sm:$0xff] %v8157
        %8222 = vst [vmem:[%s449 + $0x1d0] sm:$0xff] %v8158
        %8223 = vst [vmem:[%s449 + $0x1d8] sm:$0xff] %v8159
        %8224 = vst [vmem:[%s449 + $0x1e0] sm:$0xff] %v8160
        %8225 = vst [vmem:[%s449 + $0x1e8] sm:$0xff] %v8161
        %8226 = vst [vmem:[%s449 + $0x1f0] sm:$0xff] %v8162
        %8227 = vst [vmem:[%s449 + $0x1f8] sm:$0xff] %v8163
        %8228 = vmatpush.bf16.msra.mxu0 %v7018
        %8229 = vmatpush.bf16.msra.mxu0 %v7016
        %8230 = vmatpush.bf16.msra.mxu0 %v7014
        %8231 = vmatpush.bf16.msra.mxu0 %v7012
        %8232 = vmatpush.bf16.msra.mxu0 %v7010
        %8233 = vmatpush.bf16.msra.mxu0 %v7008
        %8234 = vmatpush.bf16.msra.mxu0 %v7006
        %8235 = vmatpush.bf16.msra.mxu0 %v7004
        %8236 = vmatmul.bf16.gmra.mxu0 %v7520
        %v8237 = vpop.f32.mrf.mxu0
        %v8238 = vadd.f32 0.0, %v8237
        %v8239 = vpop.f32.mrf.mxu0
        %v8240 = vadd.f32 0.0, %v8239
        %8241 = vmatmul.bf16.gmra.mxu0 %v7522
        %v8242 = vpop.f32.mrf.mxu0
        %v8243 = vadd.f32 0.0, %v8242
        %v8244 = vpop.f32.mrf.mxu0
        %v8245 = vadd.f32 0.0, %v8244
        %8246 = vmatmul.bf16.gmra.mxu0 %v7524
        %v8247 = vpop.f32.mrf.mxu0
        %v8248 = vadd.f32 0.0, %v8247
        %v8249 = vpop.f32.mrf.mxu0
        %v8250 = vadd.f32 0.0, %v8249
        %8251 = vmatmul.bf16.gmra.mxu0 %v7526
        %v8252 = vpop.f32.mrf.mxu0
        %v8253 = vadd.f32 0.0, %v8252
        %v8254 = vpop.f32.mrf.mxu0
        %v8255 = vadd.f32 0.0, %v8254
        %8256 = vmatmul.bf16.gmra.mxu0 %v7528
        %v8257 = vpop.f32.mrf.mxu0
        %v8258 = vadd.f32 0.0, %v8257
        %v8259 = vpop.f32.mrf.mxu0
        %v8260 = vadd.f32 0.0, %v8259
        %8261 = vmatmul.bf16.gmra.mxu0 %v7530
        %v8262 = vpop.f32.mrf.mxu0
        %v8263 = vadd.f32 0.0, %v8262
        %v8264 = vpop.f32.mrf.mxu0
        %v8265 = vadd.f32 0.0, %v8264
        %8266 = vmatmul.bf16.gmra.mxu0 %v7532
        %v8267 = vpop.f32.mrf.mxu0
        %v8268 = vadd.f32 0.0, %v8267
        %v8269 = vpop.f32.mrf.mxu0
        %v8270 = vadd.f32 0.0, %v8269
        %8271 = vmatmul.bf16.gmra.mxu0 %v7534
        %v8272 = vpop.f32.mrf.mxu0
        %v8273 = vadd.f32 0.0, %v8272
        %v8274 = vpop.f32.mrf.mxu0
        %v8275 = vadd.f32 0.0, %v8274
        %8276 = vmatmul.bf16.gmra.mxu0 %v7536
        %v8277 = vpop.f32.mrf.mxu0
        %v8278 = vadd.f32 0.0, %v8277
        %v8279 = vpop.f32.mrf.mxu0
        %v8280 = vadd.f32 0.0, %v8279
        %8281 = vmatmul.bf16.gmra.mxu0 %v7538
        %v8282 = vpop.f32.mrf.mxu0
        %v8283 = vadd.f32 0.0, %v8282
        %v8284 = vpop.f32.mrf.mxu0
        %v8285 = vadd.f32 0.0, %v8284
        %8286 = vmatmul.bf16.gmra.mxu0 %v7540
        %v8287 = vpop.f32.mrf.mxu0
        %v8288 = vadd.f32 0.0, %v8287
        %v8289 = vpop.f32.mrf.mxu0
        %v8290 = vadd.f32 0.0, %v8289
        %8291 = vmatmul.bf16.gmra.mxu0 %v7542
        %v8292 = vpop.f32.mrf.mxu0
        %v8293 = vadd.f32 0.0, %v8292
        %v8294 = vpop.f32.mrf.mxu0
        %v8295 = vadd.f32 0.0, %v8294
        %8296 = vmatmul.bf16.gmra.mxu0 %v7544
        %v8297 = vpop.f32.mrf.mxu0
        %v8298 = vadd.f32 0.0, %v8297
        %v8299 = vpop.f32.mrf.mxu0
        %v8300 = vadd.f32 0.0, %v8299
        %8301 = vmatmul.bf16.gmra.mxu0 %v7546
        %v8302 = vpop.f32.mrf.mxu0
        %v8303 = vadd.f32 0.0, %v8302
        %v8304 = vpop.f32.mrf.mxu0
        %v8305 = vadd.f32 0.0, %v8304
        %8306 = vmatmul.bf16.gmra.mxu0 %v7548
        %v8307 = vpop.f32.mrf.mxu0
        %v8308 = vadd.f32 0.0, %v8307
        %v8309 = vpop.f32.mrf.mxu0
        %v8310 = vadd.f32 0.0, %v8309
        %8311 = vmatmul.bf16.gmra.mxu0 %v7550
        %v8312 = vpop.f32.mrf.mxu0
        %v8313 = vadd.f32 0.0, %v8312
        %v8314 = vpop.f32.mrf.mxu0
        %v8315 = vadd.f32 0.0, %v8314
        %8316 = vdwg.mxu0
        %8317 = vmatpush.bf16.msra.mxu0 %v7034
        %8318 = vmatpush.bf16.msra.mxu0 %v7032
        %8319 = vmatpush.bf16.msra.mxu0 %v7030
        %8320 = vmatpush.bf16.msra.mxu0 %v7028
        %8321 = vmatpush.bf16.msra.mxu0 %v7026
        %8322 = vmatpush.bf16.msra.mxu0 %v7024
        %8323 = vmatpush.bf16.msra.mxu0 %v7022
        %8324 = vmatpush.bf16.msra.mxu0 %v7020
        %8325 = vmatmul.bf16.gmra.mxu0 %v7521
        %v8326 = vpop.f32.mrf.mxu0
        %v8327 = vadd.f32 %v8238, %v8326
        %v8328 = vpop.f32.mrf.mxu0
        %v8329 = vadd.f32 %v8240, %v8328
        %8330 = vmatmul.bf16.gmra.mxu0 %v7523
        %v8331 = vpop.f32.mrf.mxu0
        %v8332 = vadd.f32 %v8243, %v8331
        %v8333 = vpop.f32.mrf.mxu0
        %v8334 = vadd.f32 %v8245, %v8333
        %8335 = vmatmul.bf16.gmra.mxu0 %v7525
        %v8336 = vpop.f32.mrf.mxu0
        %v8337 = vadd.f32 %v8248, %v8336
        %v8338 = vpop.f32.mrf.mxu0
        %v8339 = vadd.f32 %v8250, %v8338
        %8340 = vmatmul.bf16.gmra.mxu0 %v7527
        %v8341 = vpop.f32.mrf.mxu0
        %v8342 = vadd.f32 %v8253, %v8341
        %v8343 = vpop.f32.mrf.mxu0
        %v8344 = vadd.f32 %v8255, %v8343
        %8345 = vmatmul.bf16.gmra.mxu0 %v7529
        %v8346 = vpop.f32.mrf.mxu0
        %v8347 = vadd.f32 %v8258, %v8346
        %v8348 = vpop.f32.mrf.mxu0
        %v8349 = vadd.f32 %v8260, %v8348
        %8350 = vmatmul.bf16.gmra.mxu0 %v7531
        %v8351 = vpop.f32.mrf.mxu0
        %v8352 = vadd.f32 %v8263, %v8351
        %v8353 = vpop.f32.mrf.mxu0
        %v8354 = vadd.f32 %v8265, %v8353
        %8355 = vmatmul.bf16.gmra.mxu0 %v7533
        %v8356 = vpop.f32.mrf.mxu0
        %v8357 = vadd.f32 %v8268, %v8356
        %v8358 = vpop.f32.mrf.mxu0
        %v8359 = vadd.f32 %v8270, %v8358
        %8360 = vmatmul.bf16.gmra.mxu0 %v7535
        %v8361 = vpop.f32.mrf.mxu0
        %v8362 = vadd.f32 %v8273, %v8361
        %v8363 = vpop.f32.mrf.mxu0
        %v8364 = vadd.f32 %v8275, %v8363
        %8365 = vmatmul.bf16.gmra.mxu0 %v7537
        %v8366 = vpop.f32.mrf.mxu0
        %v8367 = vadd.f32 %v8278, %v8366
        %v8368 = vpop.f32.mrf.mxu0
        %v8369 = vadd.f32 %v8280, %v8368
        %8370 = vmatmul.bf16.gmra.mxu0 %v7539
        %v8371 = vpop.f32.mrf.mxu0
        %v8372 = vadd.f32 %v8283, %v8371
        %v8373 = vpop.f32.mrf.mxu0
        %v8374 = vadd.f32 %v8285, %v8373
        %8375 = vmatmul.bf16.gmra.mxu0 %v7541
        %v8376 = vpop.f32.mrf.mxu0
        %v8377 = vadd.f32 %v8288, %v8376
        %v8378 = vpop.f32.mrf.mxu0
        %v8379 = vadd.f32 %v8290, %v8378
        %8380 = vmatmul.bf16.gmra.mxu0 %v7543
        %v8381 = vpop.f32.mrf.mxu0
        %v8382 = vadd.f32 %v8293, %v8381
        %v8383 = vpop.f32.mrf.mxu0
        %v8384 = vadd.f32 %v8295, %v8383
        %8385 = vmatmul.bf16.gmra.mxu0 %v7545
        %v8386 = vpop.f32.mrf.mxu0
        %v8387 = vadd.f32 %v8298, %v8386
        %v8388 = vpop.f32.mrf.mxu0
        %v8389 = vadd.f32 %v8300, %v8388
        %8390 = vmatmul.bf16.gmra.mxu0 %v7547
        %v8391 = vpop.f32.mrf.mxu0
        %v8392 = vadd.f32 %v8303, %v8391
        %v8393 = vpop.f32.mrf.mxu0
        %v8394 = vadd.f32 %v8305, %v8393
        %8395 = vmatmul.bf16.gmra.mxu0 %v7549
        %v8396 = vpop.f32.mrf.mxu0
        %v8397 = vadd.f32 %v8308, %v8396
        %v8398 = vpop.f32.mrf.mxu0
        %v8399 = vadd.f32 %v8310, %v8398
        %8400 = vmatmul.bf16.gmra.mxu0 %v7551
        %v8401 = vpop.f32.mrf.mxu0
        %v8402 = vadd.f32 %v8313, %v8401
        %v8403 = vpop.f32.mrf.mxu0
        %v8404 = vadd.f32 %v8315, %v8403
        %8405 = vdwg.mxu0
        %8406 = vmatpush.bf16.msra.mxu0 %v7019
        %8407 = vmatpush.bf16.msra.mxu0 %v7017
        %8408 = vmatpush.bf16.msra.mxu0 %v7015
        %8409 = vmatpush.bf16.msra.mxu0 %v7013
        %8410 = vmatpush.bf16.msra.mxu0 %v7011
        %8411 = vmatpush.bf16.msra.mxu0 %v7009
        %8412 = vmatpush.bf16.msra.mxu0 %v7007
        %8413 = vmatpush.bf16.msra.mxu0 %v7005
        %8414 = vmatmul.bf16.gmra.mxu0 %v7520
        %v8415 = vpop.f32.mrf.mxu0
        %v8416 = vadd.f32 0.0, %v8415
        %v8417 = vpop.f32.mrf.mxu0
        %v8418 = vadd.f32 0.0, %v8417
        %8419 = vmatmul.bf16.gmra.mxu0 %v7522
        %v8420 = vpop.f32.mrf.mxu0
        %v8421 = vadd.f32 0.0, %v8420
        %v8422 = vpop.f32.mrf.mxu0
        %v8423 = vadd.f32 0.0, %v8422
        %8424 = vmatmul.bf16.gmra.mxu0 %v7524
        %v8425 = vpop.f32.mrf.mxu0
        %v8426 = vadd.f32 0.0, %v8425
        %v8427 = vpop.f32.mrf.mxu0
        %v8428 = vadd.f32 0.0, %v8427
        %8429 = vmatmul.bf16.gmra.mxu0 %v7526
        %v8430 = vpop.f32.mrf.mxu0
        %v8431 = vadd.f32 0.0, %v8430
        %v8432 = vpop.f32.mrf.mxu0
        %v8433 = vadd.f32 0.0, %v8432
        %8434 = vmatmul.bf16.gmra.mxu0 %v7528
        %v8435 = vpop.f32.mrf.mxu0
        %v8436 = vadd.f32 0.0, %v8435
        %v8437 = vpop.f32.mrf.mxu0
        %v8438 = vadd.f32 0.0, %v8437
        %8439 = vmatmul.bf16.gmra.mxu0 %v7530
        %v8440 = vpop.f32.mrf.mxu0
        %v8441 = vadd.f32 0.0, %v8440
        %v8442 = vpop.f32.mrf.mxu0
        %v8443 = vadd.f32 0.0, %v8442
        %8444 = vmatmul.bf16.gmra.mxu0 %v7532
        %v8445 = vpop.f32.mrf.mxu0
        %v8446 = vadd.f32 0.0, %v8445
        %v8447 = vpop.f32.mrf.mxu0
        %v8448 = vadd.f32 0.0, %v8447
        %8449 = vmatmul.bf16.gmra.mxu0 %v7534
        %v8450 = vpop.f32.mrf.mxu0
        %v8451 = vadd.f32 0.0, %v8450
        %v8452 = vpop.f32.mrf.mxu0
        %v8453 = vadd.f32 0.0, %v8452
        %8454 = vmatmul.bf16.gmra.mxu0 %v7536
        %v8455 = vpop.f32.mrf.mxu0
        %v8456 = vadd.f32 0.0, %v8455
        %v8457 = vpop.f32.mrf.mxu0
        %v8458 = vadd.f32 0.0, %v8457
        %8459 = vmatmul.bf16.gmra.mxu0 %v7538
        %v8460 = vpop.f32.mrf.mxu0
        %v8461 = vadd.f32 0.0, %v8460
        %v8462 = vpop.f32.mrf.mxu0
        %v8463 = vadd.f32 0.0, %v8462
        %8464 = vmatmul.bf16.gmra.mxu0 %v7540
        %v8465 = vpop.f32.mrf.mxu0
        %v8466 = vadd.f32 0.0, %v8465
        %v8467 = vpop.f32.mrf.mxu0
        %v8468 = vadd.f32 0.0, %v8467
        %8469 = vmatmul.bf16.gmra.mxu0 %v7542
        %v8470 = vpop.f32.mrf.mxu0
        %v8471 = vadd.f32 0.0, %v8470
        %v8472 = vpop.f32.mrf.mxu0
        %v8473 = vadd.f32 0.0, %v8472
        %8474 = vmatmul.bf16.gmra.mxu0 %v7544
        %v8475 = vpop.f32.mrf.mxu0
        %v8476 = vadd.f32 0.0, %v8475
        %v8477 = vpop.f32.mrf.mxu0
        %v8478 = vadd.f32 0.0, %v8477
        %8479 = vmatmul.bf16.gmra.mxu0 %v7546
        %v8480 = vpop.f32.mrf.mxu0
        %v8481 = vadd.f32 0.0, %v8480
        %v8482 = vpop.f32.mrf.mxu0
        %v8483 = vadd.f32 0.0, %v8482
        %8484 = vmatmul.bf16.gmra.mxu0 %v7548
        %v8485 = vpop.f32.mrf.mxu0
        %v8486 = vadd.f32 0.0, %v8485
        %v8487 = vpop.f32.mrf.mxu0
        %v8488 = vadd.f32 0.0, %v8487
        %8489 = vmatmul.bf16.gmra.mxu0 %v7550
        %v8490 = vpop.f32.mrf.mxu0
        %v8491 = vadd.f32 0.0, %v8490
        %v8492 = vpop.f32.mrf.mxu0
        %v8493 = vadd.f32 0.0, %v8492
        %8494 = vdwg.mxu0
        %8495 = vmatpush.bf16.msra.mxu0 %v7035
        %8496 = vmatpush.bf16.msra.mxu0 %v7033
        %8497 = vmatpush.bf16.msra.mxu0 %v7031
        %8498 = vmatpush.bf16.msra.mxu0 %v7029
        %8499 = vmatpush.bf16.msra.mxu0 %v7027
        %8500 = vmatpush.bf16.msra.mxu0 %v7025
        %8501 = vmatpush.bf16.msra.mxu0 %v7023
        %8502 = vmatpush.bf16.msra.mxu0 %v7021
        %8503 = vmatmul.bf16.gmra.mxu0 %v7521
        %v8504 = vpop.f32.mrf.mxu0
        %v8505 = vadd.f32 %v8416, %v8504
        %v8506 = vpop.f32.mrf.mxu0
        %v8507 = vadd.f32 %v8418, %v8506
        %8508 = vmatmul.bf16.gmra.mxu0 %v7523
        %v8509 = vpop.f32.mrf.mxu0
        %v8510 = vadd.f32 %v8421, %v8509
        %v8511 = vpop.f32.mrf.mxu0
        %v8512 = vadd.f32 %v8423, %v8511
        %8513 = vmatmul.bf16.gmra.mxu0 %v7525
        %v8514 = vpop.f32.mrf.mxu0
        %v8515 = vadd.f32 %v8426, %v8514
        %v8516 = vpop.f32.mrf.mxu0
        %v8517 = vadd.f32 %v8428, %v8516
        %8518 = vmatmul.bf16.gmra.mxu0 %v7527
        %v8519 = vpop.f32.mrf.mxu0
        %v8520 = vadd.f32 %v8431, %v8519
        %v8521 = vpop.f32.mrf.mxu0
        %v8522 = vadd.f32 %v8433, %v8521
        %8523 = vmatmul.bf16.gmra.mxu0 %v7529
        %v8524 = vpop.f32.mrf.mxu0
        %v8525 = vadd.f32 %v8436, %v8524
        %v8526 = vpop.f32.mrf.mxu0
        %v8527 = vadd.f32 %v8438, %v8526
        %8528 = vmatmul.bf16.gmra.mxu0 %v7531
        %v8529 = vpop.f32.mrf.mxu0
        %v8530 = vadd.f32 %v8441, %v8529
        %v8531 = vpop.f32.mrf.mxu0
        %v8532 = vadd.f32 %v8443, %v8531
        %8533 = vmatmul.bf16.gmra.mxu0 %v7533
        %v8534 = vpop.f32.mrf.mxu0
        %v8535 = vadd.f32 %v8446, %v8534
        %v8536 = vpop.f32.mrf.mxu0
        %v8537 = vadd.f32 %v8448, %v8536
        %8538 = vmatmul.bf16.gmra.mxu0 %v7535
        %v8539 = vpop.f32.mrf.mxu0
        %v8540 = vadd.f32 %v8451, %v8539
        %v8541 = vpop.f32.mrf.mxu0
        %v8542 = vadd.f32 %v8453, %v8541
        %8543 = vmatmul.bf16.gmra.mxu0 %v7537
        %v8544 = vpop.f32.mrf.mxu0
        %v8545 = vadd.f32 %v8456, %v8544
        %v8546 = vpop.f32.mrf.mxu0
        %v8547 = vadd.f32 %v8458, %v8546
        %8548 = vmatmul.bf16.gmra.mxu0 %v7539
        %v8549 = vpop.f32.mrf.mxu0
        %v8550 = vadd.f32 %v8461, %v8549
        %v8551 = vpop.f32.mrf.mxu0
        %v8552 = vadd.f32 %v8463, %v8551
        %8553 = vmatmul.bf16.gmra.mxu0 %v7541
        %v8554 = vpop.f32.mrf.mxu0
        %v8555 = vadd.f32 %v8466, %v8554
        %v8556 = vpop.f32.mrf.mxu0
        %v8557 = vadd.f32 %v8468, %v8556
        %8558 = vmatmul.bf16.gmra.mxu0 %v7543
        %v8559 = vpop.f32.mrf.mxu0
        %v8560 = vadd.f32 %v8471, %v8559
        %v8561 = vpop.f32.mrf.mxu0
        %v8562 = vadd.f32 %v8473, %v8561
        %8563 = vmatmul.bf16.gmra.mxu0 %v7545
        %v8564 = vpop.f32.mrf.mxu0
        %v8565 = vadd.f32 %v8476, %v8564
        %v8566 = vpop.f32.mrf.mxu0
        %v8567 = vadd.f32 %v8478, %v8566
        %8568 = vmatmul.bf16.gmra.mxu0 %v7547
        %v8569 = vpop.f32.mrf.mxu0
        %v8570 = vadd.f32 %v8481, %v8569
        %v8571 = vpop.f32.mrf.mxu0
        %v8572 = vadd.f32 %v8483, %v8571
        %8573 = vmatmul.bf16.gmra.mxu0 %v7549
        %v8574 = vpop.f32.mrf.mxu0
        %v8575 = vadd.f32 %v8486, %v8574
        %v8576 = vpop.f32.mrf.mxu0
        %v8577 = vadd.f32 %v8488, %v8576
        %8578 = vmatmul.bf16.gmra.mxu0 %v7551
        %v8579 = vpop.f32.mrf.mxu0
        %v8580 = vadd.f32 %v8491, %v8579
        %v8581 = vpop.f32.mrf.mxu0
        %v8582 = vadd.f32 %v8493, %v8581
        %8583 = vdwg.mxu0
        %8584 = vmatpush.bf16.msra.mxu0 %v7694
        %8585 = vmatpush.bf16.msra.mxu0 %v7692
        %8586 = vmatpush.bf16.msra.mxu0 %v7690
        %8587 = vmatpush.bf16.msra.mxu0 %v7688
        %8588 = vmatpush.bf16.msra.mxu0 %v7686
        %8589 = vmatpush.bf16.msra.mxu0 %v7684
        %8590 = vmatpush.bf16.msra.mxu0 %v7682
        %8591 = vmatpush.bf16.msra.mxu0 %v7680
        %8592 = vmatmul.bf16.gmra.mxu0 %v6844
        %v8593 = vpop.f32.mrf.mxu0
        %v8594 = vadd.f32 %v8327, %v8593
        %v8595 = vpop.f32.mrf.mxu0
        %v8596 = vadd.f32 %v8329, %v8595
        %8597 = vmatmul.bf16.gmra.mxu0 %v6846
        %v8598 = vpop.f32.mrf.mxu0
        %v8599 = vadd.f32 %v8332, %v8598
        %v8600 = vpop.f32.mrf.mxu0
        %v8601 = vadd.f32 %v8334, %v8600
        %8602 = vmatmul.bf16.gmra.mxu0 %v6848
        %v8603 = vpop.f32.mrf.mxu0
        %v8604 = vadd.f32 %v8337, %v8603
        %v8605 = vpop.f32.mrf.mxu0
        %v8606 = vadd.f32 %v8339, %v8605
        %8607 = vmatmul.bf16.gmra.mxu0 %v6850
        %v8608 = vpop.f32.mrf.mxu0
        %v8609 = vadd.f32 %v8342, %v8608
        %v8610 = vpop.f32.mrf.mxu0
        %v8611 = vadd.f32 %v8344, %v8610
        %8612 = vmatmul.bf16.gmra.mxu0 %v6852
        %v8613 = vpop.f32.mrf.mxu0
        %v8614 = vadd.f32 %v8347, %v8613
        %v8615 = vpop.f32.mrf.mxu0
        %v8616 = vadd.f32 %v8349, %v8615
        %8617 = vmatmul.bf16.gmra.mxu0 %v6854
        %v8618 = vpop.f32.mrf.mxu0
        %v8619 = vadd.f32 %v8352, %v8618
        %v8620 = vpop.f32.mrf.mxu0
        %v8621 = vadd.f32 %v8354, %v8620
        %8622 = vmatmul.bf16.gmra.mxu0 %v6856
        %v8623 = vpop.f32.mrf.mxu0
        %v8624 = vadd.f32 %v8357, %v8623
        %v8625 = vpop.f32.mrf.mxu0
        %v8626 = vadd.f32 %v8359, %v8625
        %8627 = vmatmul.bf16.gmra.mxu0 %v6858
        %v8628 = vpop.f32.mrf.mxu0
        %v8629 = vadd.f32 %v8362, %v8628
        %v8630 = vpop.f32.mrf.mxu0
        %v8631 = vadd.f32 %v8364, %v8630
        %8632 = vmatmul.bf16.gmra.mxu0 %v6860
        %v8633 = vpop.f32.mrf.mxu0
        %v8634 = vadd.f32 %v8367, %v8633
        %v8635 = vpop.f32.mrf.mxu0
        %v8636 = vadd.f32 %v8369, %v8635
        %8637 = vmatmul.bf16.gmra.mxu0 %v6862
        %v8638 = vpop.f32.mrf.mxu0
        %v8639 = vadd.f32 %v8372, %v8638
        %v8640 = vpop.f32.mrf.mxu0
        %v8641 = vadd.f32 %v8374, %v8640
        %8642 = vmatmul.bf16.gmra.mxu0 %v6864
        %v8643 = vpop.f32.mrf.mxu0
        %v8644 = vadd.f32 %v8377, %v8643
        %v8645 = vpop.f32.mrf.mxu0
        %v8646 = vadd.f32 %v8379, %v8645
        %8647 = vmatmul.bf16.gmra.mxu0 %v6866
        %v8648 = vpop.f32.mrf.mxu0
        %v8649 = vadd.f32 %v8382, %v8648
        %v8650 = vpop.f32.mrf.mxu0
        %v8651 = vadd.f32 %v8384, %v8650
        %8652 = vmatmul.bf16.gmra.mxu0 %v6868
        %v8653 = vpop.f32.mrf.mxu0
        %v8654 = vadd.f32 %v8387, %v8653
        %v8655 = vpop.f32.mrf.mxu0
        %v8656 = vadd.f32 %v8389, %v8655
        %8657 = vmatmul.bf16.gmra.mxu0 %v6870
        %v8658 = vpop.f32.mrf.mxu0
        %v8659 = vadd.f32 %v8392, %v8658
        %v8660 = vpop.f32.mrf.mxu0
        %v8661 = vadd.f32 %v8394, %v8660
        %8662 = vmatmul.bf16.gmra.mxu0 %v6872
        %v8663 = vpop.f32.mrf.mxu0
        %v8664 = vadd.f32 %v8397, %v8663
        %v8665 = vpop.f32.mrf.mxu0
        %v8666 = vadd.f32 %v8399, %v8665
        %8667 = vmatmul.bf16.gmra.mxu0 %v6874
        %v8668 = vpop.f32.mrf.mxu0
        %v8669 = vadd.f32 %v8402, %v8668
        %v8670 = vpop.f32.mrf.mxu0
        %v8671 = vadd.f32 %v8404, %v8670
        %8672 = vdwg.mxu0
        %8673 = vmatpush.bf16.msra.mxu0 %v7710
        %8674 = vmatpush.bf16.msra.mxu0 %v7708
        %8675 = vmatpush.bf16.msra.mxu0 %v7706
        %8676 = vmatpush.bf16.msra.mxu0 %v7704
        %8677 = vmatpush.bf16.msra.mxu0 %v7702
        %8678 = vmatpush.bf16.msra.mxu0 %v7700
        %8679 = vmatpush.bf16.msra.mxu0 %v7698
        %8680 = vmatpush.bf16.msra.mxu0 %v7696
        %8681 = vmatmul.bf16.gmra.mxu0 %v6845
        %v8682 = vpop.f32.mrf.mxu0
        %v8683 = vadd.f32 %v8594, %v8682
        %v8684 = vpop.f32.mrf.mxu0
        %v8685 = vadd.f32 %v8596, %v8684
        %8686 = vmatmul.bf16.gmra.mxu0 %v6847
        %v8687 = vpop.f32.mrf.mxu0
        %v8688 = vadd.f32 %v8599, %v8687
        %v8689 = vpop.f32.mrf.mxu0
        %v8690 = vadd.f32 %v8601, %v8689
        %8691 = vmatmul.bf16.gmra.mxu0 %v6849
        %v8692 = vpop.f32.mrf.mxu0
        %v8693 = vadd.f32 %v8604, %v8692
        %v8694 = vpop.f32.mrf.mxu0
        %v8695 = vadd.f32 %v8606, %v8694
        %8696 = vmatmul.bf16.gmra.mxu0 %v6851
        %v8697 = vpop.f32.mrf.mxu0
        %v8698 = vadd.f32 %v8609, %v8697
        %v8699 = vpop.f32.mrf.mxu0
        %v8700 = vadd.f32 %v8611, %v8699
        %8701 = vmatmul.bf16.gmra.mxu0 %v6853
        %v8702 = vpop.f32.mrf.mxu0
        %v8703 = vadd.f32 %v8614, %v8702
        %v8704 = vpop.f32.mrf.mxu0
        %v8705 = vadd.f32 %v8616, %v8704
        %8706 = vmatmul.bf16.gmra.mxu0 %v6855
        %v8707 = vpop.f32.mrf.mxu0
        %v8708 = vadd.f32 %v8619, %v8707
        %v8709 = vpop.f32.mrf.mxu0
        %v8710 = vadd.f32 %v8621, %v8709
        %8711 = vmatmul.bf16.gmra.mxu0 %v6857
        %v8712 = vpop.f32.mrf.mxu0
        %v8713 = vadd.f32 %v8624, %v8712
        %v8714 = vpop.f32.mrf.mxu0
        %v8715 = vadd.f32 %v8626, %v8714
        %8716 = vmatmul.bf16.gmra.mxu0 %v6859
        %v8717 = vpop.f32.mrf.mxu0
        %v8718 = vadd.f32 %v8629, %v8717
        %v8719 = vpop.f32.mrf.mxu0
        %v8720 = vadd.f32 %v8631, %v8719
        %8721 = vmatmul.bf16.gmra.mxu0 %v6861
        %v8722 = vpop.f32.mrf.mxu0
        %v8723 = vadd.f32 %v8634, %v8722
        %v8724 = vpop.f32.mrf.mxu0
        %v8725 = vadd.f32 %v8636, %v8724
        %8726 = vmatmul.bf16.gmra.mxu0 %v6863
        %v8727 = vpop.f32.mrf.mxu0
        %v8728 = vadd.f32 %v8639, %v8727
        %v8729 = vpop.f32.mrf.mxu0
        %v8730 = vadd.f32 %v8641, %v8729
        %8731 = vmatmul.bf16.gmra.mxu0 %v6865
        %v8732 = vpop.f32.mrf.mxu0
        %v8733 = vadd.f32 %v8644, %v8732
        %v8734 = vpop.f32.mrf.mxu0
        %v8735 = vadd.f32 %v8646, %v8734
        %8736 = vmatmul.bf16.gmra.mxu0 %v6867
        %v8737 = vpop.f32.mrf.mxu0
        %v8738 = vadd.f32 %v8649, %v8737
        %v8739 = vpop.f32.mrf.mxu0
        %v8740 = vadd.f32 %v8651, %v8739
        %8741 = vmatmul.bf16.gmra.mxu0 %v6869
        %v8742 = vpop.f32.mrf.mxu0
        %v8743 = vadd.f32 %v8654, %v8742
        %v8744 = vpop.f32.mrf.mxu0
        %v8745 = vadd.f32 %v8656, %v8744
        %8746 = vmatmul.bf16.gmra.mxu0 %v6871
        %v8747 = vpop.f32.mrf.mxu0
        %v8748 = vadd.f32 %v8659, %v8747
        %v8749 = vpop.f32.mrf.mxu0
        %v8750 = vadd.f32 %v8661, %v8749
        %8751 = vmatmul.bf16.gmra.mxu0 %v6873
        %v8752 = vpop.f32.mrf.mxu0
        %v8753 = vadd.f32 %v8664, %v8752
        %v8754 = vpop.f32.mrf.mxu0
        %v8755 = vadd.f32 %v8666, %v8754
        %8756 = vmatmul.bf16.gmra.mxu0 %v6875
        %v8757 = vpop.f32.mrf.mxu0
        %v8758 = vadd.f32 %v8669, %v8757
        %v8759 = vpop.f32.mrf.mxu0
        %v8760 = vadd.f32 %v8671, %v8759
        %8761 = vdwg.mxu0
        %8762 = vmatpush.bf16.msra.mxu0 %v7695
        %8763 = vmatpush.bf16.msra.mxu0 %v7693
        %8764 = vmatpush.bf16.msra.mxu0 %v7691
        %8765 = vmatpush.bf16.msra.mxu0 %v7689
        %8766 = vmatpush.bf16.msra.mxu0 %v7687
        %8767 = vmatpush.bf16.msra.mxu0 %v7685
        %8768 = vmatpush.bf16.msra.mxu0 %v7683
        %8769 = vmatpush.bf16.msra.mxu0 %v7681
        %8770 = vmatmul.bf16.gmra.mxu0 %v6844
        %v8771 = vpop.f32.mrf.mxu0
        %v8772 = vadd.f32 %v8505, %v8771
        %v8773 = vpop.f32.mrf.mxu0
        %v8774 = vadd.f32 %v8507, %v8773
        %8775 = vmatmul.bf16.gmra.mxu0 %v6846
        %v8776 = vpop.f32.mrf.mxu0
        %v8777 = vadd.f32 %v8510, %v8776
        %v8778 = vpop.f32.mrf.mxu0
        %v8779 = vadd.f32 %v8512, %v8778
        %8780 = vmatmul.bf16.gmra.mxu0 %v6848
        %v8781 = vpop.f32.mrf.mxu0
        %v8782 = vadd.f32 %v8515, %v8781
        %v8783 = vpop.f32.mrf.mxu0
        %v8784 = vadd.f32 %v8517, %v8783
        %8785 = vmatmul.bf16.gmra.mxu0 %v6850
        %v8786 = vpop.f32.mrf.mxu0
        %v8787 = vadd.f32 %v8520, %v8786
        %v8788 = vpop.f32.mrf.mxu0
        %v8789 = vadd.f32 %v8522, %v8788
        %8790 = vmatmul.bf16.gmra.mxu0 %v6852
        %v8791 = vpop.f32.mrf.mxu0
        %v8792 = vadd.f32 %v8525, %v8791
        %v8793 = vpop.f32.mrf.mxu0
        %v8794 = vadd.f32 %v8527, %v8793
        %8795 = vmatmul.bf16.gmra.mxu0 %v6854
        %v8796 = vpop.f32.mrf.mxu0
        %v8797 = vadd.f32 %v8530, %v8796
        %v8798 = vpop.f32.mrf.mxu0
        %v8799 = vadd.f32 %v8532, %v8798
        %8800 = vmatmul.bf16.gmra.mxu0 %v6856
        %v8801 = vpop.f32.mrf.mxu0
        %v8802 = vadd.f32 %v8535, %v8801
        %v8803 = vpop.f32.mrf.mxu0
        %v8804 = vadd.f32 %v8537, %v8803
        %8805 = vmatmul.bf16.gmra.mxu0 %v6858
        %v8806 = vpop.f32.mrf.mxu0
        %v8807 = vadd.f32 %v8540, %v8806
        %v8808 = vpop.f32.mrf.mxu0
        %v8809 = vadd.f32 %v8542, %v8808
        %8810 = vmatmul.bf16.gmra.mxu0 %v6860
        %v8811 = vpop.f32.mrf.mxu0
        %v8812 = vadd.f32 %v8545, %v8811
        %v8813 = vpop.f32.mrf.mxu0
        %v8814 = vadd.f32 %v8547, %v8813
        %8815 = vmatmul.bf16.gmra.mxu0 %v6862
        %v8816 = vpop.f32.mrf.mxu0
        %v8817 = vadd.f32 %v8550, %v8816
        %v8818 = vpop.f32.mrf.mxu0
        %v8819 = vadd.f32 %v8552, %v8818
        %8820 = vmatmul.bf16.gmra.mxu0 %v6864
        %v8821 = vpop.f32.mrf.mxu0
        %v8822 = vadd.f32 %v8555, %v8821
        %v8823 = vpop.f32.mrf.mxu0
        %v8824 = vadd.f32 %v8557, %v8823
        %8825 = vmatmul.bf16.gmra.mxu0 %v6866
        %v8826 = vpop.f32.mrf.mxu0
        %v8827 = vadd.f32 %v8560, %v8826
        %v8828 = vpop.f32.mrf.mxu0
        %v8829 = vadd.f32 %v8562, %v8828
        %8830 = vmatmul.bf16.gmra.mxu0 %v6868
        %v8831 = vpop.f32.mrf.mxu0
        %v8832 = vadd.f32 %v8565, %v8831
        %v8833 = vpop.f32.mrf.mxu0
        %v8834 = vadd.f32 %v8567, %v8833
        %8835 = vmatmul.bf16.gmra.mxu0 %v6870
        %v8836 = vpop.f32.mrf.mxu0
        %v8837 = vadd.f32 %v8570, %v8836
        %v8838 = vpop.f32.mrf.mxu0
        %v8839 = vadd.f32 %v8572, %v8838
        %8840 = vmatmul.bf16.gmra.mxu0 %v6872
        %v8841 = vpop.f32.mrf.mxu0
        %v8842 = vadd.f32 %v8575, %v8841
        %v8843 = vpop.f32.mrf.mxu0
        %v8844 = vadd.f32 %v8577, %v8843
        %8845 = vmatmul.bf16.gmra.mxu0 %v6874
        %v8846 = vpop.f32.mrf.mxu0
        %v8847 = vadd.f32 %v8580, %v8846
        %v8848 = vpop.f32.mrf.mxu0
        %v8849 = vadd.f32 %v8582, %v8848
        %8850 = vdwg.mxu0
        %8851 = vmatpush.bf16.msra.mxu0 %v7711
        %8852 = vmatpush.bf16.msra.mxu0 %v7709
        %8853 = vmatpush.bf16.msra.mxu0 %v7707
        %8854 = vmatpush.bf16.msra.mxu0 %v7705
        %8855 = vmatpush.bf16.msra.mxu0 %v7703
        %8856 = vmatpush.bf16.msra.mxu0 %v7701
        %8857 = vmatpush.bf16.msra.mxu0 %v7699
        %8858 = vmatpush.bf16.msra.mxu0 %v7697
        %8859 = vmatmul.bf16.gmra.mxu0 %v6845
        %v8860 = vpop.f32.mrf.mxu0
        %v8861 = vadd.f32 %v8772, %v8860
        %v8862 = vpop.f32.mrf.mxu0
        %v8863 = vadd.f32 %v8774, %v8862
        %8864 = vmatmul.bf16.gmra.mxu0 %v6847
        %v8865 = vpop.f32.mrf.mxu0
        %v8866 = vadd.f32 %v8777, %v8865
        %v8867 = vpop.f32.mrf.mxu0
        %v8868 = vadd.f32 %v8779, %v8867
        %8869 = vmatmul.bf16.gmra.mxu0 %v6849
        %v8870 = vpop.f32.mrf.mxu0
        %v8871 = vadd.f32 %v8782, %v8870
        %v8872 = vpop.f32.mrf.mxu0
        %v8873 = vadd.f32 %v8784, %v8872
        %8874 = vmatmul.bf16.gmra.mxu0 %v6851
        %v8875 = vpop.f32.mrf.mxu0
        %v8876 = vadd.f32 %v8787, %v8875
        %v8877 = vpop.f32.mrf.mxu0
        %v8878 = vadd.f32 %v8789, %v8877
        %8879 = vmatmul.bf16.gmra.mxu0 %v6853
        %v8880 = vpop.f32.mrf.mxu0
        %v8881 = vadd.f32 %v8792, %v8880
        %v8882 = vpop.f32.mrf.mxu0
        %v8883 = vadd.f32 %v8794, %v8882
        %8884 = vmatmul.bf16.gmra.mxu0 %v6855
        %v8885 = vpop.f32.mrf.mxu0
        %v8886 = vadd.f32 %v8797, %v8885
        %v8887 = vpop.f32.mrf.mxu0
        %v8888 = vadd.f32 %v8799, %v8887
        %8889 = vmatmul.bf16.gmra.mxu0 %v6857
        %v8890 = vpop.f32.mrf.mxu0
        %v8891 = vadd.f32 %v8802, %v8890
        %v8892 = vpop.f32.mrf.mxu0
        %v8893 = vadd.f32 %v8804, %v8892
        %8894 = vmatmul.bf16.gmra.mxu0 %v6859
        %v8895 = vpop.f32.mrf.mxu0
        %v8896 = vadd.f32 %v8807, %v8895
        %v8897 = vpop.f32.mrf.mxu0
        %v8898 = vadd.f32 %v8809, %v8897
        %8899 = vmatmul.bf16.gmra.mxu0 %v6861
        %v8900 = vpop.f32.mrf.mxu0
        %v8901 = vadd.f32 %v8812, %v8900
        %v8902 = vpop.f32.mrf.mxu0
        %v8903 = vadd.f32 %v8814, %v8902
        %8904 = vmatmul.bf16.gmra.mxu0 %v6863
        %v8905 = vpop.f32.mrf.mxu0
        %v8906 = vadd.f32 %v8817, %v8905
        %v8907 = vpop.f32.mrf.mxu0
        %v8908 = vadd.f32 %v8819, %v8907
        %8909 = vmatmul.bf16.gmra.mxu0 %v6865
        %v8910 = vpop.f32.mrf.mxu0
        %v8911 = vadd.f32 %v8822, %v8910
        %v8912 = vpop.f32.mrf.mxu0
        %v8913 = vadd.f32 %v8824, %v8912
        %8914 = vmatmul.bf16.gmra.mxu0 %v6867
        %v8915 = vpop.f32.mrf.mxu0
        %v8916 = vadd.f32 %v8827, %v8915
        %v8917 = vpop.f32.mrf.mxu0
        %v8918 = vadd.f32 %v8829, %v8917
        %8919 = vmatmul.bf16.gmra.mxu0 %v6869
        %v8920 = vpop.f32.mrf.mxu0
        %v8921 = vadd.f32 %v8832, %v8920
        %v8922 = vpop.f32.mrf.mxu0
        %v8923 = vadd.f32 %v8834, %v8922
        %8924 = vmatmul.bf16.gmra.mxu0 %v6871
        %v8925 = vpop.f32.mrf.mxu0
        %v8926 = vadd.f32 %v8837, %v8925
        %v8927 = vpop.f32.mrf.mxu0
        %v8928 = vadd.f32 %v8839, %v8927
        %8929 = vmatmul.bf16.gmra.mxu0 %v6873
        %v8930 = vpop.f32.mrf.mxu0
        %v8931 = vadd.f32 %v8842, %v8930
        %v8932 = vpop.f32.mrf.mxu0
        %v8933 = vadd.f32 %v8844, %v8932
        %8934 = vmatmul.bf16.gmra.mxu0 %v6875
        %v8935 = vpop.f32.mrf.mxu0
        %v8936 = vadd.f32 %v8847, %v8935
        %v8937 = vpop.f32.mrf.mxu0
        %v8938 = vadd.f32 %v8849, %v8937
        %8939 = vdwg.mxu0
        %8940 = vst [vmem:[%s456] sm:$0xff] %v8683
        %8941 = vst [vmem:[%s456 + $0x8] sm:$0xff] %v8861
        %8942 = vst [vmem:[%s456 + $0x10] sm:$0xff] %v8685
        %8943 = vst [vmem:[%s456 + $0x18] sm:$0xff] %v8863
        %8944 = vst [vmem:[%s456 + $0x20] sm:$0xff] %v8688
        %8945 = vst [vmem:[%s456 + $0x28] sm:$0xff] %v8866
        %8946 = vst [vmem:[%s456 + $0x30] sm:$0xff] %v8690
        %8947 = vst [vmem:[%s456 + $0x38] sm:$0xff] %v8868
        %8948 = vst [vmem:[%s456 + $0x40] sm:$0xff] %v8693
        %8949 = vst [vmem:[%s456 + $0x48] sm:$0xff] %v8871
        %8950 = vst [vmem:[%s456 + $0x50] sm:$0xff] %v8695
        %8951 = vst [vmem:[%s456 + $0x58] sm:$0xff] %v8873
        %8952 = vst [vmem:[%s456 + $0x60] sm:$0xff] %v8698
        %8953 = vst [vmem:[%s456 + $0x68] sm:$0xff] %v8876
        %8954 = vst [vmem:[%s456 + $0x70] sm:$0xff] %v8700
        %8955 = vst [vmem:[%s456 + $0x78] sm:$0xff] %v8878
        %8956 = vst [vmem:[%s456 + $0x80] sm:$0xff] %v8703
        %8957 = vst [vmem:[%s456 + $0x88] sm:$0xff] %v8881
        %8958 = vst [vmem:[%s456 + $0x90] sm:$0xff] %v8705
        %8959 = vst [vmem:[%s456 + $0x98] sm:$0xff] %v8883
        %8960 = vst [vmem:[%s456 + $0xa0] sm:$0xff] %v8708
        %8961 = vst [vmem:[%s456 + $0xa8] sm:$0xff] %v8886
        %8962 = vst [vmem:[%s456 + $0xb0] sm:$0xff] %v8710
        %8963 = vst [vmem:[%s456 + $0xb8] sm:$0xff] %v8888
        %8964 = vst [vmem:[%s456 + $0xc0] sm:$0xff] %v8713
        %8965 = vst [vmem:[%s456 + $0xc8] sm:$0xff] %v8891
        %8966 = vst [vmem:[%s456 + $0xd0] sm:$0xff] %v8715
        %8967 = vst [vmem:[%s456 + $0xd8] sm:$0xff] %v8893
        %8968 = vst [vmem:[%s456 + $0xe0] sm:$0xff] %v8718
        %8969 = vst [vmem:[%s456 + $0xe8] sm:$0xff] %v8896
        %8970 = vst [vmem:[%s456 + $0xf0] sm:$0xff] %v8720
        %8971 = vst [vmem:[%s456 + $0xf8] sm:$0xff] %v8898
        %8972 = vst [vmem:[%s456 + $0x100] sm:$0xff] %v8723
        %8973 = vst [vmem:[%s456 + $0x108] sm:$0xff] %v8901
        %8974 = vst [vmem:[%s456 + $0x110] sm:$0xff] %v8725
        %8975 = vst [vmem:[%s456 + $0x118] sm:$0xff] %v8903
        %8976 = vst [vmem:[%s456 + $0x120] sm:$0xff] %v8728
        %8977 = vst [vmem:[%s456 + $0x128] sm:$0xff] %v8906
        %8978 = vst [vmem:[%s456 + $0x130] sm:$0xff] %v8730
        %8979 = vst [vmem:[%s456 + $0x138] sm:$0xff] %v8908
        %8980 = vst [vmem:[%s456 + $0x140] sm:$0xff] %v8733
        %8981 = vst [vmem:[%s456 + $0x148] sm:$0xff] %v8911
        %8982 = vst [vmem:[%s456 + $0x150] sm:$0xff] %v8735
        %8983 = vst [vmem:[%s456 + $0x158] sm:$0xff] %v8913
        %8984 = vst [vmem:[%s456 + $0x160] sm:$0xff] %v8738
        %8985 = vst [vmem:[%s456 + $0x168] sm:$0xff] %v8916
        %8986 = vst [vmem:[%s456 + $0x170] sm:$0xff] %v8740
        %8987 = vst [vmem:[%s456 + $0x178] sm:$0xff] %v8918
        %8988 = vst [vmem:[%s456 + $0x180] sm:$0xff] %v8743
        %8989 = vst [vmem:[%s456 + $0x188] sm:$0xff] %v8921
        %8990 = vst [vmem:[%s456 + $0x190] sm:$0xff] %v8745
        %8991 = vst [vmem:[%s456 + $0x198] sm:$0xff] %v8923
        %8992 = vst [vmem:[%s456 + $0x1a0] sm:$0xff] %v8748
        %8993 = vst [vmem:[%s456 + $0x1a8] sm:$0xff] %v8926
        %8994 = vst [vmem:[%s456 + $0x1b0] sm:$0xff] %v8750
        %8995 = vst [vmem:[%s456 + $0x1b8] sm:$0xff] %v8928
        %8996 = vst [vmem:[%s456 + $0x1c0] sm:$0xff] %v8753
        %8997 = vst [vmem:[%s456 + $0x1c8] sm:$0xff] %v8931
        %8998 = vst [vmem:[%s456 + $0x1d0] sm:$0xff] %v8755
        %8999 = vst [vmem:[%s456 + $0x1d8] sm:$0xff] %v8933
        %9000 = vst [vmem:[%s456 + $0x1e0] sm:$0xff] %v8758
        %9001 = vst [vmem:[%s456 + $0x1e8] sm:$0xff] %v8936
        %9002 = vst [vmem:[%s456 + $0x1f0] sm:$0xff] %v8760
        %9003 = vst [vmem:[%s456 + $0x1f8] sm:$0xff] %v8938
        %v9036 = vunpack.c.l.b16 %v6652
        %v9037 = vunpack.c.h.b16 %v6652
        %v9038 = vunpack.c.l.b16 %v6653
        %v9039 = vunpack.c.h.b16 %v6653
        %v9040 = vunpack.c.l.b16 %v6654
        %v9041 = vunpack.c.h.b16 %v6654
        %v9042 = vunpack.c.l.b16 %v6655
        %v9043 = vunpack.c.h.b16 %v6655
        %v9044 = vunpack.c.l.b16 %v6656
        %v9045 = vunpack.c.h.b16 %v6656
        %v9046 = vunpack.c.l.b16 %v6657
        %v9047 = vunpack.c.h.b16 %v6657
        %v9048 = vunpack.c.l.b16 %v6658
        %v9049 = vunpack.c.h.b16 %v6658
        %v9050 = vunpack.c.l.b16 %v6659
        %v9051 = vunpack.c.h.b16 %v6659
        %v9052 = vunpack.c.l.b16 %v6660
        %v9053 = vunpack.c.h.b16 %v6660
        %v9054 = vunpack.c.l.b16 %v6661
        %v9055 = vunpack.c.h.b16 %v6661
        %v9056 = vunpack.c.l.b16 %v6662
        %v9057 = vunpack.c.h.b16 %v6662
        %v9058 = vunpack.c.l.b16 %v6663
        %v9059 = vunpack.c.h.b16 %v6663
        %v9060 = vunpack.c.l.b16 %v6664
        %v9061 = vunpack.c.h.b16 %v6664
        %v9062 = vunpack.c.l.b16 %v6665
        %v9063 = vunpack.c.h.b16 %v6665
        %v9064 = vunpack.c.l.b16 %v6666
        %v9065 = vunpack.c.h.b16 %v6666
        %v9066 = vunpack.c.l.b16 %v6667
        %v9067 = vunpack.c.h.b16 %v6667
        %v9068 = vunpack.c.l.b16 %v6668
        %v9069 = vunpack.c.h.b16 %v6668
        %v9070 = vunpack.c.l.b16 %v6669
        %v9071 = vunpack.c.h.b16 %v6669
        %v9072 = vunpack.c.l.b16 %v6670
        %v9073 = vunpack.c.h.b16 %v6670
        %v9074 = vunpack.c.l.b16 %v6671
        %v9075 = vunpack.c.h.b16 %v6671
        %v9076 = vunpack.c.l.b16 %v6672
        %v9077 = vunpack.c.h.b16 %v6672
        %v9078 = vunpack.c.l.b16 %v6673
        %v9079 = vunpack.c.h.b16 %v6673
        %v9080 = vunpack.c.l.b16 %v6674
        %v9081 = vunpack.c.h.b16 %v6674
        %v9082 = vunpack.c.l.b16 %v6675
        %v9083 = vunpack.c.h.b16 %v6675
        %v9084 = vunpack.c.l.b16 %v6676
        %v9085 = vunpack.c.h.b16 %v6676
        %v9086 = vunpack.c.l.b16 %v6677
        %v9087 = vunpack.c.h.b16 %v6677
        %v9088 = vunpack.c.l.b16 %v6678
        %v9089 = vunpack.c.h.b16 %v6678
        %v9090 = vunpack.c.l.b16 %v6679
        %v9091 = vunpack.c.h.b16 %v6679
        %v9092 = vunpack.c.l.b16 %v6680
        %v9093 = vunpack.c.h.b16 %v6680
        %v9094 = vunpack.c.l.b16 %v6681
        %v9095 = vunpack.c.h.b16 %v6681
        %v9096 = vunpack.c.l.b16 %v6682
        %v9097 = vunpack.c.h.b16 %v6682
        %v9098 = vunpack.c.l.b16 %v6683
        %v9099 = vunpack.c.h.b16 %v6683
        %v9100 = vpack.c.b16 %v9038, %v9036
        %v9101 = vpack.c.b16 %v9039, %v9037
        %v9102 = vpack.c.b16 %v9042, %v9040
        %v9103 = vpack.c.b16 %v9043, %v9041
        %v9104 = vpack.c.b16 %v9046, %v9044
        %v9105 = vpack.c.b16 %v9047, %v9045
        %v9106 = vpack.c.b16 %v9050, %v9048
        %v9107 = vpack.c.b16 %v9051, %v9049
        %v9108 = vpack.c.b16 %v9054, %v9052
        %v9109 = vpack.c.b16 %v9055, %v9053
        %v9110 = vpack.c.b16 %v9058, %v9056
        %v9111 = vpack.c.b16 %v9059, %v9057
        %v9112 = vpack.c.b16 %v9062, %v9060
        %v9113 = vpack.c.b16 %v9063, %v9061
        %v9114 = vpack.c.b16 %v9066, %v9064
        %v9115 = vpack.c.b16 %v9067, %v9065
        %v9116 = vpack.c.b16 %v9070, %v9068
        %v9117 = vpack.c.b16 %v9071, %v9069
        %v9118 = vpack.c.b16 %v9074, %v9072
        %v9119 = vpack.c.b16 %v9075, %v9073
        %v9120 = vpack.c.b16 %v9078, %v9076
        %v9121 = vpack.c.b16 %v9079, %v9077
        %v9122 = vpack.c.b16 %v9082, %v9080
        %v9123 = vpack.c.b16 %v9083, %v9081
        %v9124 = vpack.c.b16 %v9086, %v9084
        %v9125 = vpack.c.b16 %v9087, %v9085
        %v9126 = vpack.c.b16 %v9090, %v9088
        %v9127 = vpack.c.b16 %v9091, %v9089
        %v9128 = vpack.c.b16 %v9094, %v9092
        %v9129 = vpack.c.b16 %v9095, %v9093
        %v9130 = vpack.c.b16 %v9098, %v9096
        %v9131 = vpack.c.b16 %v9099, %v9097
        %9164 = vmatpush.bf16.msra.mxu0 %v9114
        %9165 = vmatpush.bf16.msra.mxu0 %v9112
        %9166 = vmatpush.bf16.msra.mxu0 %v9110
        %9167 = vmatpush.bf16.msra.mxu0 %v9108
        %9168 = vmatpush.bf16.msra.mxu0 %v9106
        %9169 = vmatpush.bf16.msra.mxu0 %v9104
        %9170 = vmatpush.bf16.msra.mxu0 %v9102
        %9171 = vmatpush.bf16.msra.mxu0 %v9100
        %9172 = vmatmul.bf16.gmra.mxu0 %v6844
        %v9173 = vpop.f32.mrf.mxu0
        %v9174 = vadd.f32 0.0, %v9173
        %v9175 = vpop.f32.mrf.mxu0
        %v9176 = vadd.f32 0.0, %v9175
        %9177 = vmatmul.bf16.gmra.mxu0 %v6846
        %v9178 = vpop.f32.mrf.mxu0
        %v9179 = vadd.f32 0.0, %v9178
        %v9180 = vpop.f32.mrf.mxu0
        %v9181 = vadd.f32 0.0, %v9180
        %9182 = vmatmul.bf16.gmra.mxu0 %v6848
        %v9183 = vpop.f32.mrf.mxu0
        %v9184 = vadd.f32 0.0, %v9183
        %v9185 = vpop.f32.mrf.mxu0
        %v9186 = vadd.f32 0.0, %v9185
        %9187 = vmatmul.bf16.gmra.mxu0 %v6850
        %v9188 = vpop.f32.mrf.mxu0
        %v9189 = vadd.f32 0.0, %v9188
        %v9190 = vpop.f32.mrf.mxu0
        %v9191 = vadd.f32 0.0, %v9190
        %9192 = vmatmul.bf16.gmra.mxu0 %v6852
        %v9193 = vpop.f32.mrf.mxu0
        %v9194 = vadd.f32 0.0, %v9193
        %v9195 = vpop.f32.mrf.mxu0
        %v9196 = vadd.f32 0.0, %v9195
        %9197 = vmatmul.bf16.gmra.mxu0 %v6854
        %v9198 = vpop.f32.mrf.mxu0
        %v9199 = vadd.f32 0.0, %v9198
        %v9200 = vpop.f32.mrf.mxu0
        %v9201 = vadd.f32 0.0, %v9200
        %9202 = vmatmul.bf16.gmra.mxu0 %v6856
        %v9203 = vpop.f32.mrf.mxu0
        %v9204 = vadd.f32 0.0, %v9203
        %v9205 = vpop.f32.mrf.mxu0
        %v9206 = vadd.f32 0.0, %v9205
        %9207 = vmatmul.bf16.gmra.mxu0 %v6858
        %v9208 = vpop.f32.mrf.mxu0
        %v9209 = vadd.f32 0.0, %v9208
        %v9210 = vpop.f32.mrf.mxu0
        %v9211 = vadd.f32 0.0, %v9210
        %9212 = vmatmul.bf16.gmra.mxu0 %v6860
        %v9213 = vpop.f32.mrf.mxu0
        %v9214 = vadd.f32 0.0, %v9213
        %v9215 = vpop.f32.mrf.mxu0
        %v9216 = vadd.f32 0.0, %v9215
        %9217 = vmatmul.bf16.gmra.mxu0 %v6862
        %v9218 = vpop.f32.mrf.mxu0
        %v9219 = vadd.f32 0.0, %v9218
        %v9220 = vpop.f32.mrf.mxu0
        %v9221 = vadd.f32 0.0, %v9220
        %9222 = vmatmul.bf16.gmra.mxu0 %v6864
        %v9223 = vpop.f32.mrf.mxu0
        %v9224 = vadd.f32 0.0, %v9223
        %v9225 = vpop.f32.mrf.mxu0
        %v9226 = vadd.f32 0.0, %v9225
        %9227 = vmatmul.bf16.gmra.mxu0 %v6866
        %v9228 = vpop.f32.mrf.mxu0
        %v9229 = vadd.f32 0.0, %v9228
        %v9230 = vpop.f32.mrf.mxu0
        %v9231 = vadd.f32 0.0, %v9230
        %9232 = vmatmul.bf16.gmra.mxu0 %v6868
        %v9233 = vpop.f32.mrf.mxu0
        %v9234 = vadd.f32 0.0, %v9233
        %v9235 = vpop.f32.mrf.mxu0
        %v9236 = vadd.f32 0.0, %v9235
        %9237 = vmatmul.bf16.gmra.mxu0 %v6870
        %v9238 = vpop.f32.mrf.mxu0
        %v9239 = vadd.f32 0.0, %v9238
        %v9240 = vpop.f32.mrf.mxu0
        %v9241 = vadd.f32 0.0, %v9240
        %9242 = vmatmul.bf16.gmra.mxu0 %v6872
        %v9243 = vpop.f32.mrf.mxu0
        %v9244 = vadd.f32 0.0, %v9243
        %v9245 = vpop.f32.mrf.mxu0
        %v9246 = vadd.f32 0.0, %v9245
        %9247 = vmatmul.bf16.gmra.mxu0 %v6874
        %v9248 = vpop.f32.mrf.mxu0
        %v9249 = vadd.f32 0.0, %v9248
        %v9250 = vpop.f32.mrf.mxu0
        %v9251 = vadd.f32 0.0, %v9250
        %9252 = vdwg.mxu0
        %9253 = vmatpush.bf16.msra.mxu0 %v9130
        %9254 = vmatpush.bf16.msra.mxu0 %v9128
        %9255 = vmatpush.bf16.msra.mxu0 %v9126
        %9256 = vmatpush.bf16.msra.mxu0 %v9124
        %9257 = vmatpush.bf16.msra.mxu0 %v9122
        %9258 = vmatpush.bf16.msra.mxu0 %v9120
        %9259 = vmatpush.bf16.msra.mxu0 %v9118
        %9260 = vmatpush.bf16.msra.mxu0 %v9116
        %9261 = vmatmul.bf16.gmra.mxu0 %v6845
        %v9262 = vpop.f32.mrf.mxu0
        %v9263 = vadd.f32 %v9174, %v9262
        %v9264 = vpop.f32.mrf.mxu0
        %v9265 = vadd.f32 %v9176, %v9264
        %9266 = vmatmul.bf16.gmra.mxu0 %v6847
        %v9267 = vpop.f32.mrf.mxu0
        %v9268 = vadd.f32 %v9179, %v9267
        %v9269 = vpop.f32.mrf.mxu0
        %v9270 = vadd.f32 %v9181, %v9269
        %9271 = vmatmul.bf16.gmra.mxu0 %v6849
        %v9272 = vpop.f32.mrf.mxu0
        %v9273 = vadd.f32 %v9184, %v9272
        %v9274 = vpop.f32.mrf.mxu0
        %v9275 = vadd.f32 %v9186, %v9274
        %9276 = vmatmul.bf16.gmra.mxu0 %v6851
        %v9277 = vpop.f32.mrf.mxu0
        %v9278 = vadd.f32 %v9189, %v9277
        %v9279 = vpop.f32.mrf.mxu0
        %v9280 = vadd.f32 %v9191, %v9279
        %9281 = vmatmul.bf16.gmra.mxu0 %v6853
        %v9282 = vpop.f32.mrf.mxu0
        %v9283 = vadd.f32 %v9194, %v9282
        %v9284 = vpop.f32.mrf.mxu0
        %v9285 = vadd.f32 %v9196, %v9284
        %9286 = vmatmul.bf16.gmra.mxu0 %v6855
        %v9287 = vpop.f32.mrf.mxu0
        %v9288 = vadd.f32 %v9199, %v9287
        %v9289 = vpop.f32.mrf.mxu0
        %v9290 = vadd.f32 %v9201, %v9289
        %9291 = vmatmul.bf16.gmra.mxu0 %v6857
        %v9292 = vpop.f32.mrf.mxu0
        %v9293 = vadd.f32 %v9204, %v9292
        %v9294 = vpop.f32.mrf.mxu0
        %v9295 = vadd.f32 %v9206, %v9294
        %9296 = vmatmul.bf16.gmra.mxu0 %v6859
        %v9297 = vpop.f32.mrf.mxu0
        %v9298 = vadd.f32 %v9209, %v9297
        %v9299 = vpop.f32.mrf.mxu0
        %v9300 = vadd.f32 %v9211, %v9299
        %9301 = vmatmul.bf16.gmra.mxu0 %v6861
        %v9302 = vpop.f32.mrf.mxu0
        %v9303 = vadd.f32 %v9214, %v9302
        %v9304 = vpop.f32.mrf.mxu0
        %v9305 = vadd.f32 %v9216, %v9304
        %9306 = vmatmul.bf16.gmra.mxu0 %v6863
        %v9307 = vpop.f32.mrf.mxu0
        %v9308 = vadd.f32 %v9219, %v9307
        %v9309 = vpop.f32.mrf.mxu0
        %v9310 = vadd.f32 %v9221, %v9309
        %9311 = vmatmul.bf16.gmra.mxu0 %v6865
        %v9312 = vpop.f32.mrf.mxu0
        %v9313 = vadd.f32 %v9224, %v9312
        %v9314 = vpop.f32.mrf.mxu0
        %v9315 = vadd.f32 %v9226, %v9314
        %9316 = vmatmul.bf16.gmra.mxu0 %v6867
        %v9317 = vpop.f32.mrf.mxu0
        %v9318 = vadd.f32 %v9229, %v9317
        %v9319 = vpop.f32.mrf.mxu0
        %v9320 = vadd.f32 %v9231, %v9319
        %9321 = vmatmul.bf16.gmra.mxu0 %v6869
        %v9322 = vpop.f32.mrf.mxu0
        %v9323 = vadd.f32 %v9234, %v9322
        %v9324 = vpop.f32.mrf.mxu0
        %v9325 = vadd.f32 %v9236, %v9324
        %9326 = vmatmul.bf16.gmra.mxu0 %v6871
        %v9327 = vpop.f32.mrf.mxu0
        %v9328 = vadd.f32 %v9239, %v9327
        %v9329 = vpop.f32.mrf.mxu0
        %v9330 = vadd.f32 %v9241, %v9329
        %9331 = vmatmul.bf16.gmra.mxu0 %v6873
        %v9332 = vpop.f32.mrf.mxu0
        %v9333 = vadd.f32 %v9244, %v9332
        %v9334 = vpop.f32.mrf.mxu0
        %v9335 = vadd.f32 %v9246, %v9334
        %9336 = vmatmul.bf16.gmra.mxu0 %v6875
        %v9337 = vpop.f32.mrf.mxu0
        %v9338 = vadd.f32 %v9249, %v9337
        %v9339 = vpop.f32.mrf.mxu0
        %v9340 = vadd.f32 %v9251, %v9339
        %9341 = vdwg.mxu0
        %9342 = vmatpush.bf16.msra.mxu0 %v9115
        %9343 = vmatpush.bf16.msra.mxu0 %v9113
        %9344 = vmatpush.bf16.msra.mxu0 %v9111
        %9345 = vmatpush.bf16.msra.mxu0 %v9109
        %9346 = vmatpush.bf16.msra.mxu0 %v9107
        %9347 = vmatpush.bf16.msra.mxu0 %v9105
        %9348 = vmatpush.bf16.msra.mxu0 %v9103
        %9349 = vmatpush.bf16.msra.mxu0 %v9101
        %9350 = vmatmul.bf16.gmra.mxu0 %v6844
        %v9351 = vpop.f32.mrf.mxu0
        %v9352 = vadd.f32 0.0, %v9351
        %v9353 = vpop.f32.mrf.mxu0
        %v9354 = vadd.f32 0.0, %v9353
        %9355 = vmatmul.bf16.gmra.mxu0 %v6846
        %v9356 = vpop.f32.mrf.mxu0
        %v9357 = vadd.f32 0.0, %v9356
        %v9358 = vpop.f32.mrf.mxu0
        %v9359 = vadd.f32 0.0, %v9358
        %9360 = vmatmul.bf16.gmra.mxu0 %v6848
        %v9361 = vpop.f32.mrf.mxu0
        %v9362 = vadd.f32 0.0, %v9361
        %v9363 = vpop.f32.mrf.mxu0
        %v9364 = vadd.f32 0.0, %v9363
        %9365 = vmatmul.bf16.gmra.mxu0 %v6850
        %v9366 = vpop.f32.mrf.mxu0
        %v9367 = vadd.f32 0.0, %v9366
        %v9368 = vpop.f32.mrf.mxu0
        %v9369 = vadd.f32 0.0, %v9368
        %9370 = vmatmul.bf16.gmra.mxu0 %v6852
        %v9371 = vpop.f32.mrf.mxu0
        %v9372 = vadd.f32 0.0, %v9371
        %v9373 = vpop.f32.mrf.mxu0
        %v9374 = vadd.f32 0.0, %v9373
        %9375 = vmatmul.bf16.gmra.mxu0 %v6854
        %v9376 = vpop.f32.mrf.mxu0
        %v9377 = vadd.f32 0.0, %v9376
        %v9378 = vpop.f32.mrf.mxu0
        %v9379 = vadd.f32 0.0, %v9378
        %9380 = vmatmul.bf16.gmra.mxu0 %v6856
        %v9381 = vpop.f32.mrf.mxu0
        %v9382 = vadd.f32 0.0, %v9381
        %v9383 = vpop.f32.mrf.mxu0
        %v9384 = vadd.f32 0.0, %v9383
        %9385 = vmatmul.bf16.gmra.mxu0 %v6858
        %v9386 = vpop.f32.mrf.mxu0
        %v9387 = vadd.f32 0.0, %v9386
        %v9388 = vpop.f32.mrf.mxu0
        %v9389 = vadd.f32 0.0, %v9388
        %9390 = vmatmul.bf16.gmra.mxu0 %v6860
        %v9391 = vpop.f32.mrf.mxu0
        %v9392 = vadd.f32 0.0, %v9391
        %v9393 = vpop.f32.mrf.mxu0
        %v9394 = vadd.f32 0.0, %v9393
        %9395 = vmatmul.bf16.gmra.mxu0 %v6862
        %v9396 = vpop.f32.mrf.mxu0
        %v9397 = vadd.f32 0.0, %v9396
        %v9398 = vpop.f32.mrf.mxu0
        %v9399 = vadd.f32 0.0, %v9398
        %9400 = vmatmul.bf16.gmra.mxu0 %v6864
        %v9401 = vpop.f32.mrf.mxu0
        %v9402 = vadd.f32 0.0, %v9401
        %v9403 = vpop.f32.mrf.mxu0
        %v9404 = vadd.f32 0.0, %v9403
        %9405 = vmatmul.bf16.gmra.mxu0 %v6866
        %v9406 = vpop.f32.mrf.mxu0
        %v9407 = vadd.f32 0.0, %v9406
        %v9408 = vpop.f32.mrf.mxu0
        %v9409 = vadd.f32 0.0, %v9408
        %9410 = vmatmul.bf16.gmra.mxu0 %v6868
        %v9411 = vpop.f32.mrf.mxu0
        %v9412 = vadd.f32 0.0, %v9411
        %v9413 = vpop.f32.mrf.mxu0
        %v9414 = vadd.f32 0.0, %v9413
        %9415 = vmatmul.bf16.gmra.mxu0 %v6870
        %v9416 = vpop.f32.mrf.mxu0
        %v9417 = vadd.f32 0.0, %v9416
        %v9418 = vpop.f32.mrf.mxu0
        %v9419 = vadd.f32 0.0, %v9418
        %9420 = vmatmul.bf16.gmra.mxu0 %v6872
        %v9421 = vpop.f32.mrf.mxu0
        %v9422 = vadd.f32 0.0, %v9421
        %v9423 = vpop.f32.mrf.mxu0
        %v9424 = vadd.f32 0.0, %v9423
        %9425 = vmatmul.bf16.gmra.mxu0 %v6874
        %v9426 = vpop.f32.mrf.mxu0
        %v9427 = vadd.f32 0.0, %v9426
        %v9428 = vpop.f32.mrf.mxu0
        %v9429 = vadd.f32 0.0, %v9428
        %9430 = vdwg.mxu0
        %9431 = vmatpush.bf16.msra.mxu0 %v9131
        %9432 = vmatpush.bf16.msra.mxu0 %v9129
        %9433 = vmatpush.bf16.msra.mxu0 %v9127
        %9434 = vmatpush.bf16.msra.mxu0 %v9125
        %9435 = vmatpush.bf16.msra.mxu0 %v9123
        %9436 = vmatpush.bf16.msra.mxu0 %v9121
        %9437 = vmatpush.bf16.msra.mxu0 %v9119
        %9438 = vmatpush.bf16.msra.mxu0 %v9117
        %9439 = vmatmul.bf16.gmra.mxu0 %v6845
        %v9440 = vpop.f32.mrf.mxu0
        %v9441 = vadd.f32 %v9352, %v9440
        %v9442 = vpop.f32.mrf.mxu0
        %v9443 = vadd.f32 %v9354, %v9442
        %9444 = vmatmul.bf16.gmra.mxu0 %v6847
        %v9445 = vpop.f32.mrf.mxu0
        %v9446 = vadd.f32 %v9357, %v9445
        %v9447 = vpop.f32.mrf.mxu0
        %v9448 = vadd.f32 %v9359, %v9447
        %9449 = vmatmul.bf16.gmra.mxu0 %v6849
        %v9450 = vpop.f32.mrf.mxu0
        %v9451 = vadd.f32 %v9362, %v9450
        %v9452 = vpop.f32.mrf.mxu0
        %v9453 = vadd.f32 %v9364, %v9452
        %9454 = vmatmul.bf16.gmra.mxu0 %v6851
        %v9455 = vpop.f32.mrf.mxu0
        %v9456 = vadd.f32 %v9367, %v9455
        %v9457 = vpop.f32.mrf.mxu0
        %v9458 = vadd.f32 %v9369, %v9457
        %9459 = vmatmul.bf16.gmra.mxu0 %v6853
        %v9460 = vpop.f32.mrf.mxu0
        %v9461 = vadd.f32 %v9372, %v9460
        %v9462 = vpop.f32.mrf.mxu0
        %v9463 = vadd.f32 %v9374, %v9462
        %9464 = vmatmul.bf16.gmra.mxu0 %v6855
        %v9465 = vpop.f32.mrf.mxu0
        %v9466 = vadd.f32 %v9377, %v9465
        %v9467 = vpop.f32.mrf.mxu0
        %v9468 = vadd.f32 %v9379, %v9467
        %9469 = vmatmul.bf16.gmra.mxu0 %v6857
        %v9470 = vpop.f32.mrf.mxu0
        %v9471 = vadd.f32 %v9382, %v9470
        %v9472 = vpop.f32.mrf.mxu0
        %v9473 = vadd.f32 %v9384, %v9472
        %9474 = vmatmul.bf16.gmra.mxu0 %v6859
        %v9475 = vpop.f32.mrf.mxu0
        %v9476 = vadd.f32 %v9387, %v9475
        %v9477 = vpop.f32.mrf.mxu0
        %v9478 = vadd.f32 %v9389, %v9477
        %9479 = vmatmul.bf16.gmra.mxu0 %v6861
        %v9480 = vpop.f32.mrf.mxu0
        %v9481 = vadd.f32 %v9392, %v9480
        %v9482 = vpop.f32.mrf.mxu0
        %v9483 = vadd.f32 %v9394, %v9482
        %9484 = vmatmul.bf16.gmra.mxu0 %v6863
        %v9485 = vpop.f32.mrf.mxu0
        %v9486 = vadd.f32 %v9397, %v9485
        %v9487 = vpop.f32.mrf.mxu0
        %v9488 = vadd.f32 %v9399, %v9487
        %9489 = vmatmul.bf16.gmra.mxu0 %v6865
        %v9490 = vpop.f32.mrf.mxu0
        %v9491 = vadd.f32 %v9402, %v9490
        %v9492 = vpop.f32.mrf.mxu0
        %v9493 = vadd.f32 %v9404, %v9492
        %9494 = vmatmul.bf16.gmra.mxu0 %v6867
        %v9495 = vpop.f32.mrf.mxu0
        %v9496 = vadd.f32 %v9407, %v9495
        %v9497 = vpop.f32.mrf.mxu0
        %v9498 = vadd.f32 %v9409, %v9497
        %9499 = vmatmul.bf16.gmra.mxu0 %v6869
        %v9500 = vpop.f32.mrf.mxu0
        %v9501 = vadd.f32 %v9412, %v9500
        %v9502 = vpop.f32.mrf.mxu0
        %v9503 = vadd.f32 %v9414, %v9502
        %9504 = vmatmul.bf16.gmra.mxu0 %v6871
        %v9505 = vpop.f32.mrf.mxu0
        %v9506 = vadd.f32 %v9417, %v9505
        %v9507 = vpop.f32.mrf.mxu0
        %v9508 = vadd.f32 %v9419, %v9507
        %9509 = vmatmul.bf16.gmra.mxu0 %v6873
        %v9510 = vpop.f32.mrf.mxu0
        %v9511 = vadd.f32 %v9422, %v9510
        %v9512 = vpop.f32.mrf.mxu0
        %v9513 = vadd.f32 %v9424, %v9512
        %9514 = vmatmul.bf16.gmra.mxu0 %v6875
        %v9515 = vpop.f32.mrf.mxu0
        %v9516 = vadd.f32 %v9427, %v9515
        %v9517 = vpop.f32.mrf.mxu0
        %v9518 = vadd.f32 %v9429, %v9517
        %9519 = vdwg.mxu0
        %v9552 = vunpack.c.l.b16 %v6716
        %v9553 = vunpack.c.h.b16 %v6716
        %v9554 = vunpack.c.l.b16 %v6717
        %v9555 = vunpack.c.h.b16 %v6717
        %v9556 = vunpack.c.l.b16 %v6718
        %v9557 = vunpack.c.h.b16 %v6718
        %v9558 = vunpack.c.l.b16 %v6719
        %v9559 = vunpack.c.h.b16 %v6719
        %v9560 = vunpack.c.l.b16 %v6720
        %v9561 = vunpack.c.h.b16 %v6720
        %v9562 = vunpack.c.l.b16 %v6721
        %v9563 = vunpack.c.h.b16 %v6721
        %v9564 = vunpack.c.l.b16 %v6722
        %v9565 = vunpack.c.h.b16 %v6722
        %v9566 = vunpack.c.l.b16 %v6723
        %v9567 = vunpack.c.h.b16 %v6723
        %v9568 = vunpack.c.l.b16 %v6724
        %v9569 = vunpack.c.h.b16 %v6724
        %v9570 = vunpack.c.l.b16 %v6725
        %v9571 = vunpack.c.h.b16 %v6725
        %v9572 = vunpack.c.l.b16 %v6726
        %v9573 = vunpack.c.h.b16 %v6726
        %v9574 = vunpack.c.l.b16 %v6727
        %v9575 = vunpack.c.h.b16 %v6727
        %v9576 = vunpack.c.l.b16 %v6728
        %v9577 = vunpack.c.h.b16 %v6728
        %v9578 = vunpack.c.l.b16 %v6729
        %v9579 = vunpack.c.h.b16 %v6729
        %v9580 = vunpack.c.l.b16 %v6730
        %v9581 = vunpack.c.h.b16 %v6730
        %v9582 = vunpack.c.l.b16 %v6731
        %v9583 = vunpack.c.h.b16 %v6731
        %v9584 = vunpack.c.l.b16 %v6732
        %v9585 = vunpack.c.h.b16 %v6732
        %v9586 = vunpack.c.l.b16 %v6733
        %v9587 = vunpack.c.h.b16 %v6733
        %v9588 = vunpack.c.l.b16 %v6734
        %v9589 = vunpack.c.h.b16 %v6734
        %v9590 = vunpack.c.l.b16 %v6735
        %v9591 = vunpack.c.h.b16 %v6735
        %v9592 = vunpack.c.l.b16 %v6736
        %v9593 = vunpack.c.h.b16 %v6736
        %v9594 = vunpack.c.l.b16 %v6737
        %v9595 = vunpack.c.h.b16 %v6737
        %v9596 = vunpack.c.l.b16 %v6738
        %v9597 = vunpack.c.h.b16 %v6738
        %v9598 = vunpack.c.l.b16 %v6739
        %v9599 = vunpack.c.h.b16 %v6739
        %v9600 = vunpack.c.l.b16 %v6740
        %v9601 = vunpack.c.h.b16 %v6740
        %v9602 = vunpack.c.l.b16 %v6741
        %v9603 = vunpack.c.h.b16 %v6741
        %v9604 = vunpack.c.l.b16 %v6742
        %v9605 = vunpack.c.h.b16 %v6742
        %v9606 = vunpack.c.l.b16 %v6743
        %v9607 = vunpack.c.h.b16 %v6743
        %v9608 = vunpack.c.l.b16 %v6744
        %v9609 = vunpack.c.h.b16 %v6744
        %v9610 = vunpack.c.l.b16 %v6745
        %v9611 = vunpack.c.h.b16 %v6745
        %v9612 = vunpack.c.l.b16 %v6746
        %v9613 = vunpack.c.h.b16 %v6746
        %v9614 = vunpack.c.l.b16 %v6747
        %v9615 = vunpack.c.h.b16 %v6747
        %v9616 = vpack.c.b16 %v9554, %v9552
        %v9617 = vpack.c.b16 %v9555, %v9553
        %v9618 = vpack.c.b16 %v9558, %v9556
        %v9619 = vpack.c.b16 %v9559, %v9557
        %v9620 = vpack.c.b16 %v9562, %v9560
        %v9621 = vpack.c.b16 %v9563, %v9561
        %v9622 = vpack.c.b16 %v9566, %v9564
        %v9623 = vpack.c.b16 %v9567, %v9565
        %v9624 = vpack.c.b16 %v9570, %v9568
        %v9625 = vpack.c.b16 %v9571, %v9569
        %v9626 = vpack.c.b16 %v9574, %v9572
        %v9627 = vpack.c.b16 %v9575, %v9573
        %v9628 = vpack.c.b16 %v9578, %v9576
        %v9629 = vpack.c.b16 %v9579, %v9577
        %v9630 = vpack.c.b16 %v9582, %v9580
        %v9631 = vpack.c.b16 %v9583, %v9581
        %v9632 = vpack.c.b16 %v9586, %v9584
        %v9633 = vpack.c.b16 %v9587, %v9585
        %v9634 = vpack.c.b16 %v9590, %v9588
        %v9635 = vpack.c.b16 %v9591, %v9589
        %v9636 = vpack.c.b16 %v9594, %v9592
        %v9637 = vpack.c.b16 %v9595, %v9593
        %v9638 = vpack.c.b16 %v9598, %v9596
        %v9639 = vpack.c.b16 %v9599, %v9597
        %v9640 = vpack.c.b16 %v9602, %v9600
        %v9641 = vpack.c.b16 %v9603, %v9601
        %v9642 = vpack.c.b16 %v9606, %v9604
        %v9643 = vpack.c.b16 %v9607, %v9605
        %v9644 = vpack.c.b16 %v9610, %v9608
        %v9645 = vpack.c.b16 %v9611, %v9609
        %v9646 = vpack.c.b16 %v9614, %v9612
        %v9647 = vpack.c.b16 %v9615, %v9613
        %9680 = vmatpush.bf16.msra.mxu0 %v9630
        %9681 = vmatpush.bf16.msra.mxu0 %v9628
        %9682 = vmatpush.bf16.msra.mxu0 %v9626
        %9683 = vmatpush.bf16.msra.mxu0 %v9624
        %9684 = vmatpush.bf16.msra.mxu0 %v9622
        %9685 = vmatpush.bf16.msra.mxu0 %v9620
        %9686 = vmatpush.bf16.msra.mxu0 %v9618
        %9687 = vmatpush.bf16.msra.mxu0 %v9616
        %9688 = vmatmul.bf16.gmra.mxu0 %v7520
        %v9689 = vpop.f32.mrf.mxu0
        %v9690 = vadd.f32 0.0, %v9689
        %v9691 = vpop.f32.mrf.mxu0
        %v9692 = vadd.f32 0.0, %v9691
        %9693 = vmatmul.bf16.gmra.mxu0 %v7522
        %v9694 = vpop.f32.mrf.mxu0
        %v9695 = vadd.f32 0.0, %v9694
        %v9696 = vpop.f32.mrf.mxu0
        %v9697 = vadd.f32 0.0, %v9696
        %9698 = vmatmul.bf16.gmra.mxu0 %v7524
        %v9699 = vpop.f32.mrf.mxu0
        %v9700 = vadd.f32 0.0, %v9699
        %v9701 = vpop.f32.mrf.mxu0
        %v9702 = vadd.f32 0.0, %v9701
        %9703 = vmatmul.bf16.gmra.mxu0 %v7526
        %v9704 = vpop.f32.mrf.mxu0
        %v9705 = vadd.f32 0.0, %v9704
        %v9706 = vpop.f32.mrf.mxu0
        %v9707 = vadd.f32 0.0, %v9706
        %9708 = vmatmul.bf16.gmra.mxu0 %v7528
        %v9709 = vpop.f32.mrf.mxu0
        %v9710 = vadd.f32 0.0, %v9709
        %v9711 = vpop.f32.mrf.mxu0
        %v9712 = vadd.f32 0.0, %v9711
        %9713 = vmatmul.bf16.gmra.mxu0 %v7530
        %v9714 = vpop.f32.mrf.mxu0
        %v9715 = vadd.f32 0.0, %v9714
        %v9716 = vpop.f32.mrf.mxu0
        %v9717 = vadd.f32 0.0, %v9716
        %9718 = vmatmul.bf16.gmra.mxu0 %v7532
        %v9719 = vpop.f32.mrf.mxu0
        %v9720 = vadd.f32 0.0, %v9719
        %v9721 = vpop.f32.mrf.mxu0
        %v9722 = vadd.f32 0.0, %v9721
        %9723 = vmatmul.bf16.gmra.mxu0 %v7534
        %v9724 = vpop.f32.mrf.mxu0
        %v9725 = vadd.f32 0.0, %v9724
        %v9726 = vpop.f32.mrf.mxu0
        %v9727 = vadd.f32 0.0, %v9726
        %9728 = vmatmul.bf16.gmra.mxu0 %v7536
        %v9729 = vpop.f32.mrf.mxu0
        %v9730 = vadd.f32 0.0, %v9729
        %v9731 = vpop.f32.mrf.mxu0
        %v9732 = vadd.f32 0.0, %v9731
        %9733 = vmatmul.bf16.gmra.mxu0 %v7538
        %v9734 = vpop.f32.mrf.mxu0
        %v9735 = vadd.f32 0.0, %v9734
        %v9736 = vpop.f32.mrf.mxu0
        %v9737 = vadd.f32 0.0, %v9736
        %9738 = vmatmul.bf16.gmra.mxu0 %v7540
        %v9739 = vpop.f32.mrf.mxu0
        %v9740 = vadd.f32 0.0, %v9739
        %v9741 = vpop.f32.mrf.mxu0
        %v9742 = vadd.f32 0.0, %v9741
        %9743 = vmatmul.bf16.gmra.mxu0 %v7542
        %v9744 = vpop.f32.mrf.mxu0
        %v9745 = vadd.f32 0.0, %v9744
        %v9746 = vpop.f32.mrf.mxu0
        %v9747 = vadd.f32 0.0, %v9746
        %9748 = vmatmul.bf16.gmra.mxu0 %v7544
        %v9749 = vpop.f32.mrf.mxu0
        %v9750 = vadd.f32 0.0, %v9749
        %v9751 = vpop.f32.mrf.mxu0
        %v9752 = vadd.f32 0.0, %v9751
        %9753 = vmatmul.bf16.gmra.mxu0 %v7546
        %v9754 = vpop.f32.mrf.mxu0
        %v9755 = vadd.f32 0.0, %v9754
        %v9756 = vpop.f32.mrf.mxu0
        %v9757 = vadd.f32 0.0, %v9756
        %9758 = vmatmul.bf16.gmra.mxu0 %v7548
        %v9759 = vpop.f32.mrf.mxu0
        %v9760 = vadd.f32 0.0, %v9759
        %v9761 = vpop.f32.mrf.mxu0
        %v9762 = vadd.f32 0.0, %v9761
        %9763 = vmatmul.bf16.gmra.mxu0 %v7550
        %v9764 = vpop.f32.mrf.mxu0
        %v9765 = vadd.f32 0.0, %v9764
        %v9766 = vpop.f32.mrf.mxu0
        %v9767 = vadd.f32 0.0, %v9766
        %9768 = vdwg.mxu0
        %9769 = vmatpush.bf16.msra.mxu0 %v9646
        %9770 = vmatpush.bf16.msra.mxu0 %v9644
        %9771 = vmatpush.bf16.msra.mxu0 %v9642
        %9772 = vmatpush.bf16.msra.mxu0 %v9640
        %9773 = vmatpush.bf16.msra.mxu0 %v9638
        %9774 = vmatpush.bf16.msra.mxu0 %v9636
        %9775 = vmatpush.bf16.msra.mxu0 %v9634
        %9776 = vmatpush.bf16.msra.mxu0 %v9632
        %9777 = vmatmul.bf16.gmra.mxu0 %v7521
        %v9778 = vpop.f32.mrf.mxu0
        %v9779 = vadd.f32 %v9690, %v9778
        %v9780 = vpop.f32.mrf.mxu0
        %v9781 = vadd.f32 %v9692, %v9780
        %9782 = vmatmul.bf16.gmra.mxu0 %v7523
        %v9783 = vpop.f32.mrf.mxu0
        %v9784 = vadd.f32 %v9695, %v9783
        %v9785 = vpop.f32.mrf.mxu0
        %v9786 = vadd.f32 %v9697, %v9785
        %9787 = vmatmul.bf16.gmra.mxu0 %v7525
        %v9788 = vpop.f32.mrf.mxu0
        %v9789 = vadd.f32 %v9700, %v9788
        %v9790 = vpop.f32.mrf.mxu0
        %v9791 = vadd.f32 %v9702, %v9790
        %9792 = vmatmul.bf16.gmra.mxu0 %v7527
        %v9793 = vpop.f32.mrf.mxu0
        %v9794 = vadd.f32 %v9705, %v9793
        %v9795 = vpop.f32.mrf.mxu0
        %v9796 = vadd.f32 %v9707, %v9795
        %9797 = vmatmul.bf16.gmra.mxu0 %v7529
        %v9798 = vpop.f32.mrf.mxu0
        %v9799 = vadd.f32 %v9710, %v9798
        %v9800 = vpop.f32.mrf.mxu0
        %v9801 = vadd.f32 %v9712, %v9800
        %9802 = vmatmul.bf16.gmra.mxu0 %v7531
        %v9803 = vpop.f32.mrf.mxu0
        %v9804 = vadd.f32 %v9715, %v9803
        %v9805 = vpop.f32.mrf.mxu0
        %v9806 = vadd.f32 %v9717, %v9805
        %9807 = vmatmul.bf16.gmra.mxu0 %v7533
        %v9808 = vpop.f32.mrf.mxu0
        %v9809 = vadd.f32 %v9720, %v9808
        %v9810 = vpop.f32.mrf.mxu0
        %v9811 = vadd.f32 %v9722, %v9810
        %9812 = vmatmul.bf16.gmra.mxu0 %v7535
        %v9813 = vpop.f32.mrf.mxu0
        %v9814 = vadd.f32 %v9725, %v9813
        %v9815 = vpop.f32.mrf.mxu0
        %v9816 = vadd.f32 %v9727, %v9815
        %9817 = vmatmul.bf16.gmra.mxu0 %v7537
        %v9818 = vpop.f32.mrf.mxu0
        %v9819 = vadd.f32 %v9730, %v9818
        %v9820 = vpop.f32.mrf.mxu0
        %v9821 = vadd.f32 %v9732, %v9820
        %9822 = vmatmul.bf16.gmra.mxu0 %v7539
        %v9823 = vpop.f32.mrf.mxu0
        %v9824 = vadd.f32 %v9735, %v9823
        %v9825 = vpop.f32.mrf.mxu0
        %v9826 = vadd.f32 %v9737, %v9825
        %9827 = vmatmul.bf16.gmra.mxu0 %v7541
        %v9828 = vpop.f32.mrf.mxu0
        %v9829 = vadd.f32 %v9740, %v9828
        %v9830 = vpop.f32.mrf.mxu0
        %v9831 = vadd.f32 %v9742, %v9830
        %9832 = vmatmul.bf16.gmra.mxu0 %v7543
        %v9833 = vpop.f32.mrf.mxu0
        %v9834 = vadd.f32 %v9745, %v9833
        %v9835 = vpop.f32.mrf.mxu0
        %v9836 = vadd.f32 %v9747, %v9835
        %9837 = vmatmul.bf16.gmra.mxu0 %v7545
        %v9838 = vpop.f32.mrf.mxu0
        %v9839 = vadd.f32 %v9750, %v9838
        %v9840 = vpop.f32.mrf.mxu0
        %v9841 = vadd.f32 %v9752, %v9840
        %9842 = vmatmul.bf16.gmra.mxu0 %v7547
        %v9843 = vpop.f32.mrf.mxu0
        %v9844 = vadd.f32 %v9755, %v9843
        %v9845 = vpop.f32.mrf.mxu0
        %v9846 = vadd.f32 %v9757, %v9845
        %9847 = vmatmul.bf16.gmra.mxu0 %v7549
        %v9848 = vpop.f32.mrf.mxu0
        %v9849 = vadd.f32 %v9760, %v9848
        %v9850 = vpop.f32.mrf.mxu0
        %v9851 = vadd.f32 %v9762, %v9850
        %9852 = vmatmul.bf16.gmra.mxu0 %v7551
        %v9853 = vpop.f32.mrf.mxu0
        %v9854 = vadd.f32 %v9765, %v9853
        %v9855 = vpop.f32.mrf.mxu0
        %v9856 = vadd.f32 %v9767, %v9855
        %9857 = vdwg.mxu0
        %9858 = vmatpush.bf16.msra.mxu0 %v9631
        %9859 = vmatpush.bf16.msra.mxu0 %v9629
        %9860 = vmatpush.bf16.msra.mxu0 %v9627
        %9861 = vmatpush.bf16.msra.mxu0 %v9625
        %9862 = vmatpush.bf16.msra.mxu0 %v9623
        %9863 = vmatpush.bf16.msra.mxu0 %v9621
        %9864 = vmatpush.bf16.msra.mxu0 %v9619
        %9865 = vmatpush.bf16.msra.mxu0 %v9617
        %9866 = vmatmul.bf16.gmra.mxu0 %v7520
        %v9867 = vpop.f32.mrf.mxu0
        %v9868 = vadd.f32 0.0, %v9867
        %v9869 = vpop.f32.mrf.mxu0
        %v9870 = vadd.f32 0.0, %v9869
        %9871 = vmatmul.bf16.gmra.mxu0 %v7522
        %v9872 = vpop.f32.mrf.mxu0
        %v9873 = vadd.f32 0.0, %v9872
        %v9874 = vpop.f32.mrf.mxu0
        %v9875 = vadd.f32 0.0, %v9874
        %9876 = vmatmul.bf16.gmra.mxu0 %v7524
        %v9877 = vpop.f32.mrf.mxu0
        %v9878 = vadd.f32 0.0, %v9877
        %v9879 = vpop.f32.mrf.mxu0
        %v9880 = vadd.f32 0.0, %v9879
        %9881 = vmatmul.bf16.gmra.mxu0 %v7526
        %v9882 = vpop.f32.mrf.mxu0
        %v9883 = vadd.f32 0.0, %v9882
        %v9884 = vpop.f32.mrf.mxu0
        %v9885 = vadd.f32 0.0, %v9884
        %9886 = vmatmul.bf16.gmra.mxu0 %v7528
        %v9887 = vpop.f32.mrf.mxu0
        %v9888 = vadd.f32 0.0, %v9887
        %v9889 = vpop.f32.mrf.mxu0
        %v9890 = vadd.f32 0.0, %v9889
        %9891 = vmatmul.bf16.gmra.mxu0 %v7530
        %v9892 = vpop.f32.mrf.mxu0
        %v9893 = vadd.f32 0.0, %v9892
        %v9894 = vpop.f32.mrf.mxu0
        %v9895 = vadd.f32 0.0, %v9894
        %9896 = vmatmul.bf16.gmra.mxu0 %v7532
        %v9897 = vpop.f32.mrf.mxu0
        %v9898 = vadd.f32 0.0, %v9897
        %v9899 = vpop.f32.mrf.mxu0
        %v9900 = vadd.f32 0.0, %v9899
        %9901 = vmatmul.bf16.gmra.mxu0 %v7534
        %v9902 = vpop.f32.mrf.mxu0
        %v9903 = vadd.f32 0.0, %v9902
        %v9904 = vpop.f32.mrf.mxu0
        %v9905 = vadd.f32 0.0, %v9904
        %9906 = vmatmul.bf16.gmra.mxu0 %v7536
        %v9907 = vpop.f32.mrf.mxu0
        %v9908 = vadd.f32 0.0, %v9907
        %v9909 = vpop.f32.mrf.mxu0
        %v9910 = vadd.f32 0.0, %v9909
        %9911 = vmatmul.bf16.gmra.mxu0 %v7538
        %v9912 = vpop.f32.mrf.mxu0
        %v9913 = vadd.f32 0.0, %v9912
        %v9914 = vpop.f32.mrf.mxu0
        %v9915 = vadd.f32 0.0, %v9914
        %9916 = vmatmul.bf16.gmra.mxu0 %v7540
        %v9917 = vpop.f32.mrf.mxu0
        %v9918 = vadd.f32 0.0, %v9917
        %v9919 = vpop.f32.mrf.mxu0
        %v9920 = vadd.f32 0.0, %v9919
        %9921 = vmatmul.bf16.gmra.mxu0 %v7542
        %v9922 = vpop.f32.mrf.mxu0
        %v9923 = vadd.f32 0.0, %v9922
        %v9924 = vpop.f32.mrf.mxu0
        %v9925 = vadd.f32 0.0, %v9924
        %9926 = vmatmul.bf16.gmra.mxu0 %v7544
        %v9927 = vpop.f32.mrf.mxu0
        %v9928 = vadd.f32 0.0, %v9927
        %v9929 = vpop.f32.mrf.mxu0
        %v9930 = vadd.f32 0.0, %v9929
        %9931 = vmatmul.bf16.gmra.mxu0 %v7546
        %v9932 = vpop.f32.mrf.mxu0
        %v9933 = vadd.f32 0.0, %v9932
        %v9934 = vpop.f32.mrf.mxu0
        %v9935 = vadd.f32 0.0, %v9934
        %9936 = vmatmul.bf16.gmra.mxu0 %v7548
        %v9937 = vpop.f32.mrf.mxu0
        %v9938 = vadd.f32 0.0, %v9937
        %v9939 = vpop.f32.mrf.mxu0
        %v9940 = vadd.f32 0.0, %v9939
        %9941 = vmatmul.bf16.gmra.mxu0 %v7550
        %v9942 = vpop.f32.mrf.mxu0
        %v9943 = vadd.f32 0.0, %v9942
        %v9944 = vpop.f32.mrf.mxu0
        %v9945 = vadd.f32 0.0, %v9944
        %9946 = vdwg.mxu0
        %9947 = vmatpush.bf16.msra.mxu0 %v9647
        %9948 = vmatpush.bf16.msra.mxu0 %v9645
        %9949 = vmatpush.bf16.msra.mxu0 %v9643
        %9950 = vmatpush.bf16.msra.mxu0 %v9641
        %9951 = vmatpush.bf16.msra.mxu0 %v9639
        %9952 = vmatpush.bf16.msra.mxu0 %v9637
        %9953 = vmatpush.bf16.msra.mxu0 %v9635
        %9954 = vmatpush.bf16.msra.mxu0 %v9633
        %9955 = vmatmul.bf16.gmra.mxu0 %v7521
        %v9956 = vpop.f32.mrf.mxu0
        %v9957 = vadd.f32 %v9868, %v9956
        %v9958 = vpop.f32.mrf.mxu0
        %v9959 = vadd.f32 %v9870, %v9958
        %9960 = vmatmul.bf16.gmra.mxu0 %v7523
        %v9961 = vpop.f32.mrf.mxu0
        %v9962 = vadd.f32 %v9873, %v9961
        %v9963 = vpop.f32.mrf.mxu0
        %v9964 = vadd.f32 %v9875, %v9963
        %9965 = vmatmul.bf16.gmra.mxu0 %v7525
        %v9966 = vpop.f32.mrf.mxu0
        %v9967 = vadd.f32 %v9878, %v9966
        %v9968 = vpop.f32.mrf.mxu0
        %v9969 = vadd.f32 %v9880, %v9968
        %9970 = vmatmul.bf16.gmra.mxu0 %v7527
        %v9971 = vpop.f32.mrf.mxu0
        %v9972 = vadd.f32 %v9883, %v9971
        %v9973 = vpop.f32.mrf.mxu0
        %v9974 = vadd.f32 %v9885, %v9973
        %9975 = vmatmul.bf16.gmra.mxu0 %v7529
        %v9976 = vpop.f32.mrf.mxu0
        %v9977 = vadd.f32 %v9888, %v9976
        %v9978 = vpop.f32.mrf.mxu0
        %v9979 = vadd.f32 %v9890, %v9978
        %9980 = vmatmul.bf16.gmra.mxu0 %v7531
        %v9981 = vpop.f32.mrf.mxu0
        %v9982 = vadd.f32 %v9893, %v9981
        %v9983 = vpop.f32.mrf.mxu0
        %v9984 = vadd.f32 %v9895, %v9983
        %9985 = vmatmul.bf16.gmra.mxu0 %v7533
        %v9986 = vpop.f32.mrf.mxu0
        %v9987 = vadd.f32 %v9898, %v9986
        %v9988 = vpop.f32.mrf.mxu0
        %v9989 = vadd.f32 %v9900, %v9988
        %9990 = vmatmul.bf16.gmra.mxu0 %v7535
        %v9991 = vpop.f32.mrf.mxu0
        %v9992 = vadd.f32 %v9903, %v9991
        %v9993 = vpop.f32.mrf.mxu0
        %v9994 = vadd.f32 %v9905, %v9993
        %9995 = vmatmul.bf16.gmra.mxu0 %v7537
        %v9996 = vpop.f32.mrf.mxu0
        %v9997 = vadd.f32 %v9908, %v9996
        %v9998 = vpop.f32.mrf.mxu0
        %v9999 = vadd.f32 %v9910, %v9998
        %10000 = vmatmul.bf16.gmra.mxu0 %v7539
        %v10001 = vpop.f32.mrf.mxu0
        %v10002 = vadd.f32 %v9913, %v10001
        %v10003 = vpop.f32.mrf.mxu0
        %v10004 = vadd.f32 %v9915, %v10003
        %10005 = vmatmul.bf16.gmra.mxu0 %v7541
        %v10006 = vpop.f32.mrf.mxu0
        %v10007 = vadd.f32 %v9918, %v10006
        %v10008 = vpop.f32.mrf.mxu0
        %v10009 = vadd.f32 %v9920, %v10008
        %10010 = vmatmul.bf16.gmra.mxu0 %v7543
        %v10011 = vpop.f32.mrf.mxu0
        %v10012 = vadd.f32 %v9923, %v10011
        %v10013 = vpop.f32.mrf.mxu0
        %v10014 = vadd.f32 %v9925, %v10013
        %10015 = vmatmul.bf16.gmra.mxu0 %v7545
        %v10016 = vpop.f32.mrf.mxu0
        %v10017 = vadd.f32 %v9928, %v10016
        %v10018 = vpop.f32.mrf.mxu0
        %v10019 = vadd.f32 %v9930, %v10018
        %10020 = vmatmul.bf16.gmra.mxu0 %v7547
        %v10021 = vpop.f32.mrf.mxu0
        %v10022 = vadd.f32 %v9933, %v10021
        %v10023 = vpop.f32.mrf.mxu0
        %v10024 = vadd.f32 %v9935, %v10023
        %10025 = vmatmul.bf16.gmra.mxu0 %v7549
        %v10026 = vpop.f32.mrf.mxu0
        %v10027 = vadd.f32 %v9938, %v10026
        %v10028 = vpop.f32.mrf.mxu0
        %v10029 = vadd.f32 %v9940, %v10028
        %10030 = vmatmul.bf16.gmra.mxu0 %v7551
        %v10031 = vpop.f32.mrf.mxu0
        %v10032 = vadd.f32 %v9943, %v10031
        %v10033 = vpop.f32.mrf.mxu0
        %v10034 = vadd.f32 %v9945, %v10033
        %10035 = vdwg.mxu0
        %v10036 = vsub.f32 %v9263, %v9779
        %v10037 = vsub.f32 %v9441, %v9957
        %v10038 = vsub.f32 %v9265, %v9781
        %v10039 = vsub.f32 %v9443, %v9959
        %v10040 = vsub.f32 %v9268, %v9784
        %v10041 = vsub.f32 %v9446, %v9962
        %v10042 = vsub.f32 %v9270, %v9786
        %v10043 = vsub.f32 %v9448, %v9964
        %v10044 = vsub.f32 %v9273, %v9789
        %v10045 = vsub.f32 %v9451, %v9967
        %v10046 = vsub.f32 %v9275, %v9791
        %v10047 = vsub.f32 %v9453, %v9969
        %v10048 = vsub.f32 %v9278, %v9794
        %v10049 = vsub.f32 %v9456, %v9972
        %v10050 = vsub.f32 %v9280, %v9796
        %v10051 = vsub.f32 %v9458, %v9974
        %v10052 = vsub.f32 %v9283, %v9799
        %v10053 = vsub.f32 %v9461, %v9977
        %v10054 = vsub.f32 %v9285, %v9801
        %v10055 = vsub.f32 %v9463, %v9979
        %v10056 = vsub.f32 %v9288, %v9804
        %v10057 = vsub.f32 %v9466, %v9982
        %v10058 = vsub.f32 %v9290, %v9806
        %v10059 = vsub.f32 %v9468, %v9984
        %v10060 = vsub.f32 %v9293, %v9809
        %v10061 = vsub.f32 %v9471, %v9987
        %v10062 = vsub.f32 %v9295, %v9811
        %v10063 = vsub.f32 %v9473, %v9989
        %v10064 = vsub.f32 %v9298, %v9814
        %v10065 = vsub.f32 %v9476, %v9992
        %v10066 = vsub.f32 %v9300, %v9816
        %v10067 = vsub.f32 %v9478, %v9994
        %v10068 = vsub.f32 %v9303, %v9819
        %v10069 = vsub.f32 %v9481, %v9997
        %v10070 = vsub.f32 %v9305, %v9821
        %v10071 = vsub.f32 %v9483, %v9999
        %v10072 = vsub.f32 %v9308, %v9824
        %v10073 = vsub.f32 %v9486, %v10002
        %v10074 = vsub.f32 %v9310, %v9826
        %v10075 = vsub.f32 %v9488, %v10004
        %v10076 = vsub.f32 %v9313, %v9829
        %v10077 = vsub.f32 %v9491, %v10007
        %v10078 = vsub.f32 %v9315, %v9831
        %v10079 = vsub.f32 %v9493, %v10009
        %v10080 = vsub.f32 %v9318, %v9834
        %v10081 = vsub.f32 %v9496, %v10012
        %v10082 = vsub.f32 %v9320, %v9836
        %v10083 = vsub.f32 %v9498, %v10014
        %v10084 = vsub.f32 %v9323, %v9839
        %v10085 = vsub.f32 %v9501, %v10017
        %v10086 = vsub.f32 %v9325, %v9841
        %v10087 = vsub.f32 %v9503, %v10019
        %v10088 = vsub.f32 %v9328, %v9844
        %v10089 = vsub.f32 %v9506, %v10022
        %v10090 = vsub.f32 %v9330, %v9846
        %v10091 = vsub.f32 %v9508, %v10024
        %v10092 = vsub.f32 %v9333, %v9849
        %v10093 = vsub.f32 %v9511, %v10027
        %v10094 = vsub.f32 %v9335, %v9851
        %v10095 = vsub.f32 %v9513, %v10029
        %v10096 = vsub.f32 %v9338, %v9854
        %v10097 = vsub.f32 %v9516, %v10032
        %v10098 = vsub.f32 %v9340, %v9856
        %v10099 = vsub.f32 %v9518, %v10034
        %s10100 = scalar_lea.vmem %s449, 512 [#allocation14]
        %10101 = vst [vmem:[%s10100] sm:$0xff] %v10036
        %10102 = vst [vmem:[%s10100 + $0x8] sm:$0xff] %v10037
        %10103 = vst [vmem:[%s10100 + $0x10] sm:$0xff] %v10038
        %10104 = vst [vmem:[%s10100 + $0x18] sm:$0xff] %v10039
        %10105 = vst [vmem:[%s10100 + $0x20] sm:$0xff] %v10040
        %10106 = vst [vmem:[%s10100 + $0x28] sm:$0xff] %v10041
        %10107 = vst [vmem:[%s10100 + $0x30] sm:$0xff] %v10042
        %10108 = vst [vmem:[%s10100 + $0x38] sm:$0xff] %v10043
        %10109 = vst [vmem:[%s10100 + $0x40] sm:$0xff] %v10044
        %10110 = vst [vmem:[%s10100 + $0x48] sm:$0xff] %v10045
        %10111 = vst [vmem:[%s10100 + $0x50] sm:$0xff] %v10046
        %10112 = vst [vmem:[%s10100 + $0x58] sm:$0xff] %v10047
        %10113 = vst [vmem:[%s10100 + $0x60] sm:$0xff] %v10048
        %10114 = vst [vmem:[%s10100 + $0x68] sm:$0xff] %v10049
        %10115 = vst [vmem:[%s10100 + $0x70] sm:$0xff] %v10050
        %10116 = vst [vmem:[%s10100 + $0x78] sm:$0xff] %v10051
        %10117 = vst [vmem:[%s10100 + $0x80] sm:$0xff] %v10052
        %10118 = vst [vmem:[%s10100 + $0x88] sm:$0xff] %v10053
        %10119 = vst [vmem:[%s10100 + $0x90] sm:$0xff] %v10054
        %10120 = vst [vmem:[%s10100 + $0x98] sm:$0xff] %v10055
        %10121 = vst [vmem:[%s10100 + $0xa0] sm:$0xff] %v10056
        %10122 = vst [vmem:[%s10100 + $0xa8] sm:$0xff] %v10057
        %10123 = vst [vmem:[%s10100 + $0xb0] sm:$0xff] %v10058
        %10124 = vst [vmem:[%s10100 + $0xb8] sm:$0xff] %v10059
        %10125 = vst [vmem:[%s10100 + $0xc0] sm:$0xff] %v10060
        %10126 = vst [vmem:[%s10100 + $0xc8] sm:$0xff] %v10061
        %10127 = vst [vmem:[%s10100 + $0xd0] sm:$0xff] %v10062
        %10128 = vst [vmem:[%s10100 + $0xd8] sm:$0xff] %v10063
        %10129 = vst [vmem:[%s10100 + $0xe0] sm:$0xff] %v10064
        %10130 = vst [vmem:[%s10100 + $0xe8] sm:$0xff] %v10065
        %10131 = vst [vmem:[%s10100 + $0xf0] sm:$0xff] %v10066
        %10132 = vst [vmem:[%s10100 + $0xf8] sm:$0xff] %v10067
        %10133 = vst [vmem:[%s10100 + $0x100] sm:$0xff] %v10068
        %10134 = vst [vmem:[%s10100 + $0x108] sm:$0xff] %v10069
        %10135 = vst [vmem:[%s10100 + $0x110] sm:$0xff] %v10070
        %10136 = vst [vmem:[%s10100 + $0x118] sm:$0xff] %v10071
        %10137 = vst [vmem:[%s10100 + $0x120] sm:$0xff] %v10072
        %10138 = vst [vmem:[%s10100 + $0x128] sm:$0xff] %v10073
        %10139 = vst [vmem:[%s10100 + $0x130] sm:$0xff] %v10074
        %10140 = vst [vmem:[%s10100 + $0x138] sm:$0xff] %v10075
        %10141 = vst [vmem:[%s10100 + $0x140] sm:$0xff] %v10076
        %10142 = vst [vmem:[%s10100 + $0x148] sm:$0xff] %v10077
        %10143 = vst [vmem:[%s10100 + $0x150] sm:$0xff] %v10078
        %10144 = vst [vmem:[%s10100 + $0x158] sm:$0xff] %v10079
        %10145 = vst [vmem:[%s10100 + $0x160] sm:$0xff] %v10080
        %10146 = vst [vmem:[%s10100 + $0x168] sm:$0xff] %v10081
        %10147 = vst [vmem:[%s10100 + $0x170] sm:$0xff] %v10082
        %10148 = vst [vmem:[%s10100 + $0x178] sm:$0xff] %v10083
        %10149 = vst [vmem:[%s10100 + $0x180] sm:$0xff] %v10084
        %10150 = vst [vmem:[%s10100 + $0x188] sm:$0xff] %v10085
        %10151 = vst [vmem:[%s10100 + $0x190] sm:$0xff] %v10086
        %10152 = vst [vmem:[%s10100 + $0x198] sm:$0xff] %v10087
        %10153 = vst [vmem:[%s10100 + $0x1a0] sm:$0xff] %v10088
        %10154 = vst [vmem:[%s10100 + $0x1a8] sm:$0xff] %v10089
        %10155 = vst [vmem:[%s10100 + $0x1b0] sm:$0xff] %v10090
        %10156 = vst [vmem:[%s10100 + $0x1b8] sm:$0xff] %v10091
        %10157 = vst [vmem:[%s10100 + $0x1c0] sm:$0xff] %v10092
        %10158 = vst [vmem:[%s10100 + $0x1c8] sm:$0xff] %v10093
        %10159 = vst [vmem:[%s10100 + $0x1d0] sm:$0xff] %v10094
        %10160 = vst [vmem:[%s10100 + $0x1d8] sm:$0xff] %v10095
        %10161 = vst [vmem:[%s10100 + $0x1e0] sm:$0xff] %v10096
        %10162 = vst [vmem:[%s10100 + $0x1e8] sm:$0xff] %v10097
        %10163 = vst [vmem:[%s10100 + $0x1f0] sm:$0xff] %v10098
        %10164 = vst [vmem:[%s10100 + $0x1f8] sm:$0xff] %v10099
        %10165 = vmatpush.bf16.msra.mxu0 %v9114
        %10166 = vmatpush.bf16.msra.mxu0 %v9112
        %10167 = vmatpush.bf16.msra.mxu0 %v9110
        %10168 = vmatpush.bf16.msra.mxu0 %v9108
        %10169 = vmatpush.bf16.msra.mxu0 %v9106
        %10170 = vmatpush.bf16.msra.mxu0 %v9104
        %10171 = vmatpush.bf16.msra.mxu0 %v9102
        %10172 = vmatpush.bf16.msra.mxu0 %v9100
        %10173 = vmatmul.bf16.gmra.mxu0 %v7520
        %v10174 = vpop.f32.mrf.mxu0
        %v10175 = vadd.f32 0.0, %v10174
        %v10176 = vpop.f32.mrf.mxu0
        %v10177 = vadd.f32 0.0, %v10176
        %10178 = vmatmul.bf16.gmra.mxu0 %v7522
        %v10179 = vpop.f32.mrf.mxu0
        %v10180 = vadd.f32 0.0, %v10179
        %v10181 = vpop.f32.mrf.mxu0
        %v10182 = vadd.f32 0.0, %v10181
        %10183 = vmatmul.bf16.gmra.mxu0 %v7524
        %v10184 = vpop.f32.mrf.mxu0
        %v10185 = vadd.f32 0.0, %v10184
        %v10186 = vpop.f32.mrf.mxu0
        %v10187 = vadd.f32 0.0, %v10186
        %10188 = vmatmul.bf16.gmra.mxu0 %v7526
        %v10189 = vpop.f32.mrf.mxu0
        %v10190 = vadd.f32 0.0, %v10189
        %v10191 = vpop.f32.mrf.mxu0
        %v10192 = vadd.f32 0.0, %v10191
        %10193 = vmatmul.bf16.gmra.mxu0 %v7528
        %v10194 = vpop.f32.mrf.mxu0
        %v10195 = vadd.f32 0.0, %v10194
        %v10196 = vpop.f32.mrf.mxu0
        %v10197 = vadd.f32 0.0, %v10196
        %10198 = vmatmul.bf16.gmra.mxu0 %v7530
        %v10199 = vpop.f32.mrf.mxu0
        %v10200 = vadd.f32 0.0, %v10199
        %v10201 = vpop.f32.mrf.mxu0
        %v10202 = vadd.f32 0.0, %v10201
        %10203 = vmatmul.bf16.gmra.mxu0 %v7532
        %v10204 = vpop.f32.mrf.mxu0
        %v10205 = vadd.f32 0.0, %v10204
        %v10206 = vpop.f32.mrf.mxu0
        %v10207 = vadd.f32 0.0, %v10206
        %10208 = vmatmul.bf16.gmra.mxu0 %v7534
        %v10209 = vpop.f32.mrf.mxu0
        %v10210 = vadd.f32 0.0, %v10209
        %v10211 = vpop.f32.mrf.mxu0
        %v10212 = vadd.f32 0.0, %v10211
        %10213 = vmatmul.bf16.gmra.mxu0 %v7536
        %v10214 = vpop.f32.mrf.mxu0
        %v10215 = vadd.f32 0.0, %v10214
        %v10216 = vpop.f32.mrf.mxu0
        %v10217 = vadd.f32 0.0, %v10216
        %10218 = vmatmul.bf16.gmra.mxu0 %v7538
        %v10219 = vpop.f32.mrf.mxu0
        %v10220 = vadd.f32 0.0, %v10219
        %v10221 = vpop.f32.mrf.mxu0
        %v10222 = vadd.f32 0.0, %v10221
        %10223 = vmatmul.bf16.gmra.mxu0 %v7540
        %v10224 = vpop.f32.mrf.mxu0
        %v10225 = vadd.f32 0.0, %v10224
        %v10226 = vpop.f32.mrf.mxu0
        %v10227 = vadd.f32 0.0, %v10226
        %10228 = vmatmul.bf16.gmra.mxu0 %v7542
        %v10229 = vpop.f32.mrf.mxu0
        %v10230 = vadd.f32 0.0, %v10229
        %v10231 = vpop.f32.mrf.mxu0
        %v10232 = vadd.f32 0.0, %v10231
        %10233 = vmatmul.bf16.gmra.mxu0 %v7544
        %v10234 = vpop.f32.mrf.mxu0
        %v10235 = vadd.f32 0.0, %v10234
        %v10236 = vpop.f32.mrf.mxu0
        %v10237 = vadd.f32 0.0, %v10236
        %10238 = vmatmul.bf16.gmra.mxu0 %v7546
        %v10239 = vpop.f32.mrf.mxu0
        %v10240 = vadd.f32 0.0, %v10239
        %v10241 = vpop.f32.mrf.mxu0
        %v10242 = vadd.f32 0.0, %v10241
        %10243 = vmatmul.bf16.gmra.mxu0 %v7548
        %v10244 = vpop.f32.mrf.mxu0
        %v10245 = vadd.f32 0.0, %v10244
        %v10246 = vpop.f32.mrf.mxu0
        %v10247 = vadd.f32 0.0, %v10246
        %10248 = vmatmul.bf16.gmra.mxu0 %v7550
        %v10249 = vpop.f32.mrf.mxu0
        %v10250 = vadd.f32 0.0, %v10249
        %v10251 = vpop.f32.mrf.mxu0
        %v10252 = vadd.f32 0.0, %v10251
        %10253 = vdwg.mxu0
        %10254 = vmatpush.bf16.msra.mxu0 %v9130
        %10255 = vmatpush.bf16.msra.mxu0 %v9128
        %10256 = vmatpush.bf16.msra.mxu0 %v9126
        %10257 = vmatpush.bf16.msra.mxu0 %v9124
        %10258 = vmatpush.bf16.msra.mxu0 %v9122
        %10259 = vmatpush.bf16.msra.mxu0 %v9120
        %10260 = vmatpush.bf16.msra.mxu0 %v9118
        %10261 = vmatpush.bf16.msra.mxu0 %v9116
        %10262 = vmatmul.bf16.gmra.mxu0 %v7521
        %v10263 = vpop.f32.mrf.mxu0
        %v10264 = vadd.f32 %v10175, %v10263
        %v10265 = vpop.f32.mrf.mxu0
        %v10266 = vadd.f32 %v10177, %v10265
        %10267 = vmatmul.bf16.gmra.mxu0 %v7523
        %v10268 = vpop.f32.mrf.mxu0
        %v10269 = vadd.f32 %v10180, %v10268
        %v10270 = vpop.f32.mrf.mxu0
        %v10271 = vadd.f32 %v10182, %v10270
        %10272 = vmatmul.bf16.gmra.mxu0 %v7525
        %v10273 = vpop.f32.mrf.mxu0
        %v10274 = vadd.f32 %v10185, %v10273
        %v10275 = vpop.f32.mrf.mxu0
        %v10276 = vadd.f32 %v10187, %v10275
        %10277 = vmatmul.bf16.gmra.mxu0 %v7527
        %v10278 = vpop.f32.mrf.mxu0
        %v10279 = vadd.f32 %v10190, %v10278
        %v10280 = vpop.f32.mrf.mxu0
        %v10281 = vadd.f32 %v10192, %v10280
        %10282 = vmatmul.bf16.gmra.mxu0 %v7529
        %v10283 = vpop.f32.mrf.mxu0
        %v10284 = vadd.f32 %v10195, %v10283
        %v10285 = vpop.f32.mrf.mxu0
        %v10286 = vadd.f32 %v10197, %v10285
        %10287 = vmatmul.bf16.gmra.mxu0 %v7531
        %v10288 = vpop.f32.mrf.mxu0
        %v10289 = vadd.f32 %v10200, %v10288
        %v10290 = vpop.f32.mrf.mxu0
        %v10291 = vadd.f32 %v10202, %v10290
        %10292 = vmatmul.bf16.gmra.mxu0 %v7533
        %v10293 = vpop.f32.mrf.mxu0
        %v10294 = vadd.f32 %v10205, %v10293
        %v10295 = vpop.f32.mrf.mxu0
        %v10296 = vadd.f32 %v10207, %v10295
        %10297 = vmatmul.bf16.gmra.mxu0 %v7535
        %v10298 = vpop.f32.mrf.mxu0
        %v10299 = vadd.f32 %v10210, %v10298
        %v10300 = vpop.f32.mrf.mxu0
        %v10301 = vadd.f32 %v10212, %v10300
        %10302 = vmatmul.bf16.gmra.mxu0 %v7537
        %v10303 = vpop.f32.mrf.mxu0
        %v10304 = vadd.f32 %v10215, %v10303
        %v10305 = vpop.f32.mrf.mxu0
        %v10306 = vadd.f32 %v10217, %v10305
        %10307 = vmatmul.bf16.gmra.mxu0 %v7539
        %v10308 = vpop.f32.mrf.mxu0
        %v10309 = vadd.f32 %v10220, %v10308
        %v10310 = vpop.f32.mrf.mxu0
        %v10311 = vadd.f32 %v10222, %v10310
        %10312 = vmatmul.bf16.gmra.mxu0 %v7541
        %v10313 = vpop.f32.mrf.mxu0
        %v10314 = vadd.f32 %v10225, %v10313
        %v10315 = vpop.f32.mrf.mxu0
        %v10316 = vadd.f32 %v10227, %v10315
        %10317 = vmatmul.bf16.gmra.mxu0 %v7543
        %v10318 = vpop.f32.mrf.mxu0
        %v10319 = vadd.f32 %v10230, %v10318
        %v10320 = vpop.f32.mrf.mxu0
        %v10321 = vadd.f32 %v10232, %v10320
        %10322 = vmatmul.bf16.gmra.mxu0 %v7545
        %v10323 = vpop.f32.mrf.mxu0
        %v10324 = vadd.f32 %v10235, %v10323
        %v10325 = vpop.f32.mrf.mxu0
        %v10326 = vadd.f32 %v10237, %v10325
        %10327 = vmatmul.bf16.gmra.mxu0 %v7547
        %v10328 = vpop.f32.mrf.mxu0
        %v10329 = vadd.f32 %v10240, %v10328
        %v10330 = vpop.f32.mrf.mxu0
        %v10331 = vadd.f32 %v10242, %v10330
        %10332 = vmatmul.bf16.gmra.mxu0 %v7549
        %v10333 = vpop.f32.mrf.mxu0
        %v10334 = vadd.f32 %v10245, %v10333
        %v10335 = vpop.f32.mrf.mxu0
        %v10336 = vadd.f32 %v10247, %v10335
        %10337 = vmatmul.bf16.gmra.mxu0 %v7551
        %v10338 = vpop.f32.mrf.mxu0
        %v10339 = vadd.f32 %v10250, %v10338
        %v10340 = vpop.f32.mrf.mxu0
        %v10341 = vadd.f32 %v10252, %v10340
        %10342 = vdwg.mxu0
        %10343 = vmatpush.bf16.msra.mxu0 %v9115
        %10344 = vmatpush.bf16.msra.mxu0 %v9113
        %10345 = vmatpush.bf16.msra.mxu0 %v9111
        %10346 = vmatpush.bf16.msra.mxu0 %v9109
        %10347 = vmatpush.bf16.msra.mxu0 %v9107
        %10348 = vmatpush.bf16.msra.mxu0 %v9105
        %10349 = vmatpush.bf16.msra.mxu0 %v9103
        %10350 = vmatpush.bf16.msra.mxu0 %v9101
        %10351 = vmatmul.bf16.gmra.mxu0 %v7520
        %v10352 = vpop.f32.mrf.mxu0
        %v10353 = vadd.f32 0.0, %v10352
        %v10354 = vpop.f32.mrf.mxu0
        %v10355 = vadd.f32 0.0, %v10354
        %10356 = vmatmul.bf16.gmra.mxu0 %v7522
        %v10357 = vpop.f32.mrf.mxu0
        %v10358 = vadd.f32 0.0, %v10357
        %v10359 = vpop.f32.mrf.mxu0
        %v10360 = vadd.f32 0.0, %v10359
        %10361 = vmatmul.bf16.gmra.mxu0 %v7524
        %v10362 = vpop.f32.mrf.mxu0
        %v10363 = vadd.f32 0.0, %v10362
        %v10364 = vpop.f32.mrf.mxu0
        %v10365 = vadd.f32 0.0, %v10364
        %10366 = vmatmul.bf16.gmra.mxu0 %v7526
        %v10367 = vpop.f32.mrf.mxu0
        %v10368 = vadd.f32 0.0, %v10367
        %v10369 = vpop.f32.mrf.mxu0
        %v10370 = vadd.f32 0.0, %v10369
        %10371 = vmatmul.bf16.gmra.mxu0 %v7528
        %v10372 = vpop.f32.mrf.mxu0
        %v10373 = vadd.f32 0.0, %v10372
        %v10374 = vpop.f32.mrf.mxu0
        %v10375 = vadd.f32 0.0, %v10374
        %10376 = vmatmul.bf16.gmra.mxu0 %v7530
        %v10377 = vpop.f32.mrf.mxu0
        %v10378 = vadd.f32 0.0, %v10377
        %v10379 = vpop.f32.mrf.mxu0
        %v10380 = vadd.f32 0.0, %v10379
        %10381 = vmatmul.bf16.gmra.mxu0 %v7532
        %v10382 = vpop.f32.mrf.mxu0
        %v10383 = vadd.f32 0.0, %v10382
        %v10384 = vpop.f32.mrf.mxu0
        %v10385 = vadd.f32 0.0, %v10384
        %10386 = vmatmul.bf16.gmra.mxu0 %v7534
        %v10387 = vpop.f32.mrf.mxu0
        %v10388 = vadd.f32 0.0, %v10387
        %v10389 = vpop.f32.mrf.mxu0
        %v10390 = vadd.f32 0.0, %v10389
        %10391 = vmatmul.bf16.gmra.mxu0 %v7536
        %v10392 = vpop.f32.mrf.mxu0
        %v10393 = vadd.f32 0.0, %v10392
        %v10394 = vpop.f32.mrf.mxu0
        %v10395 = vadd.f32 0.0, %v10394
        %10396 = vmatmul.bf16.gmra.mxu0 %v7538
        %v10397 = vpop.f32.mrf.mxu0
        %v10398 = vadd.f32 0.0, %v10397
        %v10399 = vpop.f32.mrf.mxu0
        %v10400 = vadd.f32 0.0, %v10399
        %10401 = vmatmul.bf16.gmra.mxu0 %v7540
        %v10402 = vpop.f32.mrf.mxu0
        %v10403 = vadd.f32 0.0, %v10402
        %v10404 = vpop.f32.mrf.mxu0
        %v10405 = vadd.f32 0.0, %v10404
        %10406 = vmatmul.bf16.gmra.mxu0 %v7542
        %v10407 = vpop.f32.mrf.mxu0
        %v10408 = vadd.f32 0.0, %v10407
        %v10409 = vpop.f32.mrf.mxu0
        %v10410 = vadd.f32 0.0, %v10409
        %10411 = vmatmul.bf16.gmra.mxu0 %v7544
        %v10412 = vpop.f32.mrf.mxu0
        %v10413 = vadd.f32 0.0, %v10412
        %v10414 = vpop.f32.mrf.mxu0
        %v10415 = vadd.f32 0.0, %v10414
        %10416 = vmatmul.bf16.gmra.mxu0 %v7546
        %v10417 = vpop.f32.mrf.mxu0
        %v10418 = vadd.f32 0.0, %v10417
        %v10419 = vpop.f32.mrf.mxu0
        %v10420 = vadd.f32 0.0, %v10419
        %10421 = vmatmul.bf16.gmra.mxu0 %v7548
        %v10422 = vpop.f32.mrf.mxu0
        %v10423 = vadd.f32 0.0, %v10422
        %v10424 = vpop.f32.mrf.mxu0
        %v10425 = vadd.f32 0.0, %v10424
        %10426 = vmatmul.bf16.gmra.mxu0 %v7550
        %v10427 = vpop.f32.mrf.mxu0
        %v10428 = vadd.f32 0.0, %v10427
        %v10429 = vpop.f32.mrf.mxu0
        %v10430 = vadd.f32 0.0, %v10429
        %10431 = vdwg.mxu0
        %10432 = vmatpush.bf16.msra.mxu0 %v9131
        %10433 = vmatpush.bf16.msra.mxu0 %v9129
        %10434 = vmatpush.bf16.msra.mxu0 %v9127
        %10435 = vmatpush.bf16.msra.mxu0 %v9125
        %10436 = vmatpush.bf16.msra.mxu0 %v9123
        %10437 = vmatpush.bf16.msra.mxu0 %v9121
        %10438 = vmatpush.bf16.msra.mxu0 %v9119
        %10439 = vmatpush.bf16.msra.mxu0 %v9117
        %10440 = vmatmul.bf16.gmra.mxu0 %v7521
        %v10441 = vpop.f32.mrf.mxu0
        %v10442 = vadd.f32 %v10353, %v10441
        %v10443 = vpop.f32.mrf.mxu0
        %v10444 = vadd.f32 %v10355, %v10443
        %10445 = vmatmul.bf16.gmra.mxu0 %v7523
        %v10446 = vpop.f32.mrf.mxu0
        %v10447 = vadd.f32 %v10358, %v10446
        %v10448 = vpop.f32.mrf.mxu0
        %v10449 = vadd.f32 %v10360, %v10448
        %10450 = vmatmul.bf16.gmra.mxu0 %v7525
        %v10451 = vpop.f32.mrf.mxu0
        %v10452 = vadd.f32 %v10363, %v10451
        %v10453 = vpop.f32.mrf.mxu0
        %v10454 = vadd.f32 %v10365, %v10453
        %10455 = vmatmul.bf16.gmra.mxu0 %v7527
        %v10456 = vpop.f32.mrf.mxu0
        %v10457 = vadd.f32 %v10368, %v10456
        %v10458 = vpop.f32.mrf.mxu0
        %v10459 = vadd.f32 %v10370, %v10458
        %10460 = vmatmul.bf16.gmra.mxu0 %v7529
        %v10461 = vpop.f32.mrf.mxu0
        %v10462 = vadd.f32 %v10373, %v10461
        %v10463 = vpop.f32.mrf.mxu0
        %v10464 = vadd.f32 %v10375, %v10463
        %10465 = vmatmul.bf16.gmra.mxu0 %v7531
        %v10466 = vpop.f32.mrf.mxu0
        %v10467 = vadd.f32 %v10378, %v10466
        %v10468 = vpop.f32.mrf.mxu0
        %v10469 = vadd.f32 %v10380, %v10468
        %10470 = vmatmul.bf16.gmra.mxu0 %v7533
        %v10471 = vpop.f32.mrf.mxu0
        %v10472 = vadd.f32 %v10383, %v10471
        %v10473 = vpop.f32.mrf.mxu0
        %v10474 = vadd.f32 %v10385, %v10473
        %10475 = vmatmul.bf16.gmra.mxu0 %v7535
        %v10476 = vpop.f32.mrf.mxu0
        %v10477 = vadd.f32 %v10388, %v10476
        %v10478 = vpop.f32.mrf.mxu0
        %v10479 = vadd.f32 %v10390, %v10478
        %10480 = vmatmul.bf16.gmra.mxu0 %v7537
        %v10481 = vpop.f32.mrf.mxu0
        %v10482 = vadd.f32 %v10393, %v10481
        %v10483 = vpop.f32.mrf.mxu0
        %v10484 = vadd.f32 %v10395, %v10483
        %10485 = vmatmul.bf16.gmra.mxu0 %v7539
        %v10486 = vpop.f32.mrf.mxu0
        %v10487 = vadd.f32 %v10398, %v10486
        %v10488 = vpop.f32.mrf.mxu0
        %v10489 = vadd.f32 %v10400, %v10488
        %10490 = vmatmul.bf16.gmra.mxu0 %v7541
        %v10491 = vpop.f32.mrf.mxu0
        %v10492 = vadd.f32 %v10403, %v10491
        %v10493 = vpop.f32.mrf.mxu0
        %v10494 = vadd.f32 %v10405, %v10493
        %10495 = vmatmul.bf16.gmra.mxu0 %v7543
        %v10496 = vpop.f32.mrf.mxu0
        %v10497 = vadd.f32 %v10408, %v10496
        %v10498 = vpop.f32.mrf.mxu0
        %v10499 = vadd.f32 %v10410, %v10498
        %10500 = vmatmul.bf16.gmra.mxu0 %v7545
        %v10501 = vpop.f32.mrf.mxu0
        %v10502 = vadd.f32 %v10413, %v10501
        %v10503 = vpop.f32.mrf.mxu0
        %v10504 = vadd.f32 %v10415, %v10503
        %10505 = vmatmul.bf16.gmra.mxu0 %v7547
        %v10506 = vpop.f32.mrf.mxu0
        %v10507 = vadd.f32 %v10418, %v10506
        %v10508 = vpop.f32.mrf.mxu0
        %v10509 = vadd.f32 %v10420, %v10508
        %10510 = vmatmul.bf16.gmra.mxu0 %v7549
        %v10511 = vpop.f32.mrf.mxu0
        %v10512 = vadd.f32 %v10423, %v10511
        %v10513 = vpop.f32.mrf.mxu0
        %v10514 = vadd.f32 %v10425, %v10513
        %10515 = vmatmul.bf16.gmra.mxu0 %v7551
        %v10516 = vpop.f32.mrf.mxu0
        %v10517 = vadd.f32 %v10428, %v10516
        %v10518 = vpop.f32.mrf.mxu0
        %v10519 = vadd.f32 %v10430, %v10518
        %10520 = vdwg.mxu0
        %10521 = vmatpush.bf16.msra.mxu0 %v9630
        %10522 = vmatpush.bf16.msra.mxu0 %v9628
        %10523 = vmatpush.bf16.msra.mxu0 %v9626
        %10524 = vmatpush.bf16.msra.mxu0 %v9624
        %10525 = vmatpush.bf16.msra.mxu0 %v9622
        %10526 = vmatpush.bf16.msra.mxu0 %v9620
        %10527 = vmatpush.bf16.msra.mxu0 %v9618
        %10528 = vmatpush.bf16.msra.mxu0 %v9616
        %10529 = vmatmul.bf16.gmra.mxu0 %v6844
        %v10530 = vpop.f32.mrf.mxu0
        %v10531 = vadd.f32 %v10264, %v10530
        %v10532 = vpop.f32.mrf.mxu0
        %v10533 = vadd.f32 %v10266, %v10532
        %10534 = vmatmul.bf16.gmra.mxu0 %v6846
        %v10535 = vpop.f32.mrf.mxu0
        %v10536 = vadd.f32 %v10269, %v10535
        %v10537 = vpop.f32.mrf.mxu0
        %v10538 = vadd.f32 %v10271, %v10537
        %10539 = vmatmul.bf16.gmra.mxu0 %v6848
        %v10540 = vpop.f32.mrf.mxu0
        %v10541 = vadd.f32 %v10274, %v10540
        %v10542 = vpop.f32.mrf.mxu0
        %v10543 = vadd.f32 %v10276, %v10542
        %10544 = vmatmul.bf16.gmra.mxu0 %v6850
        %v10545 = vpop.f32.mrf.mxu0
        %v10546 = vadd.f32 %v10279, %v10545
        %v10547 = vpop.f32.mrf.mxu0
        %v10548 = vadd.f32 %v10281, %v10547
        %10549 = vmatmul.bf16.gmra.mxu0 %v6852
        %v10550 = vpop.f32.mrf.mxu0
        %v10551 = vadd.f32 %v10284, %v10550
        %v10552 = vpop.f32.mrf.mxu0
        %v10553 = vadd.f32 %v10286, %v10552
        %10554 = vmatmul.bf16.gmra.mxu0 %v6854
        %v10555 = vpop.f32.mrf.mxu0
        %v10556 = vadd.f32 %v10289, %v10555
        %v10557 = vpop.f32.mrf.mxu0
        %v10558 = vadd.f32 %v10291, %v10557
        %10559 = vmatmul.bf16.gmra.mxu0 %v6856
        %v10560 = vpop.f32.mrf.mxu0
        %v10561 = vadd.f32 %v10294, %v10560
        %v10562 = vpop.f32.mrf.mxu0
        %v10563 = vadd.f32 %v10296, %v10562
        %10564 = vmatmul.bf16.gmra.mxu0 %v6858
        %v10565 = vpop.f32.mrf.mxu0
        %v10566 = vadd.f32 %v10299, %v10565
        %v10567 = vpop.f32.mrf.mxu0
        %v10568 = vadd.f32 %v10301, %v10567
        %10569 = vmatmul.bf16.gmra.mxu0 %v6860
        %v10570 = vpop.f32.mrf.mxu0
        %v10571 = vadd.f32 %v10304, %v10570
        %v10572 = vpop.f32.mrf.mxu0
        %v10573 = vadd.f32 %v10306, %v10572
        %10574 = vmatmul.bf16.gmra.mxu0 %v6862
        %v10575 = vpop.f32.mrf.mxu0
        %v10576 = vadd.f32 %v10309, %v10575
        %v10577 = vpop.f32.mrf.mxu0
        %v10578 = vadd.f32 %v10311, %v10577
        %10579 = vmatmul.bf16.gmra.mxu0 %v6864
        %v10580 = vpop.f32.mrf.mxu0
        %v10581 = vadd.f32 %v10314, %v10580
        %v10582 = vpop.f32.mrf.mxu0
        %v10583 = vadd.f32 %v10316, %v10582
        %10584 = vmatmul.bf16.gmra.mxu0 %v6866
        %v10585 = vpop.f32.mrf.mxu0
        %v10586 = vadd.f32 %v10319, %v10585
        %v10587 = vpop.f32.mrf.mxu0
        %v10588 = vadd.f32 %v10321, %v10587
        %10589 = vmatmul.bf16.gmra.mxu0 %v6868
        %v10590 = vpop.f32.mrf.mxu0
        %v10591 = vadd.f32 %v10324, %v10590
        %v10592 = vpop.f32.mrf.mxu0
        %v10593 = vadd.f32 %v10326, %v10592
        %10594 = vmatmul.bf16.gmra.mxu0 %v6870
        %v10595 = vpop.f32.mrf.mxu0
        %v10596 = vadd.f32 %v10329, %v10595
        %v10597 = vpop.f32.mrf.mxu0
        %v10598 = vadd.f32 %v10331, %v10597
        %10599 = vmatmul.bf16.gmra.mxu0 %v6872
        %v10600 = vpop.f32.mrf.mxu0
        %v10601 = vadd.f32 %v10334, %v10600
        %v10602 = vpop.f32.mrf.mxu0
        %v10603 = vadd.f32 %v10336, %v10602
        %10604 = vmatmul.bf16.gmra.mxu0 %v6874
        %v10605 = vpop.f32.mrf.mxu0
        %v10606 = vadd.f32 %v10339, %v10605
        %v10607 = vpop.f32.mrf.mxu0
        %v10608 = vadd.f32 %v10341, %v10607
        %10609 = vdwg.mxu0
        %10610 = vmatpush.bf16.msra.mxu0 %v9646
        %10611 = vmatpush.bf16.msra.mxu0 %v9644
        %10612 = vmatpush.bf16.msra.mxu0 %v9642
        %10613 = vmatpush.bf16.msra.mxu0 %v9640
        %10614 = vmatpush.bf16.msra.mxu0 %v9638
        %10615 = vmatpush.bf16.msra.mxu0 %v9636
        %10616 = vmatpush.bf16.msra.mxu0 %v9634
        %10617 = vmatpush.bf16.msra.mxu0 %v9632
        %10618 = vmatmul.bf16.gmra.mxu0 %v6845
        %v10619 = vpop.f32.mrf.mxu0
        %v10620 = vadd.f32 %v10531, %v10619
        %v10621 = vpop.f32.mrf.mxu0
        %v10622 = vadd.f32 %v10533, %v10621
        %10623 = vmatmul.bf16.gmra.mxu0 %v6847
        %v10624 = vpop.f32.mrf.mxu0
        %v10625 = vadd.f32 %v10536, %v10624
        %v10626 = vpop.f32.mrf.mxu0
        %v10627 = vadd.f32 %v10538, %v10626
        %10628 = vmatmul.bf16.gmra.mxu0 %v6849
        %v10629 = vpop.f32.mrf.mxu0
        %v10630 = vadd.f32 %v10541, %v10629
        %v10631 = vpop.f32.mrf.mxu0
        %v10632 = vadd.f32 %v10543, %v10631
        %10633 = vmatmul.bf16.gmra.mxu0 %v6851
        %v10634 = vpop.f32.mrf.mxu0
        %v10635 = vadd.f32 %v10546, %v10634
        %v10636 = vpop.f32.mrf.mxu0
        %v10637 = vadd.f32 %v10548, %v10636
        %10638 = vmatmul.bf16.gmra.mxu0 %v6853
        %v10639 = vpop.f32.mrf.mxu0
        %v10640 = vadd.f32 %v10551, %v10639
        %v10641 = vpop.f32.mrf.mxu0
        %v10642 = vadd.f32 %v10553, %v10641
        %10643 = vmatmul.bf16.gmra.mxu0 %v6855
        %v10644 = vpop.f32.mrf.mxu0
        %v10645 = vadd.f32 %v10556, %v10644
        %v10646 = vpop.f32.mrf.mxu0
        %v10647 = vadd.f32 %v10558, %v10646
        %10648 = vmatmul.bf16.gmra.mxu0 %v6857
        %v10649 = vpop.f32.mrf.mxu0
        %v10650 = vadd.f32 %v10561, %v10649
        %v10651 = vpop.f32.mrf.mxu0
        %v10652 = vadd.f32 %v10563, %v10651
        %10653 = vmatmul.bf16.gmra.mxu0 %v6859
        %v10654 = vpop.f32.mrf.mxu0
        %v10655 = vadd.f32 %v10566, %v10654
        %v10656 = vpop.f32.mrf.mxu0
        %v10657 = vadd.f32 %v10568, %v10656
        %10658 = vmatmul.bf16.gmra.mxu0 %v6861
        %v10659 = vpop.f32.mrf.mxu0
        %v10660 = vadd.f32 %v10571, %v10659
        %v10661 = vpop.f32.mrf.mxu0
        %v10662 = vadd.f32 %v10573, %v10661
        %10663 = vmatmul.bf16.gmra.mxu0 %v6863
        %v10664 = vpop.f32.mrf.mxu0
        %v10665 = vadd.f32 %v10576, %v10664
        %v10666 = vpop.f32.mrf.mxu0
        %v10667 = vadd.f32 %v10578, %v10666
        %10668 = vmatmul.bf16.gmra.mxu0 %v6865
        %v10669 = vpop.f32.mrf.mxu0
        %v10670 = vadd.f32 %v10581, %v10669
        %v10671 = vpop.f32.mrf.mxu0
        %v10672 = vadd.f32 %v10583, %v10671
        %10673 = vmatmul.bf16.gmra.mxu0 %v6867
        %v10674 = vpop.f32.mrf.mxu0
        %v10675 = vadd.f32 %v10586, %v10674
        %v10676 = vpop.f32.mrf.mxu0
        %v10677 = vadd.f32 %v10588, %v10676
        %10678 = vmatmul.bf16.gmra.mxu0 %v6869
        %v10679 = vpop.f32.mrf.mxu0
        %v10680 = vadd.f32 %v10591, %v10679
        %v10681 = vpop.f32.mrf.mxu0
        %v10682 = vadd.f32 %v10593, %v10681
        %10683 = vmatmul.bf16.gmra.mxu0 %v6871
        %v10684 = vpop.f32.mrf.mxu0
        %v10685 = vadd.f32 %v10596, %v10684
        %v10686 = vpop.f32.mrf.mxu0
        %v10687 = vadd.f32 %v10598, %v10686
        %10688 = vmatmul.bf16.gmra.mxu0 %v6873
        %v10689 = vpop.f32.mrf.mxu0
        %v10690 = vadd.f32 %v10601, %v10689
        %v10691 = vpop.f32.mrf.mxu0
        %v10692 = vadd.f32 %v10603, %v10691
        %10693 = vmatmul.bf16.gmra.mxu0 %v6875
        %v10694 = vpop.f32.mrf.mxu0
        %v10695 = vadd.f32 %v10606, %v10694
        %v10696 = vpop.f32.mrf.mxu0
        %v10697 = vadd.f32 %v10608, %v10696
        %10698 = vdwg.mxu0
        %10699 = vmatpush.bf16.msra.mxu0 %v9631
        %10700 = vmatpush.bf16.msra.mxu0 %v9629
        %10701 = vmatpush.bf16.msra.mxu0 %v9627
        %10702 = vmatpush.bf16.msra.mxu0 %v9625
        %10703 = vmatpush.bf16.msra.mxu0 %v9623
        %10704 = vmatpush.bf16.msra.mxu0 %v9621
        %10705 = vmatpush.bf16.msra.mxu0 %v9619
        %10706 = vmatpush.bf16.msra.mxu0 %v9617
        %10707 = vmatmul.bf16.gmra.mxu0 %v6844
        %v10708 = vpop.f32.mrf.mxu0
        %v10709 = vadd.f32 %v10442, %v10708
        %v10710 = vpop.f32.mrf.mxu0
        %v10711 = vadd.f32 %v10444, %v10710
        %10712 = vmatmul.bf16.gmra.mxu0 %v6846
        %v10713 = vpop.f32.mrf.mxu0
        %v10714 = vadd.f32 %v10447, %v10713
        %v10715 = vpop.f32.mrf.mxu0
        %v10716 = vadd.f32 %v10449, %v10715
        %10717 = vmatmul.bf16.gmra.mxu0 %v6848
        %v10718 = vpop.f32.mrf.mxu0
        %v10719 = vadd.f32 %v10452, %v10718
        %v10720 = vpop.f32.mrf.mxu0
        %v10721 = vadd.f32 %v10454, %v10720
        %10722 = vmatmul.bf16.gmra.mxu0 %v6850
        %v10723 = vpop.f32.mrf.mxu0
        %v10724 = vadd.f32 %v10457, %v10723
        %v10725 = vpop.f32.mrf.mxu0
        %v10726 = vadd.f32 %v10459, %v10725
        %10727 = vmatmul.bf16.gmra.mxu0 %v6852
        %v10728 = vpop.f32.mrf.mxu0
        %v10729 = vadd.f32 %v10462, %v10728
        %v10730 = vpop.f32.mrf.mxu0
        %v10731 = vadd.f32 %v10464, %v10730
        %10732 = vmatmul.bf16.gmra.mxu0 %v6854
        %v10733 = vpop.f32.mrf.mxu0
        %v10734 = vadd.f32 %v10467, %v10733
        %v10735 = vpop.f32.mrf.mxu0
        %v10736 = vadd.f32 %v10469, %v10735
        %10737 = vmatmul.bf16.gmra.mxu0 %v6856
        %v10738 = vpop.f32.mrf.mxu0
        %v10739 = vadd.f32 %v10472, %v10738
        %v10740 = vpop.f32.mrf.mxu0
        %v10741 = vadd.f32 %v10474, %v10740
        %10742 = vmatmul.bf16.gmra.mxu0 %v6858
        %v10743 = vpop.f32.mrf.mxu0
        %v10744 = vadd.f32 %v10477, %v10743
        %v10745 = vpop.f32.mrf.mxu0
        %v10746 = vadd.f32 %v10479, %v10745
        %10747 = vmatmul.bf16.gmra.mxu0 %v6860
        %v10748 = vpop.f32.mrf.mxu0
        %v10749 = vadd.f32 %v10482, %v10748
        %v10750 = vpop.f32.mrf.mxu0
        %v10751 = vadd.f32 %v10484, %v10750
        %10752 = vmatmul.bf16.gmra.mxu0 %v6862
        %v10753 = vpop.f32.mrf.mxu0
        %v10754 = vadd.f32 %v10487, %v10753
        %v10755 = vpop.f32.mrf.mxu0
        %v10756 = vadd.f32 %v10489, %v10755
        %10757 = vmatmul.bf16.gmra.mxu0 %v6864
        %v10758 = vpop.f32.mrf.mxu0
        %v10759 = vadd.f32 %v10492, %v10758
        %v10760 = vpop.f32.mrf.mxu0
        %v10761 = vadd.f32 %v10494, %v10760
        %10762 = vmatmul.bf16.gmra.mxu0 %v6866
        %v10763 = vpop.f32.mrf.mxu0
        %v10764 = vadd.f32 %v10497, %v10763
        %v10765 = vpop.f32.mrf.mxu0
        %v10766 = vadd.f32 %v10499, %v10765
        %10767 = vmatmul.bf16.gmra.mxu0 %v6868
        %v10768 = vpop.f32.mrf.mxu0
        %v10769 = vadd.f32 %v10502, %v10768
        %v10770 = vpop.f32.mrf.mxu0
        %v10771 = vadd.f32 %v10504, %v10770
        %10772 = vmatmul.bf16.gmra.mxu0 %v6870
        %v10773 = vpop.f32.mrf.mxu0
        %v10774 = vadd.f32 %v10507, %v10773
        %v10775 = vpop.f32.mrf.mxu0
        %v10776 = vadd.f32 %v10509, %v10775
        %10777 = vmatmul.bf16.gmra.mxu0 %v6872
        %v10778 = vpop.f32.mrf.mxu0
        %v10779 = vadd.f32 %v10512, %v10778
        %v10780 = vpop.f32.mrf.mxu0
        %v10781 = vadd.f32 %v10514, %v10780
        %10782 = vmatmul.bf16.gmra.mxu0 %v6874
        %v10783 = vpop.f32.mrf.mxu0
        %v10784 = vadd.f32 %v10517, %v10783
        %v10785 = vpop.f32.mrf.mxu0
        %v10786 = vadd.f32 %v10519, %v10785
        %10787 = vdwg.mxu0
        %10788 = vmatpush.bf16.msra.mxu0 %v9647
        %10789 = vmatpush.bf16.msra.mxu0 %v9645
        %10790 = vmatpush.bf16.msra.mxu0 %v9643
        %10791 = vmatpush.bf16.msra.mxu0 %v9641
        %10792 = vmatpush.bf16.msra.mxu0 %v9639
        %10793 = vmatpush.bf16.msra.mxu0 %v9637
        %10794 = vmatpush.bf16.msra.mxu0 %v9635
        %10795 = vmatpush.bf16.msra.mxu0 %v9633
        %10796 = vmatmul.bf16.gmra.mxu0 %v6845
        %v10797 = vpop.f32.mrf.mxu0
        %v10798 = vadd.f32 %v10709, %v10797
        %v10799 = vpop.f32.mrf.mxu0
        %v10800 = vadd.f32 %v10711, %v10799
        %10801 = vmatmul.bf16.gmra.mxu0 %v6847
        %v10802 = vpop.f32.mrf.mxu0
        %v10803 = vadd.f32 %v10714, %v10802
        %v10804 = vpop.f32.mrf.mxu0
        %v10805 = vadd.f32 %v10716, %v10804
        %10806 = vmatmul.bf16.gmra.mxu0 %v6849
        %v10807 = vpop.f32.mrf.mxu0
        %v10808 = vadd.f32 %v10719, %v10807
        %v10809 = vpop.f32.mrf.mxu0
        %v10810 = vadd.f32 %v10721, %v10809
        %10811 = vmatmul.bf16.gmra.mxu0 %v6851
        %v10812 = vpop.f32.mrf.mxu0
        %v10813 = vadd.f32 %v10724, %v10812
        %v10814 = vpop.f32.mrf.mxu0
        %v10815 = vadd.f32 %v10726, %v10814
        %10816 = vmatmul.bf16.gmra.mxu0 %v6853
        %v10817 = vpop.f32.mrf.mxu0
        %v10818 = vadd.f32 %v10729, %v10817
        %v10819 = vpop.f32.mrf.mxu0
        %v10820 = vadd.f32 %v10731, %v10819
        %10821 = vmatmul.bf16.gmra.mxu0 %v6855
        %v10822 = vpop.f32.mrf.mxu0
        %v10823 = vadd.f32 %v10734, %v10822
        %v10824 = vpop.f32.mrf.mxu0
        %v10825 = vadd.f32 %v10736, %v10824
        %10826 = vmatmul.bf16.gmra.mxu0 %v6857
        %v10827 = vpop.f32.mrf.mxu0
        %v10828 = vadd.f32 %v10739, %v10827
        %v10829 = vpop.f32.mrf.mxu0
        %v10830 = vadd.f32 %v10741, %v10829
        %10831 = vmatmul.bf16.gmra.mxu0 %v6859
        %v10832 = vpop.f32.mrf.mxu0
        %v10833 = vadd.f32 %v10744, %v10832
        %v10834 = vpop.f32.mrf.mxu0
        %v10835 = vadd.f32 %v10746, %v10834
        %10836 = vmatmul.bf16.gmra.mxu0 %v6861
        %v10837 = vpop.f32.mrf.mxu0
        %v10838 = vadd.f32 %v10749, %v10837
        %v10839 = vpop.f32.mrf.mxu0
        %v10840 = vadd.f32 %v10751, %v10839
        %10841 = vmatmul.bf16.gmra.mxu0 %v6863
        %v10842 = vpop.f32.mrf.mxu0
        %v10843 = vadd.f32 %v10754, %v10842
        %v10844 = vpop.f32.mrf.mxu0
        %v10845 = vadd.f32 %v10756, %v10844
        %10846 = vmatmul.bf16.gmra.mxu0 %v6865
        %v10847 = vpop.f32.mrf.mxu0
        %v10848 = vadd.f32 %v10759, %v10847
        %v10849 = vpop.f32.mrf.mxu0
        %v10850 = vadd.f32 %v10761, %v10849
        %10851 = vmatmul.bf16.gmra.mxu0 %v6867
        %v10852 = vpop.f32.mrf.mxu0
        %v10853 = vadd.f32 %v10764, %v10852
        %v10854 = vpop.f32.mrf.mxu0
        %v10855 = vadd.f32 %v10766, %v10854
        %10856 = vmatmul.bf16.gmra.mxu0 %v6869
        %v10857 = vpop.f32.mrf.mxu0
        %v10858 = vadd.f32 %v10769, %v10857
        %v10859 = vpop.f32.mrf.mxu0
        %v10860 = vadd.f32 %v10771, %v10859
        %10861 = vmatmul.bf16.gmra.mxu0 %v6871
        %v10862 = vpop.f32.mrf.mxu0
        %v10863 = vadd.f32 %v10774, %v10862
        %v10864 = vpop.f32.mrf.mxu0
        %v10865 = vadd.f32 %v10776, %v10864
        %10866 = vmatmul.bf16.gmra.mxu0 %v6873
        %v10867 = vpop.f32.mrf.mxu0
        %v10868 = vadd.f32 %v10779, %v10867
        %v10869 = vpop.f32.mrf.mxu0
        %v10870 = vadd.f32 %v10781, %v10869
        %10871 = vmatmul.bf16.gmra.mxu0 %v6875
        %v10872 = vpop.f32.mrf.mxu0
        %v10873 = vadd.f32 %v10784, %v10872
        %v10874 = vpop.f32.mrf.mxu0
        %v10875 = vadd.f32 %v10786, %v10874
        %10876 = vdwg.mxu0
        %s10877 = scalar_lea.vmem %s456, 512 [#allocation15]
        %10878 = vst [vmem:[%s10877] sm:$0xff] %v10620
        %10879 = vst [vmem:[%s10877 + $0x8] sm:$0xff] %v10798
        %10880 = vst [vmem:[%s10877 + $0x10] sm:$0xff] %v10622
        %10881 = vst [vmem:[%s10877 + $0x18] sm:$0xff] %v10800
        %10882 = vst [vmem:[%s10877 + $0x20] sm:$0xff] %v10625
        %10883 = vst [vmem:[%s10877 + $0x28] sm:$0xff] %v10803
        %10884 = vst [vmem:[%s10877 + $0x30] sm:$0xff] %v10627
        %10885 = vst [vmem:[%s10877 + $0x38] sm:$0xff] %v10805
        %10886 = vst [vmem:[%s10877 + $0x40] sm:$0xff] %v10630
        %10887 = vst [vmem:[%s10877 + $0x48] sm:$0xff] %v10808
        %10888 = vst [vmem:[%s10877 + $0x50] sm:$0xff] %v10632
        %10889 = vst [vmem:[%s10877 + $0x58] sm:$0xff] %v10810
        %10890 = vst [vmem:[%s10877 + $0x60] sm:$0xff] %v10635
        %10891 = vst [vmem:[%s10877 + $0x68] sm:$0xff] %v10813
        %10892 = vst [vmem:[%s10877 + $0x70] sm:$0xff] %v10637
        %10893 = vst [vmem:[%s10877 + $0x78] sm:$0xff] %v10815
        %10894 = vst [vmem:[%s10877 + $0x80] sm:$0xff] %v10640
        %10895 = vst [vmem:[%s10877 + $0x88] sm:$0xff] %v10818
        %10896 = vst [vmem:[%s10877 + $0x90] sm:$0xff] %v10642
        %10897 = vst [vmem:[%s10877 + $0x98] sm:$0xff] %v10820
        %10898 = vst [vmem:[%s10877 + $0xa0] sm:$0xff] %v10645
        %10899 = vst [vmem:[%s10877 + $0xa8] sm:$0xff] %v10823
        %10900 = vst [vmem:[%s10877 + $0xb0] sm:$0xff] %v10647
        %10901 = vst [vmem:[%s10877 + $0xb8] sm:$0xff] %v10825
        %10902 = vst [vmem:[%s10877 + $0xc0] sm:$0xff] %v10650
        %10903 = vst [vmem:[%s10877 + $0xc8] sm:$0xff] %v10828
        %10904 = vst [vmem:[%s10877 + $0xd0] sm:$0xff] %v10652
        %10905 = vst [vmem:[%s10877 + $0xd8] sm:$0xff] %v10830
        %10906 = vst [vmem:[%s10877 + $0xe0] sm:$0xff] %v10655
        %10907 = vst [vmem:[%s10877 + $0xe8] sm:$0xff] %v10833
        %10908 = vst [vmem:[%s10877 + $0xf0] sm:$0xff] %v10657
        %10909 = vst [vmem:[%s10877 + $0xf8] sm:$0xff] %v10835
        %10910 = vst [vmem:[%s10877 + $0x100] sm:$0xff] %v10660
        %10911 = vst [vmem:[%s10877 + $0x108] sm:$0xff] %v10838
        %10912 = vst [vmem:[%s10877 + $0x110] sm:$0xff] %v10662
        %10913 = vst [vmem:[%s10877 + $0x118] sm:$0xff] %v10840
        %10914 = vst [vmem:[%s10877 + $0x120] sm:$0xff] %v10665
        %10915 = vst [vmem:[%s10877 + $0x128] sm:$0xff] %v10843
        %10916 = vst [vmem:[%s10877 + $0x130] sm:$0xff] %v10667
        %10917 = vst [vmem:[%s10877 + $0x138] sm:$0xff] %v10845
        %10918 = vst [vmem:[%s10877 + $0x140] sm:$0xff] %v10670
        %10919 = vst [vmem:[%s10877 + $0x148] sm:$0xff] %v10848
        %10920 = vst [vmem:[%s10877 + $0x150] sm:$0xff] %v10672
        %10921 = vst [vmem:[%s10877 + $0x158] sm:$0xff] %v10850
        %10922 = vst [vmem:[%s10877 + $0x160] sm:$0xff] %v10675
        %10923 = vst [vmem:[%s10877 + $0x168] sm:$0xff] %v10853
        %10924 = vst [vmem:[%s10877 + $0x170] sm:$0xff] %v10677
        %10925 = vst [vmem:[%s10877 + $0x178] sm:$0xff] %v10855
        %10926 = vst [vmem:[%s10877 + $0x180] sm:$0xff] %v10680
        %10927 = vst [vmem:[%s10877 + $0x188] sm:$0xff] %v10858
        %10928 = vst [vmem:[%s10877 + $0x190] sm:$0xff] %v10682
        %10929 = vst [vmem:[%s10877 + $0x198] sm:$0xff] %v10860
        %10930 = vst [vmem:[%s10877 + $0x1a0] sm:$0xff] %v10685
        %10931 = vst [vmem:[%s10877 + $0x1a8] sm:$0xff] %v10863
        %10932 = vst [vmem:[%s10877 + $0x1b0] sm:$0xff] %v10687
        %10933 = vst [vmem:[%s10877 + $0x1b8] sm:$0xff] %v10865
        %10934 = vst [vmem:[%s10877 + $0x1c0] sm:$0xff] %v10690
        %10935 = vst [vmem:[%s10877 + $0x1c8] sm:$0xff] %v10868
        %10936 = vst [vmem:[%s10877 + $0x1d0] sm:$0xff] %v10692
        %10937 = vst [vmem:[%s10877 + $0x1d8] sm:$0xff] %v10870
        %10938 = vst [vmem:[%s10877 + $0x1e0] sm:$0xff] %v10695
        %10939 = vst [vmem:[%s10877 + $0x1e8] sm:$0xff] %v10873
        %10940 = vst [vmem:[%s10877 + $0x1f0] sm:$0xff] %v10697
        %10941 = vst [vmem:[%s10877 + $0x1f8] sm:$0xff] %v10875
        %s10942 = sand.u32 %s208, 1
        %s10943 = scalar_lea.sflag [#allocation4], %s10942
        %s10944 = sand.u32 %s208, 1
        %s10945 = smul.addr %s10944, 1024
        %s10946 = scalar_lea.vmem [#allocation14], %s10945
        %s10947 = sand.u32 %s236, 1
        %s10948 = scalar_lea.sflag [#allocation16], %s10947
        %s10949 = sand.u32 %s236, 1
        %s10950 = smul.addr %s10949, 1024
        %s10951 = scalar_lea.vmem [#allocation15], %s10950
        // Predicated region
        $region77: #{tpu_custom_call.1} parent=47 // pred_check
          %p10952 = pneg %p218
        $region78: #{tpu_custom_call.1} parent=47 // pred_check_branch
          %10954 = sbr.rel (%p10952) target = $region80
        $region79: #{tpu_custom_call.1} parent=47 // pred_region
          %s10955 = smul.u32 2, %s36
          %10957 = vsyncadd %s10943, 0
          %s10958 = smul.addr %s37, 64
          %s10959 = smul.addr %s10955, 64
          %s10960 = sadd.s32 %s10958, %s10959
          %s10961 = smul.addr %s10960, 8
          %s10962 = scalar_lea.hbm %s7, %s10961
          %s10963 = sshll.u32 %s10946, 4
          %s10964 = int_to_ptr.vmem [resolvable:$true] %s10963
          %s10965 = sshll.u32 %s10962, 4
          %s10966 = int_to_ptr.hbm [resolvable:$true] %s10965
          %10971 = dma.vmem_to_hbm [thread:$0]  %s10964, 16384, %s10966, %s10943, 256, 256, 16
        $region80: #{tpu_custom_call.1} parent=47 // pred_fallthru
          _
        // Predicated region
        $region81: #{tpu_custom_call.1} parent=47 // pred_check
          %p10972 = pneg %p246
        $region82: #{tpu_custom_call.1} parent=47 // pred_check_branch
          %10974 = sbr.rel (%p10972) target = $region84
        $region83: #{tpu_custom_call.1} parent=47 // pred_region
          %s10975 = smul.u32 2, %s36
          %10977 = vsyncadd %s10948, 0
          %s10978 = smul.addr %s37, 64
          %s10979 = smul.addr %s10975, 64
          %s10980 = sadd.s32 %s10978, %s10979
          %s10981 = smul.addr %s10980, 8
          %s10982 = scalar_lea.hbm %s8, %s10981
          %s10983 = sshll.u32 %s10951, 4
          %s10984 = int_to_ptr.vmem [resolvable:$true] %s10983
          %s10985 = sshll.u32 %s10982, 4
          %s10986 = int_to_ptr.hbm [resolvable:$true] %s10985
          %10991 = dma.vmem_to_hbm [thread:$0]  %s10984, 16384, %s10986, %s10948, 256, 256, 16
        $region84: #{tpu_custom_call.1} parent=47 // pred_fallthru
          _
      $region48: #{tpu_custom_call.1} parent=5 // pred_fallthru
        _
      %p10992 = scmp.le.s32.totalorder 2, %s27
      // Predicated region
      $region85: #{tpu_custom_call.1} parent=5 // pred_check
        %p10993 = pneg %p10992
      $region86: #{tpu_custom_call.1} parent=5 // pred_check_branch
        %10995 = sbr.rel (%p10993) target = $region88
      $region87: #{tpu_custom_call.1} parent=5 // pred_region
        %s10996 = ssub.s32 %s27, 2
        // Predicated region
        $region89: #{tpu_custom_call.1} parent=87 // pred_check
          %p10997 = pneg %p224
        $region90: #{tpu_custom_call.1} parent=87 // pred_check_branch
          %10999 = sbr.rel (%p10997) target = $region92
        $region91: #{tpu_custom_call.1} parent=87 // pred_region
          %s11000 = sand.u32 %s209, 1
          %s11001 = scalar_lea.sflag [#allocation4], %s11000
          %s11002 = sand.u32 %s209, 1
          %s11003 = smul.addr %s11002, 1024
          %s11004 = scalar_lea.vmem [#allocation14], %s11003
          %11006 = dma.done %s11001, 16384
        $region92: #{tpu_custom_call.1} parent=87 // pred_fallthru
          _
        // Predicated region
        $region93: #{tpu_custom_call.1} parent=87 // pred_check
          %p11007 = pneg %p252
        $region94: #{tpu_custom_call.1} parent=87 // pred_check_branch
          %11009 = sbr.rel (%p11007) target = $region96
        $region95: #{tpu_custom_call.1} parent=87 // pred_region
          %s11010 = sand.u32 %s237, 1
          %s11011 = scalar_lea.sflag [#allocation16], %s11010
          %s11012 = sand.u32 %s237, 1
          %s11013 = smul.addr %s11012, 1024
          %s11014 = scalar_lea.vmem [#allocation15], %s11013
          %11016 = dma.done %s11011, 16384
        $region96: #{tpu_custom_call.1} parent=87 // pred_fallthru
          _
      $region88: #{tpu_custom_call.1} parent=5 // pred_fallthru
        _
    $region6: #{tpu_custom_call.1} parent=1 // loop_footer
      %s31 = sadd.s32 1, %s27
    $region7: #{tpu_custom_call.1} parent=1 // loop_footer_branch
      %26 = sbr.rel target = $region3
    $region8: #{tpu_custom_call.1} parent=1 // loop_exit
      _
    %11017 = vsyncpa [#allocation3], 1
    %s11018 = scalar_lea.sflag [#allocation3], 1
    %11019 = vsyncpa %s11018, 1
    %11020 = vsyncpa [#allocation6], 1
    %11021 = vsyncpa [#allocation9], 1
    %11022 = vsyncpa [#allocation12], 1
    %11023 = vsyncpa [#allocation4], 1
    %s11024 = scalar_lea.sflag [#allocation4], 1
    %11025 = vsyncpa %s11024, 1
    %11026 = vsyncpa [#allocation16], 1
    %s11027 = scalar_lea.sflag [#allocation16], 1
    %11028 = vsyncpa %s11027, 1

</llo_original>
